<compile_context>
chip_gen: v6e
topology: v6e:2x2x1
jax: 0.10.0
libtpu: 0.0.40
codegen_flags: <defaults>
</compile_context>

<pallas_src>
import jax
import jax.numpy as jnp
from jax.experimental import pallas as pl
from jax.experimental.pallas import tpu as pltpu

CP = 128   # padded output-channel width (lane-dense)
TM = 256   # flat pixel rows per grid step


def forward(x_nchw, w1, gamma, beta, w2, eps=1e-3):
    N, Cin, H, W = x_nchw.shape
    Cmid = w1.shape[0]
    Cout = w2.shape[0]
    Hp, Wp = H + 2, W + 2
    assert TM > Wp + 1, "tile must cover the 3x3 halo"
    P = N * Hp * Wp                      # flat padded-pixel count
    nb = -(-P // TM)                     # number of real row blocks
    Pp = nb * TM
    # flat offsets of the 9 taps (kh, kw) relative to the output pixel
    offs = tuple((kh - 1) * Wp + (kw - 1) for kh in range(3) for kw in range(3))

    # ---- layout: NCHW -> NHWC -> spatial zero-pad -> flat (pixel, channel) ----
    x_flat = jnp.pad(jnp.transpose(x_nchw, (0, 2, 3, 1)),
                     ((0, 0), (1, 1), (1, 1), (0, 0)))
    x_flat = x_flat.reshape(P, Cin).astype(jnp.bfloat16)
    # conv1 input: TWO zero guard blocks on each side (halo fetch, no clamping)
    x_g = jnp.pad(x_flat, ((2 * TM, 2 * TM + Pp - P), (0, 0)))
    # validity mask (1 on real output pixels, 0 on pad ring / row rounding),
    # stored in the "one guard block each side" layout shared with conv1's output
    msk = jnp.zeros((N, Hp, Wp), jnp.float32).at[:, 1:H + 1, 1:W + 1].set(1.0)
    msk_g = jnp.pad(msk.reshape(P, 1), ((TM, TM + Pp - P), (0, 0)))

    # ---- weights: (Cout, Cin, 3, 3) -> (9*Cin, 128), zero-padded lanes ----
    w1m = jnp.transpose(w1, (2, 3, 1, 0)).reshape(9 * Cin, Cmid)
    w1m = jnp.pad(w1m, ((0, 0), (0, CP - Cmid))).astype(jnp.bfloat16)
    w2m = jnp.pad(jnp.transpose(w2, (2, 3, 1, 0)),
                  ((0, 0), (0, 0), (0, CP - Cmid), (0, CP - Cout)))
    w2m = w2m.reshape(9 * CP, CP).astype(jnp.bfloat16)
    gamma_p = jnp.pad(gamma, (0, CP - Cmid)).astype(jnp.float32)
    beta_p = jnp.pad(beta, (0, CP - Cmid)).astype(jnp.float32)

    # ------------------------------------------------------------------
    # Kernel 1: conv1 (64 -> 128 lanes) + per-block BN statistics
    # ------------------------------------------------------------------
    def conv1_kernel(xp_ref, xc_ref, xn_ref, mk_ref, w_ref, y_ref, st_ref, xcat):
        # stage prev|cur|next pixel-row blocks (f32 staging: unaligned sublane
        # slices of 32-bit data are cheap and safe)
        xcat[pl.ds(0, TM), :] = xp_ref[...].astype(jnp.float32)
        xcat[pl.ds(TM, TM), :] = xc_ref[...].astype(jnp.float32)
        xcat[pl.ds(2 * TM, TM), :] = xn_ref[...].astype(jnp.float32)
        acc = jnp.zeros((TM, CP), jnp.float32)
        for t, d in enumerate(offs):                       # 9 taps, unrolled
            xs = xcat[pl.ds(TM + d, TM), :].astype(jnp.bfloat16)
            wt = w_ref[pl.ds(t * Cin, Cin), :]
            acc = acc + jnp.dot(xs, wt, preferred_element_type=jnp.float32)
        y_ref[...] = acc.astype(jnp.bfloat16)
        ym = acc * mk_ref[...]                             # zero non-valid pixels
        s = jnp.sum(ym, axis=0, keepdims=True)             # (1, CP)
        ss = jnp.sum(ym * acc, axis=0, keepdims=True)      # (1, CP)
        rows = jax.lax.broadcasted_iota(jnp.int32, (8, CP), 0)
        st_ref[...] = jnp.where(rows == 0, s, 0.0) + jnp.where(rows == 1, ss, 0.0)

    y1_g, st = pl.pallas_call(
        conv1_kernel,
        out_shape=(
            jax.ShapeDtypeStruct((Pp + 2 * TM, CP), jnp.bfloat16),  # guarded y1
            jax.ShapeDtypeStruct(((nb + 2) * 8, CP), jnp.float32),  # partial stats
        ),
        grid=(nb + 2,),
        in_specs=[
            pl.BlockSpec((TM, Cin), lambda g: (g, 0)),        # prev rows
            pl.BlockSpec((TM, Cin), lambda g: (g + 1, 0)),    # current rows
            pl.BlockSpec((TM, Cin), lambda g: (g + 2, 0)),    # next rows
            pl.BlockSpec((TM, 1), lambda g: (g, 0)),          # validity mask
            pl.BlockSpec((9 * Cin, CP), lambda g: (0, 0)),    # weights (resident)
        ],
        out_specs=(
            pl.BlockSpec((TM, CP), lambda g: (g, 0)),
            pl.BlockSpec((8, CP), lambda g: (g, 0)),
        ),
        scratch_shapes=[pltpu.VMEM((3 * TM, Cin), jnp.float32)],
        compiler_params=pltpu.CompilerParams(dimension_semantics=("parallel",)),
    )(x_g, x_g, x_g, msk_g, w1m)

    # ---- finalize BN batch statistics (training mode, biased variance) ----
    stv = st.reshape(nb + 2, 8, CP)
    cnt = float(N * H * W)
    mean = jnp.sum(stv[:, 0, :], axis=0) / cnt
    var = jnp.maximum(jnp.sum(stv[:, 1, :], axis=0) / cnt - mean * mean, 0.0)
    inv_std = jax.lax.rsqrt(var + eps)
    bn_scale = (gamma_p * inv_std).reshape(1, CP)
    bn_shift = (beta_p - mean * gamma_p * inv_std).reshape(1, CP)

    # ------------------------------------------------------------------
    # Kernel 2: fused BN-affine + ReLU + pad-mask prologue, then conv2
    # ------------------------------------------------------------------
    def conv2_kernel(yp_ref, yc_ref, yn_ref, mp_ref, mc_ref, mn_ref,
                     sc_ref, sh_ref, w_ref, o_ref, xcat):
        sc = sc_ref[...]
        sh = sh_ref[...]
        for slot, (yr, mr) in enumerate(
                ((yp_ref, mp_ref), (yc_ref, mc_ref), (yn_ref, mn_ref))):
            z = yr[...].astype(jnp.float32) * sc + sh
            xcat[pl.ds(slot * TM, TM), :] = jnp.maximum(z, 0.0) * mr[...]
        acc = jnp.zeros((TM, CP), jnp.float32)
        for t, d in enumerate(offs):                       # 9 taps, unrolled
            xs = xcat[pl.ds(TM + d, TM), :].astype(jnp.bfloat16)
            wt = w_ref[pl.ds(t * CP, CP), :]
            acc = acc + jnp.dot(xs, wt, preferred_element_type=jnp.float32)
        o_ref[...] = acc

    y3 = pl.pallas_call(
        conv2_kernel,
        out_shape=jax.ShapeDtypeStruct((Pp, CP), jnp.float32),
        grid=(nb,),
        in_specs=[
            pl.BlockSpec((TM, CP), lambda m: (m, 0)),         # y1 prev
            pl.BlockSpec((TM, CP), lambda m: (m + 1, 0)),     # y1 current
            pl.BlockSpec((TM, CP), lambda m: (m + 2, 0)),     # y1 next
            pl.BlockSpec((TM, 1), lambda m: (m, 0)),          # mask prev
            pl.BlockSpec((TM, 1), lambda m: (m + 1, 0)),      # mask current
            pl.BlockSpec((TM, 1), lambda m: (m + 2, 0)),      # mask next
            pl.BlockSpec((1, CP), lambda m: (0, 0)),          # BN scale
            pl.BlockSpec((1, CP), lambda m: (0, 0)),          # BN shift
            pl.BlockSpec((9 * CP, CP), lambda m: (0, 0)),     # weights (resident)
        ],
        out_specs=pl.BlockSpec((TM, CP), lambda m: (m, 0)),
        scratch_shapes=[pltpu.VMEM((3 * TM, CP), jnp.float32)],
        compiler_params=pltpu.CompilerParams(dimension_semantics=("parallel",)),
    )(y1_g, y1_g, y1_g, msk_g, msk_g, msk_g, bn_scale, bn_shift, w2m)

    out = y3[:P].reshape(N, Hp, Wp, CP)[:, 1:H + 1, 1:W + 1, :Cout]
    return jnp.transpose(out, (0, 3, 1, 2))                  # back to NCHW


def reference(x, w1, gamma, beta, w2, eps=1e-3):
    """Pure-JAX reference of the PyTorch module's forward (training-mode BN)."""
    y1 = jax.lax.conv_general_dilated(
        x, w1, window_strides=(1, 1), padding=((1, 1), (1, 1)),
        dimension_numbers=("NCHW", "OIHW", "NCHW"))
    mean = jnp.mean(y1, axis=(0, 2, 3), keepdims=True)
    var = jnp.var(y1, axis=(0, 2, 3), keepdims=True)         # biased
    y2 = (y1 - mean) * jax.lax.rsqrt(var + eps)
    y2 = y2 * gamma.reshape(1, -1, 1, 1) + beta.reshape(1, -1, 1, 1)
    y2 = jnp.maximum(y2, 0.0)
    return jax.lax.conv_general_dilated(
        y2, w2, window_strides=(1, 1), padding=((1, 1), (1, 1)),
        dimension_numbers=("NCHW", "OIHW", "NCHW"))


if __name__ == "__main__":
    key = jax.random.PRNGKey(0)
    kx, kw1, kw2 = jax.random.split(key, 3)

    # Small shapes consistent with the module (Cin must be 64).
    N, Cin, H, W = 2, 64, 16, 16
    Cmid, Cout = 96, 96

    x = jax.random.normal(kx, (N, Cin, H, W), dtype=jnp.float32)
    w1 = jax.random.normal(kw1, (Cmid, Cin, 3, 3), dtype=jnp.float32) * 0.05
    w2 = jax.random.normal(kw2, (Cout, Cmid, 3, 3), dtype=jnp.float32) * 0.05
    gamma = jnp.ones((Cmid,), dtype=jnp.float32)   # fresh BatchNorm2d affine
    beta = jnp.zeros((Cmid,), dtype=jnp.float32)

    out = jax.block_until_ready(jax.jit(forward)(x, w1, gamma, beta, w2))
    assert out.shape == (N, Cout, H, W), out.shape
    assert out.dtype == jnp.float32

    ref = jax.block_until_ready(jax.jit(reference)(x, w1, gamma, beta, w2))
    err = float(jnp.max(jnp.abs(out - ref)))
    assert err < 0.2, f"max abs error vs reference too large: {err}"

    print("KERNEL_OK")
</pallas_src>

<mosaic_0001>
module attributes {stable_mosaic.version = 11 : i64} {
  func.func @conv1_kernel(%arg0: i32, %arg1: memref<256x64xbf16, #tpu.memory_space<vmem>>, %arg2: memref<256x64xbf16, #tpu.memory_space<vmem>>, %arg3: memref<256x64xbf16, #tpu.memory_space<vmem>>, %arg4: memref<256x1xf32, #tpu.memory_space<vmem>>, %arg5: memref<576x128xbf16, #tpu.memory_space<vmem>>, %arg6: memref<256x128xbf16, #tpu.memory_space<vmem>>, %arg7: memref<8x128xf32, #tpu.memory_space<vmem>>, %arg8: memref<768x64xf32, #tpu.memory_space<vmem>>) attributes {dimension_semantics = [#tpu.dimension_semantics<parallel>], iteration_bounds = array<i64: 5>, scalar_prefetch = 0 : i64, scratch_operands = 1 : i64, tpu.core_type = #tpu.core_type<tc>, window_params = [{transform_indices = @transform_0, window_bounds = array<i64: 256, 64>}, {transform_indices = @transform_1, window_bounds = array<i64: 256, 64>}, {transform_indices = @transform_2, window_bounds = array<i64: 256, 64>}, {transform_indices = @transform_3, window_bounds = array<i64: 256, 1>}, {pipeline_mode = #tpu.pipeline_mode<synchronous>, transform_indices = @transform_4, window_bounds = array<i64: 576, 128>}, {transform_indices = @transform_5, window_bounds = array<i64: 256, 128>}, {transform_indices = @transform_6, window_bounds = array<i64: 8, 128>}]} {
    %c0 = arith.constant 0 : index
    %c0_0 = arith.constant 0 : index
    %0 = vector.load %arg1[%c0, %c0_0] : memref<256x64xbf16, #tpu.memory_space<vmem>>, vector<256x64xbf16>
    %1 = arith.extf %0 : vector<256x64xbf16> to vector<256x64xf32>
    %c0_1 = arith.constant 0 : index
    %c0_2 = arith.constant 0 : index
    %2 = vector.load %arg8[%c0_1, %c0_2] : memref<768x64xf32, #tpu.memory_space<vmem>>, vector<256x64xf32>
    tpu.vector_store %arg8[%c0_1, %c0_2], %1 {strides = array<i32>} : memref<768x64xf32, #tpu.memory_space<vmem>>, vector<256x64xf32>,
    %c0_3 = arith.constant 0 : index
    %c0_4 = arith.constant 0 : index
    %3 = vector.load %arg2[%c0_3, %c0_4] : memref<256x64xbf16, #tpu.memory_space<vmem>>, vector<256x64xbf16>
    %4 = arith.extf %3 : vector<256x64xbf16> to vector<256x64xf32>
    %c256 = arith.constant 256 : index
    %c0_5 = arith.constant 0 : index
    %5 = vector.load %arg8[%c256, %c0_5] : memref<768x64xf32, #tpu.memory_space<vmem>>, vector<256x64xf32>
    tpu.vector_store %arg8[%c256, %c0_5], %4 {strides = array<i32>} : memref<768x64xf32, #tpu.memory_space<vmem>>, vector<256x64xf32>,
    %c0_6 = arith.constant 0 : index
    %c0_7 = arith.constant 0 : index
    %6 = vector.load %arg3[%c0_6, %c0_7] : memref<256x64xbf16, #tpu.memory_space<vmem>>, vector<256x64xbf16>
    %7 = arith.extf %6 : vector<256x64xbf16> to vector<256x64xf32>
    %c512 = arith.constant 512 : index
    %c0_8 = arith.constant 0 : index
    %8 = vector.load %arg8[%c512, %c0_8] : memref<768x64xf32, #tpu.memory_space<vmem>>, vector<256x64xf32>
    tpu.vector_store %arg8[%c512, %c0_8], %7 {strides = array<i32>} : memref<768x64xf32, #tpu.memory_space<vmem>>, vector<256x64xf32>,
    %cst = arith.constant 0.000000e+00 : f32
    %9 = vector.broadcast %cst : f32 to vector<256x128xf32>
    %c237 = arith.constant 237 : index
    %c0_9 = arith.constant 0 : index
    %10 = vector.load %arg8[%c237, %c0_9] : memref<768x64xf32, #tpu.memory_space<vmem>>, vector<256x64xf32>
    %11 = arith.truncf %10 : vector<256x64xf32> to vector<256x64xbf16>
    %c0_10 = arith.constant 0 : index
    %c0_11 = arith.constant 0 : index
    %12 = vector.load %arg5[%c0_10, %c0_11] : memref<576x128xbf16, #tpu.memory_space<vmem>>, vector<64x128xbf16>
    %cst_12 = arith.constant dense<0.000000e+00> : vector<256x128xf32>
    %13 = tpu.matmul %11, %12, %cst_12 {dimension_numbers = #tpu.dot_dimension_numbers<[1], [0], [0], [1], [0, 0, 1, 1], [], []>} : vector<256x64xbf16>, vector<64x128xbf16>, vector<256x128xf32> -> vector<256x128xf32>
    %14 = arith.addf %9, %13 : vector<256x128xf32>
    %c238 = arith.constant 238 : index
    %c0_13 = arith.constant 0 : index
    %15 = vector.load %arg8[%c238, %c0_13] : memref<768x64xf32, #tpu.memory_space<vmem>>, vector<256x64xf32>
    %16 = arith.truncf %15 : vector<256x64xf32> to vector<256x64xbf16>
    %c64 = arith.constant 64 : index
    %c0_14 = arith.constant 0 : index
    %17 = vector.load %arg5[%c64, %c0_14] : memref<576x128xbf16, #tpu.memory_space<vmem>>, vector<64x128xbf16>
    %cst_15 = arith.constant dense<0.000000e+00> : vector<256x128xf32>
    %18 = tpu.matmul %16, %17, %cst_15 {dimension_numbers = #tpu.dot_dimension_numbers<[1], [0], [0], [1], [0, 0, 1, 1], [], []>} : vector<256x64xbf16>, vector<64x128xbf16>, vector<256x128xf32> -> vector<256x128xf32>
    %19 = arith.addf %14, %18 : vector<256x128xf32>
    %c239 = arith.constant 239 : index
    %c0_16 = arith.constant 0 : index
    %20 = vector.load %arg8[%c239, %c0_16] : memref<768x64xf32, #tpu.memory_space<vmem>>, vector<256x64xf32>
    %21 = arith.truncf %20 : vector<256x64xf32> to vector<256x64xbf16>
    %c128 = arith.constant 128 : index
    %c0_17 = arith.constant 0 : index
    %22 = vector.load %arg5[%c128, %c0_17] : memref<576x128xbf16, #tpu.memory_space<vmem>>, vector<64x128xbf16>
    %cst_18 = arith.constant dense<0.000000e+00> : vector<256x128xf32>
    %23 = tpu.matmul %21, %22, %cst_18 {dimension_numbers = #tpu.dot_dimension_numbers<[1], [0], [0], [1], [0, 0, 1, 1], [], []>} : vector<256x64xbf16>, vector<64x128xbf16>, vector<256x128xf32> -> vector<256x128xf32>
    %24 = arith.addf %19, %23 : vector<256x128xf32>
    %c255 = arith.constant 255 : index
    %c0_19 = arith.constant 0 : index
    %25 = vector.load %arg8[%c255, %c0_19] : memref<768x64xf32, #tpu.memory_space<vmem>>, vector<256x64xf32>
    %26 = arith.truncf %25 : vector<256x64xf32> to vector<256x64xbf16>
    %c192 = arith.constant 192 : index
    %c0_20 = arith.constant 0 : index
    %27 = vector.load %arg5[%c192, %c0_20] : memref<576x128xbf16, #tpu.memory_space<vmem>>, vector<64x128xbf16>
    %cst_21 = arith.constant dense<0.000000e+00> : vector<256x128xf32>
    %28 = tpu.matmul %26, %27, %cst_21 {dimension_numbers = #tpu.dot_dimension_numbers<[1], [0], [0], [1], [0, 0, 1, 1], [], []>} : vector<256x64xbf16>, vector<64x128xbf16>, vector<256x128xf32> -> vector<256x128xf32>
    %29 = arith.addf %24, %28 : vector<256x128xf32>
    %c256_22 = arith.constant 256 : index
    %c0_23 = arith.constant 0 : index
    %30 = vector.load %arg8[%c256_22, %c0_23] : memref<768x64xf32, #tpu.memory_space<vmem>>, vector<256x64xf32>
    %31 = arith.truncf %30 : vector<256x64xf32> to vector<256x64xbf16>
    %c256_24 = arith.constant 256 : index
    %c0_25 = arith.constant 0 : index
    %32 = vector.load %arg5[%c256_24, %c0_25] : memref<576x128xbf16, #tpu.memory_space<vmem>>, vector<64x128xbf16>
    %cst_26 = arith.constant dense<0.000000e+00> : vector<256x128xf32>
    %33 = tpu.matmul %31, %32, %cst_26 {dimension_numbers = #tpu.dot_dimension_numbers<[1], [0], [0], [1], [0, 0, 1, 1], [], []>} : vector<256x64xbf16>, vector<64x128xbf16>, vector<256x128xf32> -> vector<256x128xf32>
    %34 = arith.addf %29, %33 : vector<256x128xf32>
    %c257 = arith.constant 257 : index
    %c0_27 = arith.constant 0 : index
    %35 = vector.load %arg8[%c257, %c0_27] : memref<768x64xf32, #tpu.memory_space<vmem>>, vector<256x64xf32>
    %36 = arith.truncf %35 : vector<256x64xf32> to vector<256x64xbf16>
    %c320 = arith.constant 320 : index
    %c0_28 = arith.constant 0 : index
    %37 = vector.load %arg5[%c320, %c0_28] : memref<576x128xbf16, #tpu.memory_space<vmem>>, vector<64x128xbf16>
    %cst_29 = arith.constant dense<0.000000e+00> : vector<256x128xf32>
    %38 = tpu.matmul %36, %37, %cst_29 {dimension_numbers = #tpu.dot_dimension_numbers<[1], [0], [0], [1], [0, 0, 1, 1], [], []>} : vector<256x64xbf16>, vector<64x128xbf16>, vector<256x128xf32> -> vector<256x128xf32>
    %39 = arith.addf %34, %38 : vector<256x128xf32>
    %c273 = arith.constant 273 : index
    %c0_30 = arith.constant 0 : index
    %40 = vector.load %arg8[%c273, %c0_30] : memref<768x64xf32, #tpu.memory_space<vmem>>, vector<256x64xf32>
    %41 = arith.truncf %40 : vector<256x64xf32> to vector<256x64xbf16>
    %c384 = arith.constant 384 : index
    %c0_31 = arith.constant 0 : index
    %42 = vector.load %arg5[%c384, %c0_31] : memref<576x128xbf16, #tpu.memory_space<vmem>>, vector<64x128xbf16>
    %cst_32 = arith.constant dense<0.000000e+00> : vector<256x128xf32>
    %43 = tpu.matmul %41, %42, %cst_32 {dimension_numbers = #tpu.dot_dimension_numbers<[1], [0], [0], [1], [0, 0, 1, 1], [], []>} : vector<256x64xbf16>, vector<64x128xbf16>, vector<256x128xf32> -> vector<256x128xf32>
    %44 = arith.addf %39, %43 : vector<256x128xf32>
    %c274 = arith.constant 274 : index
    %c0_33 = arith.constant 0 : index
    %45 = vector.load %arg8[%c274, %c0_33] : memref<768x64xf32, #tpu.memory_space<vmem>>, vector<256x64xf32>
    %46 = arith.truncf %45 : vector<256x64xf32> to vector<256x64xbf16>
    %c448 = arith.constant 448 : index
    %c0_34 = arith.constant 0 : index
    %47 = vector.load %arg5[%c448, %c0_34] : memref<576x128xbf16, #tpu.memory_space<vmem>>, vector<64x128xbf16>
    %cst_35 = arith.constant dense<0.000000e+00> : vector<256x128xf32>
    %48 = tpu.matmul %46, %47, %cst_35 {dimension_numbers = #tpu.dot_dimension_numbers<[1], [0], [0], [1], [0, 0, 1, 1], [], []>} : vector<256x64xbf16>, vector<64x128xbf16>, vector<256x128xf32> -> vector<256x128xf32>
    %49 = arith.addf %44, %48 : vector<256x128xf32>
    %c275 = arith.constant 275 : index
    %c0_36 = arith.constant 0 : index
    %50 = vector.load %arg8[%c275, %c0_36] : memref<768x64xf32, #tpu.memory_space<vmem>>, vector<256x64xf32>
    %51 = arith.truncf %50 : vector<256x64xf32> to vector<256x64xbf16>
    %c512_37 = arith.constant 512 : index
    %c0_38 = arith.constant 0 : index
    %52 = vector.load %arg5[%c512_37, %c0_38] : memref<576x128xbf16, #tpu.memory_space<vmem>>, vector<64x128xbf16>
    %cst_39 = arith.constant dense<0.000000e+00> : vector<256x128xf32>
    %53 = tpu.matmul %51, %52, %cst_39 {dimension_numbers = #tpu.dot_dimension_numbers<[1], [0], [0], [1], [0, 0, 1, 1], [], []>} : vector<256x64xbf16>, vector<64x128xbf16>, vector<256x128xf32> -> vector<256x128xf32>
    %54 = arith.addf %49, %53 : vector<256x128xf32>
    %55 = arith.truncf %54 : vector<256x128xf32> to vector<256x128xbf16>
    %c0_40 = arith.constant 0 : index
    %c0_41 = arith.constant 0 : index
    %56 = vector.load %arg6[%c0_40, %c0_41] : memref<256x128xbf16, #tpu.memory_space<vmem>>, vector<256x128xbf16>
    tpu.vector_store %arg6[%c0_40, %c0_41], %55 {strides = array<i32>} : memref<256x128xbf16, #tpu.memory_space<vmem>>, vector<256x128xbf16>,
    %c0_42 = arith.constant 0 : index
    %c0_43 = arith.constant 0 : index
    %57 = vector.load %arg4[%c0_42, %c0_43] : memref<256x1xf32, #tpu.memory_space<vmem>>, vector<256x1xf32>
    %58 = vector.broadcast %57 : vector<256x1xf32> to vector<256x128xf32>
    %59 = arith.mulf %54, %58 : vector<256x128xf32>
    %cst_44 = arith.constant dense<0.000000e+00> : vector<128xf32>
    %60 = vector.multi_reduction <add>, %59, %cst_44 [0] : vector<256x128xf32> to vector<128xf32>
    %61 = vector.shape_cast %60 : vector<128xf32> to vector<1x128xf32>
    %62 = arith.mulf %59, %54 : vector<256x128xf32>
    %cst_45 = arith.constant dense<0.000000e+00> : vector<128xf32>
    %63 = vector.multi_reduction <add>, %62, %cst_45 [0] : vector<256x128xf32> to vector<128xf32>
    %64 = vector.shape_cast %63 : vector<128xf32> to vector<1x128xf32>
    %65 = tpu.iota {dimensions = array<i32: 0>} : vector<8x128xi32>
    %c0_i32 = arith.constant 0 : i32
    %66 = vector.broadcast %c0_i32 : i32 to vector<8x128xi32>
    %67 = arith.cmpi eq, %65, %66 : vector<8x128xi32>
    %cst_46 = arith.constant 0.000000e+00 : f32
    %68 = vector.shape_cast %61 : vector<1x128xf32> to vector<1x128xf32>
    %69 = vector.broadcast %68 : vector<1x128xf32> to vector<8x128xf32>
    %70 = vector.broadcast %cst_46 : f32 to vector<8x128xf32>
    %71 = arith.select %67, %69, %70 : vector<8x128xi1>, vector<8x128xf32>
    %c1_i32 = arith.constant 1 : i32
    %72 = vector.broadcast %c1_i32 : i32 to vector<8x128xi32>
    %73 = arith.cmpi eq, %65, %72 : vector<8x128xi32>
    %cst_47 = arith.constant 0.000000e+00 : f32
    %74 = vector.shape_cast %64 : vector<1x128xf32> to vector<1x128xf32>
    %75 = vector.broadcast %74 : vector<1x128xf32> to vector<8x128xf32>
    %76 = vector.broadcast %cst_47 : f32 to vector<8x128xf32>
    %77 = arith.select %73, %75, %76 : vector<8x128xi1>, vector<8x128xf32>
    %78 = arith.addf %71, %77 : vector<8x128xf32>
    %c0_48 = arith.constant 0 : index
    %c0_49 = arith.constant 0 : index
    %79 = vector.load %arg7[%c0_48, %c0_49] : memref<8x128xf32, #tpu.memory_space<vmem>>, vector<8x128xf32>
    tpu.vector_store %arg7[%c0_48, %c0_49], %78 {strides = array<i32>} : memref<8x128xf32, #tpu.memory_space<vmem>>, vector<8x128xf32>,
    return
  }
  func.func @transform_0(%arg0: i32) -> (i32, i32) {
    %c0_i32 = arith.constant 0 : i32
    %c0_i32_0 = arith.constant 0 : i32
    return %arg0, %c0_i32 : i32, i32
  }
  func.func @transform_1(%arg0: i32) -> (i32, i32) {
    %c1_i32 = arith.constant 1 : i32
    %0 = arith.addi %arg0, %c1_i32 : i32
    %c0_i32 = arith.constant 0 : i32
    %c0_i32_0 = arith.constant 0 : i32
    return %0, %c0_i32 : i32, i32
  }
  func.func @transform_2(%arg0: i32) -> (i32, i32) {
    %c2_i32 = arith.constant 2 : i32
    %0 = arith.addi %arg0, %c2_i32 : i32
    %c0_i32 = arith.constant 0 : i32
    %c0_i32_0 = arith.constant 0 : i32
    return %0, %c0_i32 : i32, i32
  }
  func.func @transform_3(%arg0: i32) -> (i32, i32) {
    %c0_i32 = arith.constant 0 : i32
    %c0_i32_0 = arith.constant 0 : i32
    return %arg0, %c0_i32 : i32, i32
  }
  func.func @transform_4(%arg0: i32) -> (i32, i32) {
    %c0_i32 = arith.constant 0 : i32
    %c0_i32_0 = arith.constant 0 : i32
    %c0_i32_1 = arith.constant 0 : i32
    return %c0_i32, %c0_i32_0 : i32, i32
  }
  func.func @transform_5(%arg0: i32) -> (i32, i32) {
    %c0_i32 = arith.constant 0 : i32
    %c0_i32_0 = arith.constant 0 : i32
    return %arg0, %c0_i32 : i32, i32
  }
  func.func @transform_6(%arg0: i32) -> (i32, i32) {
    %c0_i32 = arith.constant 0 : i32
    %c0_i32_0 = arith.constant 0 : i32
    return %arg0, %c0_i32 : i32, i32
  }
}

module attributes {stable_mosaic.version = 11 : i64} {
  func.func @conv2_kernel(%arg0: i32, %arg1: memref<256x128xbf16, #tpu.memory_space<vmem>>, %arg2: memref<256x128xbf16, #tpu.memory_space<vmem>>, %arg3: memref<256x128xbf16, #tpu.memory_space<vmem>>, %arg4: memref<256x1xf32, #tpu.memory_space<vmem>>, %arg5: memref<256x1xf32, #tpu.memory_space<vmem>>, %arg6: memref<256x1xf32, #tpu.memory_space<vmem>>, %arg7: memref<1x128xf32, #tpu.memory_space<vmem>>, %arg8: memref<1x128xf32, #tpu.memory_space<vmem>>, %arg9: memref<1152x128xbf16, #tpu.memory_space<vmem>>, %arg10: memref<256x128xf32, #tpu.memory_space<vmem>>, %arg11: memref<768x128xf32, #tpu.memory_space<vmem>>) attributes {dimension_semantics = [#tpu.dimension_semantics<parallel>], iteration_bounds = array<i64: 3>, scalar_prefetch = 0 : i64, scratch_operands = 1 : i64, tpu.core_type = #tpu.core_type<tc>, window_params = [{transform_indices = @transform_0, window_bounds = array<i64: 256, 128>}, {transform_indices = @transform_1, window_bounds = array<i64: 256, 128>}, {transform_indices = @transform_2, window_bounds = array<i64: 256, 128>}, {transform_indices = @transform_3, window_bounds = array<i64: 256, 1>}, {transform_indices = @transform_4, window_bounds = array<i64: 256, 1>}, {transform_indices = @transform_5, window_bounds = array<i64: 256, 1>}, {pipeline_mode = #tpu.pipeline_mode<synchronous>, transform_indices = @transform_6, window_bounds = array<i64: 1, 128>}, {pipeline_mode = #tpu.pipeline_mode<synchronous>, transform_indices = @transform_7, window_bounds = array<i64: 1, 128>}, {pipeline_mode = #tpu.pipeline_mode<synchronous>, transform_indices = @transform_8, window_bounds = array<i64: 1152, 128>}, {transform_indices = @transform_9, window_bounds = array<i64: 256, 128>}]} {
    %c0 = arith.constant 0 : index
    %c0_0 = arith.constant 0 : index
    %0 = vector.load %arg7[%c0, %c0_0] : memref<1x128xf32, #tpu.memory_space<vmem>>, vector<1x128xf32>
    %c0_1 = arith.constant 0 : index
    %c0_2 = arith.constant 0 : index
    %1 = vector.load %arg8[%c0_1, %c0_2] : memref<1x128xf32, #tpu.memory_space<vmem>>, vector<1x128xf32>
    %c0_3 = arith.constant 0 : index
    %c0_4 = arith.constant 0 : index
    %2 = vector.load %arg1[%c0_3, %c0_4] : memref<256x128xbf16, #tpu.memory_space<vmem>>, vector<256x128xbf16>
    %3 = arith.extf %2 : vector<256x128xbf16> to vector<256x128xf32>
    %4 = vector.broadcast %0 : vector<1x128xf32> to vector<256x128xf32>
    %5 = arith.mulf %3, %4 : vector<256x128xf32>
    %6 = vector.broadcast %1 : vector<1x128xf32> to vector<256x128xf32>
    %7 = arith.addf %5, %6 : vector<256x128xf32>
    %cst = arith.constant 0.000000e+00 : f32
    %8 = vector.broadcast %cst : f32 to vector<256x128xf32>
    %9 = arith.maximumf %7, %8 : vector<256x128xf32>
    %c0_5 = arith.constant 0 : index
    %c0_6 = arith.constant 0 : index
    %10 = vector.load %arg4[%c0_5, %c0_6] : memref<256x1xf32, #tpu.memory_space<vmem>>, vector<256x1xf32>
    %11 = vector.broadcast %10 : vector<256x1xf32> to vector<256x128xf32>
    %12 = arith.mulf %9, %11 : vector<256x128xf32>
    %c0_7 = arith.constant 0 : index
    %c0_8 = arith.constant 0 : index
    %13 = vector.load %arg11[%c0_7, %c0_8] : memref<768x128xf32, #tpu.memory_space<vmem>>, vector<256x128xf32>
    tpu.vector_store %arg11[%c0_7, %c0_8], %12 {strides = array<i32>} : memref<768x128xf32, #tpu.memory_space<vmem>>, vector<256x128xf32>,
    %c0_9 = arith.constant 0 : index
    %c0_10 = arith.constant 0 : index
    %14 = vector.load %arg2[%c0_9, %c0_10] : memref<256x128xbf16, #tpu.memory_space<vmem>>, vector<256x128xbf16>
    %15 = arith.extf %14 : vector<256x128xbf16> to vector<256x128xf32>
    %16 = vector.broadcast %0 : vector<1x128xf32> to vector<256x128xf32>
    %17 = arith.mulf %15, %16 : vector<256x128xf32>
    %18 = vector.broadcast %1 : vector<1x128xf32> to vector<256x128xf32>
    %19 = arith.addf %17, %18 : vector<256x128xf32>
    %cst_11 = arith.constant 0.000000e+00 : f32
    %20 = vector.broadcast %cst_11 : f32 to vector<256x128xf32>
    %21 = arith.maximumf %19, %20 : vector<256x128xf32>
    %c0_12 = arith.constant 0 : index
    %c0_13 = arith.constant 0 : index
    %22 = vector.load %arg5[%c0_12, %c0_13] : memref<256x1xf32, #tpu.memory_space<vmem>>, vector<256x1xf32>
    %23 = vector.broadcast %22 : vector<256x1xf32> to vector<256x128xf32>
    %24 = arith.mulf %21, %23 : vector<256x128xf32>
    %c256 = arith.constant 256 : index
    %c0_14 = arith.constant 0 : index
    %25 = vector.load %arg11[%c256, %c0_14] : memref<768x128xf32, #tpu.memory_space<vmem>>, vector<256x128xf32>
    tpu.vector_store %arg11[%c256, %c0_14], %24 {strides = array<i32>} : memref<768x128xf32, #tpu.memory_space<vmem>>, vector<256x128xf32>,
    %c0_15 = arith.constant 0 : index
    %c0_16 = arith.constant 0 : index
    %26 = vector.load %arg3[%c0_15, %c0_16] : memref<256x128xbf16, #tpu.memory_space<vmem>>, vector<256x128xbf16>
    %27 = arith.extf %26 : vector<256x128xbf16> to vector<256x128xf32>
    %28 = vector.broadcast %0 : vector<1x128xf32> to vector<256x128xf32>
    %29 = arith.mulf %27, %28 : vector<256x128xf32>
    %30 = vector.broadcast %1 : vector<1x128xf32> to vector<256x128xf32>
    %31 = arith.addf %29, %30 : vector<256x128xf32>
    %cst_17 = arith.constant 0.000000e+00 : f32
    %32 = vector.broadcast %cst_17 : f32 to vector<256x128xf32>
    %33 = arith.maximumf %31, %32 : vector<256x128xf32>
    %c0_18 = arith.constant 0 : index
    %c0_19 = arith.constant 0 : index
    %34 = vector.load %arg6[%c0_18, %c0_19] : memref<256x1xf32, #tpu.memory_space<vmem>>, vector<256x1xf32>
    %35 = vector.broadcast %34 : vector<256x1xf32> to vector<256x128xf32>
    %36 = arith.mulf %33, %35 : vector<256x128xf32>
    %c512 = arith.constant 512 : index
    %c0_20 = arith.constant 0 : index
    %37 = vector.load %arg11[%c512, %c0_20] : memref<768x128xf32, #tpu.memory_space<vmem>>, vector<256x128xf32>
    tpu.vector_store %arg11[%c512, %c0_20], %36 {strides = array<i32>} : memref<768x128xf32, #tpu.memory_space<vmem>>, vector<256x128xf32>,
    %cst_21 = arith.constant 0.000000e+00 : f32
    %38 = vector.broadcast %cst_21 : f32 to vector<256x128xf32>
    %c237 = arith.constant 237 : index
    %c0_22 = arith.constant 0 : index
    %39 = vector.load %arg11[%c237, %c0_22] : memref<768x128xf32, #tpu.memory_space<vmem>>, vector<256x128xf32>
    %40 = arith.truncf %39 : vector<256x128xf32> to vector<256x128xbf16>
    %c0_23 = arith.constant 0 : index
    %c0_24 = arith.constant 0 : index
    %41 = vector.load %arg9[%c0_23, %c0_24] : memref<1152x128xbf16, #tpu.memory_space<vmem>>, vector<128x128xbf16>
    %cst_25 = arith.constant dense<0.000000e+00> : vector<256x128xf32>
    %42 = tpu.matmul %40, %41, %cst_25 {dimension_numbers = #tpu.dot_dimension_numbers<[1], [0], [0], [1], [0, 0, 1, 1], [], []>} : vector<256x128xbf16>, vector<128x128xbf16>, vector<256x128xf32> -> vector<256x128xf32>
    %43 = arith.addf %38, %42 : vector<256x128xf32>
    %c238 = arith.constant 238 : index
    %c0_26 = arith.constant 0 : index
    %44 = vector.load %arg11[%c238, %c0_26] : memref<768x128xf32, #tpu.memory_space<vmem>>, vector<256x128xf32>
    %45 = arith.truncf %44 : vector<256x128xf32> to vector<256x128xbf16>
    %c128 = arith.constant 128 : index
    %c0_27 = arith.constant 0 : index
    %46 = vector.load %arg9[%c128, %c0_27] : memref<1152x128xbf16, #tpu.memory_space<vmem>>, vector<128x128xbf16>
    %cst_28 = arith.constant dense<0.000000e+00> : vector<256x128xf32>
    %47 = tpu.matmul %45, %46, %cst_28 {dimension_numbers = #tpu.dot_dimension_numbers<[1], [0], [0], [1], [0, 0, 1, 1], [], []>} : vector<256x128xbf16>, vector<128x128xbf16>, vector<256x128xf32> -> vector<256x128xf32>
    %48 = arith.addf %43, %47 : vector<256x128xf32>
    %c239 = arith.constant 239 : index
    %c0_29 = arith.constant 0 : index
    %49 = vector.load %arg11[%c239, %c0_29] : memref<768x128xf32, #tpu.memory_space<vmem>>, vector<256x128xf32>
    %50 = arith.truncf %49 : vector<256x128xf32> to vector<256x128xbf16>
    %c256_30 = arith.constant 256 : index
    %c0_31 = arith.constant 0 : index
    %51 = vector.load %arg9[%c256_30, %c0_31] : memref<1152x128xbf16, #tpu.memory_space<vmem>>, vector<128x128xbf16>
    %cst_32 = arith.constant dense<0.000000e+00> : vector<256x128xf32>
    %52 = tpu.matmul %50, %51, %cst_32 {dimension_numbers = #tpu.dot_dimension_numbers<[1], [0], [0], [1], [0, 0, 1, 1], [], []>} : vector<256x128xbf16>, vector<128x128xbf16>, vector<256x128xf32> -> vector<256x128xf32>
    %53 = arith.addf %48, %52 : vector<256x128xf32>
    %c255 = arith.constant 255 : index
    %c0_33 = arith.constant 0 : index
    %54 = vector.load %arg11[%c255, %c0_33] : memref<768x128xf32, #tpu.memory_space<vmem>>, vector<256x128xf32>
    %55 = arith.truncf %54 : vector<256x128xf32> to vector<256x128xbf16>
    %c384 = arith.constant 384 : index
    %c0_34 = arith.constant 0 : index
    %56 = vector.load %arg9[%c384, %c0_34] : memref<1152x128xbf16, #tpu.memory_space<vmem>>, vector<128x128xbf16>
    %cst_35 = arith.constant dense<0.000000e+00> : vector<256x128xf32>
    %57 = tpu.matmul %55, %56, %cst_35 {dimension_numbers = #tpu.dot_dimension_numbers<[1], [0], [0], [1], [0, 0, 1, 1], [], []>} : vector<256x128xbf16>, vector<128x128xbf16>, vector<256x128xf32> -> vector<256x128xf32>
    %58 = arith.addf %53, %57 : vector<256x128xf32>
    %c256_36 = arith.constant 256 : index
    %c0_37 = arith.constant 0 : index
    %59 = vector.load %arg11[%c256_36, %c0_37] : memref<768x128xf32, #tpu.memory_space<vmem>>, vector<256x128xf32>
    %60 = arith.truncf %59 : vector<256x128xf32> to vector<256x128xbf16>
    %c512_38 = arith.constant 512 : index
    %c0_39 = arith.constant 0 : index
    %61 = vector.load %arg9[%c512_38, %c0_39] : memref<1152x128xbf16, #tpu.memory_space<vmem>>, vector<128x128xbf16>
    %cst_40 = arith.constant dense<0.000000e+00> : vector<256x128xf32>
    %62 = tpu.matmul %60, %61, %cst_40 {dimension_numbers = #tpu.dot_dimension_numbers<[1], [0], [0], [1], [0, 0, 1, 1], [], []>} : vector<256x128xbf16>, vector<128x128xbf16>, vector<256x128xf32> -> vector<256x128xf32>
    %63 = arith.addf %58, %62 : vector<256x128xf32>
    %c257 = arith.constant 257 : index
    %c0_41 = arith.constant 0 : index
    %64 = vector.load %arg11[%c257, %c0_41] : memref<768x128xf32, #tpu.memory_space<vmem>>, vector<256x128xf32>
    %65 = arith.truncf %64 : vector<256x128xf32> to vector<256x128xbf16>
    %c640 = arith.constant 640 : index
    %c0_42 = arith.constant 0 : index
    %66 = vector.load %arg9[%c640, %c0_42] : memref<1152x128xbf16, #tpu.memory_space<vmem>>, vector<128x128xbf16>
    %cst_43 = arith.constant dense<0.000000e+00> : vector<256x128xf32>
    %67 = tpu.matmul %65, %66, %cst_43 {dimension_numbers = #tpu.dot_dimension_numbers<[1], [0], [0], [1], [0, 0, 1, 1], [], []>} : vector<256x128xbf16>, vector<128x128xbf16>, vector<256x128xf32> -> vector<256x128xf32>
    %68 = arith.addf %63, %67 : vector<256x128xf32>
    %c273 = arith.constant 273 : index
    %c0_44 = arith.constant 0 : index
    %69 = vector.load %arg11[%c273, %c0_44] : memref<768x128xf32, #tpu.memory_space<vmem>>, vector<256x128xf32>
    %70 = arith.truncf %69 : vector<256x128xf32> to vector<256x128xbf16>
    %c768 = arith.constant 768 : index
    %c0_45 = arith.constant 0 : index
    %71 = vector.load %arg9[%c768, %c0_45] : memref<1152x128xbf16, #tpu.memory_space<vmem>>, vector<128x128xbf16>
    %cst_46 = arith.constant dense<0.000000e+00> : vector<256x128xf32>
    %72 = tpu.matmul %70, %71, %cst_46 {dimension_numbers = #tpu.dot_dimension_numbers<[1], [0], [0], [1], [0, 0, 1, 1], [], []>} : vector<256x128xbf16>, vector<128x128xbf16>, vector<256x128xf32> -> vector<256x128xf32>
    %73 = arith.addf %68, %72 : vector<256x128xf32>
    %c274 = arith.constant 274 : index
    %c0_47 = arith.constant 0 : index
    %74 = vector.load %arg11[%c274, %c0_47] : memref<768x128xf32, #tpu.memory_space<vmem>>, vector<256x128xf32>
    %75 = arith.truncf %74 : vector<256x128xf32> to vector<256x128xbf16>
    %c896 = arith.constant 896 : index
    %c0_48 = arith.constant 0 : index
    %76 = vector.load %arg9[%c896, %c0_48] : memref<1152x128xbf16, #tpu.memory_space<vmem>>, vector<128x128xbf16>
    %cst_49 = arith.constant dense<0.000000e+00> : vector<256x128xf32>
    %77 = tpu.matmul %75, %76, %cst_49 {dimension_numbers = #tpu.dot_dimension_numbers<[1], [0], [0], [1], [0, 0, 1, 1], [], []>} : vector<256x128xbf16>, vector<128x128xbf16>, vector<256x128xf32> -> vector<256x128xf32>
    %78 = arith.addf %73, %77 : vector<256x128xf32>
    %c275 = arith.constant 275 : index
    %c0_50 = arith.constant 0 : index
    %79 = vector.load %arg11[%c275, %c0_50] : memref<768x128xf32, #tpu.memory_space<vmem>>, vector<256x128xf32>
    %80 = arith.truncf %79 : vector<256x128xf32> to vector<256x128xbf16>
    %c1024 = arith.constant 1024 : index
    %c0_51 = arith.constant 0 : index
    %81 = vector.load %arg9[%c1024, %c0_51] : memref<1152x128xbf16, #tpu.memory_space<vmem>>, vector<128x128xbf16>
    %cst_52 = arith.constant dense<0.000000e+00> : vector<256x128xf32>
    %82 = tpu.matmul %80, %81, %cst_52 {dimension_numbers = #tpu.dot_dimension_numbers<[1], [0], [0], [1], [0, 0, 1, 1], [], []>} : vector<256x128xbf16>, vector<128x128xbf16>, vector<256x128xf32> -> vector<256x128xf32>
    %83 = arith.addf %78, %82 : vector<256x128xf32>
    %c0_53 = arith.constant 0 : index
    %c0_54 = arith.constant 0 : index
    %84 = vector.load %arg10[%c0_53, %c0_54] : memref<256x128xf32, #tpu.memory_space<vmem>>, vector<256x128xf32>
    tpu.vector_store %arg10[%c0_53, %c0_54], %83 {strides = array<i32>} : memref<256x128xf32, #tpu.memory_space<vmem>>, vector<256x128xf32>,
    return
  }
  func.func @transform_0(%arg0: i32) -> (i32, i32) {
    %c0_i32 = arith.constant 0 : i32
    %c0_i32_0 = arith.constant 0 : i32
    return %arg0, %c0_i32 : i32, i32
  }
  func.func @transform_1(%arg0: i32) -> (i32, i32) {
    %c1_i32 = arith.constant 1 : i32
    %0 = arith.addi %arg0, %c1_i32 : i32
    %c0_i32 = arith.constant 0 : i32
    %c0_i32_0 = arith.constant 0 : i32
    return %0, %c0_i32 : i32, i32
  }
  func.func @transform_2(%arg0: i32) -> (i32, i32) {
    %c2_i32 = arith.constant 2 : i32
    %0 = arith.addi %arg0, %c2_i32 : i32
    %c0_i32 = arith.constant 0 : i32
    %c0_i32_0 = arith.constant 0 : i32
    return %0, %c0_i32 : i32, i32
  }
  func.func @transform_3(%arg0: i32) -> (i32, i32) {
    %c0_i32 = arith.constant 0 : i32
    %c0_i32_0 = arith.constant 0 : i32
    return %arg0, %c0_i32 : i32, i32
  }
  func.func @transform_4(%arg0: i32) -> (i32, i32) {
    %c1_i32 = arith.constant 1 : i32
    %0 = arith.addi %arg0, %c1_i32 : i32
    %c0_i32 = arith.constant 0 : i32
    %c0_i32_0 = arith.constant 0 : i32
    return %0, %c0_i32 : i32, i32
  }
  func.func @transform_5(%arg0: i32) -> (i32, i32) {
    %c2_i32 = arith.constant 2 : i32
    %0 = arith.addi %arg0, %c2_i32 : i32
    %c0_i32 = arith.constant 0 : i32
    %c0_i32_0 = arith.constant 0 : i32
    return %0, %c0_i32 : i32, i32
  }
  func.func @transform_6(%arg0: i32) -> (i32, i32) {
    %c0_i32 = arith.constant 0 : i32
    %c0_i32_0 = arith.constant 0 : i32
    %c0_i32_1 = arith.constant 0 : i32
    return %c0_i32, %c0_i32_0 : i32, i32
  }
  func.func @transform_7(%arg0: i32) -> (i32, i32) {
    %c0_i32 = arith.constant 0 : i32
    %c0_i32_0 = arith.constant 0 : i32
    %c0_i32_1 = arith.constant 0 : i32
    return %c0_i32, %c0_i32_0 : i32, i32
  }
  func.func @transform_8(%arg0: i32) -> (i32, i32) {
    %c0_i32 = arith.constant 0 : i32
    %c0_i32_0 = arith.constant 0 : i32
    %c0_i32_1 = arith.constant 0 : i32
    return %c0_i32, %c0_i32_0 : i32, i32
  }
  func.func @transform_9(%arg0: i32) -> (i32, i32) {
    %c0_i32 = arith.constant 0 : i32
    %c0_i32_0 = arith.constant 0 : i32
    return %arg0, %c0_i32 : i32, i32
  }
}

</mosaic_0001>

<llo_original>
// kernel: forward.2
$region0: #{forward.2}
  #allocation0 [shape = 'u32[]', space=smem, size = 0x4, offset = 0x4, fixed_abs, tag = 'smem constant byte address 0x4 - core index']
  #allocation1 [shape = 'u32[144,128]{1,0:T(1,128)}', space=vmem, size = 0x12000, scoped, tag = 'internal scratch']
  #allocation2 [shape = 'f32[768,64]{1,0:T(8,128)}', space=vmem, size = 0x60000, scoped, tag = 'scratch operand']
  %s0 = inlined_call_operand.vmem [shape: bf16[1792,64], index: 0, kind: input, shape index: {}, may-alias: {0,1,2}]
  %s1 = inlined_call_operand.vmem [shape: bf16[1792,64], index: 1, kind: input, shape index: {}, may-alias: {0,1,2}]
  %s2 = inlined_call_operand.vmem [shape: bf16[1792,64], index: 2, kind: input, shape index: {}, may-alias: {0,1,2}]
  %s3 = inlined_call_operand.vmem [shape: f32[1280,1], index: 3, kind: input, shape index: {}]
  %s4 = inlined_call_operand.vmem [shape: bf16[576,128], index: 4, kind: input, shape index: {}]
  %s5 = inlined_call_operand.vmem [shape: bf16[1280,128], index: 5, kind: output, shape index: {0}]
  %s6 = inlined_call_operand.vmem [shape: f32[40,128], index: 6, kind: output, shape index: {1}]
  %7 = xla_tuple %s5, %s6
  %s8 = sld [smem:[#allocation0]]
  $region61: #{forward.2} parent=0
    _
  %s10 = ssub.s32 1, %s8
  %s11 = scalar_select 0, %s10, %s8
  loop: start=0, step=1, limit=7
  $region2: #{forward.2} parent=0 // loop_pre_header
    _
  $region3: #{forward.2} parent=0 // loop_header
    %s13 = sphi 0, %s17
    %p14 = scmp.ge.s32.totalorder %s13, 7
    %s23 = sphi 0, %s25
    %s26 = sphi 0, %s23
    %s27 = sphi 0, %s26
    %s43 = sphi 0, %s27
    %s51 = sphi 0, %s53
    %s54 = sphi 0, %s51
    %s55 = sphi 0, %s54
    %s71 = sphi 0, %s55
    %s79 = sphi 0, %s81
    %s82 = sphi 0, %s79
    %s83 = sphi 0, %s82
    %s99 = sphi 0, %s83
    %s105 = sphi 0, %s107
    %s108 = sphi 0, %s105
    %s109 = sphi 0, %s108
    %s125 = sphi 0, %s109
    %s129 = sphi 0, %s129
    %s131 = sphi 0, %s129
    %s132 = sphi 0, %s131
    %s146 = sphi 0, %s132
    %s152 = sphi 0, %s154
    %s155 = sphi 0, %s152
    %s156 = sphi 0, %s155
    %s172 = sphi 0, %s156
    %s178 = sphi 0, %s180
    %s181 = sphi 0, %s178
    %s182 = sphi 0, %s181
    %s198 = sphi 0, %s182
  $region4: #{forward.2} parent=0 // loop_header_branch
    %16 = sbr.rel (%p14) target = $region8
  $region5: #{forward.2} parent=0 // loop_body
    %s18 = ssub.s32 %s13, 1
    %s19 = ssub.s32 %s13, 2
    %s20 = sadd.s32 %s13, 1
    %s21 = ssub.s32 %s13, %s20
    %p22 = scmp.eq.s32.totalorder %s21, 0
    %s24 = sadd.s32 %s23, 1
    %s25 = scalar_select %p22, %s23, %s24
    %p28 = pneg %p22
    %p29 = scmp.eq.s32.totalorder %s13, 4
    %p30 = por %p28, %p29
    %p31 = scmp.ne.s32.totalorder %s23, %s26
    %p32 = scmp.eq.s32.totalorder %s13, 0
    %p33 = por %p31, %p32
    %p34 = scmp.ne.s32.totalorder %s23, %s26
    %p35 = scmp.eq.s32.totalorder %s18, 4
    %p36 = por %p34, %p35
    %p37 = scmp.ne.s32.totalorder %s26, %s27
    %p38 = scmp.eq.s32.totalorder %s18, 0
    %p39 = por %p37, %p38
    %p40 = scmp.ne.s32.totalorder %s26, %s27
    %p41 = scmp.eq.s32.totalorder %s19, 4
    %p42 = por %p40, %p41
    %p44 = scmp.ne.s32.totalorder %s27, %s43
    %p45 = scmp.eq.s32.totalorder %s19, 0
    %p46 = por %p44, %p45
    %s47 = sadd.s32 %s13, 1
    %s48 = sadd.s32 %s20, 1
    %s49 = ssub.s32 %s47, %s48
    %p50 = scmp.eq.s32.totalorder %s49, 0
    %s52 = sadd.s32 %s51, 1
    %s53 = scalar_select %p50, %s51, %s52
    %p56 = pneg %p50
    %p57 = scmp.eq.s32.totalorder %s13, 4
    %p58 = por %p56, %p57
    %p59 = scmp.ne.s32.totalorder %s51, %s54
    %p60 = scmp.eq.s32.totalorder %s13, 0
    %p61 = por %p59, %p60
    %p62 = scmp.ne.s32.totalorder %s51, %s54
    %p63 = scmp.eq.s32.totalorder %s18, 4
    %p64 = por %p62, %p63
    %p65 = scmp.ne.s32.totalorder %s54, %s55
    %p66 = scmp.eq.s32.totalorder %s18, 0
    %p67 = por %p65, %p66
    %p68 = scmp.ne.s32.totalorder %s54, %s55
    %p69 = scmp.eq.s32.totalorder %s19, 4
    %p70 = por %p68, %p69
    %p72 = scmp.ne.s32.totalorder %s55, %s71
    %p73 = scmp.eq.s32.totalorder %s19, 0
    %p74 = por %p72, %p73
    %s75 = sadd.s32 %s13, 2
    %s76 = sadd.s32 %s20, 2
    %s77 = ssub.s32 %s75, %s76
    %p78 = scmp.eq.s32.totalorder %s77, 0
    %s80 = sadd.s32 %s79, 1
    %s81 = scalar_select %p78, %s79, %s80
    %p84 = pneg %p78
    %p85 = scmp.eq.s32.totalorder %s13, 4
    %p86 = por %p84, %p85
    %p87 = scmp.ne.s32.totalorder %s79, %s82
    %p88 = scmp.eq.s32.totalorder %s13, 0
    %p89 = por %p87, %p88
    %p90 = scmp.ne.s32.totalorder %s79, %s82
    %p91 = scmp.eq.s32.totalorder %s18, 4
    %p92 = por %p90, %p91
    %p93 = scmp.ne.s32.totalorder %s82, %s83
    %p94 = scmp.eq.s32.totalorder %s18, 0
    %p95 = por %p93, %p94
    %p96 = scmp.ne.s32.totalorder %s82, %s83
    %p97 = scmp.eq.s32.totalorder %s19, 4
    %p98 = por %p96, %p97
    %p100 = scmp.ne.s32.totalorder %s83, %s99
    %p101 = scmp.eq.s32.totalorder %s19, 0
    %p102 = por %p100, %p101
    %s103 = ssub.s32 %s13, %s20
    %p104 = scmp.eq.s32.totalorder %s103, 0
    %s106 = sadd.s32 %s105, 1
    %s107 = scalar_select %p104, %s105, %s106
    %p110 = pneg %p104
    %p111 = scmp.eq.s32.totalorder %s13, 4
    %p112 = por %p110, %p111
    %p113 = scmp.ne.s32.totalorder %s105, %s108
    %p114 = scmp.eq.s32.totalorder %s13, 0
    %p115 = por %p113, %p114
    %p116 = scmp.ne.s32.totalorder %s105, %s108
    %p117 = scmp.eq.s32.totalorder %s18, 4
    %p118 = por %p116, %p117
    %p119 = scmp.ne.s32.totalorder %s108, %s109
    %p120 = scmp.eq.s32.totalorder %s18, 0
    %p121 = por %p119, %p120
    %p122 = scmp.ne.s32.totalorder %s108, %s109
    %p123 = scmp.eq.s32.totalorder %s19, 4
    %p124 = por %p122, %p123
    %p126 = scmp.ne.s32.totalorder %s109, %s125
    %p127 = scmp.eq.s32.totalorder %s19, 0
    %p128 = por %p126, %p127
    %s130 = sadd.s32 %s129, 1
    %p133 = scmp.eq.s32.totalorder %s13, 4
    %p134 = scmp.ne.s32.totalorder %s129, %s131
    %p135 = scmp.eq.s32.totalorder %s13, 0
    %p136 = por %p134, %p135
    %p137 = scmp.ne.s32.totalorder %s129, %s131
    %p138 = scmp.eq.s32.totalorder %s18, 4
    %p139 = por %p137, %p138
    %p140 = scmp.ne.s32.totalorder %s131, %s132
    %p141 = scmp.eq.s32.totalorder %s18, 0
    %p142 = por %p140, %p141
    %p143 = scmp.ne.s32.totalorder %s131, %s132
    %p144 = scmp.eq.s32.totalorder %s19, 4
    %p145 = por %p143, %p144
    %p147 = scmp.ne.s32.totalorder %s132, %s146
    %p148 = scmp.eq.s32.totalorder %s19, 0
    %p149 = por %p147, %p148
    %s150 = ssub.s32 %s13, %s20
    %p151 = scmp.eq.s32.totalorder %s150, 0
    %s153 = sadd.s32 %s152, 1
    %s154 = scalar_select %p151, %s152, %s153
    %p157 = pneg %p151
    %p158 = scmp.eq.s32.totalorder %s13, 4
    %p159 = por %p157, %p158
    %p160 = scmp.ne.s32.totalorder %s152, %s155
    %p161 = scmp.eq.s32.totalorder %s13, 0
    %p162 = por %p160, %p161
    %p163 = scmp.ne.s32.totalorder %s152, %s155
    %p164 = scmp.eq.s32.totalorder %s18, 4
    %p165 = por %p163, %p164
    %p166 = scmp.ne.s32.totalorder %s155, %s156
    %p167 = scmp.eq.s32.totalorder %s18, 0
    %p168 = por %p166, %p167
    %p169 = scmp.ne.s32.totalorder %s155, %s156
    %p170 = scmp.eq.s32.totalorder %s19, 4
    %p171 = por %p169, %p170
    %p173 = scmp.ne.s32.totalorder %s156, %s172
    %p174 = scmp.eq.s32.totalorder %s19, 0
    %p175 = por %p173, %p174
    %s176 = ssub.s32 %s13, %s20
    %p177 = scmp.eq.s32.totalorder %s176, 0
    %s179 = sadd.s32 %s178, 1
    %s180 = scalar_select %p177, %s178, %s179
    %p183 = pneg %p177
    %p184 = scmp.eq.s32.totalorder %s13, 4
    %p185 = por %p183, %p184
    %p186 = scmp.ne.s32.totalorder %s178, %s181
    %p187 = scmp.eq.s32.totalorder %s13, 0
    %p188 = por %p186, %p187
    %p189 = scmp.ne.s32.totalorder %s178, %s181
    %p190 = scmp.eq.s32.totalorder %s18, 4
    %p191 = por %p189, %p190
    %p192 = scmp.ne.s32.totalorder %s181, %s182
    %p193 = scmp.eq.s32.totalorder %s18, 0
    %p194 = por %p192, %p193
    %p195 = scmp.ne.s32.totalorder %s181, %s182
    %p196 = scmp.eq.s32.totalorder %s19, 4
    %p197 = por %p195, %p196
    %p199 = scmp.ne.s32.totalorder %s182, %s198
    %p200 = scmp.eq.s32.totalorder %s19, 0
    %p201 = por %p199, %p200
    %p202 = scmp.le.s32.totalorder 1, %s13
    %p203 = scmp.lt.s32.totalorder %s13, 6
    %p204 = pnand %p202, %p203
    %p205 = pneg %p204
    // Predicated region
    $region9: #{forward.2} parent=5 // pred_check
      _
    $region10: #{forward.2} parent=5 // pred_check_branch
      %207 = sbr.rel (%p204) target = $region12
    $region11: #{forward.2} parent=5 // pred_region
      %s208 = ssub.s32 %s13, 1
      // Predicated region
      $region13: #{forward.2} parent=11 // pred_check
        %p209 = pneg %p142
      $region14: #{forward.2} parent=11 // pred_check_branch
        %211 = sbr.rel (%p209) target = $region16
      $region15: #{forward.2} parent=11 // pred_region
        _
      $region16: #{forward.2} parent=11 // pred_fallthru
        _
    $region12: #{forward.2} parent=5 // pred_fallthru
      _
    %p212 = scmp.lt.s32.totalorder %s13, 5
    // Predicated region
    $region17: #{forward.2} parent=5 // pred_check
      %p213 = pneg %p212
    $region18: #{forward.2} parent=5 // pred_check_branch
      %215 = sbr.rel (%p213) target = $region20
    $region19: #{forward.2} parent=5 // pred_region
      // Predicated region
      $region21: #{forward.2} parent=19 // pred_check
        %p216 = pneg %p33
      $region22: #{forward.2} parent=19 // pred_check_branch
        %218 = sbr.rel (%p216) target = $region24
      $region23: #{forward.2} parent=19 // pred_region
        %s219 = smul.u32 32, %s13
        %p220 = scmp.lt.s32.totalorder %s219, 223
        %s221 = scalar_select %p220, %s219, 223
        %s222 = smul.addr %s221, 4
        %s223 = scalar_lea.vmem %s0, %s222
        %s224 = smul.u32 32, %s13
      $region24: #{forward.2} parent=19 // pred_fallthru
        _
      // Predicated region
      $region25: #{forward.2} parent=19 // pred_check
        %p225 = pneg %p61
      $region26: #{forward.2} parent=19 // pred_check_branch
        %227 = sbr.rel (%p225) target = $region28
      $region27: #{forward.2} parent=19 // pred_region
        %s228 = sadd.s32 %s13, 1
        %s229 = smul.u32 32, %s228
        %p230 = scmp.lt.s32.totalorder %s229, 223
        %s231 = scalar_select %p230, %s229, 223
        %s232 = smul.addr %s231, 4
        %s233 = scalar_lea.vmem %s1, %s232
        %s234 = sadd.s32 %s13, 1
        %s235 = smul.u32 32, %s234
      $region28: #{forward.2} parent=19 // pred_fallthru
        _
      // Predicated region
      $region29: #{forward.2} parent=19 // pred_check
        %p236 = pneg %p89
      $region30: #{forward.2} parent=19 // pred_check_branch
        %238 = sbr.rel (%p236) target = $region32
      $region31: #{forward.2} parent=19 // pred_region
        %s239 = sadd.s32 %s13, 2
        %s240 = smul.u32 32, %s239
        %p241 = scmp.lt.s32.totalorder %s240, 223
        %s242 = scalar_select %p241, %s240, 223
        %s243 = smul.addr %s242, 4
        %s244 = scalar_lea.vmem %s2, %s243
        %s245 = sadd.s32 %s13, 2
        %s246 = smul.u32 32, %s245
      $region32: #{forward.2} parent=19 // pred_fallthru
        _
      // Predicated region
      $region33: #{forward.2} parent=19 // pred_check
        %p247 = pneg %p115
      $region34: #{forward.2} parent=19 // pred_check_branch
        %249 = sbr.rel (%p247) target = $region36
      $region35: #{forward.2} parent=19 // pred_region
        %s250 = smul.u32 32, %s13
        %p251 = scmp.lt.s32.totalorder %s250, 159
        %s252 = scalar_select %p251, %s250, 159
        %s253 = smul.addr %s252, 8
        %s254 = scalar_lea.vmem %s3, %s253
        %s255 = smul.u32 32, %s13
      $region36: #{forward.2} parent=19 // pred_fallthru
        _
    $region20: #{forward.2} parent=5 // pred_fallthru
      _
    %p256 = scmp.le.s32.totalorder 1, %s13
    %p257 = scmp.lt.s32.totalorder %s13, 6
    %p258 = pnand %p256, %p257
    %p259 = pneg %p258
    // Predicated region
    $region37: #{forward.2} parent=5 // pred_check
      _
    $region38: #{forward.2} parent=5 // pred_check_branch
      %261 = sbr.rel (%p258) target = $region40
    $region39: #{forward.2} parent=5 // pred_region
      %s262 = ssub.s32 %s13, 1
      %s263 = smul.u32 32, %s18
      %p264 = scmp.lt.s32.totalorder %s263, 223
      %s265 = scalar_select %p264, %s263, 223
      %s266 = smul.addr %s265, 4
      %s267 = scalar_lea.vmem %s0, %s266
      %p268 = pneg %p39
      %p269 = pneg %p36
      %s270 = sadd.s32 %s18, 1
      %s271 = smul.u32 32, %s270
      %p272 = scmp.lt.s32.totalorder %s271, 223
      %s273 = scalar_select %p272, %s271, 223
      %s274 = smul.addr %s273, 4
      %s275 = scalar_lea.vmem %s1, %s274
      %p276 = pneg %p67
      %p277 = pneg %p64
      %s278 = sadd.s32 %s18, 2
      %s279 = smul.u32 32, %s278
      %p280 = scmp.lt.s32.totalorder %s279, 223
      %s281 = scalar_select %p280, %s279, 223
      %s282 = smul.addr %s281, 4
      %s283 = scalar_lea.vmem %s2, %s282
      %p284 = pneg %p95
      %p285 = pneg %p92
      %s286 = smul.u32 32, %s18
      %p287 = scmp.lt.s32.totalorder %s286, 159
      %s288 = scalar_select %p287, %s286, 159
      %s289 = smul.addr %s288, 8
      %s290 = scalar_lea.vmem %s3, %s289
      %p291 = pneg %p121
      %p292 = pneg %p118
      %p293 = pneg %p142
      %p294 = pneg %p139
      %p295 = pneg %p168
      %p296 = pneg %p165
      %s297 = smul.u32 32, %s18
      %p298 = scmp.lt.s32.totalorder %s297, 159
      %s299 = scalar_select %p298, %s297, 159
      %s300 = smul.addr %s299, 4
      %s301 = scalar_lea.vmem %s5, %s300
      %p302 = pneg %p194
      %p303 = pneg %p191
      %p304 = scmp.lt.s32.totalorder %s18, 4
      %s305 = scalar_select %p304, %s18, 4
      %s306 = smul.addr %s305, 8
      %s307 = scalar_lea.vmem %s6, %s306
      %s308 = smul.u32 32, %s18
      %p309 = scmp.lt.s32.totalorder %s308, 223
      %s310 = scalar_select %p309, %s308, 223
      %s311 = smul.addr %s310, 4
      %s312 = scalar_lea.vmem %s0, %s311
      %s313 = smul.u32 32, %s18
      %s314 = sadd.s32 %s18, 1
      %s315 = smul.u32 32, %s314
      %p316 = scmp.lt.s32.totalorder %s315, 223
      %s317 = scalar_select %p316, %s315, 223
      %s318 = smul.addr %s317, 4
      %s319 = scalar_lea.vmem %s1, %s318
      %s320 = sadd.s32 %s18, 1
      %s321 = smul.u32 32, %s320
      %s322 = sadd.s32 %s18, 2
      %s323 = smul.u32 32, %s322
      %p324 = scmp.lt.s32.totalorder %s323, 223
      %s325 = scalar_select %p324, %s323, 223
      %s326 = smul.addr %s325, 4
      %s327 = scalar_lea.vmem %s2, %s326
      %s328 = sadd.s32 %s18, 2
      %s329 = smul.u32 32, %s328
      %s330 = smul.u32 32, %s18
      %p331 = scmp.lt.s32.totalorder %s330, 159
      %s332 = scalar_select %p331, %s330, 159
      %s333 = smul.addr %s332, 8
      %s334 = scalar_lea.vmem %s3, %s333
      %s335 = smul.u32 32, %s18
      %s336 = smul.u32 32, %s18
      %p337 = scmp.lt.s32.totalorder %s336, 159
      %s338 = scalar_select %p337, %s336, 159
      %s339 = smul.addr %s338, 4
      %s340 = scalar_lea.vmem %s5, %s339
      %s341 = smul.u32 32, %s18
      %p342 = scmp.lt.s32.totalorder %s18, 4
      %s343 = scalar_select %p342, %s18, 4
      %s344 = smul.addr %s343, 8
      %s345 = scalar_lea.vmem %s6, %s344
      %v347 = vld [vmem:[%s312] sm:$0xf]
      %v348 = vld [vmem:[%s312 + $0x4] sm:$0xf]
      %v349 = vld [vmem:[%s312 + $0x8] sm:$0xf]
      %v350 = vld [vmem:[%s312 + $0xc] sm:$0xf]
      %v351 = vld [vmem:[%s312 + $0x10] sm:$0xf]
      %v352 = vld [vmem:[%s312 + $0x14] sm:$0xf]
      %v353 = vld [vmem:[%s312 + $0x18] sm:$0xf]
      %v354 = vld [vmem:[%s312 + $0x1c] sm:$0xf]
      %v355 = vld [vmem:[%s312 + $0x20] sm:$0xf]
      %v356 = vld [vmem:[%s312 + $0x24] sm:$0xf]
      %v357 = vld [vmem:[%s312 + $0x28] sm:$0xf]
      %v358 = vld [vmem:[%s312 + $0x2c] sm:$0xf]
      %v359 = vld [vmem:[%s312 + $0x30] sm:$0xf]
      %v360 = vld [vmem:[%s312 + $0x34] sm:$0xf]
      %v361 = vld [vmem:[%s312 + $0x38] sm:$0xf]
      %v362 = vld [vmem:[%s312 + $0x3c] sm:$0xf]
      %v363 = vld [vmem:[%s312 + $0x40] sm:$0xf]
      %v364 = vld [vmem:[%s312 + $0x44] sm:$0xf]
      %v365 = vld [vmem:[%s312 + $0x48] sm:$0xf]
      %v366 = vld [vmem:[%s312 + $0x4c] sm:$0xf]
      %v367 = vld [vmem:[%s312 + $0x50] sm:$0xf]
      %v368 = vld [vmem:[%s312 + $0x54] sm:$0xf]
      %v369 = vld [vmem:[%s312 + $0x58] sm:$0xf]
      %v370 = vld [vmem:[%s312 + $0x5c] sm:$0xf]
      %v371 = vld [vmem:[%s312 + $0x60] sm:$0xf]
      %v372 = vld [vmem:[%s312 + $0x64] sm:$0xf]
      %v373 = vld [vmem:[%s312 + $0x68] sm:$0xf]
      %v374 = vld [vmem:[%s312 + $0x6c] sm:$0xf]
      %v375 = vld [vmem:[%s312 + $0x70] sm:$0xf]
      %v376 = vld [vmem:[%s312 + $0x74] sm:$0xf]
      %v377 = vld [vmem:[%s312 + $0x78] sm:$0xf]
      %v378 = vld [vmem:[%s312 + $0x7c] sm:$0xf]
      %v379 = vunpack.c.l.bf16 %v347
      %v380 = vunpack.c.l.bf16 %v348
      %v381 = vunpack.c.l.bf16 %v349
      %v382 = vunpack.c.l.bf16 %v350
      %v383 = vunpack.c.l.bf16 %v351
      %v384 = vunpack.c.l.bf16 %v352
      %v385 = vunpack.c.l.bf16 %v353
      %v386 = vunpack.c.l.bf16 %v354
      %v387 = vunpack.c.l.bf16 %v355
      %v388 = vunpack.c.l.bf16 %v356
      %v389 = vunpack.c.l.bf16 %v357
      %v390 = vunpack.c.l.bf16 %v358
      %v391 = vunpack.c.l.bf16 %v359
      %v392 = vunpack.c.l.bf16 %v360
      %v393 = vunpack.c.l.bf16 %v361
      %v394 = vunpack.c.l.bf16 %v362
      %v395 = vunpack.c.l.bf16 %v363
      %v396 = vunpack.c.l.bf16 %v364
      %v397 = vunpack.c.l.bf16 %v365
      %v398 = vunpack.c.l.bf16 %v366
      %v399 = vunpack.c.l.bf16 %v367
      %v400 = vunpack.c.l.bf16 %v368
      %v401 = vunpack.c.l.bf16 %v369
      %v402 = vunpack.c.l.bf16 %v370
      %v403 = vunpack.c.l.bf16 %v371
      %v404 = vunpack.c.l.bf16 %v372
      %v405 = vunpack.c.l.bf16 %v373
      %v406 = vunpack.c.l.bf16 %v374
      %v407 = vunpack.c.l.bf16 %v375
      %v408 = vunpack.c.l.bf16 %v376
      %v409 = vunpack.c.l.bf16 %v377
      %v410 = vunpack.c.l.bf16 %v378
      %vm411 = vcmask 523264
      %412 = vst.msk [vmem:[#allocation2] sm:$0xff] %vm411, %v379
      %413 = vst.msk [vmem:[#allocation2 + $0x8] sm:$0xff] %vm411, %v380
      %414 = vst.msk [vmem:[#allocation2 + $0x10] sm:$0xff] %vm411, %v381
      %415 = vst.msk [vmem:[#allocation2 + $0x18] sm:$0xff] %vm411, %v382
      %416 = vst.msk [vmem:[#allocation2 + $0x20] sm:$0xff] %vm411, %v383
      %417 = vst.msk [vmem:[#allocation2 + $0x28] sm:$0xff] %vm411, %v384
      %418 = vst.msk [vmem:[#allocation2 + $0x30] sm:$0xff] %vm411, %v385
      %419 = vst.msk [vmem:[#allocation2 + $0x38] sm:$0xff] %vm411, %v386
      %420 = vst.msk [vmem:[#allocation2 + $0x40] sm:$0xff] %vm411, %v387
      %421 = vst.msk [vmem:[#allocation2 + $0x48] sm:$0xff] %vm411, %v388
      %422 = vst.msk [vmem:[#allocation2 + $0x50] sm:$0xff] %vm411, %v389
      %423 = vst.msk [vmem:[#allocation2 + $0x58] sm:$0xff] %vm411, %v390
      %424 = vst.msk [vmem:[#allocation2 + $0x60] sm:$0xff] %vm411, %v391
      %425 = vst.msk [vmem:[#allocation2 + $0x68] sm:$0xff] %vm411, %v392
      %426 = vst.msk [vmem:[#allocation2 + $0x70] sm:$0xff] %vm411, %v393
      %427 = vst.msk [vmem:[#allocation2 + $0x78] sm:$0xff] %vm411, %v394
      %428 = vst.msk [vmem:[#allocation2 + $0x80] sm:$0xff] %vm411, %v395
      %429 = vst.msk [vmem:[#allocation2 + $0x88] sm:$0xff] %vm411, %v396
      %430 = vst.msk [vmem:[#allocation2 + $0x90] sm:$0xff] %vm411, %v397
      %431 = vst.msk [vmem:[#allocation2 + $0x98] sm:$0xff] %vm411, %v398
      %432 = vst.msk [vmem:[#allocation2 + $0xa0] sm:$0xff] %vm411, %v399
      %433 = vst.msk [vmem:[#allocation2 + $0xa8] sm:$0xff] %vm411, %v400
      %434 = vst.msk [vmem:[#allocation2 + $0xb0] sm:$0xff] %vm411, %v401
      %435 = vst.msk [vmem:[#allocation2 + $0xb8] sm:$0xff] %vm411, %v402
      %436 = vst.msk [vmem:[#allocation2 + $0xc0] sm:$0xff] %vm411, %v403
      %437 = vst.msk [vmem:[#allocation2 + $0xc8] sm:$0xff] %vm411, %v404
      %438 = vst.msk [vmem:[#allocation2 + $0xd0] sm:$0xff] %vm411, %v405
      %439 = vst.msk [vmem:[#allocation2 + $0xd8] sm:$0xff] %vm411, %v406
      %440 = vst.msk [vmem:[#allocation2 + $0xe0] sm:$0xff] %vm411, %v407
      %441 = vst.msk [vmem:[#allocation2 + $0xe8] sm:$0xff] %vm411, %v408
      %442 = vst.msk [vmem:[#allocation2 + $0xf0] sm:$0xff] %vm411, %v409
      %443 = vst.msk [vmem:[#allocation2 + $0xf8] sm:$0xff] %vm411, %v410
      %v444 = vld [vmem:[%s319] sm:$0xf]
      %v445 = vld [vmem:[%s319 + $0x4] sm:$0xf]
      %v446 = vld [vmem:[%s319 + $0x8] sm:$0xf]
      %v447 = vld [vmem:[%s319 + $0xc] sm:$0xf]
      %v448 = vld [vmem:[%s319 + $0x10] sm:$0xf]
      %v449 = vld [vmem:[%s319 + $0x14] sm:$0xf]
      %v450 = vld [vmem:[%s319 + $0x18] sm:$0xf]
      %v451 = vld [vmem:[%s319 + $0x1c] sm:$0xf]
      %v452 = vld [vmem:[%s319 + $0x20] sm:$0xf]
      %v453 = vld [vmem:[%s319 + $0x24] sm:$0xf]
      %v454 = vld [vmem:[%s319 + $0x28] sm:$0xf]
      %v455 = vld [vmem:[%s319 + $0x2c] sm:$0xf]
      %v456 = vld [vmem:[%s319 + $0x30] sm:$0xf]
      %v457 = vld [vmem:[%s319 + $0x34] sm:$0xf]
      %v458 = vld [vmem:[%s319 + $0x38] sm:$0xf]
      %v459 = vld [vmem:[%s319 + $0x3c] sm:$0xf]
      %v460 = vld [vmem:[%s319 + $0x40] sm:$0xf]
      %v461 = vld [vmem:[%s319 + $0x44] sm:$0xf]
      %v462 = vld [vmem:[%s319 + $0x48] sm:$0xf]
      %v463 = vld [vmem:[%s319 + $0x4c] sm:$0xf]
      %v464 = vld [vmem:[%s319 + $0x50] sm:$0xf]
      %v465 = vld [vmem:[%s319 + $0x54] sm:$0xf]
      %v466 = vld [vmem:[%s319 + $0x58] sm:$0xf]
      %v467 = vld [vmem:[%s319 + $0x5c] sm:$0xf]
      %v468 = vld [vmem:[%s319 + $0x60] sm:$0xf]
      %v469 = vld [vmem:[%s319 + $0x64] sm:$0xf]
      %v470 = vld [vmem:[%s319 + $0x68] sm:$0xf]
      %v471 = vld [vmem:[%s319 + $0x6c] sm:$0xf]
      %v472 = vld [vmem:[%s319 + $0x70] sm:$0xf]
      %v473 = vld [vmem:[%s319 + $0x74] sm:$0xf]
      %v474 = vld [vmem:[%s319 + $0x78] sm:$0xf]
      %v475 = vld [vmem:[%s319 + $0x7c] sm:$0xf]
      %v476 = vunpack.c.l.bf16 %v444
      %v477 = vunpack.c.l.bf16 %v445
      %v478 = vunpack.c.l.bf16 %v446
      %v479 = vunpack.c.l.bf16 %v447
      %v480 = vunpack.c.l.bf16 %v448
      %v481 = vunpack.c.l.bf16 %v449
      %v482 = vunpack.c.l.bf16 %v450
      %v483 = vunpack.c.l.bf16 %v451
      %v484 = vunpack.c.l.bf16 %v452
      %v485 = vunpack.c.l.bf16 %v453
      %v486 = vunpack.c.l.bf16 %v454
      %v487 = vunpack.c.l.bf16 %v455
      %v488 = vunpack.c.l.bf16 %v456
      %v489 = vunpack.c.l.bf16 %v457
      %v490 = vunpack.c.l.bf16 %v458
      %v491 = vunpack.c.l.bf16 %v459
      %v492 = vunpack.c.l.bf16 %v460
      %v493 = vunpack.c.l.bf16 %v461
      %v494 = vunpack.c.l.bf16 %v462
      %v495 = vunpack.c.l.bf16 %v463
      %v496 = vunpack.c.l.bf16 %v464
      %v497 = vunpack.c.l.bf16 %v465
      %v498 = vunpack.c.l.bf16 %v466
      %v499 = vunpack.c.l.bf16 %v467
      %v500 = vunpack.c.l.bf16 %v468
      %v501 = vunpack.c.l.bf16 %v469
      %v502 = vunpack.c.l.bf16 %v470
      %v503 = vunpack.c.l.bf16 %v471
      %v504 = vunpack.c.l.bf16 %v472
      %v505 = vunpack.c.l.bf16 %v473
      %v506 = vunpack.c.l.bf16 %v474
      %v507 = vunpack.c.l.bf16 %v475
      %508 = vst.msk [vmem:[#allocation2 + $0x100] sm:$0xff] %vm411, %v476
      %509 = vst.msk [vmem:[#allocation2 + $0x108] sm:$0xff] %vm411, %v477
      %510 = vst.msk [vmem:[#allocation2 + $0x110] sm:$0xff] %vm411, %v478
      %511 = vst.msk [vmem:[#allocation2 + $0x118] sm:$0xff] %vm411, %v479
      %512 = vst.msk [vmem:[#allocation2 + $0x120] sm:$0xff] %vm411, %v480
      %513 = vst.msk [vmem:[#allocation2 + $0x128] sm:$0xff] %vm411, %v481
      %514 = vst.msk [vmem:[#allocation2 + $0x130] sm:$0xff] %vm411, %v482
      %515 = vst.msk [vmem:[#allocation2 + $0x138] sm:$0xff] %vm411, %v483
      %516 = vst.msk [vmem:[#allocation2 + $0x140] sm:$0xff] %vm411, %v484
      %517 = vst.msk [vmem:[#allocation2 + $0x148] sm:$0xff] %vm411, %v485
      %518 = vst.msk [vmem:[#allocation2 + $0x150] sm:$0xff] %vm411, %v486
      %519 = vst.msk [vmem:[#allocation2 + $0x158] sm:$0xff] %vm411, %v487
      %520 = vst.msk [vmem:[#allocation2 + $0x160] sm:$0xff] %vm411, %v488
      %521 = vst.msk [vmem:[#allocation2 + $0x168] sm:$0xff] %vm411, %v489
      %522 = vst.msk [vmem:[#allocation2 + $0x170] sm:$0xff] %vm411, %v490
      %523 = vst.msk [vmem:[#allocation2 + $0x178] sm:$0xff] %vm411, %v491
      %524 = vst.msk [vmem:[#allocation2 + $0x180] sm:$0xff] %vm411, %v492
      %525 = vst.msk [vmem:[#allocation2 + $0x188] sm:$0xff] %vm411, %v493
      %526 = vst.msk [vmem:[#allocation2 + $0x190] sm:$0xff] %vm411, %v494
      %527 = vst.msk [vmem:[#allocation2 + $0x198] sm:$0xff] %vm411, %v495
      %528 = vst.msk [vmem:[#allocation2 + $0x1a0] sm:$0xff] %vm411, %v496
      %529 = vst.msk [vmem:[#allocation2 + $0x1a8] sm:$0xff] %vm411, %v497
      %530 = vst.msk [vmem:[#allocation2 + $0x1b0] sm:$0xff] %vm411, %v498
      %531 = vst.msk [vmem:[#allocation2 + $0x1b8] sm:$0xff] %vm411, %v499
      %532 = vst.msk [vmem:[#allocation2 + $0x1c0] sm:$0xff] %vm411, %v500
      %533 = vst.msk [vmem:[#allocation2 + $0x1c8] sm:$0xff] %vm411, %v501
      %534 = vst.msk [vmem:[#allocation2 + $0x1d0] sm:$0xff] %vm411, %v502
      %535 = vst.msk [vmem:[#allocation2 + $0x1d8] sm:$0xff] %vm411, %v503
      %536 = vst.msk [vmem:[#allocation2 + $0x1e0] sm:$0xff] %vm411, %v504
      %537 = vst.msk [vmem:[#allocation2 + $0x1e8] sm:$0xff] %vm411, %v505
      %538 = vst.msk [vmem:[#allocation2 + $0x1f0] sm:$0xff] %vm411, %v506
      %539 = vst.msk [vmem:[#allocation2 + $0x1f8] sm:$0xff] %vm411, %v507
      %v540 = vld [vmem:[%s327] sm:$0xf]
      %v541 = vld [vmem:[%s327 + $0x4] sm:$0xf]
      %v542 = vld [vmem:[%s327 + $0x8] sm:$0xf]
      %v543 = vld [vmem:[%s327 + $0xc] sm:$0xf]
      %v544 = vld [vmem:[%s327 + $0x10] sm:$0xf]
      %v545 = vld [vmem:[%s327 + $0x14] sm:$0xf]
      %v546 = vld [vmem:[%s327 + $0x18] sm:$0xf]
      %v547 = vld [vmem:[%s327 + $0x1c] sm:$0xf]
      %v548 = vld [vmem:[%s327 + $0x20] sm:$0xf]
      %v549 = vld [vmem:[%s327 + $0x24] sm:$0xf]
      %v550 = vld [vmem:[%s327 + $0x28] sm:$0xf]
      %v551 = vld [vmem:[%s327 + $0x2c] sm:$0xf]
      %v552 = vld [vmem:[%s327 + $0x30] sm:$0xf]
      %v553 = vld [vmem:[%s327 + $0x34] sm:$0xf]
      %v554 = vld [vmem:[%s327 + $0x38] sm:$0xf]
      %v555 = vld [vmem:[%s327 + $0x3c] sm:$0xf]
      %v556 = vld [vmem:[%s327 + $0x40] sm:$0xf]
      %v557 = vld [vmem:[%s327 + $0x44] sm:$0xf]
      %v558 = vld [vmem:[%s327 + $0x48] sm:$0xf]
      %v559 = vld [vmem:[%s327 + $0x4c] sm:$0xf]
      %v560 = vld [vmem:[%s327 + $0x50] sm:$0xf]
      %v561 = vld [vmem:[%s327 + $0x54] sm:$0xf]
      %v562 = vld [vmem:[%s327 + $0x58] sm:$0xf]
      %v563 = vld [vmem:[%s327 + $0x5c] sm:$0xf]
      %v564 = vld [vmem:[%s327 + $0x60] sm:$0xf]
      %v565 = vld [vmem:[%s327 + $0x64] sm:$0xf]
      %v566 = vld [vmem:[%s327 + $0x68] sm:$0xf]
      %v567 = vld [vmem:[%s327 + $0x6c] sm:$0xf]
      %v568 = vld [vmem:[%s327 + $0x70] sm:$0xf]
      %v569 = vld [vmem:[%s327 + $0x74] sm:$0xf]
      %v570 = vld [vmem:[%s327 + $0x78] sm:$0xf]
      %v571 = vld [vmem:[%s327 + $0x7c] sm:$0xf]
      %v572 = vunpack.c.l.bf16 %v540
      %v573 = vunpack.c.l.bf16 %v541
      %v574 = vunpack.c.l.bf16 %v542
      %v575 = vunpack.c.l.bf16 %v543
      %v576 = vunpack.c.l.bf16 %v544
      %v577 = vunpack.c.l.bf16 %v545
      %v578 = vunpack.c.l.bf16 %v546
      %v579 = vunpack.c.l.bf16 %v547
      %v580 = vunpack.c.l.bf16 %v548
      %v581 = vunpack.c.l.bf16 %v549
      %v582 = vunpack.c.l.bf16 %v550
      %v583 = vunpack.c.l.bf16 %v551
      %v584 = vunpack.c.l.bf16 %v552
      %v585 = vunpack.c.l.bf16 %v553
      %v586 = vunpack.c.l.bf16 %v554
      %v587 = vunpack.c.l.bf16 %v555
      %v588 = vunpack.c.l.bf16 %v556
      %v589 = vunpack.c.l.bf16 %v557
      %v590 = vunpack.c.l.bf16 %v558
      %v591 = vunpack.c.l.bf16 %v559
      %v592 = vunpack.c.l.bf16 %v560
      %v593 = vunpack.c.l.bf16 %v561
      %v594 = vunpack.c.l.bf16 %v562
      %v595 = vunpack.c.l.bf16 %v563
      %v596 = vunpack.c.l.bf16 %v564
      %v597 = vunpack.c.l.bf16 %v565
      %v598 = vunpack.c.l.bf16 %v566
      %v599 = vunpack.c.l.bf16 %v567
      %v600 = vunpack.c.l.bf16 %v568
      %v601 = vunpack.c.l.bf16 %v569
      %v602 = vunpack.c.l.bf16 %v570
      %v603 = vunpack.c.l.bf16 %v571
      %604 = vst.msk [vmem:[#allocation2 + $0x200] sm:$0xff] %vm411, %v572
      %605 = vst.msk [vmem:[#allocation2 + $0x208] sm:$0xff] %vm411, %v573
      %606 = vst.msk [vmem:[#allocation2 + $0x210] sm:$0xff] %vm411, %v574
      %607 = vst.msk [vmem:[#allocation2 + $0x218] sm:$0xff] %vm411, %v575
      %608 = vst.msk [vmem:[#allocation2 + $0x220] sm:$0xff] %vm411, %v576
      %609 = vst.msk [vmem:[#allocation2 + $0x228] sm:$0xff] %vm411, %v577
      %610 = vst.msk [vmem:[#allocation2 + $0x230] sm:$0xff] %vm411, %v578
      %611 = vst.msk [vmem:[#allocation2 + $0x238] sm:$0xff] %vm411, %v579
      %612 = vst.msk [vmem:[#allocation2 + $0x240] sm:$0xff] %vm411, %v580
      %613 = vst.msk [vmem:[#allocation2 + $0x248] sm:$0xff] %vm411, %v581
      %614 = vst.msk [vmem:[#allocation2 + $0x250] sm:$0xff] %vm411, %v582
      %615 = vst.msk [vmem:[#allocation2 + $0x258] sm:$0xff] %vm411, %v583
      %616 = vst.msk [vmem:[#allocation2 + $0x260] sm:$0xff] %vm411, %v584
      %617 = vst.msk [vmem:[#allocation2 + $0x268] sm:$0xff] %vm411, %v585
      %618 = vst.msk [vmem:[#allocation2 + $0x270] sm:$0xff] %vm411, %v586
      %619 = vst.msk [vmem:[#allocation2 + $0x278] sm:$0xff] %vm411, %v587
      %620 = vst.msk [vmem:[#allocation2 + $0x280] sm:$0xff] %vm411, %v588
      %621 = vst.msk [vmem:[#allocation2 + $0x288] sm:$0xff] %vm411, %v589
      %622 = vst.msk [vmem:[#allocation2 + $0x290] sm:$0xff] %vm411, %v590
      %623 = vst.msk [vmem:[#allocation2 + $0x298] sm:$0xff] %vm411, %v591
      %624 = vst.msk [vmem:[#allocation2 + $0x2a0] sm:$0xff] %vm411, %v592
      %625 = vst.msk [vmem:[#allocation2 + $0x2a8] sm:$0xff] %vm411, %v593
      %626 = vst.msk [vmem:[#allocation2 + $0x2b0] sm:$0xff] %vm411, %v594
      %627 = vst.msk [vmem:[#allocation2 + $0x2b8] sm:$0xff] %vm411, %v595
      %628 = vst.msk [vmem:[#allocation2 + $0x2c0] sm:$0xff] %vm411, %v596
      %629 = vst.msk [vmem:[#allocation2 + $0x2c8] sm:$0xff] %vm411, %v597
      %630 = vst.msk [vmem:[#allocation2 + $0x2d0] sm:$0xff] %vm411, %v598
      %631 = vst.msk [vmem:[#allocation2 + $0x2d8] sm:$0xff] %vm411, %v599
      %632 = vst.msk [vmem:[#allocation2 + $0x2e0] sm:$0xff] %vm411, %v600
      %633 = vst.msk [vmem:[#allocation2 + $0x2e8] sm:$0xff] %vm411, %v601
      %634 = vst.msk [vmem:[#allocation2 + $0x2f0] sm:$0xff] %vm411, %v602
      %635 = vst.msk [vmem:[#allocation2 + $0x2f8] sm:$0xff] %vm411, %v603
      %v636 = vld [vmem:[#allocation2 + $0xed] sm:$0xff]
      %v637 = vld [vmem:[#allocation2 + $0xf5] sm:$0xff]
      %v638 = vld [vmem:[#allocation2 + $0xfd] sm:$0xff]
      %v639 = vld [vmem:[#allocation2 + $0x105] sm:$0xff]
      %v640 = vld [vmem:[#allocation2 + $0x10d] sm:$0xff]
      %v641 = vld [vmem:[#allocation2 + $0x115] sm:$0xff]
      %v642 = vld [vmem:[#allocation2 + $0x11d] sm:$0xff]
      %v643 = vld [vmem:[#allocation2 + $0x125] sm:$0xff]
      %v644 = vld [vmem:[#allocation2 + $0x12d] sm:$0xff]
      %v645 = vld [vmem:[#allocation2 + $0x135] sm:$0xff]
      %v646 = vld [vmem:[#allocation2 + $0x13d] sm:$0xff]
      %v647 = vld [vmem:[#allocation2 + $0x145] sm:$0xff]
      %v648 = vld [vmem:[#allocation2 + $0x14d] sm:$0xff]
      %v649 = vld [vmem:[#allocation2 + $0x155] sm:$0xff]
      %v650 = vld [vmem:[#allocation2 + $0x15d] sm:$0xff]
      %v651 = vld [vmem:[#allocation2 + $0x165] sm:$0xff]
      %v652 = vld [vmem:[#allocation2 + $0x16d] sm:$0xff]
      %v653 = vld [vmem:[#allocation2 + $0x175] sm:$0xff]
      %v654 = vld [vmem:[#allocation2 + $0x17d] sm:$0xff]
      %v655 = vld [vmem:[#allocation2 + $0x185] sm:$0xff]
      %v656 = vld [vmem:[#allocation2 + $0x18d] sm:$0xff]
      %v657 = vld [vmem:[#allocation2 + $0x195] sm:$0xff]
      %v658 = vld [vmem:[#allocation2 + $0x19d] sm:$0xff]
      %v659 = vld [vmem:[#allocation2 + $0x1a5] sm:$0xff]
      %v660 = vld [vmem:[#allocation2 + $0x1ad] sm:$0xff]
      %v661 = vld [vmem:[#allocation2 + $0x1b5] sm:$0xff]
      %v662 = vld [vmem:[#allocation2 + $0x1bd] sm:$0xff]
      %v663 = vld [vmem:[#allocation2 + $0x1c5] sm:$0xff]
      %v664 = vld [vmem:[#allocation2 + $0x1cd] sm:$0xff]
      %v665 = vld [vmem:[#allocation2 + $0x1d5] sm:$0xff]
      %v666 = vld [vmem:[#allocation2 + $0x1dd] sm:$0xff]
      %v667 = vld [vmem:[#allocation2 + $0x1e5] sm:$0xff]
      %v668 = vpack.c.bf16 %v637, %v636
      %v669 = vpack.c.bf16 %v639, %v638
      %v670 = vpack.c.bf16 %v641, %v640
      %v671 = vpack.c.bf16 %v643, %v642
      %v672 = vpack.c.bf16 %v645, %v644
      %v673 = vpack.c.bf16 %v647, %v646
      %v674 = vpack.c.bf16 %v649, %v648
      %v675 = vpack.c.bf16 %v651, %v650
      %v676 = vpack.c.bf16 %v653, %v652
      %v677 = vpack.c.bf16 %v655, %v654
      %v678 = vpack.c.bf16 %v657, %v656
      %v679 = vpack.c.bf16 %v659, %v658
      %v680 = vpack.c.bf16 %v661, %v660
      %v681 = vpack.c.bf16 %v663, %v662
      %v682 = vpack.c.bf16 %v665, %v664
      %v683 = vpack.c.bf16 %v667, %v666
      %v684 = vld [vmem:[%s4] sm:$0xf]
      %v685 = vld [vmem:[%s4 + $0x4] sm:$0xf]
      %v686 = vld [vmem:[%s4 + $0x8] sm:$0xf]
      %v687 = vld [vmem:[%s4 + $0xc] sm:$0xf]
      %v688 = vld [vmem:[%s4 + $0x10] sm:$0xf]
      %v689 = vld [vmem:[%s4 + $0x14] sm:$0xf]
      %v690 = vld [vmem:[%s4 + $0x18] sm:$0xf]
      %v691 = vld [vmem:[%s4 + $0x1c] sm:$0xf]
      %v692 = vld [vmem:[#allocation2 + $0xee] sm:$0xff]
      %v693 = vld [vmem:[#allocation2 + $0xf6] sm:$0xff]
      %v694 = vld [vmem:[#allocation2 + $0xfe] sm:$0xff]
      %v695 = vld [vmem:[#allocation2 + $0x106] sm:$0xff]
      %v696 = vld [vmem:[#allocation2 + $0x10e] sm:$0xff]
      %v697 = vld [vmem:[#allocation2 + $0x116] sm:$0xff]
      %v698 = vld [vmem:[#allocation2 + $0x11e] sm:$0xff]
      %v699 = vld [vmem:[#allocation2 + $0x126] sm:$0xff]
      %v700 = vld [vmem:[#allocation2 + $0x12e] sm:$0xff]
      %v701 = vld [vmem:[#allocation2 + $0x136] sm:$0xff]
      %v702 = vld [vmem:[#allocation2 + $0x13e] sm:$0xff]
      %v703 = vld [vmem:[#allocation2 + $0x146] sm:$0xff]
      %v704 = vld [vmem:[#allocation2 + $0x14e] sm:$0xff]
      %v705 = vld [vmem:[#allocation2 + $0x156] sm:$0xff]
      %v706 = vld [vmem:[#allocation2 + $0x15e] sm:$0xff]
      %v707 = vld [vmem:[#allocation2 + $0x166] sm:$0xff]
      %v708 = vld [vmem:[#allocation2 + $0x16e] sm:$0xff]
      %v709 = vld [vmem:[#allocation2 + $0x176] sm:$0xff]
      %v710 = vld [vmem:[#allocation2 + $0x17e] sm:$0xff]
      %v711 = vld [vmem:[#allocation2 + $0x186] sm:$0xff]
      %v712 = vld [vmem:[#allocation2 + $0x18e] sm:$0xff]
      %v713 = vld [vmem:[#allocation2 + $0x196] sm:$0xff]
      %v714 = vld [vmem:[#allocation2 + $0x19e] sm:$0xff]
      %v715 = vld [vmem:[#allocation2 + $0x1a6] sm:$0xff]
      %v716 = vld [vmem:[#allocation2 + $0x1ae] sm:$0xff]
      %v717 = vld [vmem:[#allocation2 + $0x1b6] sm:$0xff]
      %v718 = vld [vmem:[#allocation2 + $0x1be] sm:$0xff]
      %v719 = vld [vmem:[#allocation2 + $0x1c6] sm:$0xff]
      %v720 = vld [vmem:[#allocation2 + $0x1ce] sm:$0xff]
      %v721 = vld [vmem:[#allocation2 + $0x1d6] sm:$0xff]
      %v722 = vld [vmem:[#allocation2 + $0x1de] sm:$0xff]
      %v723 = vld [vmem:[#allocation2 + $0x1e6] sm:$0xff]
      %v724 = vpack.c.bf16 %v693, %v692
      %v725 = vpack.c.bf16 %v695, %v694
      %v726 = vpack.c.bf16 %v697, %v696
      %v727 = vpack.c.bf16 %v699, %v698
      %v728 = vpack.c.bf16 %v701, %v700
      %v729 = vpack.c.bf16 %v703, %v702
      %v730 = vpack.c.bf16 %v705, %v704
      %v731 = vpack.c.bf16 %v707, %v706
      %v732 = vpack.c.bf16 %v709, %v708
      %v733 = vpack.c.bf16 %v711, %v710
      %v734 = vpack.c.bf16 %v713, %v712
      %v735 = vpack.c.bf16 %v715, %v714
      %v736 = vpack.c.bf16 %v717, %v716
      %v737 = vpack.c.bf16 %v719, %v718
      %v738 = vpack.c.bf16 %v721, %v720
      %v739 = vpack.c.bf16 %v723, %v722
      %v740 = vld [vmem:[%s4 + $0x20] sm:$0xf]
      %v741 = vld [vmem:[%s4 + $0x24] sm:$0xf]
      %v742 = vld [vmem:[%s4 + $0x28] sm:$0xf]
      %v743 = vld [vmem:[%s4 + $0x2c] sm:$0xf]
      %v744 = vld [vmem:[%s4 + $0x30] sm:$0xf]
      %v745 = vld [vmem:[%s4 + $0x34] sm:$0xf]
      %v746 = vld [vmem:[%s4 + $0x38] sm:$0xf]
      %v747 = vld [vmem:[%s4 + $0x3c] sm:$0xf]
      %v756 = vunpack.c.l.b16 %v740
      %v757 = vunpack.c.l.b16 %v741
      %v758 = vunpack.c.l.b16 %v742
      %v759 = vunpack.c.l.b16 %v743
      %v760 = vunpack.c.l.b16 %v744
      %v761 = vunpack.c.l.b16 %v745
      %v762 = vunpack.c.l.b16 %v746
      %v763 = vunpack.c.l.b16 %v747
      %v764 = vpack.c.b16 %v757, %v756
      %v765 = vpack.c.b16 %v759, %v758
      %v766 = vpack.c.b16 %v761, %v760
      %v767 = vpack.c.b16 %v763, %v762
      %v773 = vsel %vm411, %v724, 0
      %v776 = vsel %vm411, %v725, 0
      %v779 = vsel %vm411, %v726, 0
      %v782 = vsel %vm411, %v727, 0
      %v785 = vsel %vm411, %v728, 0
      %v788 = vsel %vm411, %v729, 0
      %v791 = vsel %vm411, %v730, 0
      %v794 = vsel %vm411, %v731, 0
      %v797 = vsel %vm411, %v732, 0
      %v800 = vsel %vm411, %v733, 0
      %v803 = vsel %vm411, %v734, 0
      %v806 = vsel %vm411, %v735, 0
      %v809 = vsel %vm411, %v736, 0
      %v812 = vsel %vm411, %v737, 0
      %v815 = vsel %vm411, %v738, 0
      %v818 = vsel %vm411, %v739, 0
      %820 = vmatprep.subr.bf16.mxu0 0
      %821 = vmatpush1.bf16.msra.mxu0 0
      %822 = vmatprep.subr.bf16.mxu0 0
      %823 = vmatpush1.bf16.msra.mxu0 0
      %824 = vmatprep.subr.bf16.mxu0 0
      %825 = vmatpush1.bf16.msra.mxu0 0
      %826 = vmatprep.subr.bf16.mxu0 0
      %827 = vmatpush1.bf16.msra.mxu0 0
      %828 = vmatprep.subr.bf16.mxu0 0
      %829 = vmatpush1.bf16.msra.mxu0 %v767
      %830 = vmatprep.subr.bf16.mxu0 0
      %831 = vmatpush1.bf16.msra.mxu0 %v766
      %832 = vmatprep.subr.bf16.mxu0 0
      %833 = vmatpush1.bf16.msra.mxu0 %v765
      %834 = vmatprep.subr.bf16.mxu0 0
      %835 = vmatpush1.bf16.msra.mxu0 %v764
      %836 = vmatprep.subr.bf16.mxu0 0
      %837 = vmatpush2.bf16.msra.mxu0 0
      %838 = vmatprep.subr.bf16.mxu0 0
      %839 = vmatpush2.bf16.msra.mxu0 0
      %840 = vmatprep.subr.bf16.mxu0 0
      %841 = vmatpush2.bf16.msra.mxu0 0
      %842 = vmatprep.subr.bf16.mxu0 0
      %843 = vmatpush2.bf16.msra.mxu0 0
      %844 = vmatprep.subr.bf16.mxu0 0
      %845 = vmatpush2.bf16.msra.mxu0 0
      %846 = vmatprep.subr.bf16.mxu0 0
      %847 = vmatpush2.bf16.msra.mxu0 0
      %848 = vmatprep.subr.bf16.mxu0 0
      %849 = vmatpush2.bf16.msra.mxu0 0
      %850 = vmatprep.subr.bf16.mxu0 0
      %851 = vmatpush2.bf16.msra.mxu0 0
      %852 = vmatprep.mubr.bf16.mxu0 0
      %853 = vmatmul.mubr.bf16.gmra.mxu0 %v773
      %v854 = vpop.f32.mrf.mxu0
      %v855 = vadd.f32 0.0, %v854
      %v856 = vpop.f32.mrf.mxu0
      %v857 = vpop.f32.mrf.mxu0
      %v858 = vadd.f32 0.0, %v857
      %v859 = vpop.f32.mrf.mxu0
      %860 = vmatprep.mubr.bf16.mxu0 0
      %861 = vmatmul.mubr.bf16.gmra.mxu0 %v776
      %v862 = vpop.f32.mrf.mxu0
      %v863 = vadd.f32 0.0, %v862
      %v864 = vpop.f32.mrf.mxu0
      %v865 = vpop.f32.mrf.mxu0
      %v866 = vadd.f32 0.0, %v865
      %v867 = vpop.f32.mrf.mxu0
      %868 = vmatprep.mubr.bf16.mxu0 0
      %869 = vmatmul.mubr.bf16.gmra.mxu0 %v779
      %v870 = vpop.f32.mrf.mxu0
      %v871 = vadd.f32 0.0, %v870
      %v872 = vpop.f32.mrf.mxu0
      %v873 = vpop.f32.mrf.mxu0
      %v874 = vadd.f32 0.0, %v873
      %v875 = vpop.f32.mrf.mxu0
      %876 = vmatprep.mubr.bf16.mxu0 0
      %877 = vmatmul.mubr.bf16.gmra.mxu0 %v782
      %v878 = vpop.f32.mrf.mxu0
      %v879 = vadd.f32 0.0, %v878
      %v880 = vpop.f32.mrf.mxu0
      %v881 = vpop.f32.mrf.mxu0
      %v882 = vadd.f32 0.0, %v881
      %v883 = vpop.f32.mrf.mxu0
      %884 = vmatprep.mubr.bf16.mxu0 0
      %885 = vmatmul.mubr.bf16.gmra.mxu0 %v785
      %v886 = vpop.f32.mrf.mxu0
      %v887 = vadd.f32 0.0, %v886
      %v888 = vpop.f32.mrf.mxu0
      %v889 = vpop.f32.mrf.mxu0
      %v890 = vadd.f32 0.0, %v889
      %v891 = vpop.f32.mrf.mxu0
      %892 = vmatprep.mubr.bf16.mxu0 0
      %893 = vmatmul.mubr.bf16.gmra.mxu0 %v788
      %v894 = vpop.f32.mrf.mxu0
      %v895 = vadd.f32 0.0, %v894
      %v896 = vpop.f32.mrf.mxu0
      %v897 = vpop.f32.mrf.mxu0
      %v898 = vadd.f32 0.0, %v897
      %v899 = vpop.f32.mrf.mxu0
      %900 = vmatprep.mubr.bf16.mxu0 0
      %901 = vmatmul.mubr.bf16.gmra.mxu0 %v791
      %v902 = vpop.f32.mrf.mxu0
      %v903 = vadd.f32 0.0, %v902
      %v904 = vpop.f32.mrf.mxu0
      %v905 = vpop.f32.mrf.mxu0
      %v906 = vadd.f32 0.0, %v905
      %v907 = vpop.f32.mrf.mxu0
      %908 = vmatprep.mubr.bf16.mxu0 0
      %909 = vmatmul.mubr.bf16.gmra.mxu0 %v794
      %v910 = vpop.f32.mrf.mxu0
      %v911 = vadd.f32 0.0, %v910
      %v912 = vpop.f32.mrf.mxu0
      %v913 = vpop.f32.mrf.mxu0
      %v914 = vadd.f32 0.0, %v913
      %v915 = vpop.f32.mrf.mxu0
      %916 = vmatprep.mubr.bf16.mxu0 0
      %917 = vmatmul.mubr.bf16.gmra.mxu0 %v797
      %v918 = vpop.f32.mrf.mxu0
      %v919 = vadd.f32 0.0, %v918
      %v920 = vpop.f32.mrf.mxu0
      %v921 = vpop.f32.mrf.mxu0
      %v922 = vadd.f32 0.0, %v921
      %v923 = vpop.f32.mrf.mxu0
      %924 = vmatprep.mubr.bf16.mxu0 0
      %925 = vmatmul.mubr.bf16.gmra.mxu0 %v800
      %v926 = vpop.f32.mrf.mxu0
      %v927 = vadd.f32 0.0, %v926
      %v928 = vpop.f32.mrf.mxu0
      %v929 = vpop.f32.mrf.mxu0
      %v930 = vadd.f32 0.0, %v929
      %v931 = vpop.f32.mrf.mxu0
      %932 = vmatprep.mubr.bf16.mxu0 0
      %933 = vmatmul.mubr.bf16.gmra.mxu0 %v803
      %v934 = vpop.f32.mrf.mxu0
      %v935 = vadd.f32 0.0, %v934
      %v936 = vpop.f32.mrf.mxu0
      %v937 = vpop.f32.mrf.mxu0
      %v938 = vadd.f32 0.0, %v937
      %v939 = vpop.f32.mrf.mxu0
      %940 = vmatprep.mubr.bf16.mxu0 0
      %941 = vmatmul.mubr.bf16.gmra.mxu0 %v806
      %v942 = vpop.f32.mrf.mxu0
      %v943 = vadd.f32 0.0, %v942
      %v944 = vpop.f32.mrf.mxu0
      %v945 = vpop.f32.mrf.mxu0
      %v946 = vadd.f32 0.0, %v945
      %v947 = vpop.f32.mrf.mxu0
      %948 = vmatprep.mubr.bf16.mxu0 0
      %949 = vmatmul.mubr.bf16.gmra.mxu0 %v809
      %v950 = vpop.f32.mrf.mxu0
      %v951 = vadd.f32 0.0, %v950
      %v952 = vpop.f32.mrf.mxu0
      %v953 = vpop.f32.mrf.mxu0
      %v954 = vadd.f32 0.0, %v953
      %v955 = vpop.f32.mrf.mxu0
      %956 = vmatprep.mubr.bf16.mxu0 0
      %957 = vmatmul.mubr.bf16.gmra.mxu0 %v812
      %v958 = vpop.f32.mrf.mxu0
      %v959 = vadd.f32 0.0, %v958
      %v960 = vpop.f32.mrf.mxu0
      %v961 = vpop.f32.mrf.mxu0
      %v962 = vadd.f32 0.0, %v961
      %v963 = vpop.f32.mrf.mxu0
      %964 = vmatprep.mubr.bf16.mxu0 0
      %965 = vmatmul.mubr.bf16.gmra.mxu0 %v815
      %v966 = vpop.f32.mrf.mxu0
      %v967 = vadd.f32 0.0, %v966
      %v968 = vpop.f32.mrf.mxu0
      %v969 = vpop.f32.mrf.mxu0
      %v970 = vadd.f32 0.0, %v969
      %v971 = vpop.f32.mrf.mxu0
      %972 = vmatprep.mubr.bf16.mxu0 0
      %973 = vmatmul.mubr.bf16.gmra.mxu0 %v818
      %v974 = vpop.f32.mrf.mxu0
      %v975 = vadd.f32 0.0, %v974
      %v976 = vpop.f32.mrf.mxu0
      %v977 = vpop.f32.mrf.mxu0
      %v978 = vadd.f32 0.0, %v977
      %v979 = vpop.f32.mrf.mxu0
      %980 = vdwg.mxu0
      %v989 = vunpack.c.l.b16 %v684
      %v990 = vunpack.c.l.b16 %v685
      %v991 = vunpack.c.l.b16 %v686
      %v992 = vunpack.c.l.b16 %v687
      %v993 = vunpack.c.l.b16 %v688
      %v994 = vunpack.c.l.b16 %v689
      %v995 = vunpack.c.l.b16 %v690
      %v996 = vunpack.c.l.b16 %v691
      %v997 = vpack.c.b16 %v990, %v989
      %v998 = vpack.c.b16 %v992, %v991
      %v999 = vpack.c.b16 %v994, %v993
      %v1000 = vpack.c.b16 %v996, %v995
      %v1006 = vsel %vm411, %v668, 0
      %v1009 = vsel %vm411, %v669, 0
      %v1012 = vsel %vm411, %v670, 0
      %v1015 = vsel %vm411, %v671, 0
      %v1018 = vsel %vm411, %v672, 0
      %v1021 = vsel %vm411, %v673, 0
      %v1024 = vsel %vm411, %v674, 0
      %v1027 = vsel %vm411, %v675, 0
      %v1030 = vsel %vm411, %v676, 0
      %v1033 = vsel %vm411, %v677, 0
      %v1036 = vsel %vm411, %v678, 0
      %v1039 = vsel %vm411, %v679, 0
      %v1042 = vsel %vm411, %v680, 0
      %v1045 = vsel %vm411, %v681, 0
      %v1048 = vsel %vm411, %v682, 0
      %v1051 = vsel %vm411, %v683, 0
      %1053 = vmatprep.subr.bf16.mxu0 0
      %1054 = vmatpush1.bf16.msra.mxu0 0
      %1055 = vmatprep.subr.bf16.mxu0 0
      %1056 = vmatpush1.bf16.msra.mxu0 0
      %1057 = vmatprep.subr.bf16.mxu0 0
      %1058 = vmatpush1.bf16.msra.mxu0 0
      %1059 = vmatprep.subr.bf16.mxu0 0
      %1060 = vmatpush1.bf16.msra.mxu0 0
      %1061 = vmatprep.subr.bf16.mxu0 0
      %1062 = vmatpush1.bf16.msra.mxu0 %v1000
      %1063 = vmatprep.subr.bf16.mxu0 0
      %1064 = vmatpush1.bf16.msra.mxu0 %v999
      %1065 = vmatprep.subr.bf16.mxu0 0
      %1066 = vmatpush1.bf16.msra.mxu0 %v998
      %1067 = vmatprep.subr.bf16.mxu0 0
      %1068 = vmatpush1.bf16.msra.mxu0 %v997
      %1069 = vmatprep.subr.bf16.mxu0 0
      %1070 = vmatpush2.bf16.msra.mxu0 0
      %1071 = vmatprep.subr.bf16.mxu0 0
      %1072 = vmatpush2.bf16.msra.mxu0 0
      %1073 = vmatprep.subr.bf16.mxu0 0
      %1074 = vmatpush2.bf16.msra.mxu0 0
      %1075 = vmatprep.subr.bf16.mxu0 0
      %1076 = vmatpush2.bf16.msra.mxu0 0
      %1077 = vmatprep.subr.bf16.mxu0 0
      %1078 = vmatpush2.bf16.msra.mxu0 0
      %1079 = vmatprep.subr.bf16.mxu0 0
      %1080 = vmatpush2.bf16.msra.mxu0 0
      %1081 = vmatprep.subr.bf16.mxu0 0
      %1082 = vmatpush2.bf16.msra.mxu0 0
      %1083 = vmatprep.subr.bf16.mxu0 0
      %1084 = vmatpush2.bf16.msra.mxu0 0
      %1085 = vmatprep.mubr.bf16.mxu0 0
      %1086 = vmatmul.mubr.bf16.gmra.mxu0 %v1006
      %v1087 = vpop.f32.mrf.mxu0
      %v1088 = vadd.f32 %v855, %v1087
      %v1089 = vpop.f32.mrf.mxu0
      %v1090 = vpop.f32.mrf.mxu0
      %v1091 = vadd.f32 %v858, %v1090
      %v1092 = vpop.f32.mrf.mxu0
      %1093 = vmatprep.mubr.bf16.mxu0 0
      %1094 = vmatmul.mubr.bf16.gmra.mxu0 %v1009
      %v1095 = vpop.f32.mrf.mxu0
      %v1096 = vadd.f32 %v863, %v1095
      %v1097 = vpop.f32.mrf.mxu0
      %v1098 = vpop.f32.mrf.mxu0
      %v1099 = vadd.f32 %v866, %v1098
      %v1100 = vpop.f32.mrf.mxu0
      %1101 = vmatprep.mubr.bf16.mxu0 0
      %1102 = vmatmul.mubr.bf16.gmra.mxu0 %v1012
      %v1103 = vpop.f32.mrf.mxu0
      %v1104 = vadd.f32 %v871, %v1103
      %v1105 = vpop.f32.mrf.mxu0
      %v1106 = vpop.f32.mrf.mxu0
      %v1107 = vadd.f32 %v874, %v1106
      %v1108 = vpop.f32.mrf.mxu0
      %1109 = vmatprep.mubr.bf16.mxu0 0
      %1110 = vmatmul.mubr.bf16.gmra.mxu0 %v1015
      %v1111 = vpop.f32.mrf.mxu0
      %v1112 = vadd.f32 %v879, %v1111
      %v1113 = vpop.f32.mrf.mxu0
      %v1114 = vpop.f32.mrf.mxu0
      %v1115 = vadd.f32 %v882, %v1114
      %v1116 = vpop.f32.mrf.mxu0
      %1117 = vmatprep.mubr.bf16.mxu0 0
      %1118 = vmatmul.mubr.bf16.gmra.mxu0 %v1018
      %v1119 = vpop.f32.mrf.mxu0
      %v1120 = vadd.f32 %v887, %v1119
      %v1121 = vpop.f32.mrf.mxu0
      %v1122 = vpop.f32.mrf.mxu0
      %v1123 = vadd.f32 %v890, %v1122
      %v1124 = vpop.f32.mrf.mxu0
      %1125 = vmatprep.mubr.bf16.mxu0 0
      %1126 = vmatmul.mubr.bf16.gmra.mxu0 %v1021
      %v1127 = vpop.f32.mrf.mxu0
      %v1128 = vadd.f32 %v895, %v1127
      %v1129 = vpop.f32.mrf.mxu0
      %v1130 = vpop.f32.mrf.mxu0
      %v1131 = vadd.f32 %v898, %v1130
      %v1132 = vpop.f32.mrf.mxu0
      %1133 = vmatprep.mubr.bf16.mxu0 0
      %1134 = vmatmul.mubr.bf16.gmra.mxu0 %v1024
      %v1135 = vpop.f32.mrf.mxu0
      %v1136 = vadd.f32 %v903, %v1135
      %v1137 = vpop.f32.mrf.mxu0
      %v1138 = vpop.f32.mrf.mxu0
      %v1139 = vadd.f32 %v906, %v1138
      %v1140 = vpop.f32.mrf.mxu0
      %1141 = vmatprep.mubr.bf16.mxu0 0
      %1142 = vmatmul.mubr.bf16.gmra.mxu0 %v1027
      %v1143 = vpop.f32.mrf.mxu0
      %v1144 = vadd.f32 %v911, %v1143
      %v1145 = vpop.f32.mrf.mxu0
      %v1146 = vpop.f32.mrf.mxu0
      %v1147 = vadd.f32 %v914, %v1146
      %v1148 = vpop.f32.mrf.mxu0
      %1149 = vmatprep.mubr.bf16.mxu0 0
      %1150 = vmatmul.mubr.bf16.gmra.mxu0 %v1030
      %v1151 = vpop.f32.mrf.mxu0
      %v1152 = vadd.f32 %v919, %v1151
      %v1153 = vpop.f32.mrf.mxu0
      %v1154 = vpop.f32.mrf.mxu0
      %v1155 = vadd.f32 %v922, %v1154
      %v1156 = vpop.f32.mrf.mxu0
      %1157 = vmatprep.mubr.bf16.mxu0 0
      %1158 = vmatmul.mubr.bf16.gmra.mxu0 %v1033
      %v1159 = vpop.f32.mrf.mxu0
      %v1160 = vadd.f32 %v927, %v1159
      %v1161 = vpop.f32.mrf.mxu0
      %v1162 = vpop.f32.mrf.mxu0
      %v1163 = vadd.f32 %v930, %v1162
      %v1164 = vpop.f32.mrf.mxu0
      %1165 = vmatprep.mubr.bf16.mxu0 0
      %1166 = vmatmul.mubr.bf16.gmra.mxu0 %v1036
      %v1167 = vpop.f32.mrf.mxu0
      %v1168 = vadd.f32 %v935, %v1167
      %v1169 = vpop.f32.mrf.mxu0
      %v1170 = vpop.f32.mrf.mxu0
      %v1171 = vadd.f32 %v938, %v1170
      %v1172 = vpop.f32.mrf.mxu0
      %1173 = vmatprep.mubr.bf16.mxu0 0
      %1174 = vmatmul.mubr.bf16.gmra.mxu0 %v1039
      %v1175 = vpop.f32.mrf.mxu0
      %v1176 = vadd.f32 %v943, %v1175
      %v1177 = vpop.f32.mrf.mxu0
      %v1178 = vpop.f32.mrf.mxu0
      %v1179 = vadd.f32 %v946, %v1178
      %v1180 = vpop.f32.mrf.mxu0
      %1181 = vmatprep.mubr.bf16.mxu0 0
      %1182 = vmatmul.mubr.bf16.gmra.mxu0 %v1042
      %v1183 = vpop.f32.mrf.mxu0
      %v1184 = vadd.f32 %v951, %v1183
      %v1185 = vpop.f32.mrf.mxu0
      %v1186 = vpop.f32.mrf.mxu0
      %v1187 = vadd.f32 %v954, %v1186
      %v1188 = vpop.f32.mrf.mxu0
      %1189 = vmatprep.mubr.bf16.mxu0 0
      %1190 = vmatmul.mubr.bf16.gmra.mxu0 %v1045
      %v1191 = vpop.f32.mrf.mxu0
      %v1192 = vadd.f32 %v959, %v1191
      %v1193 = vpop.f32.mrf.mxu0
      %v1194 = vpop.f32.mrf.mxu0
      %v1195 = vadd.f32 %v962, %v1194
      %v1196 = vpop.f32.mrf.mxu0
      %1197 = vmatprep.mubr.bf16.mxu0 0
      %1198 = vmatmul.mubr.bf16.gmra.mxu0 %v1048
      %v1199 = vpop.f32.mrf.mxu0
      %v1200 = vadd.f32 %v967, %v1199
      %v1201 = vpop.f32.mrf.mxu0
      %v1202 = vpop.f32.mrf.mxu0
      %v1203 = vadd.f32 %v970, %v1202
      %v1204 = vpop.f32.mrf.mxu0
      %1205 = vmatprep.mubr.bf16.mxu0 0
      %1206 = vmatmul.mubr.bf16.gmra.mxu0 %v1051
      %v1207 = vpop.f32.mrf.mxu0
      %v1208 = vadd.f32 %v975, %v1207
      %v1209 = vpop.f32.mrf.mxu0
      %v1210 = vpop.f32.mrf.mxu0
      %v1211 = vadd.f32 %v978, %v1210
      %v1212 = vpop.f32.mrf.mxu0
      %1213 = vdwg.mxu0
      %v1214 = vld [vmem:[#allocation2 + $0xef] sm:$0xff]
      %v1215 = vld [vmem:[#allocation2 + $0xf7] sm:$0xff]
      %v1216 = vld [vmem:[#allocation2 + $0xff] sm:$0xff]
      %v1217 = vld [vmem:[#allocation2 + $0x107] sm:$0xff]
      %v1218 = vld [vmem:[#allocation2 + $0x10f] sm:$0xff]
      %v1219 = vld [vmem:[#allocation2 + $0x117] sm:$0xff]
      %v1220 = vld [vmem:[#allocation2 + $0x11f] sm:$0xff]
      %v1221 = vld [vmem:[#allocation2 + $0x127] sm:$0xff]
      %v1222 = vld [vmem:[#allocation2 + $0x12f] sm:$0xff]
      %v1223 = vld [vmem:[#allocation2 + $0x137] sm:$0xff]
      %v1224 = vld [vmem:[#allocation2 + $0x13f] sm:$0xff]
      %v1225 = vld [vmem:[#allocation2 + $0x147] sm:$0xff]
      %v1226 = vld [vmem:[#allocation2 + $0x14f] sm:$0xff]
      %v1227 = vld [vmem:[#allocation2 + $0x157] sm:$0xff]
      %v1228 = vld [vmem:[#allocation2 + $0x15f] sm:$0xff]
      %v1229 = vld [vmem:[#allocation2 + $0x167] sm:$0xff]
      %v1230 = vld [vmem:[#allocation2 + $0x16f] sm:$0xff]
      %v1231 = vld [vmem:[#allocation2 + $0x177] sm:$0xff]
      %v1232 = vld [vmem:[#allocation2 + $0x17f] sm:$0xff]
      %v1233 = vld [vmem:[#allocation2 + $0x187] sm:$0xff]
      %v1234 = vld [vmem:[#allocation2 + $0x18f] sm:$0xff]
      %v1235 = vld [vmem:[#allocation2 + $0x197] sm:$0xff]
      %v1236 = vld [vmem:[#allocation2 + $0x19f] sm:$0xff]
      %v1237 = vld [vmem:[#allocation2 + $0x1a7] sm:$0xff]
      %v1238 = vld [vmem:[#allocation2 + $0x1af] sm:$0xff]
      %v1239 = vld [vmem:[#allocation2 + $0x1b7] sm:$0xff]
      %v1240 = vld [vmem:[#allocation2 + $0x1bf] sm:$0xff]
      %v1241 = vld [vmem:[#allocation2 + $0x1c7] sm:$0xff]
      %v1242 = vld [vmem:[#allocation2 + $0x1cf] sm:$0xff]
      %v1243 = vld [vmem:[#allocation2 + $0x1d7] sm:$0xff]
      %v1244 = vld [vmem:[#allocation2 + $0x1df] sm:$0xff]
      %v1245 = vld [vmem:[#allocation2 + $0x1e7] sm:$0xff]
      %v1246 = vpack.c.bf16 %v1215, %v1214
      %v1247 = vpack.c.bf16 %v1217, %v1216
      %v1248 = vpack.c.bf16 %v1219, %v1218
      %v1249 = vpack.c.bf16 %v1221, %v1220
      %v1250 = vpack.c.bf16 %v1223, %v1222
      %v1251 = vpack.c.bf16 %v1225, %v1224
      %v1252 = vpack.c.bf16 %v1227, %v1226
      %v1253 = vpack.c.bf16 %v1229, %v1228
      %v1254 = vpack.c.bf16 %v1231, %v1230
      %v1255 = vpack.c.bf16 %v1233, %v1232
      %v1256 = vpack.c.bf16 %v1235, %v1234
      %v1257 = vpack.c.bf16 %v1237, %v1236
      %v1258 = vpack.c.bf16 %v1239, %v1238
      %v1259 = vpack.c.bf16 %v1241, %v1240
      %v1260 = vpack.c.bf16 %v1243, %v1242
      %v1261 = vpack.c.bf16 %v1245, %v1244
      %v1262 = vld [vmem:[%s4 + $0x40] sm:$0xf]
      %v1263 = vld [vmem:[%s4 + $0x44] sm:$0xf]
      %v1264 = vld [vmem:[%s4 + $0x48] sm:$0xf]
      %v1265 = vld [vmem:[%s4 + $0x4c] sm:$0xf]
      %v1266 = vld [vmem:[%s4 + $0x50] sm:$0xf]
      %v1267 = vld [vmem:[%s4 + $0x54] sm:$0xf]
      %v1268 = vld [vmem:[%s4 + $0x58] sm:$0xf]
      %v1269 = vld [vmem:[%s4 + $0x5c] sm:$0xf]
      %v1278 = vunpack.c.l.b16 %v1262
      %v1279 = vunpack.c.l.b16 %v1263
      %v1280 = vunpack.c.l.b16 %v1264
      %v1281 = vunpack.c.l.b16 %v1265
      %v1282 = vunpack.c.l.b16 %v1266
      %v1283 = vunpack.c.l.b16 %v1267
      %v1284 = vunpack.c.l.b16 %v1268
      %v1285 = vunpack.c.l.b16 %v1269
      %v1286 = vpack.c.b16 %v1279, %v1278
      %v1287 = vpack.c.b16 %v1281, %v1280
      %v1288 = vpack.c.b16 %v1283, %v1282
      %v1289 = vpack.c.b16 %v1285, %v1284
      %v1295 = vsel %vm411, %v1246, 0
      %v1298 = vsel %vm411, %v1247, 0
      %v1301 = vsel %vm411, %v1248, 0
      %v1304 = vsel %vm411, %v1249, 0
      %v1307 = vsel %vm411, %v1250, 0
      %v1310 = vsel %vm411, %v1251, 0
      %v1313 = vsel %vm411, %v1252, 0
      %v1316 = vsel %vm411, %v1253, 0
      %v1319 = vsel %vm411, %v1254, 0
      %v1322 = vsel %vm411, %v1255, 0
      %v1325 = vsel %vm411, %v1256, 0
      %v1328 = vsel %vm411, %v1257, 0
      %v1331 = vsel %vm411, %v1258, 0
      %v1334 = vsel %vm411, %v1259, 0
      %v1337 = vsel %vm411, %v1260, 0
      %v1340 = vsel %vm411, %v1261, 0
      %1342 = vmatprep.subr.bf16.mxu0 0
      %1343 = vmatpush1.bf16.msra.mxu0 0
      %1344 = vmatprep.subr.bf16.mxu0 0
      %1345 = vmatpush1.bf16.msra.mxu0 0
      %1346 = vmatprep.subr.bf16.mxu0 0
      %1347 = vmatpush1.bf16.msra.mxu0 0
      %1348 = vmatprep.subr.bf16.mxu0 0
      %1349 = vmatpush1.bf16.msra.mxu0 0
      %1350 = vmatprep.subr.bf16.mxu0 0
      %1351 = vmatpush1.bf16.msra.mxu0 %v1289
      %1352 = vmatprep.subr.bf16.mxu0 0
      %1353 = vmatpush1.bf16.msra.mxu0 %v1288
      %1354 = vmatprep.subr.bf16.mxu0 0
      %1355 = vmatpush1.bf16.msra.mxu0 %v1287
      %1356 = vmatprep.subr.bf16.mxu0 0
      %1357 = vmatpush1.bf16.msra.mxu0 %v1286
      %1358 = vmatprep.subr.bf16.mxu0 0
      %1359 = vmatpush2.bf16.msra.mxu0 0
      %1360 = vmatprep.subr.bf16.mxu0 0
      %1361 = vmatpush2.bf16.msra.mxu0 0
      %1362 = vmatprep.subr.bf16.mxu0 0
      %1363 = vmatpush2.bf16.msra.mxu0 0
      %1364 = vmatprep.subr.bf16.mxu0 0
      %1365 = vmatpush2.bf16.msra.mxu0 0
      %1366 = vmatprep.subr.bf16.mxu0 0
      %1367 = vmatpush2.bf16.msra.mxu0 0
      %1368 = vmatprep.subr.bf16.mxu0 0
      %1369 = vmatpush2.bf16.msra.mxu0 0
      %1370 = vmatprep.subr.bf16.mxu0 0
      %1371 = vmatpush2.bf16.msra.mxu0 0
      %1372 = vmatprep.subr.bf16.mxu0 0
      %1373 = vmatpush2.bf16.msra.mxu0 0
      %1374 = vmatprep.mubr.bf16.mxu0 0
      %1375 = vmatmul.mubr.bf16.gmra.mxu0 %v1295
      %v1376 = vpop.f32.mrf.mxu0
      %v1377 = vadd.f32 0.0, %v1376
      %v1378 = vpop.f32.mrf.mxu0
      %v1379 = vpop.f32.mrf.mxu0
      %v1380 = vadd.f32 0.0, %v1379
      %v1381 = vpop.f32.mrf.mxu0
      %1382 = vmatprep.mubr.bf16.mxu0 0
      %1383 = vmatmul.mubr.bf16.gmra.mxu0 %v1298
      %v1384 = vpop.f32.mrf.mxu0
      %v1385 = vadd.f32 0.0, %v1384
      %v1386 = vpop.f32.mrf.mxu0
      %v1387 = vpop.f32.mrf.mxu0
      %v1388 = vadd.f32 0.0, %v1387
      %v1389 = vpop.f32.mrf.mxu0
      %1390 = vmatprep.mubr.bf16.mxu0 0
      %1391 = vmatmul.mubr.bf16.gmra.mxu0 %v1301
      %v1392 = vpop.f32.mrf.mxu0
      %v1393 = vadd.f32 0.0, %v1392
      %v1394 = vpop.f32.mrf.mxu0
      %v1395 = vpop.f32.mrf.mxu0
      %v1396 = vadd.f32 0.0, %v1395
      %v1397 = vpop.f32.mrf.mxu0
      %1398 = vmatprep.mubr.bf16.mxu0 0
      %1399 = vmatmul.mubr.bf16.gmra.mxu0 %v1304
      %v1400 = vpop.f32.mrf.mxu0
      %v1401 = vadd.f32 0.0, %v1400
      %v1402 = vpop.f32.mrf.mxu0
      %v1403 = vpop.f32.mrf.mxu0
      %v1404 = vadd.f32 0.0, %v1403
      %v1405 = vpop.f32.mrf.mxu0
      %1406 = vmatprep.mubr.bf16.mxu0 0
      %1407 = vmatmul.mubr.bf16.gmra.mxu0 %v1307
      %v1408 = vpop.f32.mrf.mxu0
      %v1409 = vadd.f32 0.0, %v1408
      %v1410 = vpop.f32.mrf.mxu0
      %v1411 = vpop.f32.mrf.mxu0
      %v1412 = vadd.f32 0.0, %v1411
      %v1413 = vpop.f32.mrf.mxu0
      %1414 = vmatprep.mubr.bf16.mxu0 0
      %1415 = vmatmul.mubr.bf16.gmra.mxu0 %v1310
      %v1416 = vpop.f32.mrf.mxu0
      %v1417 = vadd.f32 0.0, %v1416
      %v1418 = vpop.f32.mrf.mxu0
      %v1419 = vpop.f32.mrf.mxu0
      %v1420 = vadd.f32 0.0, %v1419
      %v1421 = vpop.f32.mrf.mxu0
      %1422 = vmatprep.mubr.bf16.mxu0 0
      %1423 = vmatmul.mubr.bf16.gmra.mxu0 %v1313
      %v1424 = vpop.f32.mrf.mxu0
      %v1425 = vadd.f32 0.0, %v1424
      %v1426 = vpop.f32.mrf.mxu0
      %v1427 = vpop.f32.mrf.mxu0
      %v1428 = vadd.f32 0.0, %v1427
      %v1429 = vpop.f32.mrf.mxu0
      %1430 = vmatprep.mubr.bf16.mxu0 0
      %1431 = vmatmul.mubr.bf16.gmra.mxu0 %v1316
      %v1432 = vpop.f32.mrf.mxu0
      %v1433 = vadd.f32 0.0, %v1432
      %v1434 = vpop.f32.mrf.mxu0
      %v1435 = vpop.f32.mrf.mxu0
      %v1436 = vadd.f32 0.0, %v1435
      %v1437 = vpop.f32.mrf.mxu0
      %1438 = vmatprep.mubr.bf16.mxu0 0
      %1439 = vmatmul.mubr.bf16.gmra.mxu0 %v1319
      %v1440 = vpop.f32.mrf.mxu0
      %v1441 = vadd.f32 0.0, %v1440
      %v1442 = vpop.f32.mrf.mxu0
      %v1443 = vpop.f32.mrf.mxu0
      %v1444 = vadd.f32 0.0, %v1443
      %v1445 = vpop.f32.mrf.mxu0
      %1446 = vmatprep.mubr.bf16.mxu0 0
      %1447 = vmatmul.mubr.bf16.gmra.mxu0 %v1322
      %v1448 = vpop.f32.mrf.mxu0
      %v1449 = vadd.f32 0.0, %v1448
      %v1450 = vpop.f32.mrf.mxu0
      %v1451 = vpop.f32.mrf.mxu0
      %v1452 = vadd.f32 0.0, %v1451
      %v1453 = vpop.f32.mrf.mxu0
      %1454 = vmatprep.mubr.bf16.mxu0 0
      %1455 = vmatmul.mubr.bf16.gmra.mxu0 %v1325
      %v1456 = vpop.f32.mrf.mxu0
      %v1457 = vadd.f32 0.0, %v1456
      %v1458 = vpop.f32.mrf.mxu0
      %v1459 = vpop.f32.mrf.mxu0
      %v1460 = vadd.f32 0.0, %v1459
      %v1461 = vpop.f32.mrf.mxu0
      %1462 = vmatprep.mubr.bf16.mxu0 0
      %1463 = vmatmul.mubr.bf16.gmra.mxu0 %v1328
      %v1464 = vpop.f32.mrf.mxu0
      %v1465 = vadd.f32 0.0, %v1464
      %v1466 = vpop.f32.mrf.mxu0
      %v1467 = vpop.f32.mrf.mxu0
      %v1468 = vadd.f32 0.0, %v1467
      %v1469 = vpop.f32.mrf.mxu0
      %1470 = vmatprep.mubr.bf16.mxu0 0
      %1471 = vmatmul.mubr.bf16.gmra.mxu0 %v1331
      %v1472 = vpop.f32.mrf.mxu0
      %v1473 = vadd.f32 0.0, %v1472
      %v1474 = vpop.f32.mrf.mxu0
      %v1475 = vpop.f32.mrf.mxu0
      %v1476 = vadd.f32 0.0, %v1475
      %v1477 = vpop.f32.mrf.mxu0
      %1478 = vmatprep.mubr.bf16.mxu0 0
      %1479 = vmatmul.mubr.bf16.gmra.mxu0 %v1334
      %v1480 = vpop.f32.mrf.mxu0
      %v1481 = vadd.f32 0.0, %v1480
      %v1482 = vpop.f32.mrf.mxu0
      %v1483 = vpop.f32.mrf.mxu0
      %v1484 = vadd.f32 0.0, %v1483
      %v1485 = vpop.f32.mrf.mxu0
      %1486 = vmatprep.mubr.bf16.mxu0 0
      %1487 = vmatmul.mubr.bf16.gmra.mxu0 %v1337
      %v1488 = vpop.f32.mrf.mxu0
      %v1489 = vadd.f32 0.0, %v1488
      %v1490 = vpop.f32.mrf.mxu0
      %v1491 = vpop.f32.mrf.mxu0
      %v1492 = vadd.f32 0.0, %v1491
      %v1493 = vpop.f32.mrf.mxu0
      %1494 = vmatprep.mubr.bf16.mxu0 0
      %1495 = vmatmul.mubr.bf16.gmra.mxu0 %v1340
      %v1496 = vpop.f32.mrf.mxu0
      %v1497 = vadd.f32 0.0, %v1496
      %v1498 = vpop.f32.mrf.mxu0
      %v1499 = vpop.f32.mrf.mxu0
      %v1500 = vadd.f32 0.0, %v1499
      %v1501 = vpop.f32.mrf.mxu0
      %1502 = vdwg.mxu0
      %v1503 = vadd.f32 %v1088, %v1377
      %v1504 = vadd.f32 %v1091, %v1380
      %v1505 = vadd.f32 %v1096, %v1385
      %v1506 = vadd.f32 %v1099, %v1388
      %v1507 = vadd.f32 %v1104, %v1393
      %v1508 = vadd.f32 %v1107, %v1396
      %v1509 = vadd.f32 %v1112, %v1401
      %v1510 = vadd.f32 %v1115, %v1404
      %v1511 = vadd.f32 %v1120, %v1409
      %v1512 = vadd.f32 %v1123, %v1412
      %v1513 = vadd.f32 %v1128, %v1417
      %v1514 = vadd.f32 %v1131, %v1420
      %v1515 = vadd.f32 %v1136, %v1425
      %v1516 = vadd.f32 %v1139, %v1428
      %v1517 = vadd.f32 %v1144, %v1433
      %v1518 = vadd.f32 %v1147, %v1436
      %v1519 = vadd.f32 %v1152, %v1441
      %v1520 = vadd.f32 %v1155, %v1444
      %v1521 = vadd.f32 %v1160, %v1449
      %v1522 = vadd.f32 %v1163, %v1452
      %v1523 = vadd.f32 %v1168, %v1457
      %v1524 = vadd.f32 %v1171, %v1460
      %v1525 = vadd.f32 %v1176, %v1465
      %v1526 = vadd.f32 %v1179, %v1468
      %v1527 = vadd.f32 %v1184, %v1473
      %v1528 = vadd.f32 %v1187, %v1476
      %v1529 = vadd.f32 %v1192, %v1481
      %v1530 = vadd.f32 %v1195, %v1484
      %v1531 = vadd.f32 %v1200, %v1489
      %v1532 = vadd.f32 %v1203, %v1492
      %v1533 = vadd.f32 %v1208, %v1497
      %v1534 = vadd.f32 %v1211, %v1500
      %v1535 = vld [vmem:[#allocation2 + $0xff] sm:$0xff]
      %v1536 = vld [vmem:[#allocation2 + $0x107] sm:$0xff]
      %v1537 = vld [vmem:[#allocation2 + $0x10f] sm:$0xff]
      %v1538 = vld [vmem:[#allocation2 + $0x117] sm:$0xff]
      %v1539 = vld [vmem:[#allocation2 + $0x11f] sm:$0xff]
      %v1540 = vld [vmem:[#allocation2 + $0x127] sm:$0xff]
      %v1541 = vld [vmem:[#allocation2 + $0x12f] sm:$0xff]
      %v1542 = vld [vmem:[#allocation2 + $0x137] sm:$0xff]
      %v1543 = vld [vmem:[#allocation2 + $0x13f] sm:$0xff]
      %v1544 = vld [vmem:[#allocation2 + $0x147] sm:$0xff]
      %v1545 = vld [vmem:[#allocation2 + $0x14f] sm:$0xff]
      %v1546 = vld [vmem:[#allocation2 + $0x157] sm:$0xff]
      %v1547 = vld [vmem:[#allocation2 + $0x15f] sm:$0xff]
      %v1548 = vld [vmem:[#allocation2 + $0x167] sm:$0xff]
      %v1549 = vld [vmem:[#allocation2 + $0x16f] sm:$0xff]
      %v1550 = vld [vmem:[#allocation2 + $0x177] sm:$0xff]
      %v1551 = vld [vmem:[#allocation2 + $0x17f] sm:$0xff]
      %v1552 = vld [vmem:[#allocation2 + $0x187] sm:$0xff]
      %v1553 = vld [vmem:[#allocation2 + $0x18f] sm:$0xff]
      %v1554 = vld [vmem:[#allocation2 + $0x197] sm:$0xff]
      %v1555 = vld [vmem:[#allocation2 + $0x19f] sm:$0xff]
      %v1556 = vld [vmem:[#allocation2 + $0x1a7] sm:$0xff]
      %v1557 = vld [vmem:[#allocation2 + $0x1af] sm:$0xff]
      %v1558 = vld [vmem:[#allocation2 + $0x1b7] sm:$0xff]
      %v1559 = vld [vmem:[#allocation2 + $0x1bf] sm:$0xff]
      %v1560 = vld [vmem:[#allocation2 + $0x1c7] sm:$0xff]
      %v1561 = vld [vmem:[#allocation2 + $0x1cf] sm:$0xff]
      %v1562 = vld [vmem:[#allocation2 + $0x1d7] sm:$0xff]
      %v1563 = vld [vmem:[#allocation2 + $0x1df] sm:$0xff]
      %v1564 = vld [vmem:[#allocation2 + $0x1e7] sm:$0xff]
      %v1565 = vld [vmem:[#allocation2 + $0x1ef] sm:$0xff]
      %v1566 = vld [vmem:[#allocation2 + $0x1f7] sm:$0xff]
      %v1567 = vpack.c.bf16 %v1536, %v1535
      %v1568 = vpack.c.bf16 %v1538, %v1537
      %v1569 = vpack.c.bf16 %v1540, %v1539
      %v1570 = vpack.c.bf16 %v1542, %v1541
      %v1571 = vpack.c.bf16 %v1544, %v1543
      %v1572 = vpack.c.bf16 %v1546, %v1545
      %v1573 = vpack.c.bf16 %v1548, %v1547
      %v1574 = vpack.c.bf16 %v1550, %v1549
      %v1575 = vpack.c.bf16 %v1552, %v1551
      %v1576 = vpack.c.bf16 %v1554, %v1553
      %v1577 = vpack.c.bf16 %v1556, %v1555
      %v1578 = vpack.c.bf16 %v1558, %v1557
      %v1579 = vpack.c.bf16 %v1560, %v1559
      %v1580 = vpack.c.bf16 %v1562, %v1561
      %v1581 = vpack.c.bf16 %v1564, %v1563
      %v1582 = vpack.c.bf16 %v1566, %v1565
      %v1583 = vld [vmem:[%s4 + $0x60] sm:$0xf]
      %v1584 = vld [vmem:[%s4 + $0x64] sm:$0xf]
      %v1585 = vld [vmem:[%s4 + $0x68] sm:$0xf]
      %v1586 = vld [vmem:[%s4 + $0x6c] sm:$0xf]
      %v1587 = vld [vmem:[%s4 + $0x70] sm:$0xf]
      %v1588 = vld [vmem:[%s4 + $0x74] sm:$0xf]
      %v1589 = vld [vmem:[%s4 + $0x78] sm:$0xf]
      %v1590 = vld [vmem:[%s4 + $0x7c] sm:$0xf]
      %v1599 = vunpack.c.l.b16 %v1583
      %v1600 = vunpack.c.l.b16 %v1584
      %v1601 = vunpack.c.l.b16 %v1585
      %v1602 = vunpack.c.l.b16 %v1586
      %v1603 = vunpack.c.l.b16 %v1587
      %v1604 = vunpack.c.l.b16 %v1588
      %v1605 = vunpack.c.l.b16 %v1589
      %v1606 = vunpack.c.l.b16 %v1590
      %v1607 = vpack.c.b16 %v1600, %v1599
      %v1608 = vpack.c.b16 %v1602, %v1601
      %v1609 = vpack.c.b16 %v1604, %v1603
      %v1610 = vpack.c.b16 %v1606, %v1605
      %v1616 = vsel %vm411, %v1567, 0
      %v1619 = vsel %vm411, %v1568, 0
      %v1622 = vsel %vm411, %v1569, 0
      %v1625 = vsel %vm411, %v1570, 0
      %v1628 = vsel %vm411, %v1571, 0
      %v1631 = vsel %vm411, %v1572, 0
      %v1634 = vsel %vm411, %v1573, 0
      %v1637 = vsel %vm411, %v1574, 0
      %v1640 = vsel %vm411, %v1575, 0
      %v1643 = vsel %vm411, %v1576, 0
      %v1646 = vsel %vm411, %v1577, 0
      %v1649 = vsel %vm411, %v1578, 0
      %v1652 = vsel %vm411, %v1579, 0
      %v1655 = vsel %vm411, %v1580, 0
      %v1658 = vsel %vm411, %v1581, 0
      %v1661 = vsel %vm411, %v1582, 0
      %1663 = vmatprep.subr.bf16.mxu0 0
      %1664 = vmatpush1.bf16.msra.mxu0 0
      %1665 = vmatprep.subr.bf16.mxu0 0
      %1666 = vmatpush1.bf16.msra.mxu0 0
      %1667 = vmatprep.subr.bf16.mxu0 0
      %1668 = vmatpush1.bf16.msra.mxu0 0
      %1669 = vmatprep.subr.bf16.mxu0 0
      %1670 = vmatpush1.bf16.msra.mxu0 0
      %1671 = vmatprep.subr.bf16.mxu0 0
      %1672 = vmatpush1.bf16.msra.mxu0 %v1610
      %1673 = vmatprep.subr.bf16.mxu0 0
      %1674 = vmatpush1.bf16.msra.mxu0 %v1609
      %1675 = vmatprep.subr.bf16.mxu0 0
      %1676 = vmatpush1.bf16.msra.mxu0 %v1608
      %1677 = vmatprep.subr.bf16.mxu0 0
      %1678 = vmatpush1.bf16.msra.mxu0 %v1607
      %1679 = vmatprep.subr.bf16.mxu0 0
      %1680 = vmatpush2.bf16.msra.mxu0 0
      %1681 = vmatprep.subr.bf16.mxu0 0
      %1682 = vmatpush2.bf16.msra.mxu0 0
      %1683 = vmatprep.subr.bf16.mxu0 0
      %1684 = vmatpush2.bf16.msra.mxu0 0
      %1685 = vmatprep.subr.bf16.mxu0 0
      %1686 = vmatpush2.bf16.msra.mxu0 0
      %1687 = vmatprep.subr.bf16.mxu0 0
      %1688 = vmatpush2.bf16.msra.mxu0 0
      %1689 = vmatprep.subr.bf16.mxu0 0
      %1690 = vmatpush2.bf16.msra.mxu0 0
      %1691 = vmatprep.subr.bf16.mxu0 0
      %1692 = vmatpush2.bf16.msra.mxu0 0
      %1693 = vmatprep.subr.bf16.mxu0 0
      %1694 = vmatpush2.bf16.msra.mxu0 0
      %1695 = vmatprep.mubr.bf16.mxu0 0
      %1696 = vmatmul.mubr.bf16.gmra.mxu0 %v1616
      %v1697 = vpop.f32.mrf.mxu0
      %v1698 = vadd.f32 0.0, %v1697
      %v1699 = vpop.f32.mrf.mxu0
      %v1700 = vpop.f32.mrf.mxu0
      %v1701 = vadd.f32 0.0, %v1700
      %v1702 = vpop.f32.mrf.mxu0
      %1703 = vmatprep.mubr.bf16.mxu0 0
      %1704 = vmatmul.mubr.bf16.gmra.mxu0 %v1619
      %v1705 = vpop.f32.mrf.mxu0
      %v1706 = vadd.f32 0.0, %v1705
      %v1707 = vpop.f32.mrf.mxu0
      %v1708 = vpop.f32.mrf.mxu0
      %v1709 = vadd.f32 0.0, %v1708
      %v1710 = vpop.f32.mrf.mxu0
      %1711 = vmatprep.mubr.bf16.mxu0 0
      %1712 = vmatmul.mubr.bf16.gmra.mxu0 %v1622
      %v1713 = vpop.f32.mrf.mxu0
      %v1714 = vadd.f32 0.0, %v1713
      %v1715 = vpop.f32.mrf.mxu0
      %v1716 = vpop.f32.mrf.mxu0
      %v1717 = vadd.f32 0.0, %v1716
      %v1718 = vpop.f32.mrf.mxu0
      %1719 = vmatprep.mubr.bf16.mxu0 0
      %1720 = vmatmul.mubr.bf16.gmra.mxu0 %v1625
      %v1721 = vpop.f32.mrf.mxu0
      %v1722 = vadd.f32 0.0, %v1721
      %v1723 = vpop.f32.mrf.mxu0
      %v1724 = vpop.f32.mrf.mxu0
      %v1725 = vadd.f32 0.0, %v1724
      %v1726 = vpop.f32.mrf.mxu0
      %1727 = vmatprep.mubr.bf16.mxu0 0
      %1728 = vmatmul.mubr.bf16.gmra.mxu0 %v1628
      %v1729 = vpop.f32.mrf.mxu0
      %v1730 = vadd.f32 0.0, %v1729
      %v1731 = vpop.f32.mrf.mxu0
      %v1732 = vpop.f32.mrf.mxu0
      %v1733 = vadd.f32 0.0, %v1732
      %v1734 = vpop.f32.mrf.mxu0
      %1735 = vmatprep.mubr.bf16.mxu0 0
      %1736 = vmatmul.mubr.bf16.gmra.mxu0 %v1631
      %v1737 = vpop.f32.mrf.mxu0
      %v1738 = vadd.f32 0.0, %v1737
      %v1739 = vpop.f32.mrf.mxu0
      %v1740 = vpop.f32.mrf.mxu0
      %v1741 = vadd.f32 0.0, %v1740
      %v1742 = vpop.f32.mrf.mxu0
      %1743 = vmatprep.mubr.bf16.mxu0 0
      %1744 = vmatmul.mubr.bf16.gmra.mxu0 %v1634
      %v1745 = vpop.f32.mrf.mxu0
      %v1746 = vadd.f32 0.0, %v1745
      %v1747 = vpop.f32.mrf.mxu0
      %v1748 = vpop.f32.mrf.mxu0
      %v1749 = vadd.f32 0.0, %v1748
      %v1750 = vpop.f32.mrf.mxu0
      %1751 = vmatprep.mubr.bf16.mxu0 0
      %1752 = vmatmul.mubr.bf16.gmra.mxu0 %v1637
      %v1753 = vpop.f32.mrf.mxu0
      %v1754 = vadd.f32 0.0, %v1753
      %v1755 = vpop.f32.mrf.mxu0
      %v1756 = vpop.f32.mrf.mxu0
      %v1757 = vadd.f32 0.0, %v1756
      %v1758 = vpop.f32.mrf.mxu0
      %1759 = vmatprep.mubr.bf16.mxu0 0
      %1760 = vmatmul.mubr.bf16.gmra.mxu0 %v1640
      %v1761 = vpop.f32.mrf.mxu0
      %v1762 = vadd.f32 0.0, %v1761
      %v1763 = vpop.f32.mrf.mxu0
      %v1764 = vpop.f32.mrf.mxu0
      %v1765 = vadd.f32 0.0, %v1764
      %v1766 = vpop.f32.mrf.mxu0
      %1767 = vmatprep.mubr.bf16.mxu0 0
      %1768 = vmatmul.mubr.bf16.gmra.mxu0 %v1643
      %v1769 = vpop.f32.mrf.mxu0
      %v1770 = vadd.f32 0.0, %v1769
      %v1771 = vpop.f32.mrf.mxu0
      %v1772 = vpop.f32.mrf.mxu0
      %v1773 = vadd.f32 0.0, %v1772
      %v1774 = vpop.f32.mrf.mxu0
      %1775 = vmatprep.mubr.bf16.mxu0 0
      %1776 = vmatmul.mubr.bf16.gmra.mxu0 %v1646
      %v1777 = vpop.f32.mrf.mxu0
      %v1778 = vadd.f32 0.0, %v1777
      %v1779 = vpop.f32.mrf.mxu0
      %v1780 = vpop.f32.mrf.mxu0
      %v1781 = vadd.f32 0.0, %v1780
      %v1782 = vpop.f32.mrf.mxu0
      %1783 = vmatprep.mubr.bf16.mxu0 0
      %1784 = vmatmul.mubr.bf16.gmra.mxu0 %v1649
      %v1785 = vpop.f32.mrf.mxu0
      %v1786 = vadd.f32 0.0, %v1785
      %v1787 = vpop.f32.mrf.mxu0
      %v1788 = vpop.f32.mrf.mxu0
      %v1789 = vadd.f32 0.0, %v1788
      %v1790 = vpop.f32.mrf.mxu0
      %1791 = vmatprep.mubr.bf16.mxu0 0
      %1792 = vmatmul.mubr.bf16.gmra.mxu0 %v1652
      %v1793 = vpop.f32.mrf.mxu0
      %v1794 = vadd.f32 0.0, %v1793
      %v1795 = vpop.f32.mrf.mxu0
      %v1796 = vpop.f32.mrf.mxu0
      %v1797 = vadd.f32 0.0, %v1796
      %v1798 = vpop.f32.mrf.mxu0
      %1799 = vmatprep.mubr.bf16.mxu0 0
      %1800 = vmatmul.mubr.bf16.gmra.mxu0 %v1655
      %v1801 = vpop.f32.mrf.mxu0
      %v1802 = vadd.f32 0.0, %v1801
      %v1803 = vpop.f32.mrf.mxu0
      %v1804 = vpop.f32.mrf.mxu0
      %v1805 = vadd.f32 0.0, %v1804
      %v1806 = vpop.f32.mrf.mxu0
      %1807 = vmatprep.mubr.bf16.mxu0 0
      %1808 = vmatmul.mubr.bf16.gmra.mxu0 %v1658
      %v1809 = vpop.f32.mrf.mxu0
      %v1810 = vadd.f32 0.0, %v1809
      %v1811 = vpop.f32.mrf.mxu0
      %v1812 = vpop.f32.mrf.mxu0
      %v1813 = vadd.f32 0.0, %v1812
      %v1814 = vpop.f32.mrf.mxu0
      %1815 = vmatprep.mubr.bf16.mxu0 0
      %1816 = vmatmul.mubr.bf16.gmra.mxu0 %v1661
      %v1817 = vpop.f32.mrf.mxu0
      %v1818 = vadd.f32 0.0, %v1817
      %v1819 = vpop.f32.mrf.mxu0
      %v1820 = vpop.f32.mrf.mxu0
      %v1821 = vadd.f32 0.0, %v1820
      %v1822 = vpop.f32.mrf.mxu0
      %1823 = vdwg.mxu0
      %v1824 = vadd.f32 %v1503, %v1698
      %v1825 = vadd.f32 %v1504, %v1701
      %v1826 = vadd.f32 %v1505, %v1706
      %v1827 = vadd.f32 %v1506, %v1709
      %v1828 = vadd.f32 %v1507, %v1714
      %v1829 = vadd.f32 %v1508, %v1717
      %v1830 = vadd.f32 %v1509, %v1722
      %v1831 = vadd.f32 %v1510, %v1725
      %v1832 = vadd.f32 %v1511, %v1730
      %v1833 = vadd.f32 %v1512, %v1733
      %v1834 = vadd.f32 %v1513, %v1738
      %v1835 = vadd.f32 %v1514, %v1741
      %v1836 = vadd.f32 %v1515, %v1746
      %v1837 = vadd.f32 %v1516, %v1749
      %v1838 = vadd.f32 %v1517, %v1754
      %v1839 = vadd.f32 %v1518, %v1757
      %v1840 = vadd.f32 %v1519, %v1762
      %v1841 = vadd.f32 %v1520, %v1765
      %v1842 = vadd.f32 %v1521, %v1770
      %v1843 = vadd.f32 %v1522, %v1773
      %v1844 = vadd.f32 %v1523, %v1778
      %v1845 = vadd.f32 %v1524, %v1781
      %v1846 = vadd.f32 %v1525, %v1786
      %v1847 = vadd.f32 %v1526, %v1789
      %v1848 = vadd.f32 %v1527, %v1794
      %v1849 = vadd.f32 %v1528, %v1797
      %v1850 = vadd.f32 %v1529, %v1802
      %v1851 = vadd.f32 %v1530, %v1805
      %v1852 = vadd.f32 %v1531, %v1810
      %v1853 = vadd.f32 %v1532, %v1813
      %v1854 = vadd.f32 %v1533, %v1818
      %v1855 = vadd.f32 %v1534, %v1821
      %v1856 = vld [vmem:[#allocation2 + $0x100] sm:$0xff]
      %v1857 = vld [vmem:[#allocation2 + $0x108] sm:$0xff]
      %v1858 = vld [vmem:[#allocation2 + $0x110] sm:$0xff]
      %v1859 = vld [vmem:[#allocation2 + $0x118] sm:$0xff]
      %v1860 = vld [vmem:[#allocation2 + $0x120] sm:$0xff]
      %v1861 = vld [vmem:[#allocation2 + $0x128] sm:$0xff]
      %v1862 = vld [vmem:[#allocation2 + $0x130] sm:$0xff]
      %v1863 = vld [vmem:[#allocation2 + $0x138] sm:$0xff]
      %v1864 = vld [vmem:[#allocation2 + $0x140] sm:$0xff]
      %v1865 = vld [vmem:[#allocation2 + $0x148] sm:$0xff]
      %v1866 = vld [vmem:[#allocation2 + $0x150] sm:$0xff]
      %v1867 = vld [vmem:[#allocation2 + $0x158] sm:$0xff]
      %v1868 = vld [vmem:[#allocation2 + $0x160] sm:$0xff]
      %v1869 = vld [vmem:[#allocation2 + $0x168] sm:$0xff]
      %v1870 = vld [vmem:[#allocation2 + $0x170] sm:$0xff]
      %v1871 = vld [vmem:[#allocation2 + $0x178] sm:$0xff]
      %v1872 = vld [vmem:[#allocation2 + $0x180] sm:$0xff]
      %v1873 = vld [vmem:[#allocation2 + $0x188] sm:$0xff]
      %v1874 = vld [vmem:[#allocation2 + $0x190] sm:$0xff]
      %v1875 = vld [vmem:[#allocation2 + $0x198] sm:$0xff]
      %v1876 = vld [vmem:[#allocation2 + $0x1a0] sm:$0xff]
      %v1877 = vld [vmem:[#allocation2 + $0x1a8] sm:$0xff]
      %v1878 = vld [vmem:[#allocation2 + $0x1b0] sm:$0xff]
      %v1879 = vld [vmem:[#allocation2 + $0x1b8] sm:$0xff]
      %v1880 = vld [vmem:[#allocation2 + $0x1c0] sm:$0xff]
      %v1881 = vld [vmem:[#allocation2 + $0x1c8] sm:$0xff]
      %v1882 = vld [vmem:[#allocation2 + $0x1d0] sm:$0xff]
      %v1883 = vld [vmem:[#allocation2 + $0x1d8] sm:$0xff]
      %v1884 = vld [vmem:[#allocation2 + $0x1e0] sm:$0xff]
      %v1885 = vld [vmem:[#allocation2 + $0x1e8] sm:$0xff]
      %v1886 = vld [vmem:[#allocation2 + $0x1f0] sm:$0xff]
      %v1887 = vld [vmem:[#allocation2 + $0x1f8] sm:$0xff]
      %v1888 = vpack.c.bf16 %v1857, %v1856
      %v1889 = vpack.c.bf16 %v1859, %v1858
      %v1890 = vpack.c.bf16 %v1861, %v1860
      %v1891 = vpack.c.bf16 %v1863, %v1862
      %v1892 = vpack.c.bf16 %v1865, %v1864
      %v1893 = vpack.c.bf16 %v1867, %v1866
      %v1894 = vpack.c.bf16 %v1869, %v1868
      %v1895 = vpack.c.bf16 %v1871, %v1870
      %v1896 = vpack.c.bf16 %v1873, %v1872
      %v1897 = vpack.c.bf16 %v1875, %v1874
      %v1898 = vpack.c.bf16 %v1877, %v1876
      %v1899 = vpack.c.bf16 %v1879, %v1878
      %v1900 = vpack.c.bf16 %v1881, %v1880
      %v1901 = vpack.c.bf16 %v1883, %v1882
      %v1902 = vpack.c.bf16 %v1885, %v1884
      %v1903 = vpack.c.bf16 %v1887, %v1886
      %v1904 = vld [vmem:[%s4 + $0x80] sm:$0xf]
      %v1905 = vld [vmem:[%s4 + $0x84] sm:$0xf]
      %v1906 = vld [vmem:[%s4 + $0x88] sm:$0xf]
      %v1907 = vld [vmem:[%s4 + $0x8c] sm:$0xf]
      %v1908 = vld [vmem:[%s4 + $0x90] sm:$0xf]
      %v1909 = vld [vmem:[%s4 + $0x94] sm:$0xf]
      %v1910 = vld [vmem:[%s4 + $0x98] sm:$0xf]
      %v1911 = vld [vmem:[%s4 + $0x9c] sm:$0xf]
      %v1920 = vunpack.c.l.b16 %v1904
      %v1921 = vunpack.c.l.b16 %v1905
      %v1922 = vunpack.c.l.b16 %v1906
      %v1923 = vunpack.c.l.b16 %v1907
      %v1924 = vunpack.c.l.b16 %v1908
      %v1925 = vunpack.c.l.b16 %v1909
      %v1926 = vunpack.c.l.b16 %v1910
      %v1927 = vunpack.c.l.b16 %v1911
      %v1928 = vpack.c.b16 %v1921, %v1920
      %v1929 = vpack.c.b16 %v1923, %v1922
      %v1930 = vpack.c.b16 %v1925, %v1924
      %v1931 = vpack.c.b16 %v1927, %v1926
      %v1937 = vsel %vm411, %v1888, 0
      %v1940 = vsel %vm411, %v1889, 0
      %v1943 = vsel %vm411, %v1890, 0
      %v1946 = vsel %vm411, %v1891, 0
      %v1949 = vsel %vm411, %v1892, 0
      %v1952 = vsel %vm411, %v1893, 0
      %v1955 = vsel %vm411, %v1894, 0
      %v1958 = vsel %vm411, %v1895, 0
      %v1961 = vsel %vm411, %v1896, 0
      %v1964 = vsel %vm411, %v1897, 0
      %v1967 = vsel %vm411, %v1898, 0
      %v1970 = vsel %vm411, %v1899, 0
      %v1973 = vsel %vm411, %v1900, 0
      %v1976 = vsel %vm411, %v1901, 0
      %v1979 = vsel %vm411, %v1902, 0
      %v1982 = vsel %vm411, %v1903, 0
      %1984 = vmatprep.subr.bf16.mxu0 0
      %1985 = vmatpush1.bf16.msra.mxu0 0
      %1986 = vmatprep.subr.bf16.mxu0 0
      %1987 = vmatpush1.bf16.msra.mxu0 0
      %1988 = vmatprep.subr.bf16.mxu0 0
      %1989 = vmatpush1.bf16.msra.mxu0 0
      %1990 = vmatprep.subr.bf16.mxu0 0
      %1991 = vmatpush1.bf16.msra.mxu0 0
      %1992 = vmatprep.subr.bf16.mxu0 0
      %1993 = vmatpush1.bf16.msra.mxu0 %v1931
      %1994 = vmatprep.subr.bf16.mxu0 0
      %1995 = vmatpush1.bf16.msra.mxu0 %v1930
      %1996 = vmatprep.subr.bf16.mxu0 0
      %1997 = vmatpush1.bf16.msra.mxu0 %v1929
      %1998 = vmatprep.subr.bf16.mxu0 0
      %1999 = vmatpush1.bf16.msra.mxu0 %v1928
      %2000 = vmatprep.subr.bf16.mxu0 0
      %2001 = vmatpush2.bf16.msra.mxu0 0
      %2002 = vmatprep.subr.bf16.mxu0 0
      %2003 = vmatpush2.bf16.msra.mxu0 0
      %2004 = vmatprep.subr.bf16.mxu0 0
      %2005 = vmatpush2.bf16.msra.mxu0 0
      %2006 = vmatprep.subr.bf16.mxu0 0
      %2007 = vmatpush2.bf16.msra.mxu0 0
      %2008 = vmatprep.subr.bf16.mxu0 0
      %2009 = vmatpush2.bf16.msra.mxu0 0
      %2010 = vmatprep.subr.bf16.mxu0 0
      %2011 = vmatpush2.bf16.msra.mxu0 0
      %2012 = vmatprep.subr.bf16.mxu0 0
      %2013 = vmatpush2.bf16.msra.mxu0 0
      %2014 = vmatprep.subr.bf16.mxu0 0
      %2015 = vmatpush2.bf16.msra.mxu0 0
      %2016 = vmatprep.mubr.bf16.mxu0 0
      %2017 = vmatmul.mubr.bf16.gmra.mxu0 %v1937
      %v2018 = vpop.f32.mrf.mxu0
      %v2019 = vadd.f32 0.0, %v2018
      %v2020 = vpop.f32.mrf.mxu0
      %v2021 = vpop.f32.mrf.mxu0
      %v2022 = vadd.f32 0.0, %v2021
      %v2023 = vpop.f32.mrf.mxu0
      %2024 = vmatprep.mubr.bf16.mxu0 0
      %2025 = vmatmul.mubr.bf16.gmra.mxu0 %v1940
      %v2026 = vpop.f32.mrf.mxu0
      %v2027 = vadd.f32 0.0, %v2026
      %v2028 = vpop.f32.mrf.mxu0
      %v2029 = vpop.f32.mrf.mxu0
      %v2030 = vadd.f32 0.0, %v2029
      %v2031 = vpop.f32.mrf.mxu0
      %2032 = vmatprep.mubr.bf16.mxu0 0
      %2033 = vmatmul.mubr.bf16.gmra.mxu0 %v1943
      %v2034 = vpop.f32.mrf.mxu0
      %v2035 = vadd.f32 0.0, %v2034
      %v2036 = vpop.f32.mrf.mxu0
      %v2037 = vpop.f32.mrf.mxu0
      %v2038 = vadd.f32 0.0, %v2037
      %v2039 = vpop.f32.mrf.mxu0
      %2040 = vmatprep.mubr.bf16.mxu0 0
      %2041 = vmatmul.mubr.bf16.gmra.mxu0 %v1946
      %v2042 = vpop.f32.mrf.mxu0
      %v2043 = vadd.f32 0.0, %v2042
      %v2044 = vpop.f32.mrf.mxu0
      %v2045 = vpop.f32.mrf.mxu0
      %v2046 = vadd.f32 0.0, %v2045
      %v2047 = vpop.f32.mrf.mxu0
      %2048 = vmatprep.mubr.bf16.mxu0 0
      %2049 = vmatmul.mubr.bf16.gmra.mxu0 %v1949
      %v2050 = vpop.f32.mrf.mxu0
      %v2051 = vadd.f32 0.0, %v2050
      %v2052 = vpop.f32.mrf.mxu0
      %v2053 = vpop.f32.mrf.mxu0
      %v2054 = vadd.f32 0.0, %v2053
      %v2055 = vpop.f32.mrf.mxu0
      %2056 = vmatprep.mubr.bf16.mxu0 0
      %2057 = vmatmul.mubr.bf16.gmra.mxu0 %v1952
      %v2058 = vpop.f32.mrf.mxu0
      %v2059 = vadd.f32 0.0, %v2058
      %v2060 = vpop.f32.mrf.mxu0
      %v2061 = vpop.f32.mrf.mxu0
      %v2062 = vadd.f32 0.0, %v2061
      %v2063 = vpop.f32.mrf.mxu0
      %2064 = vmatprep.mubr.bf16.mxu0 0
      %2065 = vmatmul.mubr.bf16.gmra.mxu0 %v1955
      %v2066 = vpop.f32.mrf.mxu0
      %v2067 = vadd.f32 0.0, %v2066
      %v2068 = vpop.f32.mrf.mxu0
      %v2069 = vpop.f32.mrf.mxu0
      %v2070 = vadd.f32 0.0, %v2069
      %v2071 = vpop.f32.mrf.mxu0
      %2072 = vmatprep.mubr.bf16.mxu0 0
      %2073 = vmatmul.mubr.bf16.gmra.mxu0 %v1958
      %v2074 = vpop.f32.mrf.mxu0
      %v2075 = vadd.f32 0.0, %v2074
      %v2076 = vpop.f32.mrf.mxu0
      %v2077 = vpop.f32.mrf.mxu0
      %v2078 = vadd.f32 0.0, %v2077
      %v2079 = vpop.f32.mrf.mxu0
      %2080 = vmatprep.mubr.bf16.mxu0 0
      %2081 = vmatmul.mubr.bf16.gmra.mxu0 %v1961
      %v2082 = vpop.f32.mrf.mxu0
      %v2083 = vadd.f32 0.0, %v2082
      %v2084 = vpop.f32.mrf.mxu0
      %v2085 = vpop.f32.mrf.mxu0
      %v2086 = vadd.f32 0.0, %v2085
      %v2087 = vpop.f32.mrf.mxu0
      %2088 = vmatprep.mubr.bf16.mxu0 0
      %2089 = vmatmul.mubr.bf16.gmra.mxu0 %v1964
      %v2090 = vpop.f32.mrf.mxu0
      %v2091 = vadd.f32 0.0, %v2090
      %v2092 = vpop.f32.mrf.mxu0
      %v2093 = vpop.f32.mrf.mxu0
      %v2094 = vadd.f32 0.0, %v2093
      %v2095 = vpop.f32.mrf.mxu0
      %2096 = vmatprep.mubr.bf16.mxu0 0
      %2097 = vmatmul.mubr.bf16.gmra.mxu0 %v1967
      %v2098 = vpop.f32.mrf.mxu0
      %v2099 = vadd.f32 0.0, %v2098
      %v2100 = vpop.f32.mrf.mxu0
      %v2101 = vpop.f32.mrf.mxu0
      %v2102 = vadd.f32 0.0, %v2101
      %v2103 = vpop.f32.mrf.mxu0
      %2104 = vmatprep.mubr.bf16.mxu0 0
      %2105 = vmatmul.mubr.bf16.gmra.mxu0 %v1970
      %v2106 = vpop.f32.mrf.mxu0
      %v2107 = vadd.f32 0.0, %v2106
      %v2108 = vpop.f32.mrf.mxu0
      %v2109 = vpop.f32.mrf.mxu0
      %v2110 = vadd.f32 0.0, %v2109
      %v2111 = vpop.f32.mrf.mxu0
      %2112 = vmatprep.mubr.bf16.mxu0 0
      %2113 = vmatmul.mubr.bf16.gmra.mxu0 %v1973
      %v2114 = vpop.f32.mrf.mxu0
      %v2115 = vadd.f32 0.0, %v2114
      %v2116 = vpop.f32.mrf.mxu0
      %v2117 = vpop.f32.mrf.mxu0
      %v2118 = vadd.f32 0.0, %v2117
      %v2119 = vpop.f32.mrf.mxu0
      %2120 = vmatprep.mubr.bf16.mxu0 0
      %2121 = vmatmul.mubr.bf16.gmra.mxu0 %v1976
      %v2122 = vpop.f32.mrf.mxu0
      %v2123 = vadd.f32 0.0, %v2122
      %v2124 = vpop.f32.mrf.mxu0
      %v2125 = vpop.f32.mrf.mxu0
      %v2126 = vadd.f32 0.0, %v2125
      %v2127 = vpop.f32.mrf.mxu0
      %2128 = vmatprep.mubr.bf16.mxu0 0
      %2129 = vmatmul.mubr.bf16.gmra.mxu0 %v1979
      %v2130 = vpop.f32.mrf.mxu0
      %v2131 = vadd.f32 0.0, %v2130
      %v2132 = vpop.f32.mrf.mxu0
      %v2133 = vpop.f32.mrf.mxu0
      %v2134 = vadd.f32 0.0, %v2133
      %v2135 = vpop.f32.mrf.mxu0
      %2136 = vmatprep.mubr.bf16.mxu0 0
      %2137 = vmatmul.mubr.bf16.gmra.mxu0 %v1982
      %v2138 = vpop.f32.mrf.mxu0
      %v2139 = vadd.f32 0.0, %v2138
      %v2140 = vpop.f32.mrf.mxu0
      %v2141 = vpop.f32.mrf.mxu0
      %v2142 = vadd.f32 0.0, %v2141
      %v2143 = vpop.f32.mrf.mxu0
      %2144 = vdwg.mxu0
      %v2145 = vadd.f32 %v1824, %v2019
      %v2146 = vadd.f32 %v1825, %v2022
      %v2147 = vadd.f32 %v1826, %v2027
      %v2148 = vadd.f32 %v1827, %v2030
      %v2149 = vadd.f32 %v1828, %v2035
      %v2150 = vadd.f32 %v1829, %v2038
      %v2151 = vadd.f32 %v1830, %v2043
      %v2152 = vadd.f32 %v1831, %v2046
      %v2153 = vadd.f32 %v1832, %v2051
      %v2154 = vadd.f32 %v1833, %v2054
      %v2155 = vadd.f32 %v1834, %v2059
      %v2156 = vadd.f32 %v1835, %v2062
      %v2157 = vadd.f32 %v1836, %v2067
      %v2158 = vadd.f32 %v1837, %v2070
      %v2159 = vadd.f32 %v1838, %v2075
      %v2160 = vadd.f32 %v1839, %v2078
      %v2161 = vadd.f32 %v1840, %v2083
      %v2162 = vadd.f32 %v1841, %v2086
      %v2163 = vadd.f32 %v1842, %v2091
      %v2164 = vadd.f32 %v1843, %v2094
      %v2165 = vadd.f32 %v1844, %v2099
      %v2166 = vadd.f32 %v1845, %v2102
      %v2167 = vadd.f32 %v1846, %v2107
      %v2168 = vadd.f32 %v1847, %v2110
      %v2169 = vadd.f32 %v1848, %v2115
      %v2170 = vadd.f32 %v1849, %v2118
      %v2171 = vadd.f32 %v1850, %v2123
      %v2172 = vadd.f32 %v1851, %v2126
      %v2173 = vadd.f32 %v1852, %v2131
      %v2174 = vadd.f32 %v1853, %v2134
      %v2175 = vadd.f32 %v1854, %v2139
      %v2176 = vadd.f32 %v1855, %v2142
      %v2177 = vld [vmem:[#allocation2 + $0x101] sm:$0xff]
      %v2178 = vld [vmem:[#allocation2 + $0x109] sm:$0xff]
      %v2179 = vld [vmem:[#allocation2 + $0x111] sm:$0xff]
      %v2180 = vld [vmem:[#allocation2 + $0x119] sm:$0xff]
      %v2181 = vld [vmem:[#allocation2 + $0x121] sm:$0xff]
      %v2182 = vld [vmem:[#allocation2 + $0x129] sm:$0xff]
      %v2183 = vld [vmem:[#allocation2 + $0x131] sm:$0xff]
      %v2184 = vld [vmem:[#allocation2 + $0x139] sm:$0xff]
      %v2185 = vld [vmem:[#allocation2 + $0x141] sm:$0xff]
      %v2186 = vld [vmem:[#allocation2 + $0x149] sm:$0xff]
      %v2187 = vld [vmem:[#allocation2 + $0x151] sm:$0xff]
      %v2188 = vld [vmem:[#allocation2 + $0x159] sm:$0xff]
      %v2189 = vld [vmem:[#allocation2 + $0x161] sm:$0xff]
      %v2190 = vld [vmem:[#allocation2 + $0x169] sm:$0xff]
      %v2191 = vld [vmem:[#allocation2 + $0x171] sm:$0xff]
      %v2192 = vld [vmem:[#allocation2 + $0x179] sm:$0xff]
      %v2193 = vld [vmem:[#allocation2 + $0x181] sm:$0xff]
      %v2194 = vld [vmem:[#allocation2 + $0x189] sm:$0xff]
      %v2195 = vld [vmem:[#allocation2 + $0x191] sm:$0xff]
      %v2196 = vld [vmem:[#allocation2 + $0x199] sm:$0xff]
      %v2197 = vld [vmem:[#allocation2 + $0x1a1] sm:$0xff]
      %v2198 = vld [vmem:[#allocation2 + $0x1a9] sm:$0xff]
      %v2199 = vld [vmem:[#allocation2 + $0x1b1] sm:$0xff]
      %v2200 = vld [vmem:[#allocation2 + $0x1b9] sm:$0xff]
      %v2201 = vld [vmem:[#allocation2 + $0x1c1] sm:$0xff]
      %v2202 = vld [vmem:[#allocation2 + $0x1c9] sm:$0xff]
      %v2203 = vld [vmem:[#allocation2 + $0x1d1] sm:$0xff]
      %v2204 = vld [vmem:[#allocation2 + $0x1d9] sm:$0xff]
      %v2205 = vld [vmem:[#allocation2 + $0x1e1] sm:$0xff]
      %v2206 = vld [vmem:[#allocation2 + $0x1e9] sm:$0xff]
      %v2207 = vld [vmem:[#allocation2 + $0x1f1] sm:$0xff]
      %v2208 = vld [vmem:[#allocation2 + $0x1f9] sm:$0xff]
      %v2209 = vpack.c.bf16 %v2178, %v2177
      %v2210 = vpack.c.bf16 %v2180, %v2179
      %v2211 = vpack.c.bf16 %v2182, %v2181
      %v2212 = vpack.c.bf16 %v2184, %v2183
      %v2213 = vpack.c.bf16 %v2186, %v2185
      %v2214 = vpack.c.bf16 %v2188, %v2187
      %v2215 = vpack.c.bf16 %v2190, %v2189
      %v2216 = vpack.c.bf16 %v2192, %v2191
      %v2217 = vpack.c.bf16 %v2194, %v2193
      %v2218 = vpack.c.bf16 %v2196, %v2195
      %v2219 = vpack.c.bf16 %v2198, %v2197
      %v2220 = vpack.c.bf16 %v2200, %v2199
      %v2221 = vpack.c.bf16 %v2202, %v2201
      %v2222 = vpack.c.bf16 %v2204, %v2203
      %v2223 = vpack.c.bf16 %v2206, %v2205
      %v2224 = vpack.c.bf16 %v2208, %v2207
      %v2225 = vld [vmem:[%s4 + $0xa0] sm:$0xf]
      %v2226 = vld [vmem:[%s4 + $0xa4] sm:$0xf]
      %v2227 = vld [vmem:[%s4 + $0xa8] sm:$0xf]
      %v2228 = vld [vmem:[%s4 + $0xac] sm:$0xf]
      %v2229 = vld [vmem:[%s4 + $0xb0] sm:$0xf]
      %v2230 = vld [vmem:[%s4 + $0xb4] sm:$0xf]
      %v2231 = vld [vmem:[%s4 + $0xb8] sm:$0xf]
      %v2232 = vld [vmem:[%s4 + $0xbc] sm:$0xf]
      %v2241 = vunpack.c.l.b16 %v2225
      %v2242 = vunpack.c.l.b16 %v2226
      %v2243 = vunpack.c.l.b16 %v2227
      %v2244 = vunpack.c.l.b16 %v2228
      %v2245 = vunpack.c.l.b16 %v2229
      %v2246 = vunpack.c.l.b16 %v2230
      %v2247 = vunpack.c.l.b16 %v2231
      %v2248 = vunpack.c.l.b16 %v2232
      %v2249 = vpack.c.b16 %v2242, %v2241
      %v2250 = vpack.c.b16 %v2244, %v2243
      %v2251 = vpack.c.b16 %v2246, %v2245
      %v2252 = vpack.c.b16 %v2248, %v2247
      %v2258 = vsel %vm411, %v2209, 0
      %v2261 = vsel %vm411, %v2210, 0
      %v2264 = vsel %vm411, %v2211, 0
      %v2267 = vsel %vm411, %v2212, 0
      %v2270 = vsel %vm411, %v2213, 0
      %v2273 = vsel %vm411, %v2214, 0
      %v2276 = vsel %vm411, %v2215, 0
      %v2279 = vsel %vm411, %v2216, 0
      %v2282 = vsel %vm411, %v2217, 0
      %v2285 = vsel %vm411, %v2218, 0
      %v2288 = vsel %vm411, %v2219, 0
      %v2291 = vsel %vm411, %v2220, 0
      %v2294 = vsel %vm411, %v2221, 0
      %v2297 = vsel %vm411, %v2222, 0
      %v2300 = vsel %vm411, %v2223, 0
      %v2303 = vsel %vm411, %v2224, 0
      %2305 = vmatprep.subr.bf16.mxu0 0
      %2306 = vmatpush1.bf16.msra.mxu0 0
      %2307 = vmatprep.subr.bf16.mxu0 0
      %2308 = vmatpush1.bf16.msra.mxu0 0
      %2309 = vmatprep.subr.bf16.mxu0 0
      %2310 = vmatpush1.bf16.msra.mxu0 0
      %2311 = vmatprep.subr.bf16.mxu0 0
      %2312 = vmatpush1.bf16.msra.mxu0 0
      %2313 = vmatprep.subr.bf16.mxu0 0
      %2314 = vmatpush1.bf16.msra.mxu0 %v2252
      %2315 = vmatprep.subr.bf16.mxu0 0
      %2316 = vmatpush1.bf16.msra.mxu0 %v2251
      %2317 = vmatprep.subr.bf16.mxu0 0
      %2318 = vmatpush1.bf16.msra.mxu0 %v2250
      %2319 = vmatprep.subr.bf16.mxu0 0
      %2320 = vmatpush1.bf16.msra.mxu0 %v2249
      %2321 = vmatprep.subr.bf16.mxu0 0
      %2322 = vmatpush2.bf16.msra.mxu0 0
      %2323 = vmatprep.subr.bf16.mxu0 0
      %2324 = vmatpush2.bf16.msra.mxu0 0
      %2325 = vmatprep.subr.bf16.mxu0 0
      %2326 = vmatpush2.bf16.msra.mxu0 0
      %2327 = vmatprep.subr.bf16.mxu0 0
      %2328 = vmatpush2.bf16.msra.mxu0 0
      %2329 = vmatprep.subr.bf16.mxu0 0
      %2330 = vmatpush2.bf16.msra.mxu0 0
      %2331 = vmatprep.subr.bf16.mxu0 0
      %2332 = vmatpush2.bf16.msra.mxu0 0
      %2333 = vmatprep.subr.bf16.mxu0 0
      %2334 = vmatpush2.bf16.msra.mxu0 0
      %2335 = vmatprep.subr.bf16.mxu0 0
      %2336 = vmatpush2.bf16.msra.mxu0 0
      %2337 = vmatprep.mubr.bf16.mxu0 0
      %2338 = vmatmul.mubr.bf16.gmra.mxu0 %v2258
      %v2339 = vpop.f32.mrf.mxu0
      %v2340 = vadd.f32 0.0, %v2339
      %v2341 = vpop.f32.mrf.mxu0
      %v2342 = vpop.f32.mrf.mxu0
      %v2343 = vadd.f32 0.0, %v2342
      %v2344 = vpop.f32.mrf.mxu0
      %2345 = vmatprep.mubr.bf16.mxu0 0
      %2346 = vmatmul.mubr.bf16.gmra.mxu0 %v2261
      %v2347 = vpop.f32.mrf.mxu0
      %v2348 = vadd.f32 0.0, %v2347
      %v2349 = vpop.f32.mrf.mxu0
      %v2350 = vpop.f32.mrf.mxu0
      %v2351 = vadd.f32 0.0, %v2350
      %v2352 = vpop.f32.mrf.mxu0
      %2353 = vmatprep.mubr.bf16.mxu0 0
      %2354 = vmatmul.mubr.bf16.gmra.mxu0 %v2264
      %v2355 = vpop.f32.mrf.mxu0
      %v2356 = vadd.f32 0.0, %v2355
      %v2357 = vpop.f32.mrf.mxu0
      %v2358 = vpop.f32.mrf.mxu0
      %v2359 = vadd.f32 0.0, %v2358
      %v2360 = vpop.f32.mrf.mxu0
      %2361 = vmatprep.mubr.bf16.mxu0 0
      %2362 = vmatmul.mubr.bf16.gmra.mxu0 %v2267
      %v2363 = vpop.f32.mrf.mxu0
      %v2364 = vadd.f32 0.0, %v2363
      %v2365 = vpop.f32.mrf.mxu0
      %v2366 = vpop.f32.mrf.mxu0
      %v2367 = vadd.f32 0.0, %v2366
      %v2368 = vpop.f32.mrf.mxu0
      %2369 = vmatprep.mubr.bf16.mxu0 0
      %2370 = vmatmul.mubr.bf16.gmra.mxu0 %v2270
      %v2371 = vpop.f32.mrf.mxu0
      %v2372 = vadd.f32 0.0, %v2371
      %v2373 = vpop.f32.mrf.mxu0
      %v2374 = vpop.f32.mrf.mxu0
      %v2375 = vadd.f32 0.0, %v2374
      %v2376 = vpop.f32.mrf.mxu0
      %2377 = vmatprep.mubr.bf16.mxu0 0
      %2378 = vmatmul.mubr.bf16.gmra.mxu0 %v2273
      %v2379 = vpop.f32.mrf.mxu0
      %v2380 = vadd.f32 0.0, %v2379
      %v2381 = vpop.f32.mrf.mxu0
      %v2382 = vpop.f32.mrf.mxu0
      %v2383 = vadd.f32 0.0, %v2382
      %v2384 = vpop.f32.mrf.mxu0
      %2385 = vmatprep.mubr.bf16.mxu0 0
      %2386 = vmatmul.mubr.bf16.gmra.mxu0 %v2276
      %v2387 = vpop.f32.mrf.mxu0
      %v2388 = vadd.f32 0.0, %v2387
      %v2389 = vpop.f32.mrf.mxu0
      %v2390 = vpop.f32.mrf.mxu0
      %v2391 = vadd.f32 0.0, %v2390
      %v2392 = vpop.f32.mrf.mxu0
      %2393 = vmatprep.mubr.bf16.mxu0 0
      %2394 = vmatmul.mubr.bf16.gmra.mxu0 %v2279
      %v2395 = vpop.f32.mrf.mxu0
      %v2396 = vadd.f32 0.0, %v2395
      %v2397 = vpop.f32.mrf.mxu0
      %v2398 = vpop.f32.mrf.mxu0
      %v2399 = vadd.f32 0.0, %v2398
      %v2400 = vpop.f32.mrf.mxu0
      %2401 = vmatprep.mubr.bf16.mxu0 0
      %2402 = vmatmul.mubr.bf16.gmra.mxu0 %v2282
      %v2403 = vpop.f32.mrf.mxu0
      %v2404 = vadd.f32 0.0, %v2403
      %v2405 = vpop.f32.mrf.mxu0
      %v2406 = vpop.f32.mrf.mxu0
      %v2407 = vadd.f32 0.0, %v2406
      %v2408 = vpop.f32.mrf.mxu0
      %2409 = vmatprep.mubr.bf16.mxu0 0
      %2410 = vmatmul.mubr.bf16.gmra.mxu0 %v2285
      %v2411 = vpop.f32.mrf.mxu0
      %v2412 = vadd.f32 0.0, %v2411
      %v2413 = vpop.f32.mrf.mxu0
      %v2414 = vpop.f32.mrf.mxu0
      %v2415 = vadd.f32 0.0, %v2414
      %v2416 = vpop.f32.mrf.mxu0
      %2417 = vmatprep.mubr.bf16.mxu0 0
      %2418 = vmatmul.mubr.bf16.gmra.mxu0 %v2288
      %v2419 = vpop.f32.mrf.mxu0
      %v2420 = vadd.f32 0.0, %v2419
      %v2421 = vpop.f32.mrf.mxu0
      %v2422 = vpop.f32.mrf.mxu0
      %v2423 = vadd.f32 0.0, %v2422
      %v2424 = vpop.f32.mrf.mxu0
      %2425 = vmatprep.mubr.bf16.mxu0 0
      %2426 = vmatmul.mubr.bf16.gmra.mxu0 %v2291
      %v2427 = vpop.f32.mrf.mxu0
      %v2428 = vadd.f32 0.0, %v2427
      %v2429 = vpop.f32.mrf.mxu0
      %v2430 = vpop.f32.mrf.mxu0
      %v2431 = vadd.f32 0.0, %v2430
      %v2432 = vpop.f32.mrf.mxu0
      %2433 = vmatprep.mubr.bf16.mxu0 0
      %2434 = vmatmul.mubr.bf16.gmra.mxu0 %v2294
      %v2435 = vpop.f32.mrf.mxu0
      %v2436 = vadd.f32 0.0, %v2435
      %v2437 = vpop.f32.mrf.mxu0
      %v2438 = vpop.f32.mrf.mxu0
      %v2439 = vadd.f32 0.0, %v2438
      %v2440 = vpop.f32.mrf.mxu0
      %2441 = vmatprep.mubr.bf16.mxu0 0
      %2442 = vmatmul.mubr.bf16.gmra.mxu0 %v2297
      %v2443 = vpop.f32.mrf.mxu0
      %v2444 = vadd.f32 0.0, %v2443
      %v2445 = vpop.f32.mrf.mxu0
      %v2446 = vpop.f32.mrf.mxu0
      %v2447 = vadd.f32 0.0, %v2446
      %v2448 = vpop.f32.mrf.mxu0
      %2449 = vmatprep.mubr.bf16.mxu0 0
      %2450 = vmatmul.mubr.bf16.gmra.mxu0 %v2300
      %v2451 = vpop.f32.mrf.mxu0
      %v2452 = vadd.f32 0.0, %v2451
      %v2453 = vpop.f32.mrf.mxu0
      %v2454 = vpop.f32.mrf.mxu0
      %v2455 = vadd.f32 0.0, %v2454
      %v2456 = vpop.f32.mrf.mxu0
      %2457 = vmatprep.mubr.bf16.mxu0 0
      %2458 = vmatmul.mubr.bf16.gmra.mxu0 %v2303
      %v2459 = vpop.f32.mrf.mxu0
      %v2460 = vadd.f32 0.0, %v2459
      %v2461 = vpop.f32.mrf.mxu0
      %v2462 = vpop.f32.mrf.mxu0
      %v2463 = vadd.f32 0.0, %v2462
      %v2464 = vpop.f32.mrf.mxu0
      %2465 = vdwg.mxu0
      %v2466 = vadd.f32 %v2145, %v2340
      %v2467 = vadd.f32 %v2146, %v2343
      %v2468 = vadd.f32 %v2147, %v2348
      %v2469 = vadd.f32 %v2148, %v2351
      %v2470 = vadd.f32 %v2149, %v2356
      %v2471 = vadd.f32 %v2150, %v2359
      %v2472 = vadd.f32 %v2151, %v2364
      %v2473 = vadd.f32 %v2152, %v2367
      %v2474 = vadd.f32 %v2153, %v2372
      %v2475 = vadd.f32 %v2154, %v2375
      %v2476 = vadd.f32 %v2155, %v2380
      %v2477 = vadd.f32 %v2156, %v2383
      %v2478 = vadd.f32 %v2157, %v2388
      %v2479 = vadd.f32 %v2158, %v2391
      %v2480 = vadd.f32 %v2159, %v2396
      %v2481 = vadd.f32 %v2160, %v2399
      %v2482 = vadd.f32 %v2161, %v2404
      %v2483 = vadd.f32 %v2162, %v2407
      %v2484 = vadd.f32 %v2163, %v2412
      %v2485 = vadd.f32 %v2164, %v2415
      %v2486 = vadd.f32 %v2165, %v2420
      %v2487 = vadd.f32 %v2166, %v2423
      %v2488 = vadd.f32 %v2167, %v2428
      %v2489 = vadd.f32 %v2168, %v2431
      %v2490 = vadd.f32 %v2169, %v2436
      %v2491 = vadd.f32 %v2170, %v2439
      %v2492 = vadd.f32 %v2171, %v2444
      %v2493 = vadd.f32 %v2172, %v2447
      %v2494 = vadd.f32 %v2173, %v2452
      %v2495 = vadd.f32 %v2174, %v2455
      %v2496 = vadd.f32 %v2175, %v2460
      %v2497 = vadd.f32 %v2176, %v2463
      %v2498 = vld [vmem:[#allocation2 + $0x111] sm:$0xff]
      %v2499 = vld [vmem:[#allocation2 + $0x119] sm:$0xff]
      %v2500 = vld [vmem:[#allocation2 + $0x121] sm:$0xff]
      %v2501 = vld [vmem:[#allocation2 + $0x129] sm:$0xff]
      %v2502 = vld [vmem:[#allocation2 + $0x131] sm:$0xff]
      %v2503 = vld [vmem:[#allocation2 + $0x139] sm:$0xff]
      %v2504 = vld [vmem:[#allocation2 + $0x141] sm:$0xff]
      %v2505 = vld [vmem:[#allocation2 + $0x149] sm:$0xff]
      %v2506 = vld [vmem:[#allocation2 + $0x151] sm:$0xff]
      %v2507 = vld [vmem:[#allocation2 + $0x159] sm:$0xff]
      %v2508 = vld [vmem:[#allocation2 + $0x161] sm:$0xff]
      %v2509 = vld [vmem:[#allocation2 + $0x169] sm:$0xff]
      %v2510 = vld [vmem:[#allocation2 + $0x171] sm:$0xff]
      %v2511 = vld [vmem:[#allocation2 + $0x179] sm:$0xff]
      %v2512 = vld [vmem:[#allocation2 + $0x181] sm:$0xff]
      %v2513 = vld [vmem:[#allocation2 + $0x189] sm:$0xff]
      %v2514 = vld [vmem:[#allocation2 + $0x191] sm:$0xff]
      %v2515 = vld [vmem:[#allocation2 + $0x199] sm:$0xff]
      %v2516 = vld [vmem:[#allocation2 + $0x1a1] sm:$0xff]
      %v2517 = vld [vmem:[#allocation2 + $0x1a9] sm:$0xff]
      %v2518 = vld [vmem:[#allocation2 + $0x1b1] sm:$0xff]
      %v2519 = vld [vmem:[#allocation2 + $0x1b9] sm:$0xff]
      %v2520 = vld [vmem:[#allocation2 + $0x1c1] sm:$0xff]
      %v2521 = vld [vmem:[#allocation2 + $0x1c9] sm:$0xff]
      %v2522 = vld [vmem:[#allocation2 + $0x1d1] sm:$0xff]
      %v2523 = vld [vmem:[#allocation2 + $0x1d9] sm:$0xff]
      %v2524 = vld [vmem:[#allocation2 + $0x1e1] sm:$0xff]
      %v2525 = vld [vmem:[#allocation2 + $0x1e9] sm:$0xff]
      %v2526 = vld [vmem:[#allocation2 + $0x1f1] sm:$0xff]
      %v2527 = vld [vmem:[#allocation2 + $0x1f9] sm:$0xff]
      %v2528 = vld [vmem:[#allocation2 + $0x201] sm:$0xff]
      %v2529 = vld [vmem:[#allocation2 + $0x209] sm:$0xff]
      %v2530 = vpack.c.bf16 %v2499, %v2498
      %v2531 = vpack.c.bf16 %v2501, %v2500
      %v2532 = vpack.c.bf16 %v2503, %v2502
      %v2533 = vpack.c.bf16 %v2505, %v2504
      %v2534 = vpack.c.bf16 %v2507, %v2506
      %v2535 = vpack.c.bf16 %v2509, %v2508
      %v2536 = vpack.c.bf16 %v2511, %v2510
      %v2537 = vpack.c.bf16 %v2513, %v2512
      %v2538 = vpack.c.bf16 %v2515, %v2514
      %v2539 = vpack.c.bf16 %v2517, %v2516
      %v2540 = vpack.c.bf16 %v2519, %v2518
      %v2541 = vpack.c.bf16 %v2521, %v2520
      %v2542 = vpack.c.bf16 %v2523, %v2522
      %v2543 = vpack.c.bf16 %v2525, %v2524
      %v2544 = vpack.c.bf16 %v2527, %v2526
      %v2545 = vpack.c.bf16 %v2529, %v2528
      %v2546 = vld [vmem:[%s4 + $0xc0] sm:$0xf]
      %v2547 = vld [vmem:[%s4 + $0xc4] sm:$0xf]
      %v2548 = vld [vmem:[%s4 + $0xc8] sm:$0xf]
      %v2549 = vld [vmem:[%s4 + $0xcc] sm:$0xf]
      %v2550 = vld [vmem:[%s4 + $0xd0] sm:$0xf]
      %v2551 = vld [vmem:[%s4 + $0xd4] sm:$0xf]
      %v2552 = vld [vmem:[%s4 + $0xd8] sm:$0xf]
      %v2553 = vld [vmem:[%s4 + $0xdc] sm:$0xf]
      %v2562 = vunpack.c.l.b16 %v2546
      %v2563 = vunpack.c.l.b16 %v2547
      %v2564 = vunpack.c.l.b16 %v2548
      %v2565 = vunpack.c.l.b16 %v2549
      %v2566 = vunpack.c.l.b16 %v2550
      %v2567 = vunpack.c.l.b16 %v2551
      %v2568 = vunpack.c.l.b16 %v2552
      %v2569 = vunpack.c.l.b16 %v2553
      %v2570 = vpack.c.b16 %v2563, %v2562
      %v2571 = vpack.c.b16 %v2565, %v2564
      %v2572 = vpack.c.b16 %v2567, %v2566
      %v2573 = vpack.c.b16 %v2569, %v2568
      %v2579 = vsel %vm411, %v2530, 0
      %v2582 = vsel %vm411, %v2531, 0
      %v2585 = vsel %vm411, %v2532, 0
      %v2588 = vsel %vm411, %v2533, 0
      %v2591 = vsel %vm411, %v2534, 0
      %v2594 = vsel %vm411, %v2535, 0
      %v2597 = vsel %vm411, %v2536, 0
      %v2600 = vsel %vm411, %v2537, 0
      %v2603 = vsel %vm411, %v2538, 0
      %v2606 = vsel %vm411, %v2539, 0
      %v2609 = vsel %vm411, %v2540, 0
      %v2612 = vsel %vm411, %v2541, 0
      %v2615 = vsel %vm411, %v2542, 0
      %v2618 = vsel %vm411, %v2543, 0
      %v2621 = vsel %vm411, %v2544, 0
      %v2624 = vsel %vm411, %v2545, 0
      %2626 = vmatprep.subr.bf16.mxu0 0
      %2627 = vmatpush1.bf16.msra.mxu0 0
      %2628 = vmatprep.subr.bf16.mxu0 0
      %2629 = vmatpush1.bf16.msra.mxu0 0
      %2630 = vmatprep.subr.bf16.mxu0 0
      %2631 = vmatpush1.bf16.msra.mxu0 0
      %2632 = vmatprep.subr.bf16.mxu0 0
      %2633 = vmatpush1.bf16.msra.mxu0 0
      %2634 = vmatprep.subr.bf16.mxu0 0
      %2635 = vmatpush1.bf16.msra.mxu0 %v2573
      %2636 = vmatprep.subr.bf16.mxu0 0
      %2637 = vmatpush1.bf16.msra.mxu0 %v2572
      %2638 = vmatprep.subr.bf16.mxu0 0
      %2639 = vmatpush1.bf16.msra.mxu0 %v2571
      %2640 = vmatprep.subr.bf16.mxu0 0
      %2641 = vmatpush1.bf16.msra.mxu0 %v2570
      %2642 = vmatprep.subr.bf16.mxu0 0
      %2643 = vmatpush2.bf16.msra.mxu0 0
      %2644 = vmatprep.subr.bf16.mxu0 0
      %2645 = vmatpush2.bf16.msra.mxu0 0
      %2646 = vmatprep.subr.bf16.mxu0 0
      %2647 = vmatpush2.bf16.msra.mxu0 0
      %2648 = vmatprep.subr.bf16.mxu0 0
      %2649 = vmatpush2.bf16.msra.mxu0 0
      %2650 = vmatprep.subr.bf16.mxu0 0
      %2651 = vmatpush2.bf16.msra.mxu0 0
      %2652 = vmatprep.subr.bf16.mxu0 0
      %2653 = vmatpush2.bf16.msra.mxu0 0
      %2654 = vmatprep.subr.bf16.mxu0 0
      %2655 = vmatpush2.bf16.msra.mxu0 0
      %2656 = vmatprep.subr.bf16.mxu0 0
      %2657 = vmatpush2.bf16.msra.mxu0 0
      %2658 = vmatprep.mubr.bf16.mxu0 0
      %2659 = vmatmul.mubr.bf16.gmra.mxu0 %v2579
      %v2660 = vpop.f32.mrf.mxu0
      %v2661 = vadd.f32 0.0, %v2660
      %v2662 = vpop.f32.mrf.mxu0
      %v2663 = vpop.f32.mrf.mxu0
      %v2664 = vadd.f32 0.0, %v2663
      %v2665 = vpop.f32.mrf.mxu0
      %2666 = vmatprep.mubr.bf16.mxu0 0
      %2667 = vmatmul.mubr.bf16.gmra.mxu0 %v2582
      %v2668 = vpop.f32.mrf.mxu0
      %v2669 = vadd.f32 0.0, %v2668
      %v2670 = vpop.f32.mrf.mxu0
      %v2671 = vpop.f32.mrf.mxu0
      %v2672 = vadd.f32 0.0, %v2671
      %v2673 = vpop.f32.mrf.mxu0
      %2674 = vmatprep.mubr.bf16.mxu0 0
      %2675 = vmatmul.mubr.bf16.gmra.mxu0 %v2585
      %v2676 = vpop.f32.mrf.mxu0
      %v2677 = vadd.f32 0.0, %v2676
      %v2678 = vpop.f32.mrf.mxu0
      %v2679 = vpop.f32.mrf.mxu0
      %v2680 = vadd.f32 0.0, %v2679
      %v2681 = vpop.f32.mrf.mxu0
      %2682 = vmatprep.mubr.bf16.mxu0 0
      %2683 = vmatmul.mubr.bf16.gmra.mxu0 %v2588
      %v2684 = vpop.f32.mrf.mxu0
      %v2685 = vadd.f32 0.0, %v2684
      %v2686 = vpop.f32.mrf.mxu0
      %v2687 = vpop.f32.mrf.mxu0
      %v2688 = vadd.f32 0.0, %v2687
      %v2689 = vpop.f32.mrf.mxu0
      %2690 = vmatprep.mubr.bf16.mxu0 0
      %2691 = vmatmul.mubr.bf16.gmra.mxu0 %v2591
      %v2692 = vpop.f32.mrf.mxu0
      %v2693 = vadd.f32 0.0, %v2692
      %v2694 = vpop.f32.mrf.mxu0
      %v2695 = vpop.f32.mrf.mxu0
      %v2696 = vadd.f32 0.0, %v2695
      %v2697 = vpop.f32.mrf.mxu0
      %2698 = vmatprep.mubr.bf16.mxu0 0
      %2699 = vmatmul.mubr.bf16.gmra.mxu0 %v2594
      %v2700 = vpop.f32.mrf.mxu0
      %v2701 = vadd.f32 0.0, %v2700
      %v2702 = vpop.f32.mrf.mxu0
      %v2703 = vpop.f32.mrf.mxu0
      %v2704 = vadd.f32 0.0, %v2703
      %v2705 = vpop.f32.mrf.mxu0
      %2706 = vmatprep.mubr.bf16.mxu0 0
      %2707 = vmatmul.mubr.bf16.gmra.mxu0 %v2597
      %v2708 = vpop.f32.mrf.mxu0
      %v2709 = vadd.f32 0.0, %v2708
      %v2710 = vpop.f32.mrf.mxu0
      %v2711 = vpop.f32.mrf.mxu0
      %v2712 = vadd.f32 0.0, %v2711
      %v2713 = vpop.f32.mrf.mxu0
      %2714 = vmatprep.mubr.bf16.mxu0 0
      %2715 = vmatmul.mubr.bf16.gmra.mxu0 %v2600
      %v2716 = vpop.f32.mrf.mxu0
      %v2717 = vadd.f32 0.0, %v2716
      %v2718 = vpop.f32.mrf.mxu0
      %v2719 = vpop.f32.mrf.mxu0
      %v2720 = vadd.f32 0.0, %v2719
      %v2721 = vpop.f32.mrf.mxu0
      %2722 = vmatprep.mubr.bf16.mxu0 0
      %2723 = vmatmul.mubr.bf16.gmra.mxu0 %v2603
      %v2724 = vpop.f32.mrf.mxu0
      %v2725 = vadd.f32 0.0, %v2724
      %v2726 = vpop.f32.mrf.mxu0
      %v2727 = vpop.f32.mrf.mxu0
      %v2728 = vadd.f32 0.0, %v2727
      %v2729 = vpop.f32.mrf.mxu0
      %2730 = vmatprep.mubr.bf16.mxu0 0
      %2731 = vmatmul.mubr.bf16.gmra.mxu0 %v2606
      %v2732 = vpop.f32.mrf.mxu0
      %v2733 = vadd.f32 0.0, %v2732
      %v2734 = vpop.f32.mrf.mxu0
      %v2735 = vpop.f32.mrf.mxu0
      %v2736 = vadd.f32 0.0, %v2735
      %v2737 = vpop.f32.mrf.mxu0
      %2738 = vmatprep.mubr.bf16.mxu0 0
      %2739 = vmatmul.mubr.bf16.gmra.mxu0 %v2609
      %v2740 = vpop.f32.mrf.mxu0
      %v2741 = vadd.f32 0.0, %v2740
      %v2742 = vpop.f32.mrf.mxu0
      %v2743 = vpop.f32.mrf.mxu0
      %v2744 = vadd.f32 0.0, %v2743
      %v2745 = vpop.f32.mrf.mxu0
      %2746 = vmatprep.mubr.bf16.mxu0 0
      %2747 = vmatmul.mubr.bf16.gmra.mxu0 %v2612
      %v2748 = vpop.f32.mrf.mxu0
      %v2749 = vadd.f32 0.0, %v2748
      %v2750 = vpop.f32.mrf.mxu0
      %v2751 = vpop.f32.mrf.mxu0
      %v2752 = vadd.f32 0.0, %v2751
      %v2753 = vpop.f32.mrf.mxu0
      %2754 = vmatprep.mubr.bf16.mxu0 0
      %2755 = vmatmul.mubr.bf16.gmra.mxu0 %v2615
      %v2756 = vpop.f32.mrf.mxu0
      %v2757 = vadd.f32 0.0, %v2756
      %v2758 = vpop.f32.mrf.mxu0
      %v2759 = vpop.f32.mrf.mxu0
      %v2760 = vadd.f32 0.0, %v2759
      %v2761 = vpop.f32.mrf.mxu0
      %2762 = vmatprep.mubr.bf16.mxu0 0
      %2763 = vmatmul.mubr.bf16.gmra.mxu0 %v2618
      %v2764 = vpop.f32.mrf.mxu0
      %v2765 = vadd.f32 0.0, %v2764
      %v2766 = vpop.f32.mrf.mxu0
      %v2767 = vpop.f32.mrf.mxu0
      %v2768 = vadd.f32 0.0, %v2767
      %v2769 = vpop.f32.mrf.mxu0
      %2770 = vmatprep.mubr.bf16.mxu0 0
      %2771 = vmatmul.mubr.bf16.gmra.mxu0 %v2621
      %v2772 = vpop.f32.mrf.mxu0
      %v2773 = vadd.f32 0.0, %v2772
      %v2774 = vpop.f32.mrf.mxu0
      %v2775 = vpop.f32.mrf.mxu0
      %v2776 = vadd.f32 0.0, %v2775
      %v2777 = vpop.f32.mrf.mxu0
      %2778 = vmatprep.mubr.bf16.mxu0 0
      %2779 = vmatmul.mubr.bf16.gmra.mxu0 %v2624
      %v2780 = vpop.f32.mrf.mxu0
      %v2781 = vadd.f32 0.0, %v2780
      %v2782 = vpop.f32.mrf.mxu0
      %v2783 = vpop.f32.mrf.mxu0
      %v2784 = vadd.f32 0.0, %v2783
      %v2785 = vpop.f32.mrf.mxu0
      %2786 = vdwg.mxu0
      %v2787 = vadd.f32 %v2466, %v2661
      %v2788 = vadd.f32 %v2467, %v2664
      %v2789 = vadd.f32 %v2468, %v2669
      %v2790 = vadd.f32 %v2469, %v2672
      %v2791 = vadd.f32 %v2470, %v2677
      %v2792 = vadd.f32 %v2471, %v2680
      %v2793 = vadd.f32 %v2472, %v2685
      %v2794 = vadd.f32 %v2473, %v2688
      %v2795 = vadd.f32 %v2474, %v2693
      %v2796 = vadd.f32 %v2475, %v2696
      %v2797 = vadd.f32 %v2476, %v2701
      %v2798 = vadd.f32 %v2477, %v2704
      %v2799 = vadd.f32 %v2478, %v2709
      %v2800 = vadd.f32 %v2479, %v2712
      %v2801 = vadd.f32 %v2480, %v2717
      %v2802 = vadd.f32 %v2481, %v2720
      %v2803 = vadd.f32 %v2482, %v2725
      %v2804 = vadd.f32 %v2483, %v2728
      %v2805 = vadd.f32 %v2484, %v2733
      %v2806 = vadd.f32 %v2485, %v2736
      %v2807 = vadd.f32 %v2486, %v2741
      %v2808 = vadd.f32 %v2487, %v2744
      %v2809 = vadd.f32 %v2488, %v2749
      %v2810 = vadd.f32 %v2489, %v2752
      %v2811 = vadd.f32 %v2490, %v2757
      %v2812 = vadd.f32 %v2491, %v2760
      %v2813 = vadd.f32 %v2492, %v2765
      %v2814 = vadd.f32 %v2493, %v2768
      %v2815 = vadd.f32 %v2494, %v2773
      %v2816 = vadd.f32 %v2495, %v2776
      %v2817 = vadd.f32 %v2496, %v2781
      %v2818 = vadd.f32 %v2497, %v2784
      %v2819 = vld [vmem:[#allocation2 + $0x112] sm:$0xff]
      %v2820 = vld [vmem:[#allocation2 + $0x11a] sm:$0xff]
      %v2821 = vld [vmem:[#allocation2 + $0x122] sm:$0xff]
      %v2822 = vld [vmem:[#allocation2 + $0x12a] sm:$0xff]
      %v2823 = vld [vmem:[#allocation2 + $0x132] sm:$0xff]
      %v2824 = vld [vmem:[#allocation2 + $0x13a] sm:$0xff]
      %v2825 = vld [vmem:[#allocation2 + $0x142] sm:$0xff]
      %v2826 = vld [vmem:[#allocation2 + $0x14a] sm:$0xff]
      %v2827 = vld [vmem:[#allocation2 + $0x152] sm:$0xff]
      %v2828 = vld [vmem:[#allocation2 + $0x15a] sm:$0xff]
      %v2829 = vld [vmem:[#allocation2 + $0x162] sm:$0xff]
      %v2830 = vld [vmem:[#allocation2 + $0x16a] sm:$0xff]
      %v2831 = vld [vmem:[#allocation2 + $0x172] sm:$0xff]
      %v2832 = vld [vmem:[#allocation2 + $0x17a] sm:$0xff]
      %v2833 = vld [vmem:[#allocation2 + $0x182] sm:$0xff]
      %v2834 = vld [vmem:[#allocation2 + $0x18a] sm:$0xff]
      %v2835 = vld [vmem:[#allocation2 + $0x192] sm:$0xff]
      %v2836 = vld [vmem:[#allocation2 + $0x19a] sm:$0xff]
      %v2837 = vld [vmem:[#allocation2 + $0x1a2] sm:$0xff]
      %v2838 = vld [vmem:[#allocation2 + $0x1aa] sm:$0xff]
      %v2839 = vld [vmem:[#allocation2 + $0x1b2] sm:$0xff]
      %v2840 = vld [vmem:[#allocation2 + $0x1ba] sm:$0xff]
      %v2841 = vld [vmem:[#allocation2 + $0x1c2] sm:$0xff]
      %v2842 = vld [vmem:[#allocation2 + $0x1ca] sm:$0xff]
      %v2843 = vld [vmem:[#allocation2 + $0x1d2] sm:$0xff]
      %v2844 = vld [vmem:[#allocation2 + $0x1da] sm:$0xff]
      %v2845 = vld [vmem:[#allocation2 + $0x1e2] sm:$0xff]
      %v2846 = vld [vmem:[#allocation2 + $0x1ea] sm:$0xff]
      %v2847 = vld [vmem:[#allocation2 + $0x1f2] sm:$0xff]
      %v2848 = vld [vmem:[#allocation2 + $0x1fa] sm:$0xff]
      %v2849 = vld [vmem:[#allocation2 + $0x202] sm:$0xff]
      %v2850 = vld [vmem:[#allocation2 + $0x20a] sm:$0xff]
      %v2851 = vpack.c.bf16 %v2820, %v2819
      %v2852 = vpack.c.bf16 %v2822, %v2821
      %v2853 = vpack.c.bf16 %v2824, %v2823
      %v2854 = vpack.c.bf16 %v2826, %v2825
      %v2855 = vpack.c.bf16 %v2828, %v2827
      %v2856 = vpack.c.bf16 %v2830, %v2829
      %v2857 = vpack.c.bf16 %v2832, %v2831
      %v2858 = vpack.c.bf16 %v2834, %v2833
      %v2859 = vpack.c.bf16 %v2836, %v2835
      %v2860 = vpack.c.bf16 %v2838, %v2837
      %v2861 = vpack.c.bf16 %v2840, %v2839
      %v2862 = vpack.c.bf16 %v2842, %v2841
      %v2863 = vpack.c.bf16 %v2844, %v2843
      %v2864 = vpack.c.bf16 %v2846, %v2845
      %v2865 = vpack.c.bf16 %v2848, %v2847
      %v2866 = vpack.c.bf16 %v2850, %v2849
      %v2867 = vld [vmem:[%s4 + $0xe0] sm:$0xf]
      %v2868 = vld [vmem:[%s4 + $0xe4] sm:$0xf]
      %v2869 = vld [vmem:[%s4 + $0xe8] sm:$0xf]
      %v2870 = vld [vmem:[%s4 + $0xec] sm:$0xf]
      %v2871 = vld [vmem:[%s4 + $0xf0] sm:$0xf]
      %v2872 = vld [vmem:[%s4 + $0xf4] sm:$0xf]
      %v2873 = vld [vmem:[%s4 + $0xf8] sm:$0xf]
      %v2874 = vld [vmem:[%s4 + $0xfc] sm:$0xf]
      %v2883 = vunpack.c.l.b16 %v2867
      %v2884 = vunpack.c.l.b16 %v2868
      %v2885 = vunpack.c.l.b16 %v2869
      %v2886 = vunpack.c.l.b16 %v2870
      %v2887 = vunpack.c.l.b16 %v2871
      %v2888 = vunpack.c.l.b16 %v2872
      %v2889 = vunpack.c.l.b16 %v2873
      %v2890 = vunpack.c.l.b16 %v2874
      %v2891 = vpack.c.b16 %v2884, %v2883
      %v2892 = vpack.c.b16 %v2886, %v2885
      %v2893 = vpack.c.b16 %v2888, %v2887
      %v2894 = vpack.c.b16 %v2890, %v2889
      %v2900 = vsel %vm411, %v2851, 0
      %v2903 = vsel %vm411, %v2852, 0
      %v2906 = vsel %vm411, %v2853, 0
      %v2909 = vsel %vm411, %v2854, 0
      %v2912 = vsel %vm411, %v2855, 0
      %v2915 = vsel %vm411, %v2856, 0
      %v2918 = vsel %vm411, %v2857, 0
      %v2921 = vsel %vm411, %v2858, 0
      %v2924 = vsel %vm411, %v2859, 0
      %v2927 = vsel %vm411, %v2860, 0
      %v2930 = vsel %vm411, %v2861, 0
      %v2933 = vsel %vm411, %v2862, 0
      %v2936 = vsel %vm411, %v2863, 0
      %v2939 = vsel %vm411, %v2864, 0
      %v2942 = vsel %vm411, %v2865, 0
      %v2945 = vsel %vm411, %v2866, 0
      %2947 = vmatprep.subr.bf16.mxu0 0
      %2948 = vmatpush1.bf16.msra.mxu0 0
      %2949 = vmatprep.subr.bf16.mxu0 0
      %2950 = vmatpush1.bf16.msra.mxu0 0
      %2951 = vmatprep.subr.bf16.mxu0 0
      %2952 = vmatpush1.bf16.msra.mxu0 0
      %2953 = vmatprep.subr.bf16.mxu0 0
      %2954 = vmatpush1.bf16.msra.mxu0 0
      %2955 = vmatprep.subr.bf16.mxu0 0
      %2956 = vmatpush1.bf16.msra.mxu0 %v2894
      %2957 = vmatprep.subr.bf16.mxu0 0
      %2958 = vmatpush1.bf16.msra.mxu0 %v2893
      %2959 = vmatprep.subr.bf16.mxu0 0
      %2960 = vmatpush1.bf16.msra.mxu0 %v2892
      %2961 = vmatprep.subr.bf16.mxu0 0
      %2962 = vmatpush1.bf16.msra.mxu0 %v2891
      %2963 = vmatprep.subr.bf16.mxu0 0
      %2964 = vmatpush2.bf16.msra.mxu0 0
      %2965 = vmatprep.subr.bf16.mxu0 0
      %2966 = vmatpush2.bf16.msra.mxu0 0
      %2967 = vmatprep.subr.bf16.mxu0 0
      %2968 = vmatpush2.bf16.msra.mxu0 0
      %2969 = vmatprep.subr.bf16.mxu0 0
      %2970 = vmatpush2.bf16.msra.mxu0 0
      %2971 = vmatprep.subr.bf16.mxu0 0
      %2972 = vmatpush2.bf16.msra.mxu0 0
      %2973 = vmatprep.subr.bf16.mxu0 0
      %2974 = vmatpush2.bf16.msra.mxu0 0
      %2975 = vmatprep.subr.bf16.mxu0 0
      %2976 = vmatpush2.bf16.msra.mxu0 0
      %2977 = vmatprep.subr.bf16.mxu0 0
      %2978 = vmatpush2.bf16.msra.mxu0 0
      %2979 = vmatprep.mubr.bf16.mxu0 0
      %2980 = vmatmul.mubr.bf16.gmra.mxu0 %v2900
      %v2981 = vpop.f32.mrf.mxu0
      %v2982 = vadd.f32 0.0, %v2981
      %v2983 = vpop.f32.mrf.mxu0
      %v2984 = vpop.f32.mrf.mxu0
      %v2985 = vadd.f32 0.0, %v2984
      %v2986 = vpop.f32.mrf.mxu0
      %2987 = vmatprep.mubr.bf16.mxu0 0
      %2988 = vmatmul.mubr.bf16.gmra.mxu0 %v2903
      %v2989 = vpop.f32.mrf.mxu0
      %v2990 = vadd.f32 0.0, %v2989
      %v2991 = vpop.f32.mrf.mxu0
      %v2992 = vpop.f32.mrf.mxu0
      %v2993 = vadd.f32 0.0, %v2992
      %v2994 = vpop.f32.mrf.mxu0
      %2995 = vmatprep.mubr.bf16.mxu0 0
      %2996 = vmatmul.mubr.bf16.gmra.mxu0 %v2906
      %v2997 = vpop.f32.mrf.mxu0
      %v2998 = vadd.f32 0.0, %v2997
      %v2999 = vpop.f32.mrf.mxu0
      %v3000 = vpop.f32.mrf.mxu0
      %v3001 = vadd.f32 0.0, %v3000
      %v3002 = vpop.f32.mrf.mxu0
      %3003 = vmatprep.mubr.bf16.mxu0 0
      %3004 = vmatmul.mubr.bf16.gmra.mxu0 %v2909
      %v3005 = vpop.f32.mrf.mxu0
      %v3006 = vadd.f32 0.0, %v3005
      %v3007 = vpop.f32.mrf.mxu0
      %v3008 = vpop.f32.mrf.mxu0
      %v3009 = vadd.f32 0.0, %v3008
      %v3010 = vpop.f32.mrf.mxu0
      %3011 = vmatprep.mubr.bf16.mxu0 0
      %3012 = vmatmul.mubr.bf16.gmra.mxu0 %v2912
      %v3013 = vpop.f32.mrf.mxu0
      %v3014 = vadd.f32 0.0, %v3013
      %v3015 = vpop.f32.mrf.mxu0
      %v3016 = vpop.f32.mrf.mxu0
      %v3017 = vadd.f32 0.0, %v3016
      %v3018 = vpop.f32.mrf.mxu0
      %3019 = vmatprep.mubr.bf16.mxu0 0
      %3020 = vmatmul.mubr.bf16.gmra.mxu0 %v2915
      %v3021 = vpop.f32.mrf.mxu0
      %v3022 = vadd.f32 0.0, %v3021
      %v3023 = vpop.f32.mrf.mxu0
      %v3024 = vpop.f32.mrf.mxu0
      %v3025 = vadd.f32 0.0, %v3024
      %v3026 = vpop.f32.mrf.mxu0
      %3027 = vmatprep.mubr.bf16.mxu0 0
      %3028 = vmatmul.mubr.bf16.gmra.mxu0 %v2918
      %v3029 = vpop.f32.mrf.mxu0
      %v3030 = vadd.f32 0.0, %v3029
      %v3031 = vpop.f32.mrf.mxu0
      %v3032 = vpop.f32.mrf.mxu0
      %v3033 = vadd.f32 0.0, %v3032
      %v3034 = vpop.f32.mrf.mxu0
      %3035 = vmatprep.mubr.bf16.mxu0 0
      %3036 = vmatmul.mubr.bf16.gmra.mxu0 %v2921
      %v3037 = vpop.f32.mrf.mxu0
      %v3038 = vadd.f32 0.0, %v3037
      %v3039 = vpop.f32.mrf.mxu0
      %v3040 = vpop.f32.mrf.mxu0
      %v3041 = vadd.f32 0.0, %v3040
      %v3042 = vpop.f32.mrf.mxu0
      %3043 = vmatprep.mubr.bf16.mxu0 0
      %3044 = vmatmul.mubr.bf16.gmra.mxu0 %v2924
      %v3045 = vpop.f32.mrf.mxu0
      %v3046 = vadd.f32 0.0, %v3045
      %v3047 = vpop.f32.mrf.mxu0
      %v3048 = vpop.f32.mrf.mxu0
      %v3049 = vadd.f32 0.0, %v3048
      %v3050 = vpop.f32.mrf.mxu0
      %3051 = vmatprep.mubr.bf16.mxu0 0
      %3052 = vmatmul.mubr.bf16.gmra.mxu0 %v2927
      %v3053 = vpop.f32.mrf.mxu0
      %v3054 = vadd.f32 0.0, %v3053
      %v3055 = vpop.f32.mrf.mxu0
      %v3056 = vpop.f32.mrf.mxu0
      %v3057 = vadd.f32 0.0, %v3056
      %v3058 = vpop.f32.mrf.mxu0
      %3059 = vmatprep.mubr.bf16.mxu0 0
      %3060 = vmatmul.mubr.bf16.gmra.mxu0 %v2930
      %v3061 = vpop.f32.mrf.mxu0
      %v3062 = vadd.f32 0.0, %v3061
      %v3063 = vpop.f32.mrf.mxu0
      %v3064 = vpop.f32.mrf.mxu0
      %v3065 = vadd.f32 0.0, %v3064
      %v3066 = vpop.f32.mrf.mxu0
      %3067 = vmatprep.mubr.bf16.mxu0 0
      %3068 = vmatmul.mubr.bf16.gmra.mxu0 %v2933
      %v3069 = vpop.f32.mrf.mxu0
      %v3070 = vadd.f32 0.0, %v3069
      %v3071 = vpop.f32.mrf.mxu0
      %v3072 = vpop.f32.mrf.mxu0
      %v3073 = vadd.f32 0.0, %v3072
      %v3074 = vpop.f32.mrf.mxu0
      %3075 = vmatprep.mubr.bf16.mxu0 0
      %3076 = vmatmul.mubr.bf16.gmra.mxu0 %v2936
      %v3077 = vpop.f32.mrf.mxu0
      %v3078 = vadd.f32 0.0, %v3077
      %v3079 = vpop.f32.mrf.mxu0
      %v3080 = vpop.f32.mrf.mxu0
      %v3081 = vadd.f32 0.0, %v3080
      %v3082 = vpop.f32.mrf.mxu0
      %3083 = vmatprep.mubr.bf16.mxu0 0
      %3084 = vmatmul.mubr.bf16.gmra.mxu0 %v2939
      %v3085 = vpop.f32.mrf.mxu0
      %v3086 = vadd.f32 0.0, %v3085
      %v3087 = vpop.f32.mrf.mxu0
      %v3088 = vpop.f32.mrf.mxu0
      %v3089 = vadd.f32 0.0, %v3088
      %v3090 = vpop.f32.mrf.mxu0
      %3091 = vmatprep.mubr.bf16.mxu0 0
      %3092 = vmatmul.mubr.bf16.gmra.mxu0 %v2942
      %v3093 = vpop.f32.mrf.mxu0
      %v3094 = vadd.f32 0.0, %v3093
      %v3095 = vpop.f32.mrf.mxu0
      %v3096 = vpop.f32.mrf.mxu0
      %v3097 = vadd.f32 0.0, %v3096
      %v3098 = vpop.f32.mrf.mxu0
      %3099 = vmatprep.mubr.bf16.mxu0 0
      %3100 = vmatmul.mubr.bf16.gmra.mxu0 %v2945
      %v3101 = vpop.f32.mrf.mxu0
      %v3102 = vadd.f32 0.0, %v3101
      %v3103 = vpop.f32.mrf.mxu0
      %v3104 = vpop.f32.mrf.mxu0
      %v3105 = vadd.f32 0.0, %v3104
      %v3106 = vpop.f32.mrf.mxu0
      %3107 = vdwg.mxu0
      %v3108 = vadd.f32 %v2787, %v2982
      %v3109 = vadd.f32 %v2788, %v2985
      %v3110 = vadd.f32 %v2789, %v2990
      %v3111 = vadd.f32 %v2790, %v2993
      %v3112 = vadd.f32 %v2791, %v2998
      %v3113 = vadd.f32 %v2792, %v3001
      %v3114 = vadd.f32 %v2793, %v3006
      %v3115 = vadd.f32 %v2794, %v3009
      %v3116 = vadd.f32 %v2795, %v3014
      %v3117 = vadd.f32 %v2796, %v3017
      %v3118 = vadd.f32 %v2797, %v3022
      %v3119 = vadd.f32 %v2798, %v3025
      %v3120 = vadd.f32 %v2799, %v3030
      %v3121 = vadd.f32 %v2800, %v3033
      %v3122 = vadd.f32 %v2801, %v3038
      %v3123 = vadd.f32 %v2802, %v3041
      %v3124 = vadd.f32 %v2803, %v3046
      %v3125 = vadd.f32 %v2804, %v3049
      %v3126 = vadd.f32 %v2805, %v3054
      %v3127 = vadd.f32 %v2806, %v3057
      %v3128 = vadd.f32 %v2807, %v3062
      %v3129 = vadd.f32 %v2808, %v3065
      %v3130 = vadd.f32 %v2809, %v3070
      %v3131 = vadd.f32 %v2810, %v3073
      %v3132 = vadd.f32 %v2811, %v3078
      %v3133 = vadd.f32 %v2812, %v3081
      %v3134 = vadd.f32 %v2813, %v3086
      %v3135 = vadd.f32 %v2814, %v3089
      %v3136 = vadd.f32 %v2815, %v3094
      %v3137 = vadd.f32 %v2816, %v3097
      %v3138 = vadd.f32 %v2817, %v3102
      %v3139 = vadd.f32 %v2818, %v3105
      %v3140 = vld [vmem:[#allocation2 + $0x113] sm:$0xff]
      %v3141 = vld [vmem:[#allocation2 + $0x11b] sm:$0xff]
      %v3142 = vld [vmem:[#allocation2 + $0x123] sm:$0xff]
      %v3143 = vld [vmem:[#allocation2 + $0x12b] sm:$0xff]
      %v3144 = vld [vmem:[#allocation2 + $0x133] sm:$0xff]
      %v3145 = vld [vmem:[#allocation2 + $0x13b] sm:$0xff]
      %v3146 = vld [vmem:[#allocation2 + $0x143] sm:$0xff]
      %v3147 = vld [vmem:[#allocation2 + $0x14b] sm:$0xff]
      %v3148 = vld [vmem:[#allocation2 + $0x153] sm:$0xff]
      %v3149 = vld [vmem:[#allocation2 + $0x15b] sm:$0xff]
      %v3150 = vld [vmem:[#allocation2 + $0x163] sm:$0xff]
      %v3151 = vld [vmem:[#allocation2 + $0x16b] sm:$0xff]
      %v3152 = vld [vmem:[#allocation2 + $0x173] sm:$0xff]
      %v3153 = vld [vmem:[#allocation2 + $0x17b] sm:$0xff]
      %v3154 = vld [vmem:[#allocation2 + $0x183] sm:$0xff]
      %v3155 = vld [vmem:[#allocation2 + $0x18b] sm:$0xff]
      %v3156 = vld [vmem:[#allocation2 + $0x193] sm:$0xff]
      %v3157 = vld [vmem:[#allocation2 + $0x19b] sm:$0xff]
      %v3158 = vld [vmem:[#allocation2 + $0x1a3] sm:$0xff]
      %v3159 = vld [vmem:[#allocation2 + $0x1ab] sm:$0xff]
      %v3160 = vld [vmem:[#allocation2 + $0x1b3] sm:$0xff]
      %v3161 = vld [vmem:[#allocation2 + $0x1bb] sm:$0xff]
      %v3162 = vld [vmem:[#allocation2 + $0x1c3] sm:$0xff]
      %v3163 = vld [vmem:[#allocation2 + $0x1cb] sm:$0xff]
      %v3164 = vld [vmem:[#allocation2 + $0x1d3] sm:$0xff]
      %v3165 = vld [vmem:[#allocation2 + $0x1db] sm:$0xff]
      %v3166 = vld [vmem:[#allocation2 + $0x1e3] sm:$0xff]
      %v3167 = vld [vmem:[#allocation2 + $0x1eb] sm:$0xff]
      %v3168 = vld [vmem:[#allocation2 + $0x1f3] sm:$0xff]
      %v3169 = vld [vmem:[#allocation2 + $0x1fb] sm:$0xff]
      %v3170 = vld [vmem:[#allocation2 + $0x203] sm:$0xff]
      %v3171 = vld [vmem:[#allocation2 + $0x20b] sm:$0xff]
      %v3172 = vpack.c.bf16 %v3141, %v3140
      %v3173 = vpack.c.bf16 %v3143, %v3142
      %v3174 = vpack.c.bf16 %v3145, %v3144
      %v3175 = vpack.c.bf16 %v3147, %v3146
      %v3176 = vpack.c.bf16 %v3149, %v3148
      %v3177 = vpack.c.bf16 %v3151, %v3150
      %v3178 = vpack.c.bf16 %v3153, %v3152
      %v3179 = vpack.c.bf16 %v3155, %v3154
      %v3180 = vpack.c.bf16 %v3157, %v3156
      %v3181 = vpack.c.bf16 %v3159, %v3158
      %v3182 = vpack.c.bf16 %v3161, %v3160
      %v3183 = vpack.c.bf16 %v3163, %v3162
      %v3184 = vpack.c.bf16 %v3165, %v3164
      %v3185 = vpack.c.bf16 %v3167, %v3166
      %v3186 = vpack.c.bf16 %v3169, %v3168
      %v3187 = vpack.c.bf16 %v3171, %v3170
      %v3188 = vld [vmem:[%s4 + $0x100] sm:$0xf]
      %v3189 = vld [vmem:[%s4 + $0x104] sm:$0xf]
      %v3190 = vld [vmem:[%s4 + $0x108] sm:$0xf]
      %v3191 = vld [vmem:[%s4 + $0x10c] sm:$0xf]
      %v3192 = vld [vmem:[%s4 + $0x110] sm:$0xf]
      %v3193 = vld [vmem:[%s4 + $0x114] sm:$0xf]
      %v3194 = vld [vmem:[%s4 + $0x118] sm:$0xf]
      %v3195 = vld [vmem:[%s4 + $0x11c] sm:$0xf]
      %v3204 = vunpack.c.l.b16 %v3188
      %v3205 = vunpack.c.l.b16 %v3189
      %v3206 = vunpack.c.l.b16 %v3190
      %v3207 = vunpack.c.l.b16 %v3191
      %v3208 = vunpack.c.l.b16 %v3192
      %v3209 = vunpack.c.l.b16 %v3193
      %v3210 = vunpack.c.l.b16 %v3194
      %v3211 = vunpack.c.l.b16 %v3195
      %v3212 = vpack.c.b16 %v3205, %v3204
      %v3213 = vpack.c.b16 %v3207, %v3206
      %v3214 = vpack.c.b16 %v3209, %v3208
      %v3215 = vpack.c.b16 %v3211, %v3210
      %v3221 = vsel %vm411, %v3172, 0
      %v3224 = vsel %vm411, %v3173, 0
      %v3227 = vsel %vm411, %v3174, 0
      %v3230 = vsel %vm411, %v3175, 0
      %v3233 = vsel %vm411, %v3176, 0
      %v3236 = vsel %vm411, %v3177, 0
      %v3239 = vsel %vm411, %v3178, 0
      %v3242 = vsel %vm411, %v3179, 0
      %v3245 = vsel %vm411, %v3180, 0
      %v3248 = vsel %vm411, %v3181, 0
      %v3251 = vsel %vm411, %v3182, 0
      %v3254 = vsel %vm411, %v3183, 0
      %v3257 = vsel %vm411, %v3184, 0
      %v3260 = vsel %vm411, %v3185, 0
      %v3263 = vsel %vm411, %v3186, 0
      %v3266 = vsel %vm411, %v3187, 0
      %3268 = vmatprep.subr.bf16.mxu0 0
      %3269 = vmatpush1.bf16.msra.mxu0 0
      %3270 = vmatprep.subr.bf16.mxu0 0
      %3271 = vmatpush1.bf16.msra.mxu0 0
      %3272 = vmatprep.subr.bf16.mxu0 0
      %3273 = vmatpush1.bf16.msra.mxu0 0
      %3274 = vmatprep.subr.bf16.mxu0 0
      %3275 = vmatpush1.bf16.msra.mxu0 0
      %3276 = vmatprep.subr.bf16.mxu0 0
      %3277 = vmatpush1.bf16.msra.mxu0 %v3215
      %3278 = vmatprep.subr.bf16.mxu0 0
      %3279 = vmatpush1.bf16.msra.mxu0 %v3214
      %3280 = vmatprep.subr.bf16.mxu0 0
      %3281 = vmatpush1.bf16.msra.mxu0 %v3213
      %3282 = vmatprep.subr.bf16.mxu0 0
      %3283 = vmatpush1.bf16.msra.mxu0 %v3212
      %3284 = vmatprep.subr.bf16.mxu0 0
      %3285 = vmatpush2.bf16.msra.mxu0 0
      %3286 = vmatprep.subr.bf16.mxu0 0
      %3287 = vmatpush2.bf16.msra.mxu0 0
      %3288 = vmatprep.subr.bf16.mxu0 0
      %3289 = vmatpush2.bf16.msra.mxu0 0
      %3290 = vmatprep.subr.bf16.mxu0 0
      %3291 = vmatpush2.bf16.msra.mxu0 0
      %3292 = vmatprep.subr.bf16.mxu0 0
      %3293 = vmatpush2.bf16.msra.mxu0 0
      %3294 = vmatprep.subr.bf16.mxu0 0
      %3295 = vmatpush2.bf16.msra.mxu0 0
      %3296 = vmatprep.subr.bf16.mxu0 0
      %3297 = vmatpush2.bf16.msra.mxu0 0
      %3298 = vmatprep.subr.bf16.mxu0 0
      %3299 = vmatpush2.bf16.msra.mxu0 0
      %3300 = vmatprep.mubr.bf16.mxu0 0
      %3301 = vmatmul.mubr.bf16.gmra.mxu0 %v3221
      %v3302 = vpop.f32.mrf.mxu0
      %v3303 = vadd.f32 0.0, %v3302
      %v3304 = vpop.f32.mrf.mxu0
      %v3305 = vpop.f32.mrf.mxu0
      %v3306 = vadd.f32 0.0, %v3305
      %v3307 = vpop.f32.mrf.mxu0
      %3308 = vmatprep.mubr.bf16.mxu0 0
      %3309 = vmatmul.mubr.bf16.gmra.mxu0 %v3224
      %v3310 = vpop.f32.mrf.mxu0
      %v3311 = vadd.f32 0.0, %v3310
      %v3312 = vpop.f32.mrf.mxu0
      %v3313 = vpop.f32.mrf.mxu0
      %v3314 = vadd.f32 0.0, %v3313
      %v3315 = vpop.f32.mrf.mxu0
      %3316 = vmatprep.mubr.bf16.mxu0 0
      %3317 = vmatmul.mubr.bf16.gmra.mxu0 %v3227
      %v3318 = vpop.f32.mrf.mxu0
      %v3319 = vadd.f32 0.0, %v3318
      %v3320 = vpop.f32.mrf.mxu0
      %v3321 = vpop.f32.mrf.mxu0
      %v3322 = vadd.f32 0.0, %v3321
      %v3323 = vpop.f32.mrf.mxu0
      %3324 = vmatprep.mubr.bf16.mxu0 0
      %3325 = vmatmul.mubr.bf16.gmra.mxu0 %v3230
      %v3326 = vpop.f32.mrf.mxu0
      %v3327 = vadd.f32 0.0, %v3326
      %v3328 = vpop.f32.mrf.mxu0
      %v3329 = vpop.f32.mrf.mxu0
      %v3330 = vadd.f32 0.0, %v3329
      %v3331 = vpop.f32.mrf.mxu0
      %3332 = vmatprep.mubr.bf16.mxu0 0
      %3333 = vmatmul.mubr.bf16.gmra.mxu0 %v3233
      %v3334 = vpop.f32.mrf.mxu0
      %v3335 = vadd.f32 0.0, %v3334
      %v3336 = vpop.f32.mrf.mxu0
      %v3337 = vpop.f32.mrf.mxu0
      %v3338 = vadd.f32 0.0, %v3337
      %v3339 = vpop.f32.mrf.mxu0
      %3340 = vmatprep.mubr.bf16.mxu0 0
      %3341 = vmatmul.mubr.bf16.gmra.mxu0 %v3236
      %v3342 = vpop.f32.mrf.mxu0
      %v3343 = vadd.f32 0.0, %v3342
      %v3344 = vpop.f32.mrf.mxu0
      %v3345 = vpop.f32.mrf.mxu0
      %v3346 = vadd.f32 0.0, %v3345
      %v3347 = vpop.f32.mrf.mxu0
      %3348 = vmatprep.mubr.bf16.mxu0 0
      %3349 = vmatmul.mubr.bf16.gmra.mxu0 %v3239
      %v3350 = vpop.f32.mrf.mxu0
      %v3351 = vadd.f32 0.0, %v3350
      %v3352 = vpop.f32.mrf.mxu0
      %v3353 = vpop.f32.mrf.mxu0
      %v3354 = vadd.f32 0.0, %v3353
      %v3355 = vpop.f32.mrf.mxu0
      %3356 = vmatprep.mubr.bf16.mxu0 0
      %3357 = vmatmul.mubr.bf16.gmra.mxu0 %v3242
      %v3358 = vpop.f32.mrf.mxu0
      %v3359 = vadd.f32 0.0, %v3358
      %v3360 = vpop.f32.mrf.mxu0
      %v3361 = vpop.f32.mrf.mxu0
      %v3362 = vadd.f32 0.0, %v3361
      %v3363 = vpop.f32.mrf.mxu0
      %3364 = vmatprep.mubr.bf16.mxu0 0
      %3365 = vmatmul.mubr.bf16.gmra.mxu0 %v3245
      %v3366 = vpop.f32.mrf.mxu0
      %v3367 = vadd.f32 0.0, %v3366
      %v3368 = vpop.f32.mrf.mxu0
      %v3369 = vpop.f32.mrf.mxu0
      %v3370 = vadd.f32 0.0, %v3369
      %v3371 = vpop.f32.mrf.mxu0
      %3372 = vmatprep.mubr.bf16.mxu0 0
      %3373 = vmatmul.mubr.bf16.gmra.mxu0 %v3248
      %v3374 = vpop.f32.mrf.mxu0
      %v3375 = vadd.f32 0.0, %v3374
      %v3376 = vpop.f32.mrf.mxu0
      %v3377 = vpop.f32.mrf.mxu0
      %v3378 = vadd.f32 0.0, %v3377
      %v3379 = vpop.f32.mrf.mxu0
      %3380 = vmatprep.mubr.bf16.mxu0 0
      %3381 = vmatmul.mubr.bf16.gmra.mxu0 %v3251
      %v3382 = vpop.f32.mrf.mxu0
      %v3383 = vadd.f32 0.0, %v3382
      %v3384 = vpop.f32.mrf.mxu0
      %v3385 = vpop.f32.mrf.mxu0
      %v3386 = vadd.f32 0.0, %v3385
      %v3387 = vpop.f32.mrf.mxu0
      %3388 = vmatprep.mubr.bf16.mxu0 0
      %3389 = vmatmul.mubr.bf16.gmra.mxu0 %v3254
      %v3390 = vpop.f32.mrf.mxu0
      %v3391 = vadd.f32 0.0, %v3390
      %v3392 = vpop.f32.mrf.mxu0
      %v3393 = vpop.f32.mrf.mxu0
      %v3394 = vadd.f32 0.0, %v3393
      %v3395 = vpop.f32.mrf.mxu0
      %3396 = vmatprep.mubr.bf16.mxu0 0
      %3397 = vmatmul.mubr.bf16.gmra.mxu0 %v3257
      %v3398 = vpop.f32.mrf.mxu0
      %v3399 = vadd.f32 0.0, %v3398
      %v3400 = vpop.f32.mrf.mxu0
      %v3401 = vpop.f32.mrf.mxu0
      %v3402 = vadd.f32 0.0, %v3401
      %v3403 = vpop.f32.mrf.mxu0
      %3404 = vmatprep.mubr.bf16.mxu0 0
      %3405 = vmatmul.mubr.bf16.gmra.mxu0 %v3260
      %v3406 = vpop.f32.mrf.mxu0
      %v3407 = vadd.f32 0.0, %v3406
      %v3408 = vpop.f32.mrf.mxu0
      %v3409 = vpop.f32.mrf.mxu0
      %v3410 = vadd.f32 0.0, %v3409
      %v3411 = vpop.f32.mrf.mxu0
      %3412 = vmatprep.mubr.bf16.mxu0 0
      %3413 = vmatmul.mubr.bf16.gmra.mxu0 %v3263
      %v3414 = vpop.f32.mrf.mxu0
      %v3415 = vadd.f32 0.0, %v3414
      %v3416 = vpop.f32.mrf.mxu0
      %v3417 = vpop.f32.mrf.mxu0
      %v3418 = vadd.f32 0.0, %v3417
      %v3419 = vpop.f32.mrf.mxu0
      %3420 = vmatprep.mubr.bf16.mxu0 0
      %3421 = vmatmul.mubr.bf16.gmra.mxu0 %v3266
      %v3422 = vpop.f32.mrf.mxu0
      %v3423 = vadd.f32 0.0, %v3422
      %v3424 = vpop.f32.mrf.mxu0
      %v3425 = vpop.f32.mrf.mxu0
      %v3426 = vadd.f32 0.0, %v3425
      %v3427 = vpop.f32.mrf.mxu0
      %3428 = vdwg.mxu0
      %v3429 = vadd.f32 %v3108, %v3303
      %v3430 = vadd.f32 %v3109, %v3306
      %v3431 = vadd.f32 %v3110, %v3311
      %v3432 = vadd.f32 %v3111, %v3314
      %v3433 = vadd.f32 %v3112, %v3319
      %v3434 = vadd.f32 %v3113, %v3322
      %v3435 = vadd.f32 %v3114, %v3327
      %v3436 = vadd.f32 %v3115, %v3330
      %v3437 = vadd.f32 %v3116, %v3335
      %v3438 = vadd.f32 %v3117, %v3338
      %v3439 = vadd.f32 %v3118, %v3343
      %v3440 = vadd.f32 %v3119, %v3346
      %v3441 = vadd.f32 %v3120, %v3351
      %v3442 = vadd.f32 %v3121, %v3354
      %v3443 = vadd.f32 %v3122, %v3359
      %v3444 = vadd.f32 %v3123, %v3362
      %v3445 = vadd.f32 %v3124, %v3367
      %v3446 = vadd.f32 %v3125, %v3370
      %v3447 = vadd.f32 %v3126, %v3375
      %v3448 = vadd.f32 %v3127, %v3378
      %v3449 = vadd.f32 %v3128, %v3383
      %v3450 = vadd.f32 %v3129, %v3386
      %v3451 = vadd.f32 %v3130, %v3391
      %v3452 = vadd.f32 %v3131, %v3394
      %v3453 = vadd.f32 %v3132, %v3399
      %v3454 = vadd.f32 %v3133, %v3402
      %v3455 = vadd.f32 %v3134, %v3407
      %v3456 = vadd.f32 %v3135, %v3410
      %v3457 = vadd.f32 %v3136, %v3415
      %v3458 = vadd.f32 %v3137, %v3418
      %v3459 = vadd.f32 %v3138, %v3423
      %v3460 = vadd.f32 %v3139, %v3426
      %v3461 = vpack.c.bf16 %v3430, %v3429
      %v3462 = vpack.c.bf16 %v3432, %v3431
      %v3463 = vpack.c.bf16 %v3434, %v3433
      %v3464 = vpack.c.bf16 %v3436, %v3435
      %v3465 = vpack.c.bf16 %v3438, %v3437
      %v3466 = vpack.c.bf16 %v3440, %v3439
      %v3467 = vpack.c.bf16 %v3442, %v3441
      %v3468 = vpack.c.bf16 %v3444, %v3443
      %v3469 = vpack.c.bf16 %v3446, %v3445
      %v3470 = vpack.c.bf16 %v3448, %v3447
      %v3471 = vpack.c.bf16 %v3450, %v3449
      %v3472 = vpack.c.bf16 %v3452, %v3451
      %v3473 = vpack.c.bf16 %v3454, %v3453
      %v3474 = vpack.c.bf16 %v3456, %v3455
      %v3475 = vpack.c.bf16 %v3458, %v3457
      %v3476 = vpack.c.bf16 %v3460, %v3459
      %v3493 = vunpack.c.l.b16 %v3461
      %v3494 = vunpack.c.h.b16 %v3461
      %v3495 = vunpack.c.l.b16 %v3462
      %v3496 = vunpack.c.h.b16 %v3462
      %v3497 = vunpack.c.l.b16 %v3463
      %v3498 = vunpack.c.h.b16 %v3463
      %v3499 = vunpack.c.l.b16 %v3464
      %v3500 = vunpack.c.h.b16 %v3464
      %v3501 = vunpack.c.l.b16 %v3465
      %v3502 = vunpack.c.h.b16 %v3465
      %v3503 = vunpack.c.l.b16 %v3466
      %v3504 = vunpack.c.h.b16 %v3466
      %v3505 = vunpack.c.l.b16 %v3467
      %v3506 = vunpack.c.h.b16 %v3467
      %v3507 = vunpack.c.l.b16 %v3468
      %v3508 = vunpack.c.h.b16 %v3468
      %v3509 = vunpack.c.l.b16 %v3469
      %v3510 = vunpack.c.h.b16 %v3469
      %v3511 = vunpack.c.l.b16 %v3470
      %v3512 = vunpack.c.h.b16 %v3470
      %v3513 = vunpack.c.l.b16 %v3471
      %v3514 = vunpack.c.h.b16 %v3471
      %v3515 = vunpack.c.l.b16 %v3472
      %v3516 = vunpack.c.h.b16 %v3472
      %v3517 = vunpack.c.l.b16 %v3473
      %v3518 = vunpack.c.h.b16 %v3473
      %v3519 = vunpack.c.l.b16 %v3474
      %v3520 = vunpack.c.h.b16 %v3474
      %v3521 = vunpack.c.l.b16 %v3475
      %v3522 = vunpack.c.h.b16 %v3475
      %v3523 = vunpack.c.l.b16 %v3476
      %v3524 = vunpack.c.h.b16 %v3476
      %v3525 = vpack.c.b16 %v3493, %v3493
      %v3526 = vpack.c.b16 %v3494, %v3494
      %v3527 = vpack.c.b16 %v3495, %v3495
      %v3528 = vpack.c.b16 %v3496, %v3496
      %v3529 = vpack.c.b16 %v3497, %v3497
      %v3530 = vpack.c.b16 %v3498, %v3498
      %v3531 = vpack.c.b16 %v3499, %v3499
      %v3532 = vpack.c.b16 %v3500, %v3500
      %v3533 = vpack.c.b16 %v3501, %v3501
      %v3534 = vpack.c.b16 %v3502, %v3502
      %v3535 = vpack.c.b16 %v3503, %v3503
      %v3536 = vpack.c.b16 %v3504, %v3504
      %v3537 = vpack.c.b16 %v3505, %v3505
      %v3538 = vpack.c.b16 %v3506, %v3506
      %v3539 = vpack.c.b16 %v3507, %v3507
      %v3540 = vpack.c.b16 %v3508, %v3508
      %v3541 = vpack.c.b16 %v3509, %v3509
      %v3542 = vpack.c.b16 %v3510, %v3510
      %v3543 = vpack.c.b16 %v3511, %v3511
      %v3544 = vpack.c.b16 %v3512, %v3512
      %v3545 = vpack.c.b16 %v3513, %v3513
      %v3546 = vpack.c.b16 %v3514, %v3514
      %v3547 = vpack.c.b16 %v3515, %v3515
      %v3548 = vpack.c.b16 %v3516, %v3516
      %v3549 = vpack.c.b16 %v3517, %v3517
      %v3550 = vpack.c.b16 %v3518, %v3518
      %v3551 = vpack.c.b16 %v3519, %v3519
      %v3552 = vpack.c.b16 %v3520, %v3520
      %v3553 = vpack.c.b16 %v3521, %v3521
      %v3554 = vpack.c.b16 %v3522, %v3522
      %v3555 = vpack.c.b16 %v3523, %v3523
      %v3556 = vpack.c.b16 %v3524, %v3524
      %3589 = vst [vmem:[%s340] sm:$0xf] %v3525
      %3590 = vst [vmem:[%s340 + $0x4] sm:$0xf] %v3526
      %3591 = vst [vmem:[%s340 + $0x8] sm:$0xf] %v3527
      %3592 = vst [vmem:[%s340 + $0xc] sm:$0xf] %v3528
      %3593 = vst [vmem:[%s340 + $0x10] sm:$0xf] %v3529
      %3594 = vst [vmem:[%s340 + $0x14] sm:$0xf] %v3530
      %3595 = vst [vmem:[%s340 + $0x18] sm:$0xf] %v3531
      %3596 = vst [vmem:[%s340 + $0x1c] sm:$0xf] %v3532
      %3597 = vst [vmem:[%s340 + $0x20] sm:$0xf] %v3533
      %3598 = vst [vmem:[%s340 + $0x24] sm:$0xf] %v3534
      %3599 = vst [vmem:[%s340 + $0x28] sm:$0xf] %v3535
      %3600 = vst [vmem:[%s340 + $0x2c] sm:$0xf] %v3536
      %3601 = vst [vmem:[%s340 + $0x30] sm:$0xf] %v3537
      %3602 = vst [vmem:[%s340 + $0x34] sm:$0xf] %v3538
      %3603 = vst [vmem:[%s340 + $0x38] sm:$0xf] %v3539
      %3604 = vst [vmem:[%s340 + $0x3c] sm:$0xf] %v3540
      %3605 = vst [vmem:[%s340 + $0x40] sm:$0xf] %v3541
      %3606 = vst [vmem:[%s340 + $0x44] sm:$0xf] %v3542
      %3607 = vst [vmem:[%s340 + $0x48] sm:$0xf] %v3543
      %3608 = vst [vmem:[%s340 + $0x4c] sm:$0xf] %v3544
      %3609 = vst [vmem:[%s340 + $0x50] sm:$0xf] %v3545
      %3610 = vst [vmem:[%s340 + $0x54] sm:$0xf] %v3546
      %3611 = vst [vmem:[%s340 + $0x58] sm:$0xf] %v3547
      %3612 = vst [vmem:[%s340 + $0x5c] sm:$0xf] %v3548
      %3613 = vst [vmem:[%s340 + $0x60] sm:$0xf] %v3549
      %3614 = vst [vmem:[%s340 + $0x64] sm:$0xf] %v3550
      %3615 = vst [vmem:[%s340 + $0x68] sm:$0xf] %v3551
      %3616 = vst [vmem:[%s340 + $0x6c] sm:$0xf] %v3552
      %3617 = vst [vmem:[%s340 + $0x70] sm:$0xf] %v3553
      %3618 = vst [vmem:[%s340 + $0x74] sm:$0xf] %v3554
      %3619 = vst [vmem:[%s340 + $0x78] sm:$0xf] %v3555
      %3620 = vst [vmem:[%s340 + $0x7c] sm:$0xf] %v3556
      %v3621 = vld [vmem:[%s334] sm:$0xff]
      %v3622 = vld [vmem:[%s334 + $0x8] sm:$0xff]
      %v3623 = vld [vmem:[%s334 + $0x10] sm:$0xff]
      %v3624 = vld [vmem:[%s334 + $0x18] sm:$0xff]
      %v3625 = vld [vmem:[%s334 + $0x20] sm:$0xff]
      %v3626 = vld [vmem:[%s334 + $0x28] sm:$0xff]
      %v3627 = vld [vmem:[%s334 + $0x30] sm:$0xff]
      %v3628 = vld [vmem:[%s334 + $0x38] sm:$0xff]
      %v3629 = vld [vmem:[%s334 + $0x40] sm:$0xff]
      %v3630 = vld [vmem:[%s334 + $0x48] sm:$0xff]
      %v3631 = vld [vmem:[%s334 + $0x50] sm:$0xff]
      %v3632 = vld [vmem:[%s334 + $0x58] sm:$0xff]
      %v3633 = vld [vmem:[%s334 + $0x60] sm:$0xff]
      %v3634 = vld [vmem:[%s334 + $0x68] sm:$0xff]
      %v3635 = vld [vmem:[%s334 + $0x70] sm:$0xff]
      %v3636 = vld [vmem:[%s334 + $0x78] sm:$0xff]
      %v3637 = vld [vmem:[%s334 + $0x80] sm:$0xff]
      %v3638 = vld [vmem:[%s334 + $0x88] sm:$0xff]
      %v3639 = vld [vmem:[%s334 + $0x90] sm:$0xff]
      %v3640 = vld [vmem:[%s334 + $0x98] sm:$0xff]
      %v3641 = vld [vmem:[%s334 + $0xa0] sm:$0xff]
      %v3642 = vld [vmem:[%s334 + $0xa8] sm:$0xff]
      %v3643 = vld [vmem:[%s334 + $0xb0] sm:$0xff]
      %v3644 = vld [vmem:[%s334 + $0xb8] sm:$0xff]
      %v3645 = vld [vmem:[%s334 + $0xc0] sm:$0xff]
      %v3646 = vld [vmem:[%s334 + $0xc8] sm:$0xff]
      %v3647 = vld [vmem:[%s334 + $0xd0] sm:$0xff]
      %v3648 = vld [vmem:[%s334 + $0xd8] sm:$0xff]
      %v3649 = vld [vmem:[%s334 + $0xe0] sm:$0xff]
      %v3650 = vld [vmem:[%s334 + $0xe8] sm:$0xff]
      %v3651 = vld [vmem:[%s334 + $0xf0] sm:$0xff]
      %v3652 = vld [vmem:[%s334 + $0xf8] sm:$0xff]
      %3654 = vset.pattern.permute.xlu0 0
      %3655 = vperm.xlu0 %3654, %v3621
      %v3656 = vpop.permute.xlu0 %3655
      %3659 = vset.pattern.permute.xlu0 0
      %3660 = vperm.xlu0 %3659, %v3622
      %v3661 = vpop.permute.xlu0 %3660
      %3664 = vset.pattern.permute.xlu0 0
      %3665 = vperm.xlu0 %3664, %v3623
      %v3666 = vpop.permute.xlu0 %3665
      %3669 = vset.pattern.permute.xlu0 0
      %3670 = vperm.xlu0 %3669, %v3624
      %v3671 = vpop.permute.xlu0 %3670
      %3674 = vset.pattern.permute.xlu0 0
      %3675 = vperm.xlu0 %3674, %v3625
      %v3676 = vpop.permute.xlu0 %3675
      %3679 = vset.pattern.permute.xlu0 0
      %3680 = vperm.xlu0 %3679, %v3626
      %v3681 = vpop.permute.xlu0 %3680
      %3684 = vset.pattern.permute.xlu0 0
      %3685 = vperm.xlu0 %3684, %v3627
      %v3686 = vpop.permute.xlu0 %3685
      %3689 = vset.pattern.permute.xlu0 0
      %3690 = vperm.xlu0 %3689, %v3628
      %v3691 = vpop.permute.xlu0 %3690
      %3694 = vset.pattern.permute.xlu0 0
      %3695 = vperm.xlu0 %3694, %v3629
      %v3696 = vpop.permute.xlu0 %3695
      %3699 = vset.pattern.permute.xlu0 0
      %3700 = vperm.xlu0 %3699, %v3630
      %v3701 = vpop.permute.xlu0 %3700
      %3704 = vset.pattern.permute.xlu0 0
      %3705 = vperm.xlu0 %3704, %v3631
      %v3706 = vpop.permute.xlu0 %3705
      %3709 = vset.pattern.permute.xlu0 0
      %3710 = vperm.xlu0 %3709, %v3632
      %v3711 = vpop.permute.xlu0 %3710
      %3714 = vset.pattern.permute.xlu0 0
      %3715 = vperm.xlu0 %3714, %v3633
      %v3716 = vpop.permute.xlu0 %3715
      %3719 = vset.pattern.permute.xlu0 0
      %3720 = vperm.xlu0 %3719, %v3634
      %v3721 = vpop.permute.xlu0 %3720
      %3724 = vset.pattern.permute.xlu0 0
      %3725 = vperm.xlu0 %3724, %v3635
      %v3726 = vpop.permute.xlu0 %3725
      %3729 = vset.pattern.permute.xlu0 0
      %3730 = vperm.xlu0 %3729, %v3636
      %v3731 = vpop.permute.xlu0 %3730
      %3734 = vset.pattern.permute.xlu0 0
      %3735 = vperm.xlu0 %3734, %v3637
      %v3736 = vpop.permute.xlu0 %3735
      %3739 = vset.pattern.permute.xlu0 0
      %3740 = vperm.xlu0 %3739, %v3638
      %v3741 = vpop.permute.xlu0 %3740
      %3744 = vset.pattern.permute.xlu0 0
      %3745 = vperm.xlu0 %3744, %v3639
      %v3746 = vpop.permute.xlu0 %3745
      %3749 = vset.pattern.permute.xlu0 0
      %3750 = vperm.xlu0 %3749, %v3640
      %v3751 = vpop.permute.xlu0 %3750
      %3754 = vset.pattern.permute.xlu0 0
      %3755 = vperm.xlu0 %3754, %v3641
      %v3756 = vpop.permute.xlu0 %3755
      %3759 = vset.pattern.permute.xlu0 0
      %3760 = vperm.xlu0 %3759, %v3642
      %v3761 = vpop.permute.xlu0 %3760
      %3764 = vset.pattern.permute.xlu0 0
      %3765 = vperm.xlu0 %3764, %v3643
      %v3766 = vpop.permute.xlu0 %3765
      %3769 = vset.pattern.permute.xlu0 0
      %3770 = vperm.xlu0 %3769, %v3644
      %v3771 = vpop.permute.xlu0 %3770
      %3774 = vset.pattern.permute.xlu0 0
      %3775 = vperm.xlu0 %3774, %v3645
      %v3776 = vpop.permute.xlu0 %3775
      %3779 = vset.pattern.permute.xlu0 0
      %3780 = vperm.xlu0 %3779, %v3646
      %v3781 = vpop.permute.xlu0 %3780
      %3784 = vset.pattern.permute.xlu0 0
      %3785 = vperm.xlu0 %3784, %v3647
      %v3786 = vpop.permute.xlu0 %3785
      %3789 = vset.pattern.permute.xlu0 0
      %3790 = vperm.xlu0 %3789, %v3648
      %v3791 = vpop.permute.xlu0 %3790
      %3794 = vset.pattern.permute.xlu0 0
      %3795 = vperm.xlu0 %3794, %v3649
      %v3796 = vpop.permute.xlu0 %3795
      %3799 = vset.pattern.permute.xlu0 0
      %3800 = vperm.xlu0 %3799, %v3650
      %v3801 = vpop.permute.xlu0 %3800
      %3804 = vset.pattern.permute.xlu0 0
      %3805 = vperm.xlu0 %3804, %v3651
      %v3806 = vpop.permute.xlu0 %3805
      %3809 = vset.pattern.permute.xlu0 0
      %3810 = vperm.xlu0 %3809, %v3652
      %v3811 = vpop.permute.xlu0 %3810
      %v3813 = vmul.f32 %v3429, %v3656
      %v3814 = vmul.f32 %v3430, %v3661
      %v3815 = vmul.f32 %v3431, %v3666
      %v3816 = vmul.f32 %v3432, %v3671
      %v3817 = vmul.f32 %v3433, %v3676
      %v3818 = vmul.f32 %v3434, %v3681
      %v3819 = vmul.f32 %v3435, %v3686
      %v3820 = vmul.f32 %v3436, %v3691
      %v3821 = vmul.f32 %v3437, %v3696
      %v3822 = vmul.f32 %v3438, %v3701
      %v3823 = vmul.f32 %v3439, %v3706
      %v3824 = vmul.f32 %v3440, %v3711
      %v3825 = vmul.f32 %v3441, %v3716
      %v3826 = vmul.f32 %v3442, %v3721
      %v3827 = vmul.f32 %v3443, %v3726
      %v3828 = vmul.f32 %v3444, %v3731
      %v3829 = vmul.f32 %v3445, %v3736
      %v3830 = vmul.f32 %v3446, %v3741
      %v3831 = vmul.f32 %v3447, %v3746
      %v3832 = vmul.f32 %v3448, %v3751
      %v3833 = vmul.f32 %v3449, %v3756
      %v3834 = vmul.f32 %v3450, %v3761
      %v3835 = vmul.f32 %v3451, %v3766
      %v3836 = vmul.f32 %v3452, %v3771
      %v3837 = vmul.f32 %v3453, %v3776
      %v3838 = vmul.f32 %v3454, %v3781
      %v3839 = vmul.f32 %v3455, %v3786
      %v3840 = vmul.f32 %v3456, %v3791
      %v3841 = vmul.f32 %v3457, %v3796
      %v3842 = vmul.f32 %v3458, %v3801
      %v3843 = vmul.f32 %v3459, %v3806
      %v3844 = vmul.f32 %v3460, %v3811
      %v3845 = vadd.f32 %v3813, %v3814
      %v3846 = vadd.f32 %v3845, %v3815
      %v3847 = vadd.f32 %v3846, %v3816
      %v3848 = vadd.f32 %v3847, %v3817
      %v3849 = vadd.f32 %v3848, %v3818
      %v3850 = vadd.f32 %v3849, %v3819
      %v3851 = vadd.f32 %v3850, %v3820
      %v3852 = vadd.f32 %v3851, %v3821
      %v3853 = vadd.f32 %v3852, %v3822
      %v3854 = vadd.f32 %v3853, %v3823
      %v3855 = vadd.f32 %v3854, %v3824
      %v3856 = vadd.f32 %v3855, %v3825
      %v3857 = vadd.f32 %v3856, %v3826
      %v3858 = vadd.f32 %v3857, %v3827
      %v3859 = vadd.f32 %v3858, %v3828
      %v3860 = vadd.f32 %v3859, %v3829
      %v3861 = vadd.f32 %v3860, %v3830
      %v3862 = vadd.f32 %v3861, %v3831
      %v3863 = vadd.f32 %v3862, %v3832
      %v3864 = vadd.f32 %v3863, %v3833
      %v3865 = vadd.f32 %v3864, %v3834
      %v3866 = vadd.f32 %v3865, %v3835
      %v3867 = vadd.f32 %v3866, %v3836
      %v3868 = vadd.f32 %v3867, %v3837
      %v3869 = vadd.f32 %v3868, %v3838
      %v3870 = vadd.f32 %v3869, %v3839
      %v3871 = vadd.f32 %v3870, %v3840
      %v3872 = vadd.f32 %v3871, %v3841
      %v3873 = vadd.f32 %v3872, %v3842
      %v3874 = vadd.f32 %v3873, %v3843
      %v3875 = vadd.f32 %v3874, %v3844
      %v3876 = vrot.slane %v3875, 4
      %v3877 = vadd.f32 %v3875, %v3876
      %v3878 = vrot.slane %v3877, 2
      %v3879 = vadd.f32 %v3877, %v3878
      %v3880 = vrot.slane %v3879, 1
      %v3881 = vadd.f32 %v3879, %v3880
      %v3882 = vmul.f32 %v3813, %v3429
      %v3883 = vmul.f32 %v3814, %v3430
      %v3884 = vmul.f32 %v3815, %v3431
      %v3885 = vmul.f32 %v3816, %v3432
      %v3886 = vmul.f32 %v3817, %v3433
      %v3887 = vmul.f32 %v3818, %v3434
      %v3888 = vmul.f32 %v3819, %v3435
      %v3889 = vmul.f32 %v3820, %v3436
      %v3890 = vmul.f32 %v3821, %v3437
      %v3891 = vmul.f32 %v3822, %v3438
      %v3892 = vmul.f32 %v3823, %v3439
      %v3893 = vmul.f32 %v3824, %v3440
      %v3894 = vmul.f32 %v3825, %v3441
      %v3895 = vmul.f32 %v3826, %v3442
      %v3896 = vmul.f32 %v3827, %v3443
      %v3897 = vmul.f32 %v3828, %v3444
      %v3898 = vmul.f32 %v3829, %v3445
      %v3899 = vmul.f32 %v3830, %v3446
      %v3900 = vmul.f32 %v3831, %v3447
      %v3901 = vmul.f32 %v3832, %v3448
      %v3902 = vmul.f32 %v3833, %v3449
      %v3903 = vmul.f32 %v3834, %v3450
      %v3904 = vmul.f32 %v3835, %v3451
      %v3905 = vmul.f32 %v3836, %v3452
      %v3906 = vmul.f32 %v3837, %v3453
      %v3907 = vmul.f32 %v3838, %v3454
      %v3908 = vmul.f32 %v3839, %v3455
      %v3909 = vmul.f32 %v3840, %v3456
      %v3910 = vmul.f32 %v3841, %v3457
      %v3911 = vmul.f32 %v3842, %v3458
      %v3912 = vmul.f32 %v3843, %v3459
      %v3913 = vmul.f32 %v3844, %v3460
      %v3914 = vadd.f32 %v3882, %v3883
      %v3915 = vadd.f32 %v3914, %v3884
      %v3916 = vadd.f32 %v3915, %v3885
      %v3917 = vadd.f32 %v3916, %v3886
      %v3918 = vadd.f32 %v3917, %v3887
      %v3919 = vadd.f32 %v3918, %v3888
      %v3920 = vadd.f32 %v3919, %v3889
      %v3921 = vadd.f32 %v3920, %v3890
      %v3922 = vadd.f32 %v3921, %v3891
      %v3923 = vadd.f32 %v3922, %v3892
      %v3924 = vadd.f32 %v3923, %v3893
      %v3925 = vadd.f32 %v3924, %v3894
      %v3926 = vadd.f32 %v3925, %v3895
      %v3927 = vadd.f32 %v3926, %v3896
      %v3928 = vadd.f32 %v3927, %v3897
      %v3929 = vadd.f32 %v3928, %v3898
      %v3930 = vadd.f32 %v3929, %v3899
      %v3931 = vadd.f32 %v3930, %v3900
      %v3932 = vadd.f32 %v3931, %v3901
      %v3933 = vadd.f32 %v3932, %v3902
      %v3934 = vadd.f32 %v3933, %v3903
      %v3935 = vadd.f32 %v3934, %v3904
      %v3936 = vadd.f32 %v3935, %v3905
      %v3937 = vadd.f32 %v3936, %v3906
      %v3938 = vadd.f32 %v3937, %v3907
      %v3939 = vadd.f32 %v3938, %v3908
      %v3940 = vadd.f32 %v3939, %v3909
      %v3941 = vadd.f32 %v3940, %v3910
      %v3942 = vadd.f32 %v3941, %v3911
      %v3943 = vadd.f32 %v3942, %v3912
      %v3944 = vadd.f32 %v3943, %v3913
      %v3945 = vrot.slane %v3944, 4
      %v3946 = vadd.f32 %v3944, %v3945
      %v3947 = vrot.slane %v3946, 2
      %v3948 = vadd.f32 %v3946, %v3947
      %v3949 = vrot.slane %v3948, 1
      %v3950 = vadd.f32 %v3948, %v3949
      %v3951 = vlaneseq
      %v3952 = vshrl.u32 %v3951, 7
      %vm3953 = vcmp.eq.s32.totalorder %v3952, 0
      %v3954 = vsel %vm3953, %v3881, 0.0
      %vm3955 = vcmp.eq.s32.totalorder %v3952, 1
      %v3956 = vsel %vm3955, %v3950, 0.0
      %v3957 = vadd.f32 %v3954, %v3956
      %3958 = vst [vmem:[%s345] sm:$0xff] %v3957
      %s3959 = smul.u32 32, %s18
      %p3960 = scmp.lt.s32.totalorder %s3959, 159
      %s3961 = scalar_select %p3960, %s3959, 159
      %s3962 = smul.addr %s3961, 4
      %s3963 = scalar_lea.vmem %s5, %s3962
      %p3964 = scmp.lt.s32.totalorder %s18, 4
      %s3965 = scalar_select %p3964, %s18, 4
      %s3966 = smul.addr %s3965, 8
      %s3967 = scalar_lea.vmem %s6, %s3966
      // Predicated region
      $region41: #{forward.2} parent=39 // pred_check
        %p3968 = pneg %p165
      $region42: #{forward.2} parent=39 // pred_check_branch
        %3970 = sbr.rel (%p3968) target = $region44
      $region43: #{forward.2} parent=39 // pred_region
        %s3971 = smul.u32 32, %s18
      $region44: #{forward.2} parent=39 // pred_fallthru
        _
      // Predicated region
      $region45: #{forward.2} parent=39 // pred_check
        %p3972 = pneg %p191
      $region46: #{forward.2} parent=39 // pred_check_branch
        %3974 = sbr.rel (%p3972) target = $region48
      $region47: #{forward.2} parent=39 // pred_region
        _
      $region48: #{forward.2} parent=39 // pred_fallthru
        _
    $region40: #{forward.2} parent=5 // pred_fallthru
      _
    %p3975 = scmp.le.s32.totalorder 2, %s13
    // Predicated region
    $region49: #{forward.2} parent=5 // pred_check
      %p3976 = pneg %p3975
    $region50: #{forward.2} parent=5 // pred_check_branch
      %3978 = sbr.rel (%p3976) target = $region52
    $region51: #{forward.2} parent=5 // pred_region
      %s3979 = ssub.s32 %s13, 2
      // Predicated region
      $region53: #{forward.2} parent=51 // pred_check
        %p3980 = pneg %p171
      $region54: #{forward.2} parent=51 // pred_check_branch
        %3982 = sbr.rel (%p3980) target = $region56
      $region55: #{forward.2} parent=51 // pred_region
        %s3983 = smul.u32 32, %s19
        %p3984 = scmp.lt.s32.totalorder %s3983, 159
        %s3985 = scalar_select %p3984, %s3983, 159
        %s3986 = smul.addr %s3985, 4
        %s3987 = scalar_lea.vmem %s5, %s3986
      $region56: #{forward.2} parent=51 // pred_fallthru
        _
      // Predicated region
      $region57: #{forward.2} parent=51 // pred_check
        %p3988 = pneg %p197
      $region58: #{forward.2} parent=51 // pred_check_branch
        %3990 = sbr.rel (%p3988) target = $region60
      $region59: #{forward.2} parent=51 // pred_region
        %p3991 = scmp.lt.s32.totalorder %s19, 4
        %s3992 = scalar_select %p3991, %s19, 4
        %s3993 = smul.addr %s3992, 8
        %s3994 = scalar_lea.vmem %s6, %s3993
      $region60: #{forward.2} parent=51 // pred_fallthru
        _
    $region52: #{forward.2} parent=5 // pred_fallthru
      _
  $region6: #{forward.2} parent=0 // loop_footer
    %s17 = sadd.s32 1, %s13
  $region7: #{forward.2} parent=0 // loop_footer_branch
    %12 = sbr.rel target = $region3
  $region8: #{forward.2} parent=0 // loop_exit
    _

// kernel: forward.3
$region0: #{forward.3}
  #allocation0 [shape = 'u32[]', space=smem, size = 0x4, offset = 0x4, fixed_abs, tag = 'smem constant byte address 0x4 - core index']
  #allocation1 [shape = 'u32[144,128]{1,0:T(1,128)}', space=vmem, size = 0x12000, scoped, tag = 'internal scratch']
  #allocation2 [shape = 'f32[768,128]{1,0:T(8,128)}', space=vmem, size = 0x60000, scoped, tag = 'scratch operand']
  %s0 = inlined_call_operand.vmem [shape: bf16[1280,128], index: 0, kind: input, shape index: {}, may-alias: {0,1,2}]
  %s1 = inlined_call_operand.vmem [shape: bf16[1280,128], index: 1, kind: input, shape index: {}, may-alias: {0,1,2}]
  %s2 = inlined_call_operand.vmem [shape: bf16[1280,128], index: 2, kind: input, shape index: {}, may-alias: {0,1,2}]
  %s3 = inlined_call_operand.vmem [shape: f32[1280,1], index: 3, kind: input, shape index: {}, may-alias: {3,4,5}]
  %s4 = inlined_call_operand.vmem [shape: f32[1280,1], index: 4, kind: input, shape index: {}, may-alias: {3,4,5}]
  %s5 = inlined_call_operand.vmem [shape: f32[1280,1], index: 5, kind: input, shape index: {}, may-alias: {3,4,5}]
  %s6 = inlined_call_operand.vmem [shape: f32[1,128], index: 6, kind: input, shape index: {}]
  %s7 = inlined_call_operand.vmem [shape: f32[1,128], index: 7, kind: input, shape index: {}]
  %s8 = inlined_call_operand.vmem [shape: bf16[1152,128], index: 8, kind: input, shape index: {}]
  %s9 = inlined_call_operand.vmem [shape: f32[768,128], index: 9, kind: output, shape index: {}]
  %s10 = sld [smem:[#allocation0]]
  $region69: #{forward.3} parent=0
    _
  %s12 = ssub.s32 1, %s10
  %s13 = scalar_select 0, %s12, %s10
  loop: start=0, step=1, limit=5
  $region2: #{forward.3} parent=0 // loop_pre_header
    _
  $region3: #{forward.3} parent=0 // loop_header
    %s15 = sphi 0, %s19
    %p16 = scmp.ge.s32.totalorder %s15, 5
    %s25 = sphi 0, %s27
    %s28 = sphi 0, %s25
    %s29 = sphi 0, %s28
    %s45 = sphi 0, %s29
    %s53 = sphi 0, %s55
    %s56 = sphi 0, %s53
    %s57 = sphi 0, %s56
    %s73 = sphi 0, %s57
    %s81 = sphi 0, %s83
    %s84 = sphi 0, %s81
    %s85 = sphi 0, %s84
    %s101 = sphi 0, %s85
    %s107 = sphi 0, %s109
    %s110 = sphi 0, %s107
    %s111 = sphi 0, %s110
    %s127 = sphi 0, %s111
    %s135 = sphi 0, %s137
    %s138 = sphi 0, %s135
    %s139 = sphi 0, %s138
    %s155 = sphi 0, %s139
    %s163 = sphi 0, %s165
    %s166 = sphi 0, %s163
    %s167 = sphi 0, %s166
    %s183 = sphi 0, %s167
    %s187 = sphi 0, %s187
    %s189 = sphi 0, %s187
    %s190 = sphi 0, %s189
    %s204 = sphi 0, %s190
    %s208 = sphi 0, %s208
    %s210 = sphi 0, %s208
    %s211 = sphi 0, %s210
    %s225 = sphi 0, %s211
    %s229 = sphi 0, %s229
    %s231 = sphi 0, %s229
    %s232 = sphi 0, %s231
    %s246 = sphi 0, %s232
    %s252 = sphi 0, %s254
    %s255 = sphi 0, %s252
    %s256 = sphi 0, %s255
    %s272 = sphi 0, %s256
  $region4: #{forward.3} parent=0 // loop_header_branch
    %18 = sbr.rel (%p16) target = $region8
  $region5: #{forward.3} parent=0 // loop_body
    %s20 = ssub.s32 %s15, 1
    %s21 = ssub.s32 %s15, 2
    %s22 = sadd.s32 %s15, 1
    %s23 = ssub.s32 %s15, %s22
    %p24 = scmp.eq.s32.totalorder %s23, 0
    %s26 = sadd.s32 %s25, 1
    %s27 = scalar_select %p24, %s25, %s26
    %p30 = pneg %p24
    %p31 = scmp.eq.s32.totalorder %s15, 2
    %p32 = por %p30, %p31
    %p33 = scmp.ne.s32.totalorder %s25, %s28
    %p34 = scmp.eq.s32.totalorder %s15, 0
    %p35 = por %p33, %p34
    %p36 = scmp.ne.s32.totalorder %s25, %s28
    %p37 = scmp.eq.s32.totalorder %s20, 2
    %p38 = por %p36, %p37
    %p39 = scmp.ne.s32.totalorder %s28, %s29
    %p40 = scmp.eq.s32.totalorder %s20, 0
    %p41 = por %p39, %p40
    %p42 = scmp.ne.s32.totalorder %s28, %s29
    %p43 = scmp.eq.s32.totalorder %s21, 2
    %p44 = por %p42, %p43
    %p46 = scmp.ne.s32.totalorder %s29, %s45
    %p47 = scmp.eq.s32.totalorder %s21, 0
    %p48 = por %p46, %p47
    %s49 = sadd.s32 %s15, 1
    %s50 = sadd.s32 %s22, 1
    %s51 = ssub.s32 %s49, %s50
    %p52 = scmp.eq.s32.totalorder %s51, 0
    %s54 = sadd.s32 %s53, 1
    %s55 = scalar_select %p52, %s53, %s54
    %p58 = pneg %p52
    %p59 = scmp.eq.s32.totalorder %s15, 2
    %p60 = por %p58, %p59
    %p61 = scmp.ne.s32.totalorder %s53, %s56
    %p62 = scmp.eq.s32.totalorder %s15, 0
    %p63 = por %p61, %p62
    %p64 = scmp.ne.s32.totalorder %s53, %s56
    %p65 = scmp.eq.s32.totalorder %s20, 2
    %p66 = por %p64, %p65
    %p67 = scmp.ne.s32.totalorder %s56, %s57
    %p68 = scmp.eq.s32.totalorder %s20, 0
    %p69 = por %p67, %p68
    %p70 = scmp.ne.s32.totalorder %s56, %s57
    %p71 = scmp.eq.s32.totalorder %s21, 2
    %p72 = por %p70, %p71
    %p74 = scmp.ne.s32.totalorder %s57, %s73
    %p75 = scmp.eq.s32.totalorder %s21, 0
    %p76 = por %p74, %p75
    %s77 = sadd.s32 %s15, 2
    %s78 = sadd.s32 %s22, 2
    %s79 = ssub.s32 %s77, %s78
    %p80 = scmp.eq.s32.totalorder %s79, 0
    %s82 = sadd.s32 %s81, 1
    %s83 = scalar_select %p80, %s81, %s82
    %p86 = pneg %p80
    %p87 = scmp.eq.s32.totalorder %s15, 2
    %p88 = por %p86, %p87
    %p89 = scmp.ne.s32.totalorder %s81, %s84
    %p90 = scmp.eq.s32.totalorder %s15, 0
    %p91 = por %p89, %p90
    %p92 = scmp.ne.s32.totalorder %s81, %s84
    %p93 = scmp.eq.s32.totalorder %s20, 2
    %p94 = por %p92, %p93
    %p95 = scmp.ne.s32.totalorder %s84, %s85
    %p96 = scmp.eq.s32.totalorder %s20, 0
    %p97 = por %p95, %p96
    %p98 = scmp.ne.s32.totalorder %s84, %s85
    %p99 = scmp.eq.s32.totalorder %s21, 2
    %p100 = por %p98, %p99
    %p102 = scmp.ne.s32.totalorder %s85, %s101
    %p103 = scmp.eq.s32.totalorder %s21, 0
    %p104 = por %p102, %p103
    %s105 = ssub.s32 %s15, %s22
    %p106 = scmp.eq.s32.totalorder %s105, 0
    %s108 = sadd.s32 %s107, 1
    %s109 = scalar_select %p106, %s107, %s108
    %p112 = pneg %p106
    %p113 = scmp.eq.s32.totalorder %s15, 2
    %p114 = por %p112, %p113
    %p115 = scmp.ne.s32.totalorder %s107, %s110
    %p116 = scmp.eq.s32.totalorder %s15, 0
    %p117 = por %p115, %p116
    %p118 = scmp.ne.s32.totalorder %s107, %s110
    %p119 = scmp.eq.s32.totalorder %s20, 2
    %p120 = por %p118, %p119
    %p121 = scmp.ne.s32.totalorder %s110, %s111
    %p122 = scmp.eq.s32.totalorder %s20, 0
    %p123 = por %p121, %p122
    %p124 = scmp.ne.s32.totalorder %s110, %s111
    %p125 = scmp.eq.s32.totalorder %s21, 2
    %p126 = por %p124, %p125
    %p128 = scmp.ne.s32.totalorder %s111, %s127
    %p129 = scmp.eq.s32.totalorder %s21, 0
    %p130 = por %p128, %p129
    %s131 = sadd.s32 %s15, 1
    %s132 = sadd.s32 %s22, 1
    %s133 = ssub.s32 %s131, %s132
    %p134 = scmp.eq.s32.totalorder %s133, 0
    %s136 = sadd.s32 %s135, 1
    %s137 = scalar_select %p134, %s135, %s136
    %p140 = pneg %p134
    %p141 = scmp.eq.s32.totalorder %s15, 2
    %p142 = por %p140, %p141
    %p143 = scmp.ne.s32.totalorder %s135, %s138
    %p144 = scmp.eq.s32.totalorder %s15, 0
    %p145 = por %p143, %p144
    %p146 = scmp.ne.s32.totalorder %s135, %s138
    %p147 = scmp.eq.s32.totalorder %s20, 2
    %p148 = por %p146, %p147
    %p149 = scmp.ne.s32.totalorder %s138, %s139
    %p150 = scmp.eq.s32.totalorder %s20, 0
    %p151 = por %p149, %p150
    %p152 = scmp.ne.s32.totalorder %s138, %s139
    %p153 = scmp.eq.s32.totalorder %s21, 2
    %p154 = por %p152, %p153
    %p156 = scmp.ne.s32.totalorder %s139, %s155
    %p157 = scmp.eq.s32.totalorder %s21, 0
    %p158 = por %p156, %p157
    %s159 = sadd.s32 %s15, 2
    %s160 = sadd.s32 %s22, 2
    %s161 = ssub.s32 %s159, %s160
    %p162 = scmp.eq.s32.totalorder %s161, 0
    %s164 = sadd.s32 %s163, 1
    %s165 = scalar_select %p162, %s163, %s164
    %p168 = pneg %p162
    %p169 = scmp.eq.s32.totalorder %s15, 2
    %p170 = por %p168, %p169
    %p171 = scmp.ne.s32.totalorder %s163, %s166
    %p172 = scmp.eq.s32.totalorder %s15, 0
    %p173 = por %p171, %p172
    %p174 = scmp.ne.s32.totalorder %s163, %s166
    %p175 = scmp.eq.s32.totalorder %s20, 2
    %p176 = por %p174, %p175
    %p177 = scmp.ne.s32.totalorder %s166, %s167
    %p178 = scmp.eq.s32.totalorder %s20, 0
    %p179 = por %p177, %p178
    %p180 = scmp.ne.s32.totalorder %s166, %s167
    %p181 = scmp.eq.s32.totalorder %s21, 2
    %p182 = por %p180, %p181
    %p184 = scmp.ne.s32.totalorder %s167, %s183
    %p185 = scmp.eq.s32.totalorder %s21, 0
    %p186 = por %p184, %p185
    %s188 = sadd.s32 %s187, 1
    %p191 = scmp.eq.s32.totalorder %s15, 2
    %p192 = scmp.ne.s32.totalorder %s187, %s189
    %p193 = scmp.eq.s32.totalorder %s15, 0
    %p194 = por %p192, %p193
    %p195 = scmp.ne.s32.totalorder %s187, %s189
    %p196 = scmp.eq.s32.totalorder %s20, 2
    %p197 = por %p195, %p196
    %p198 = scmp.ne.s32.totalorder %s189, %s190
    %p199 = scmp.eq.s32.totalorder %s20, 0
    %p200 = por %p198, %p199
    %p201 = scmp.ne.s32.totalorder %s189, %s190
    %p202 = scmp.eq.s32.totalorder %s21, 2
    %p203 = por %p201, %p202
    %p205 = scmp.ne.s32.totalorder %s190, %s204
    %p206 = scmp.eq.s32.totalorder %s21, 0
    %p207 = por %p205, %p206
    %s209 = sadd.s32 %s208, 1
    %p212 = scmp.eq.s32.totalorder %s15, 2
    %p213 = scmp.ne.s32.totalorder %s208, %s210
    %p214 = scmp.eq.s32.totalorder %s15, 0
    %p215 = por %p213, %p214
    %p216 = scmp.ne.s32.totalorder %s208, %s210
    %p217 = scmp.eq.s32.totalorder %s20, 2
    %p218 = por %p216, %p217
    %p219 = scmp.ne.s32.totalorder %s210, %s211
    %p220 = scmp.eq.s32.totalorder %s20, 0
    %p221 = por %p219, %p220
    %p222 = scmp.ne.s32.totalorder %s210, %s211
    %p223 = scmp.eq.s32.totalorder %s21, 2
    %p224 = por %p222, %p223
    %p226 = scmp.ne.s32.totalorder %s211, %s225
    %p227 = scmp.eq.s32.totalorder %s21, 0
    %p228 = por %p226, %p227
    %s230 = sadd.s32 %s229, 1
    %p233 = scmp.eq.s32.totalorder %s15, 2
    %p234 = scmp.ne.s32.totalorder %s229, %s231
    %p235 = scmp.eq.s32.totalorder %s15, 0
    %p236 = por %p234, %p235
    %p237 = scmp.ne.s32.totalorder %s229, %s231
    %p238 = scmp.eq.s32.totalorder %s20, 2
    %p239 = por %p237, %p238
    %p240 = scmp.ne.s32.totalorder %s231, %s232
    %p241 = scmp.eq.s32.totalorder %s20, 0
    %p242 = por %p240, %p241
    %p243 = scmp.ne.s32.totalorder %s231, %s232
    %p244 = scmp.eq.s32.totalorder %s21, 2
    %p245 = por %p243, %p244
    %p247 = scmp.ne.s32.totalorder %s232, %s246
    %p248 = scmp.eq.s32.totalorder %s21, 0
    %p249 = por %p247, %p248
    %s250 = ssub.s32 %s15, %s22
    %p251 = scmp.eq.s32.totalorder %s250, 0
    %s253 = sadd.s32 %s252, 1
    %s254 = scalar_select %p251, %s252, %s253
    %p257 = pneg %p251
    %p258 = scmp.eq.s32.totalorder %s15, 2
    %p259 = por %p257, %p258
    %p260 = scmp.ne.s32.totalorder %s252, %s255
    %p261 = scmp.eq.s32.totalorder %s15, 0
    %p262 = por %p260, %p261
    %p263 = scmp.ne.s32.totalorder %s252, %s255
    %p264 = scmp.eq.s32.totalorder %s20, 2
    %p265 = por %p263, %p264
    %p266 = scmp.ne.s32.totalorder %s255, %s256
    %p267 = scmp.eq.s32.totalorder %s20, 0
    %p268 = por %p266, %p267
    %p269 = scmp.ne.s32.totalorder %s255, %s256
    %p270 = scmp.eq.s32.totalorder %s21, 2
    %p271 = por %p269, %p270
    %p273 = scmp.ne.s32.totalorder %s256, %s272
    %p274 = scmp.eq.s32.totalorder %s21, 0
    %p275 = por %p273, %p274
    %p276 = scmp.le.s32.totalorder 1, %s15
    %p277 = scmp.lt.s32.totalorder %s15, 4
    %p278 = pnand %p276, %p277
    %p279 = pneg %p278
    // Predicated region
    $region9: #{forward.3} parent=5 // pred_check
      _
    $region10: #{forward.3} parent=5 // pred_check_branch
      %281 = sbr.rel (%p278) target = $region12
    $region11: #{forward.3} parent=5 // pred_region
      %s282 = ssub.s32 %s15, 1
      // Predicated region
      $region13: #{forward.3} parent=11 // pred_check
        %p283 = pneg %p200
      $region14: #{forward.3} parent=11 // pred_check_branch
        %285 = sbr.rel (%p283) target = $region16
      $region15: #{forward.3} parent=11 // pred_region
        _
      $region16: #{forward.3} parent=11 // pred_fallthru
        _
      // Predicated region
      $region17: #{forward.3} parent=11 // pred_check
        %p286 = pneg %p221
      $region18: #{forward.3} parent=11 // pred_check_branch
        %288 = sbr.rel (%p286) target = $region20
      $region19: #{forward.3} parent=11 // pred_region
        _
      $region20: #{forward.3} parent=11 // pred_fallthru
        _
      // Predicated region
      $region21: #{forward.3} parent=11 // pred_check
        %p289 = pneg %p242
      $region22: #{forward.3} parent=11 // pred_check_branch
        %291 = sbr.rel (%p289) target = $region24
      $region23: #{forward.3} parent=11 // pred_region
        _
      $region24: #{forward.3} parent=11 // pred_fallthru
        _
    $region12: #{forward.3} parent=5 // pred_fallthru
      _
    %p292 = scmp.lt.s32.totalorder %s15, 3
    // Predicated region
    $region25: #{forward.3} parent=5 // pred_check
      %p293 = pneg %p292
    $region26: #{forward.3} parent=5 // pred_check_branch
      %295 = sbr.rel (%p293) target = $region28
    $region27: #{forward.3} parent=5 // pred_region
      // Predicated region
      $region29: #{forward.3} parent=27 // pred_check
        %p296 = pneg %p35
      $region30: #{forward.3} parent=27 // pred_check_branch
        %298 = sbr.rel (%p296) target = $region32
      $region31: #{forward.3} parent=27 // pred_region
        %s299 = smul.u32 32, %s15
        %p300 = scmp.lt.s32.totalorder %s299, 159
        %s301 = scalar_select %p300, %s299, 159
        %s302 = smul.addr %s301, 4
        %s303 = scalar_lea.vmem %s0, %s302
        %s304 = smul.u32 32, %s15
      $region32: #{forward.3} parent=27 // pred_fallthru
        _
      // Predicated region
      $region33: #{forward.3} parent=27 // pred_check
        %p305 = pneg %p63
      $region34: #{forward.3} parent=27 // pred_check_branch
        %307 = sbr.rel (%p305) target = $region36
      $region35: #{forward.3} parent=27 // pred_region
        %s308 = sadd.s32 %s15, 1
        %s309 = smul.u32 32, %s308
        %p310 = scmp.lt.s32.totalorder %s309, 159
        %s311 = scalar_select %p310, %s309, 159
        %s312 = smul.addr %s311, 4
        %s313 = scalar_lea.vmem %s1, %s312
        %s314 = sadd.s32 %s15, 1
        %s315 = smul.u32 32, %s314
      $region36: #{forward.3} parent=27 // pred_fallthru
        _
      // Predicated region
      $region37: #{forward.3} parent=27 // pred_check
        %p316 = pneg %p91
      $region38: #{forward.3} parent=27 // pred_check_branch
        %318 = sbr.rel (%p316) target = $region40
      $region39: #{forward.3} parent=27 // pred_region
        %s319 = sadd.s32 %s15, 2
        %s320 = smul.u32 32, %s319
        %p321 = scmp.lt.s32.totalorder %s320, 159
        %s322 = scalar_select %p321, %s320, 159
        %s323 = smul.addr %s322, 4
        %s324 = scalar_lea.vmem %s2, %s323
        %s325 = sadd.s32 %s15, 2
        %s326 = smul.u32 32, %s325
      $region40: #{forward.3} parent=27 // pred_fallthru
        _
      // Predicated region
      $region41: #{forward.3} parent=27 // pred_check
        %p327 = pneg %p117
      $region42: #{forward.3} parent=27 // pred_check_branch
        %329 = sbr.rel (%p327) target = $region44
      $region43: #{forward.3} parent=27 // pred_region
        %s330 = smul.u32 32, %s15
        %p331 = scmp.lt.s32.totalorder %s330, 159
        %s332 = scalar_select %p331, %s330, 159
        %s333 = smul.addr %s332, 8
        %s334 = scalar_lea.vmem %s3, %s333
        %s335 = smul.u32 32, %s15
      $region44: #{forward.3} parent=27 // pred_fallthru
        _
      // Predicated region
      $region45: #{forward.3} parent=27 // pred_check
        %p336 = pneg %p145
      $region46: #{forward.3} parent=27 // pred_check_branch
        %338 = sbr.rel (%p336) target = $region48
      $region47: #{forward.3} parent=27 // pred_region
        %s339 = sadd.s32 %s15, 1
        %s340 = smul.u32 32, %s339
        %p341 = scmp.lt.s32.totalorder %s340, 159
        %s342 = scalar_select %p341, %s340, 159
        %s343 = smul.addr %s342, 8
        %s344 = scalar_lea.vmem %s4, %s343
        %s345 = sadd.s32 %s15, 1
        %s346 = smul.u32 32, %s345
      $region48: #{forward.3} parent=27 // pred_fallthru
        _
      // Predicated region
      $region49: #{forward.3} parent=27 // pred_check
        %p347 = pneg %p173
      $region50: #{forward.3} parent=27 // pred_check_branch
        %349 = sbr.rel (%p347) target = $region52
      $region51: #{forward.3} parent=27 // pred_region
        %s350 = sadd.s32 %s15, 2
        %s351 = smul.u32 32, %s350
        %p352 = scmp.lt.s32.totalorder %s351, 159
        %s353 = scalar_select %p352, %s351, 159
        %s354 = smul.addr %s353, 8
        %s355 = scalar_lea.vmem %s5, %s354
        %s356 = sadd.s32 %s15, 2
        %s357 = smul.u32 32, %s356
      $region52: #{forward.3} parent=27 // pred_fallthru
        _
    $region28: #{forward.3} parent=5 // pred_fallthru
      _
    %p358 = scmp.le.s32.totalorder 1, %s15
    %p359 = scmp.lt.s32.totalorder %s15, 4
    %p360 = pnand %p358, %p359
    %p361 = pneg %p360
    // Predicated region
    $region53: #{forward.3} parent=5 // pred_check
      _
    $region54: #{forward.3} parent=5 // pred_check_branch
      %363 = sbr.rel (%p360) target = $region56
    $region55: #{forward.3} parent=5 // pred_region
      %s364 = ssub.s32 %s15, 1
      %s365 = smul.u32 32, %s20
      %p366 = scmp.lt.s32.totalorder %s365, 159
      %s367 = scalar_select %p366, %s365, 159
      %s368 = smul.addr %s367, 4
      %s369 = scalar_lea.vmem %s0, %s368
      %p370 = pneg %p41
      %p371 = pneg %p38
      %s372 = sadd.s32 %s20, 1
      %s373 = smul.u32 32, %s372
      %p374 = scmp.lt.s32.totalorder %s373, 159
      %s375 = scalar_select %p374, %s373, 159
      %s376 = smul.addr %s375, 4
      %s377 = scalar_lea.vmem %s1, %s376
      %p378 = pneg %p69
      %p379 = pneg %p66
      %s380 = sadd.s32 %s20, 2
      %s381 = smul.u32 32, %s380
      %p382 = scmp.lt.s32.totalorder %s381, 159
      %s383 = scalar_select %p382, %s381, 159
      %s384 = smul.addr %s383, 4
      %s385 = scalar_lea.vmem %s2, %s384
      %p386 = pneg %p97
      %p387 = pneg %p94
      %s388 = smul.u32 32, %s20
      %p389 = scmp.lt.s32.totalorder %s388, 159
      %s390 = scalar_select %p389, %s388, 159
      %s391 = smul.addr %s390, 8
      %s392 = scalar_lea.vmem %s3, %s391
      %p393 = pneg %p123
      %p394 = pneg %p120
      %s395 = sadd.s32 %s20, 1
      %s396 = smul.u32 32, %s395
      %p397 = scmp.lt.s32.totalorder %s396, 159
      %s398 = scalar_select %p397, %s396, 159
      %s399 = smul.addr %s398, 8
      %s400 = scalar_lea.vmem %s4, %s399
      %p401 = pneg %p151
      %p402 = pneg %p148
      %s403 = sadd.s32 %s20, 2
      %s404 = smul.u32 32, %s403
      %p405 = scmp.lt.s32.totalorder %s404, 159
      %s406 = scalar_select %p405, %s404, 159
      %s407 = smul.addr %s406, 8
      %s408 = scalar_lea.vmem %s5, %s407
      %p409 = pneg %p179
      %p410 = pneg %p176
      %p411 = pneg %p200
      %p412 = pneg %p197
      %p413 = pneg %p221
      %p414 = pneg %p218
      %p415 = pneg %p242
      %p416 = pneg %p239
      %p417 = pneg %p268
      %p418 = pneg %p265
      %s419 = smul.u32 32, %s20
      %p420 = scmp.lt.s32.totalorder %s419, 95
      %s421 = scalar_select %p420, %s419, 95
      %s422 = smul.addr %s421, 8
      %s423 = scalar_lea.vmem %s9, %s422
      %s424 = smul.u32 32, %s20
      %p425 = scmp.lt.s32.totalorder %s424, 159
      %s426 = scalar_select %p425, %s424, 159
      %s427 = smul.addr %s426, 4
      %s428 = scalar_lea.vmem %s0, %s427
      %s429 = smul.u32 32, %s20
      %s430 = sadd.s32 %s20, 1
      %s431 = smul.u32 32, %s430
      %p432 = scmp.lt.s32.totalorder %s431, 159
      %s433 = scalar_select %p432, %s431, 159
      %s434 = smul.addr %s433, 4
      %s435 = scalar_lea.vmem %s1, %s434
      %s436 = sadd.s32 %s20, 1
      %s437 = smul.u32 32, %s436
      %s438 = sadd.s32 %s20, 2
      %s439 = smul.u32 32, %s438
      %p440 = scmp.lt.s32.totalorder %s439, 159
      %s441 = scalar_select %p440, %s439, 159
      %s442 = smul.addr %s441, 4
      %s443 = scalar_lea.vmem %s2, %s442
      %s444 = sadd.s32 %s20, 2
      %s445 = smul.u32 32, %s444
      %s446 = smul.u32 32, %s20
      %p447 = scmp.lt.s32.totalorder %s446, 159
      %s448 = scalar_select %p447, %s446, 159
      %s449 = smul.addr %s448, 8
      %s450 = scalar_lea.vmem %s3, %s449
      %s451 = smul.u32 32, %s20
      %s452 = sadd.s32 %s20, 1
      %s453 = smul.u32 32, %s452
      %p454 = scmp.lt.s32.totalorder %s453, 159
      %s455 = scalar_select %p454, %s453, 159
      %s456 = smul.addr %s455, 8
      %s457 = scalar_lea.vmem %s4, %s456
      %s458 = sadd.s32 %s20, 1
      %s459 = smul.u32 32, %s458
      %s460 = sadd.s32 %s20, 2
      %s461 = smul.u32 32, %s460
      %p462 = scmp.lt.s32.totalorder %s461, 159
      %s463 = scalar_select %p462, %s461, 159
      %s464 = smul.addr %s463, 8
      %s465 = scalar_lea.vmem %s5, %s464
      %s466 = sadd.s32 %s20, 2
      %s467 = smul.u32 32, %s466
      %s468 = smul.u32 32, %s20
      %p469 = scmp.lt.s32.totalorder %s468, 95
      %s470 = scalar_select %p469, %s468, 95
      %s471 = smul.addr %s470, 8
      %s472 = scalar_lea.vmem %s9, %s471
      %s473 = smul.u32 32, %s20
      %v475 = vld [vmem:[%s6] sm:$0x1]
      %v476 = vld [vmem:[%s7] sm:$0x1]
      %v477 = vld [vmem:[%s428] sm:$0xf]
      %v478 = vld [vmem:[%s428 + $0x4] sm:$0xf]
      %v479 = vld [vmem:[%s428 + $0x8] sm:$0xf]
      %v480 = vld [vmem:[%s428 + $0xc] sm:$0xf]
      %v481 = vld [vmem:[%s428 + $0x10] sm:$0xf]
      %v482 = vld [vmem:[%s428 + $0x14] sm:$0xf]
      %v483 = vld [vmem:[%s428 + $0x18] sm:$0xf]
      %v484 = vld [vmem:[%s428 + $0x1c] sm:$0xf]
      %v485 = vld [vmem:[%s428 + $0x20] sm:$0xf]
      %v486 = vld [vmem:[%s428 + $0x24] sm:$0xf]
      %v487 = vld [vmem:[%s428 + $0x28] sm:$0xf]
      %v488 = vld [vmem:[%s428 + $0x2c] sm:$0xf]
      %v489 = vld [vmem:[%s428 + $0x30] sm:$0xf]
      %v490 = vld [vmem:[%s428 + $0x34] sm:$0xf]
      %v491 = vld [vmem:[%s428 + $0x38] sm:$0xf]
      %v492 = vld [vmem:[%s428 + $0x3c] sm:$0xf]
      %v493 = vld [vmem:[%s428 + $0x40] sm:$0xf]
      %v494 = vld [vmem:[%s428 + $0x44] sm:$0xf]
      %v495 = vld [vmem:[%s428 + $0x48] sm:$0xf]
      %v496 = vld [vmem:[%s428 + $0x4c] sm:$0xf]
      %v497 = vld [vmem:[%s428 + $0x50] sm:$0xf]
      %v498 = vld [vmem:[%s428 + $0x54] sm:$0xf]
      %v499 = vld [vmem:[%s428 + $0x58] sm:$0xf]
      %v500 = vld [vmem:[%s428 + $0x5c] sm:$0xf]
      %v501 = vld [vmem:[%s428 + $0x60] sm:$0xf]
      %v502 = vld [vmem:[%s428 + $0x64] sm:$0xf]
      %v503 = vld [vmem:[%s428 + $0x68] sm:$0xf]
      %v504 = vld [vmem:[%s428 + $0x6c] sm:$0xf]
      %v505 = vld [vmem:[%s428 + $0x70] sm:$0xf]
      %v506 = vld [vmem:[%s428 + $0x74] sm:$0xf]
      %v507 = vld [vmem:[%s428 + $0x78] sm:$0xf]
      %v508 = vld [vmem:[%s428 + $0x7c] sm:$0xf]
      %v509 = vunpack.c.l.bf16 %v477
      %v510 = vunpack.c.l.bf16 %v478
      %v511 = vunpack.c.l.bf16 %v479
      %v512 = vunpack.c.l.bf16 %v480
      %v513 = vunpack.c.l.bf16 %v481
      %v514 = vunpack.c.l.bf16 %v482
      %v515 = vunpack.c.l.bf16 %v483
      %v516 = vunpack.c.l.bf16 %v484
      %v517 = vunpack.c.l.bf16 %v485
      %v518 = vunpack.c.l.bf16 %v486
      %v519 = vunpack.c.l.bf16 %v487
      %v520 = vunpack.c.l.bf16 %v488
      %v521 = vunpack.c.l.bf16 %v489
      %v522 = vunpack.c.l.bf16 %v490
      %v523 = vunpack.c.l.bf16 %v491
      %v524 = vunpack.c.l.bf16 %v492
      %v525 = vunpack.c.l.bf16 %v493
      %v526 = vunpack.c.l.bf16 %v494
      %v527 = vunpack.c.l.bf16 %v495
      %v528 = vunpack.c.l.bf16 %v496
      %v529 = vunpack.c.l.bf16 %v497
      %v530 = vunpack.c.l.bf16 %v498
      %v531 = vunpack.c.l.bf16 %v499
      %v532 = vunpack.c.l.bf16 %v500
      %v533 = vunpack.c.l.bf16 %v501
      %v534 = vunpack.c.l.bf16 %v502
      %v535 = vunpack.c.l.bf16 %v503
      %v536 = vunpack.c.l.bf16 %v504
      %v537 = vunpack.c.l.bf16 %v505
      %v538 = vunpack.c.l.bf16 %v506
      %v539 = vunpack.c.l.bf16 %v507
      %v540 = vunpack.c.l.bf16 %v508
      %v542 = vlaneseq
      %v543 = vshrl.u32 %v542, 7
      %v544 = vsub.s32 0, %v543
      %v545 = vrot.slane %v475, %v544
      %v547 = vmul.f32 %v509, %v545
      %v548 = vmul.f32 %v510, %v545
      %v549 = vmul.f32 %v511, %v545
      %v550 = vmul.f32 %v512, %v545
      %v551 = vmul.f32 %v513, %v545
      %v552 = vmul.f32 %v514, %v545
      %v553 = vmul.f32 %v515, %v545
      %v554 = vmul.f32 %v516, %v545
      %v555 = vmul.f32 %v517, %v545
      %v556 = vmul.f32 %v518, %v545
      %v557 = vmul.f32 %v519, %v545
      %v558 = vmul.f32 %v520, %v545
      %v559 = vmul.f32 %v521, %v545
      %v560 = vmul.f32 %v522, %v545
      %v561 = vmul.f32 %v523, %v545
      %v562 = vmul.f32 %v524, %v545
      %v563 = vmul.f32 %v525, %v545
      %v564 = vmul.f32 %v526, %v545
      %v565 = vmul.f32 %v527, %v545
      %v566 = vmul.f32 %v528, %v545
      %v567 = vmul.f32 %v529, %v545
      %v568 = vmul.f32 %v530, %v545
      %v569 = vmul.f32 %v531, %v545
      %v570 = vmul.f32 %v532, %v545
      %v571 = vmul.f32 %v533, %v545
      %v572 = vmul.f32 %v534, %v545
      %v573 = vmul.f32 %v535, %v545
      %v574 = vmul.f32 %v536, %v545
      %v575 = vmul.f32 %v537, %v545
      %v576 = vmul.f32 %v538, %v545
      %v577 = vmul.f32 %v539, %v545
      %v578 = vmul.f32 %v540, %v545
      %v580 = vlaneseq
      %v581 = vshrl.u32 %v580, 7
      %v582 = vsub.s32 0, %v581
      %v583 = vrot.slane %v476, %v582
      %v585 = vadd.f32 %v547, %v583
      %v586 = vadd.f32 %v548, %v583
      %v587 = vadd.f32 %v549, %v583
      %v588 = vadd.f32 %v550, %v583
      %v589 = vadd.f32 %v551, %v583
      %v590 = vadd.f32 %v552, %v583
      %v591 = vadd.f32 %v553, %v583
      %v592 = vadd.f32 %v554, %v583
      %v593 = vadd.f32 %v555, %v583
      %v594 = vadd.f32 %v556, %v583
      %v595 = vadd.f32 %v557, %v583
      %v596 = vadd.f32 %v558, %v583
      %v597 = vadd.f32 %v559, %v583
      %v598 = vadd.f32 %v560, %v583
      %v599 = vadd.f32 %v561, %v583
      %v600 = vadd.f32 %v562, %v583
      %v601 = vadd.f32 %v563, %v583
      %v602 = vadd.f32 %v564, %v583
      %v603 = vadd.f32 %v565, %v583
      %v604 = vadd.f32 %v566, %v583
      %v605 = vadd.f32 %v567, %v583
      %v606 = vadd.f32 %v568, %v583
      %v607 = vadd.f32 %v569, %v583
      %v608 = vadd.f32 %v570, %v583
      %v609 = vadd.f32 %v571, %v583
      %v610 = vadd.f32 %v572, %v583
      %v611 = vadd.f32 %v573, %v583
      %v612 = vadd.f32 %v574, %v583
      %v613 = vadd.f32 %v575, %v583
      %v614 = vadd.f32 %v576, %v583
      %v615 = vadd.f32 %v577, %v583
      %v616 = vadd.f32 %v578, %v583
      %v617 = vmax.f32 %v585, 0.0
      %v618 = vmax.f32 %v586, 0.0
      %v619 = vmax.f32 %v587, 0.0
      %v620 = vmax.f32 %v588, 0.0
      %v621 = vmax.f32 %v589, 0.0
      %v622 = vmax.f32 %v590, 0.0
      %v623 = vmax.f32 %v591, 0.0
      %v624 = vmax.f32 %v592, 0.0
      %v625 = vmax.f32 %v593, 0.0
      %v626 = vmax.f32 %v594, 0.0
      %v627 = vmax.f32 %v595, 0.0
      %v628 = vmax.f32 %v596, 0.0
      %v629 = vmax.f32 %v597, 0.0
      %v630 = vmax.f32 %v598, 0.0
      %v631 = vmax.f32 %v599, 0.0
      %v632 = vmax.f32 %v600, 0.0
      %v633 = vmax.f32 %v601, 0.0
      %v634 = vmax.f32 %v602, 0.0
      %v635 = vmax.f32 %v603, 0.0
      %v636 = vmax.f32 %v604, 0.0
      %v637 = vmax.f32 %v605, 0.0
      %v638 = vmax.f32 %v606, 0.0
      %v639 = vmax.f32 %v607, 0.0
      %v640 = vmax.f32 %v608, 0.0
      %v641 = vmax.f32 %v609, 0.0
      %v642 = vmax.f32 %v610, 0.0
      %v643 = vmax.f32 %v611, 0.0
      %v644 = vmax.f32 %v612, 0.0
      %v645 = vmax.f32 %v613, 0.0
      %v646 = vmax.f32 %v614, 0.0
      %v647 = vmax.f32 %v615, 0.0
      %v648 = vmax.f32 %v616, 0.0
      %v649 = vld [vmem:[%s450] sm:$0xff]
      %v650 = vld [vmem:[%s450 + $0x8] sm:$0xff]
      %v651 = vld [vmem:[%s450 + $0x10] sm:$0xff]
      %v652 = vld [vmem:[%s450 + $0x18] sm:$0xff]
      %v653 = vld [vmem:[%s450 + $0x20] sm:$0xff]
      %v654 = vld [vmem:[%s450 + $0x28] sm:$0xff]
      %v655 = vld [vmem:[%s450 + $0x30] sm:$0xff]
      %v656 = vld [vmem:[%s450 + $0x38] sm:$0xff]
      %v657 = vld [vmem:[%s450 + $0x40] sm:$0xff]
      %v658 = vld [vmem:[%s450 + $0x48] sm:$0xff]
      %v659 = vld [vmem:[%s450 + $0x50] sm:$0xff]
      %v660 = vld [vmem:[%s450 + $0x58] sm:$0xff]
      %v661 = vld [vmem:[%s450 + $0x60] sm:$0xff]
      %v662 = vld [vmem:[%s450 + $0x68] sm:$0xff]
      %v663 = vld [vmem:[%s450 + $0x70] sm:$0xff]
      %v664 = vld [vmem:[%s450 + $0x78] sm:$0xff]
      %v665 = vld [vmem:[%s450 + $0x80] sm:$0xff]
      %v666 = vld [vmem:[%s450 + $0x88] sm:$0xff]
      %v667 = vld [vmem:[%s450 + $0x90] sm:$0xff]
      %v668 = vld [vmem:[%s450 + $0x98] sm:$0xff]
      %v669 = vld [vmem:[%s450 + $0xa0] sm:$0xff]
      %v670 = vld [vmem:[%s450 + $0xa8] sm:$0xff]
      %v671 = vld [vmem:[%s450 + $0xb0] sm:$0xff]
      %v672 = vld [vmem:[%s450 + $0xb8] sm:$0xff]
      %v673 = vld [vmem:[%s450 + $0xc0] sm:$0xff]
      %v674 = vld [vmem:[%s450 + $0xc8] sm:$0xff]
      %v675 = vld [vmem:[%s450 + $0xd0] sm:$0xff]
      %v676 = vld [vmem:[%s450 + $0xd8] sm:$0xff]
      %v677 = vld [vmem:[%s450 + $0xe0] sm:$0xff]
      %v678 = vld [vmem:[%s450 + $0xe8] sm:$0xff]
      %v679 = vld [vmem:[%s450 + $0xf0] sm:$0xff]
      %v680 = vld [vmem:[%s450 + $0xf8] sm:$0xff]
      %682 = vset.pattern.permute.xlu0 0
      %683 = vperm.xlu0 %682, %v649
      %v684 = vpop.permute.xlu0 %683
      %687 = vset.pattern.permute.xlu0 0
      %688 = vperm.xlu0 %687, %v650
      %v689 = vpop.permute.xlu0 %688
      %692 = vset.pattern.permute.xlu0 0
      %693 = vperm.xlu0 %692, %v651
      %v694 = vpop.permute.xlu0 %693
      %697 = vset.pattern.permute.xlu0 0
      %698 = vperm.xlu0 %697, %v652
      %v699 = vpop.permute.xlu0 %698
      %702 = vset.pattern.permute.xlu0 0
      %703 = vperm.xlu0 %702, %v653
      %v704 = vpop.permute.xlu0 %703
      %707 = vset.pattern.permute.xlu0 0
      %708 = vperm.xlu0 %707, %v654
      %v709 = vpop.permute.xlu0 %708
      %712 = vset.pattern.permute.xlu0 0
      %713 = vperm.xlu0 %712, %v655
      %v714 = vpop.permute.xlu0 %713
      %717 = vset.pattern.permute.xlu0 0
      %718 = vperm.xlu0 %717, %v656
      %v719 = vpop.permute.xlu0 %718
      %722 = vset.pattern.permute.xlu0 0
      %723 = vperm.xlu0 %722, %v657
      %v724 = vpop.permute.xlu0 %723
      %727 = vset.pattern.permute.xlu0 0
      %728 = vperm.xlu0 %727, %v658
      %v729 = vpop.permute.xlu0 %728
      %732 = vset.pattern.permute.xlu0 0
      %733 = vperm.xlu0 %732, %v659
      %v734 = vpop.permute.xlu0 %733
      %737 = vset.pattern.permute.xlu0 0
      %738 = vperm.xlu0 %737, %v660
      %v739 = vpop.permute.xlu0 %738
      %742 = vset.pattern.permute.xlu0 0
      %743 = vperm.xlu0 %742, %v661
      %v744 = vpop.permute.xlu0 %743
      %747 = vset.pattern.permute.xlu0 0
      %748 = vperm.xlu0 %747, %v662
      %v749 = vpop.permute.xlu0 %748
      %752 = vset.pattern.permute.xlu0 0
      %753 = vperm.xlu0 %752, %v663
      %v754 = vpop.permute.xlu0 %753
      %757 = vset.pattern.permute.xlu0 0
      %758 = vperm.xlu0 %757, %v664
      %v759 = vpop.permute.xlu0 %758
      %762 = vset.pattern.permute.xlu0 0
      %763 = vperm.xlu0 %762, %v665
      %v764 = vpop.permute.xlu0 %763
      %767 = vset.pattern.permute.xlu0 0
      %768 = vperm.xlu0 %767, %v666
      %v769 = vpop.permute.xlu0 %768
      %772 = vset.pattern.permute.xlu0 0
      %773 = vperm.xlu0 %772, %v667
      %v774 = vpop.permute.xlu0 %773
      %777 = vset.pattern.permute.xlu0 0
      %778 = vperm.xlu0 %777, %v668
      %v779 = vpop.permute.xlu0 %778
      %782 = vset.pattern.permute.xlu0 0
      %783 = vperm.xlu0 %782, %v669
      %v784 = vpop.permute.xlu0 %783
      %787 = vset.pattern.permute.xlu0 0
      %788 = vperm.xlu0 %787, %v670
      %v789 = vpop.permute.xlu0 %788
      %792 = vset.pattern.permute.xlu0 0
      %793 = vperm.xlu0 %792, %v671
      %v794 = vpop.permute.xlu0 %793
      %797 = vset.pattern.permute.xlu0 0
      %798 = vperm.xlu0 %797, %v672
      %v799 = vpop.permute.xlu0 %798
      %802 = vset.pattern.permute.xlu0 0
      %803 = vperm.xlu0 %802, %v673
      %v804 = vpop.permute.xlu0 %803
      %807 = vset.pattern.permute.xlu0 0
      %808 = vperm.xlu0 %807, %v674
      %v809 = vpop.permute.xlu0 %808
      %812 = vset.pattern.permute.xlu0 0
      %813 = vperm.xlu0 %812, %v675
      %v814 = vpop.permute.xlu0 %813
      %817 = vset.pattern.permute.xlu0 0
      %818 = vperm.xlu0 %817, %v676
      %v819 = vpop.permute.xlu0 %818
      %822 = vset.pattern.permute.xlu0 0
      %823 = vperm.xlu0 %822, %v677
      %v824 = vpop.permute.xlu0 %823
      %827 = vset.pattern.permute.xlu0 0
      %828 = vperm.xlu0 %827, %v678
      %v829 = vpop.permute.xlu0 %828
      %832 = vset.pattern.permute.xlu0 0
      %833 = vperm.xlu0 %832, %v679
      %v834 = vpop.permute.xlu0 %833
      %837 = vset.pattern.permute.xlu0 0
      %838 = vperm.xlu0 %837, %v680
      %v839 = vpop.permute.xlu0 %838
      %v841 = vmul.f32 %v617, %v684
      %v842 = vmul.f32 %v618, %v689
      %v843 = vmul.f32 %v619, %v694
      %v844 = vmul.f32 %v620, %v699
      %v845 = vmul.f32 %v621, %v704
      %v846 = vmul.f32 %v622, %v709
      %v847 = vmul.f32 %v623, %v714
      %v848 = vmul.f32 %v624, %v719
      %v849 = vmul.f32 %v625, %v724
      %v850 = vmul.f32 %v626, %v729
      %v851 = vmul.f32 %v627, %v734
      %v852 = vmul.f32 %v628, %v739
      %v853 = vmul.f32 %v629, %v744
      %v854 = vmul.f32 %v630, %v749
      %v855 = vmul.f32 %v631, %v754
      %v856 = vmul.f32 %v632, %v759
      %v857 = vmul.f32 %v633, %v764
      %v858 = vmul.f32 %v634, %v769
      %v859 = vmul.f32 %v635, %v774
      %v860 = vmul.f32 %v636, %v779
      %v861 = vmul.f32 %v637, %v784
      %v862 = vmul.f32 %v638, %v789
      %v863 = vmul.f32 %v639, %v794
      %v864 = vmul.f32 %v640, %v799
      %v865 = vmul.f32 %v641, %v804
      %v866 = vmul.f32 %v642, %v809
      %v867 = vmul.f32 %v643, %v814
      %v868 = vmul.f32 %v644, %v819
      %v869 = vmul.f32 %v645, %v824
      %v870 = vmul.f32 %v646, %v829
      %v871 = vmul.f32 %v647, %v834
      %v872 = vmul.f32 %v648, %v839
      %873 = vst [vmem:[#allocation2] sm:$0xff] %v841
      %874 = vst [vmem:[#allocation2 + $0x8] sm:$0xff] %v842
      %875 = vst [vmem:[#allocation2 + $0x10] sm:$0xff] %v843
      %876 = vst [vmem:[#allocation2 + $0x18] sm:$0xff] %v844
      %877 = vst [vmem:[#allocation2 + $0x20] sm:$0xff] %v845
      %878 = vst [vmem:[#allocation2 + $0x28] sm:$0xff] %v846
      %879 = vst [vmem:[#allocation2 + $0x30] sm:$0xff] %v847
      %880 = vst [vmem:[#allocation2 + $0x38] sm:$0xff] %v848
      %881 = vst [vmem:[#allocation2 + $0x40] sm:$0xff] %v849
      %882 = vst [vmem:[#allocation2 + $0x48] sm:$0xff] %v850
      %883 = vst [vmem:[#allocation2 + $0x50] sm:$0xff] %v851
      %884 = vst [vmem:[#allocation2 + $0x58] sm:$0xff] %v852
      %885 = vst [vmem:[#allocation2 + $0x60] sm:$0xff] %v853
      %886 = vst [vmem:[#allocation2 + $0x68] sm:$0xff] %v854
      %887 = vst [vmem:[#allocation2 + $0x70] sm:$0xff] %v855
      %888 = vst [vmem:[#allocation2 + $0x78] sm:$0xff] %v856
      %889 = vst [vmem:[#allocation2 + $0x80] sm:$0xff] %v857
      %890 = vst [vmem:[#allocation2 + $0x88] sm:$0xff] %v858
      %891 = vst [vmem:[#allocation2 + $0x90] sm:$0xff] %v859
      %892 = vst [vmem:[#allocation2 + $0x98] sm:$0xff] %v860
      %893 = vst [vmem:[#allocation2 + $0xa0] sm:$0xff] %v861
      %894 = vst [vmem:[#allocation2 + $0xa8] sm:$0xff] %v862
      %895 = vst [vmem:[#allocation2 + $0xb0] sm:$0xff] %v863
      %896 = vst [vmem:[#allocation2 + $0xb8] sm:$0xff] %v864
      %897 = vst [vmem:[#allocation2 + $0xc0] sm:$0xff] %v865
      %898 = vst [vmem:[#allocation2 + $0xc8] sm:$0xff] %v866
      %899 = vst [vmem:[#allocation2 + $0xd0] sm:$0xff] %v867
      %900 = vst [vmem:[#allocation2 + $0xd8] sm:$0xff] %v868
      %901 = vst [vmem:[#allocation2 + $0xe0] sm:$0xff] %v869
      %902 = vst [vmem:[#allocation2 + $0xe8] sm:$0xff] %v870
      %903 = vst [vmem:[#allocation2 + $0xf0] sm:$0xff] %v871
      %904 = vst [vmem:[#allocation2 + $0xf8] sm:$0xff] %v872
      %v905 = vld [vmem:[%s435] sm:$0xf]
      %v906 = vld [vmem:[%s435 + $0x4] sm:$0xf]
      %v907 = vld [vmem:[%s435 + $0x8] sm:$0xf]
      %v908 = vld [vmem:[%s435 + $0xc] sm:$0xf]
      %v909 = vld [vmem:[%s435 + $0x10] sm:$0xf]
      %v910 = vld [vmem:[%s435 + $0x14] sm:$0xf]
      %v911 = vld [vmem:[%s435 + $0x18] sm:$0xf]
      %v912 = vld [vmem:[%s435 + $0x1c] sm:$0xf]
      %v913 = vld [vmem:[%s435 + $0x20] sm:$0xf]
      %v914 = vld [vmem:[%s435 + $0x24] sm:$0xf]
      %v915 = vld [vmem:[%s435 + $0x28] sm:$0xf]
      %v916 = vld [vmem:[%s435 + $0x2c] sm:$0xf]
      %v917 = vld [vmem:[%s435 + $0x30] sm:$0xf]
      %v918 = vld [vmem:[%s435 + $0x34] sm:$0xf]
      %v919 = vld [vmem:[%s435 + $0x38] sm:$0xf]
      %v920 = vld [vmem:[%s435 + $0x3c] sm:$0xf]
      %v921 = vld [vmem:[%s435 + $0x40] sm:$0xf]
      %v922 = vld [vmem:[%s435 + $0x44] sm:$0xf]
      %v923 = vld [vmem:[%s435 + $0x48] sm:$0xf]
      %v924 = vld [vmem:[%s435 + $0x4c] sm:$0xf]
      %v925 = vld [vmem:[%s435 + $0x50] sm:$0xf]
      %v926 = vld [vmem:[%s435 + $0x54] sm:$0xf]
      %v927 = vld [vmem:[%s435 + $0x58] sm:$0xf]
      %v928 = vld [vmem:[%s435 + $0x5c] sm:$0xf]
      %v929 = vld [vmem:[%s435 + $0x60] sm:$0xf]
      %v930 = vld [vmem:[%s435 + $0x64] sm:$0xf]
      %v931 = vld [vmem:[%s435 + $0x68] sm:$0xf]
      %v932 = vld [vmem:[%s435 + $0x6c] sm:$0xf]
      %v933 = vld [vmem:[%s435 + $0x70] sm:$0xf]
      %v934 = vld [vmem:[%s435 + $0x74] sm:$0xf]
      %v935 = vld [vmem:[%s435 + $0x78] sm:$0xf]
      %v936 = vld [vmem:[%s435 + $0x7c] sm:$0xf]
      %v937 = vunpack.c.l.bf16 %v905
      %v938 = vunpack.c.l.bf16 %v906
      %v939 = vunpack.c.l.bf16 %v907
      %v940 = vunpack.c.l.bf16 %v908
      %v941 = vunpack.c.l.bf16 %v909
      %v942 = vunpack.c.l.bf16 %v910
      %v943 = vunpack.c.l.bf16 %v911
      %v944 = vunpack.c.l.bf16 %v912
      %v945 = vunpack.c.l.bf16 %v913
      %v946 = vunpack.c.l.bf16 %v914
      %v947 = vunpack.c.l.bf16 %v915
      %v948 = vunpack.c.l.bf16 %v916
      %v949 = vunpack.c.l.bf16 %v917
      %v950 = vunpack.c.l.bf16 %v918
      %v951 = vunpack.c.l.bf16 %v919
      %v952 = vunpack.c.l.bf16 %v920
      %v953 = vunpack.c.l.bf16 %v921
      %v954 = vunpack.c.l.bf16 %v922
      %v955 = vunpack.c.l.bf16 %v923
      %v956 = vunpack.c.l.bf16 %v924
      %v957 = vunpack.c.l.bf16 %v925
      %v958 = vunpack.c.l.bf16 %v926
      %v959 = vunpack.c.l.bf16 %v927
      %v960 = vunpack.c.l.bf16 %v928
      %v961 = vunpack.c.l.bf16 %v929
      %v962 = vunpack.c.l.bf16 %v930
      %v963 = vunpack.c.l.bf16 %v931
      %v964 = vunpack.c.l.bf16 %v932
      %v965 = vunpack.c.l.bf16 %v933
      %v966 = vunpack.c.l.bf16 %v934
      %v967 = vunpack.c.l.bf16 %v935
      %v968 = vunpack.c.l.bf16 %v936
      %v969 = vmul.f32 %v937, %v545
      %v970 = vmul.f32 %v938, %v545
      %v971 = vmul.f32 %v939, %v545
      %v972 = vmul.f32 %v940, %v545
      %v973 = vmul.f32 %v941, %v545
      %v974 = vmul.f32 %v942, %v545
      %v975 = vmul.f32 %v943, %v545
      %v976 = vmul.f32 %v944, %v545
      %v977 = vmul.f32 %v945, %v545
      %v978 = vmul.f32 %v946, %v545
      %v979 = vmul.f32 %v947, %v545
      %v980 = vmul.f32 %v948, %v545
      %v981 = vmul.f32 %v949, %v545
      %v982 = vmul.f32 %v950, %v545
      %v983 = vmul.f32 %v951, %v545
      %v984 = vmul.f32 %v952, %v545
      %v985 = vmul.f32 %v953, %v545
      %v986 = vmul.f32 %v954, %v545
      %v987 = vmul.f32 %v955, %v545
      %v988 = vmul.f32 %v956, %v545
      %v989 = vmul.f32 %v957, %v545
      %v990 = vmul.f32 %v958, %v545
      %v991 = vmul.f32 %v959, %v545
      %v992 = vmul.f32 %v960, %v545
      %v993 = vmul.f32 %v961, %v545
      %v994 = vmul.f32 %v962, %v545
      %v995 = vmul.f32 %v963, %v545
      %v996 = vmul.f32 %v964, %v545
      %v997 = vmul.f32 %v965, %v545
      %v998 = vmul.f32 %v966, %v545
      %v999 = vmul.f32 %v967, %v545
      %v1000 = vmul.f32 %v968, %v545
      %v1001 = vadd.f32 %v969, %v583
      %v1002 = vadd.f32 %v970, %v583
      %v1003 = vadd.f32 %v971, %v583
      %v1004 = vadd.f32 %v972, %v583
      %v1005 = vadd.f32 %v973, %v583
      %v1006 = vadd.f32 %v974, %v583
      %v1007 = vadd.f32 %v975, %v583
      %v1008 = vadd.f32 %v976, %v583
      %v1009 = vadd.f32 %v977, %v583
      %v1010 = vadd.f32 %v978, %v583
      %v1011 = vadd.f32 %v979, %v583
      %v1012 = vadd.f32 %v980, %v583
      %v1013 = vadd.f32 %v981, %v583
      %v1014 = vadd.f32 %v982, %v583
      %v1015 = vadd.f32 %v983, %v583
      %v1016 = vadd.f32 %v984, %v583
      %v1017 = vadd.f32 %v985, %v583
      %v1018 = vadd.f32 %v986, %v583
      %v1019 = vadd.f32 %v987, %v583
      %v1020 = vadd.f32 %v988, %v583
      %v1021 = vadd.f32 %v989, %v583
      %v1022 = vadd.f32 %v990, %v583
      %v1023 = vadd.f32 %v991, %v583
      %v1024 = vadd.f32 %v992, %v583
      %v1025 = vadd.f32 %v993, %v583
      %v1026 = vadd.f32 %v994, %v583
      %v1027 = vadd.f32 %v995, %v583
      %v1028 = vadd.f32 %v996, %v583
      %v1029 = vadd.f32 %v997, %v583
      %v1030 = vadd.f32 %v998, %v583
      %v1031 = vadd.f32 %v999, %v583
      %v1032 = vadd.f32 %v1000, %v583
      %v1033 = vmax.f32 %v1001, 0.0
      %v1034 = vmax.f32 %v1002, 0.0
      %v1035 = vmax.f32 %v1003, 0.0
      %v1036 = vmax.f32 %v1004, 0.0
      %v1037 = vmax.f32 %v1005, 0.0
      %v1038 = vmax.f32 %v1006, 0.0
      %v1039 = vmax.f32 %v1007, 0.0
      %v1040 = vmax.f32 %v1008, 0.0
      %v1041 = vmax.f32 %v1009, 0.0
      %v1042 = vmax.f32 %v1010, 0.0
      %v1043 = vmax.f32 %v1011, 0.0
      %v1044 = vmax.f32 %v1012, 0.0
      %v1045 = vmax.f32 %v1013, 0.0
      %v1046 = vmax.f32 %v1014, 0.0
      %v1047 = vmax.f32 %v1015, 0.0
      %v1048 = vmax.f32 %v1016, 0.0
      %v1049 = vmax.f32 %v1017, 0.0
      %v1050 = vmax.f32 %v1018, 0.0
      %v1051 = vmax.f32 %v1019, 0.0
      %v1052 = vmax.f32 %v1020, 0.0
      %v1053 = vmax.f32 %v1021, 0.0
      %v1054 = vmax.f32 %v1022, 0.0
      %v1055 = vmax.f32 %v1023, 0.0
      %v1056 = vmax.f32 %v1024, 0.0
      %v1057 = vmax.f32 %v1025, 0.0
      %v1058 = vmax.f32 %v1026, 0.0
      %v1059 = vmax.f32 %v1027, 0.0
      %v1060 = vmax.f32 %v1028, 0.0
      %v1061 = vmax.f32 %v1029, 0.0
      %v1062 = vmax.f32 %v1030, 0.0
      %v1063 = vmax.f32 %v1031, 0.0
      %v1064 = vmax.f32 %v1032, 0.0
      %v1065 = vld [vmem:[%s457] sm:$0xff]
      %v1066 = vld [vmem:[%s457 + $0x8] sm:$0xff]
      %v1067 = vld [vmem:[%s457 + $0x10] sm:$0xff]
      %v1068 = vld [vmem:[%s457 + $0x18] sm:$0xff]
      %v1069 = vld [vmem:[%s457 + $0x20] sm:$0xff]
      %v1070 = vld [vmem:[%s457 + $0x28] sm:$0xff]
      %v1071 = vld [vmem:[%s457 + $0x30] sm:$0xff]
      %v1072 = vld [vmem:[%s457 + $0x38] sm:$0xff]
      %v1073 = vld [vmem:[%s457 + $0x40] sm:$0xff]
      %v1074 = vld [vmem:[%s457 + $0x48] sm:$0xff]
      %v1075 = vld [vmem:[%s457 + $0x50] sm:$0xff]
      %v1076 = vld [vmem:[%s457 + $0x58] sm:$0xff]
      %v1077 = vld [vmem:[%s457 + $0x60] sm:$0xff]
      %v1078 = vld [vmem:[%s457 + $0x68] sm:$0xff]
      %v1079 = vld [vmem:[%s457 + $0x70] sm:$0xff]
      %v1080 = vld [vmem:[%s457 + $0x78] sm:$0xff]
      %v1081 = vld [vmem:[%s457 + $0x80] sm:$0xff]
      %v1082 = vld [vmem:[%s457 + $0x88] sm:$0xff]
      %v1083 = vld [vmem:[%s457 + $0x90] sm:$0xff]
      %v1084 = vld [vmem:[%s457 + $0x98] sm:$0xff]
      %v1085 = vld [vmem:[%s457 + $0xa0] sm:$0xff]
      %v1086 = vld [vmem:[%s457 + $0xa8] sm:$0xff]
      %v1087 = vld [vmem:[%s457 + $0xb0] sm:$0xff]
      %v1088 = vld [vmem:[%s457 + $0xb8] sm:$0xff]
      %v1089 = vld [vmem:[%s457 + $0xc0] sm:$0xff]
      %v1090 = vld [vmem:[%s457 + $0xc8] sm:$0xff]
      %v1091 = vld [vmem:[%s457 + $0xd0] sm:$0xff]
      %v1092 = vld [vmem:[%s457 + $0xd8] sm:$0xff]
      %v1093 = vld [vmem:[%s457 + $0xe0] sm:$0xff]
      %v1094 = vld [vmem:[%s457 + $0xe8] sm:$0xff]
      %v1095 = vld [vmem:[%s457 + $0xf0] sm:$0xff]
      %v1096 = vld [vmem:[%s457 + $0xf8] sm:$0xff]
      %1098 = vset.pattern.permute.xlu0 0
      %1099 = vperm.xlu0 %1098, %v1065
      %v1100 = vpop.permute.xlu0 %1099
      %1103 = vset.pattern.permute.xlu0 0
      %1104 = vperm.xlu0 %1103, %v1066
      %v1105 = vpop.permute.xlu0 %1104
      %1108 = vset.pattern.permute.xlu0 0
      %1109 = vperm.xlu0 %1108, %v1067
      %v1110 = vpop.permute.xlu0 %1109
      %1113 = vset.pattern.permute.xlu0 0
      %1114 = vperm.xlu0 %1113, %v1068
      %v1115 = vpop.permute.xlu0 %1114
      %1118 = vset.pattern.permute.xlu0 0
      %1119 = vperm.xlu0 %1118, %v1069
      %v1120 = vpop.permute.xlu0 %1119
      %1123 = vset.pattern.permute.xlu0 0
      %1124 = vperm.xlu0 %1123, %v1070
      %v1125 = vpop.permute.xlu0 %1124
      %1128 = vset.pattern.permute.xlu0 0
      %1129 = vperm.xlu0 %1128, %v1071
      %v1130 = vpop.permute.xlu0 %1129
      %1133 = vset.pattern.permute.xlu0 0
      %1134 = vperm.xlu0 %1133, %v1072
      %v1135 = vpop.permute.xlu0 %1134
      %1138 = vset.pattern.permute.xlu0 0
      %1139 = vperm.xlu0 %1138, %v1073
      %v1140 = vpop.permute.xlu0 %1139
      %1143 = vset.pattern.permute.xlu0 0
      %1144 = vperm.xlu0 %1143, %v1074
      %v1145 = vpop.permute.xlu0 %1144
      %1148 = vset.pattern.permute.xlu0 0
      %1149 = vperm.xlu0 %1148, %v1075
      %v1150 = vpop.permute.xlu0 %1149
      %1153 = vset.pattern.permute.xlu0 0
      %1154 = vperm.xlu0 %1153, %v1076
      %v1155 = vpop.permute.xlu0 %1154
      %1158 = vset.pattern.permute.xlu0 0
      %1159 = vperm.xlu0 %1158, %v1077
      %v1160 = vpop.permute.xlu0 %1159
      %1163 = vset.pattern.permute.xlu0 0
      %1164 = vperm.xlu0 %1163, %v1078
      %v1165 = vpop.permute.xlu0 %1164
      %1168 = vset.pattern.permute.xlu0 0
      %1169 = vperm.xlu0 %1168, %v1079
      %v1170 = vpop.permute.xlu0 %1169
      %1173 = vset.pattern.permute.xlu0 0
      %1174 = vperm.xlu0 %1173, %v1080
      %v1175 = vpop.permute.xlu0 %1174
      %1178 = vset.pattern.permute.xlu0 0
      %1179 = vperm.xlu0 %1178, %v1081
      %v1180 = vpop.permute.xlu0 %1179
      %1183 = vset.pattern.permute.xlu0 0
      %1184 = vperm.xlu0 %1183, %v1082
      %v1185 = vpop.permute.xlu0 %1184
      %1188 = vset.pattern.permute.xlu0 0
      %1189 = vperm.xlu0 %1188, %v1083
      %v1190 = vpop.permute.xlu0 %1189
      %1193 = vset.pattern.permute.xlu0 0
      %1194 = vperm.xlu0 %1193, %v1084
      %v1195 = vpop.permute.xlu0 %1194
      %1198 = vset.pattern.permute.xlu0 0
      %1199 = vperm.xlu0 %1198, %v1085
      %v1200 = vpop.permute.xlu0 %1199
      %1203 = vset.pattern.permute.xlu0 0
      %1204 = vperm.xlu0 %1203, %v1086
      %v1205 = vpop.permute.xlu0 %1204
      %1208 = vset.pattern.permute.xlu0 0
      %1209 = vperm.xlu0 %1208, %v1087
      %v1210 = vpop.permute.xlu0 %1209
      %1213 = vset.pattern.permute.xlu0 0
      %1214 = vperm.xlu0 %1213, %v1088
      %v1215 = vpop.permute.xlu0 %1214
      %1218 = vset.pattern.permute.xlu0 0
      %1219 = vperm.xlu0 %1218, %v1089
      %v1220 = vpop.permute.xlu0 %1219
      %1223 = vset.pattern.permute.xlu0 0
      %1224 = vperm.xlu0 %1223, %v1090
      %v1225 = vpop.permute.xlu0 %1224
      %1228 = vset.pattern.permute.xlu0 0
      %1229 = vperm.xlu0 %1228, %v1091
      %v1230 = vpop.permute.xlu0 %1229
      %1233 = vset.pattern.permute.xlu0 0
      %1234 = vperm.xlu0 %1233, %v1092
      %v1235 = vpop.permute.xlu0 %1234
      %1238 = vset.pattern.permute.xlu0 0
      %1239 = vperm.xlu0 %1238, %v1093
      %v1240 = vpop.permute.xlu0 %1239
      %1243 = vset.pattern.permute.xlu0 0
      %1244 = vperm.xlu0 %1243, %v1094
      %v1245 = vpop.permute.xlu0 %1244
      %1248 = vset.pattern.permute.xlu0 0
      %1249 = vperm.xlu0 %1248, %v1095
      %v1250 = vpop.permute.xlu0 %1249
      %1253 = vset.pattern.permute.xlu0 0
      %1254 = vperm.xlu0 %1253, %v1096
      %v1255 = vpop.permute.xlu0 %1254
      %v1257 = vmul.f32 %v1033, %v1100
      %v1258 = vmul.f32 %v1034, %v1105
      %v1259 = vmul.f32 %v1035, %v1110
      %v1260 = vmul.f32 %v1036, %v1115
      %v1261 = vmul.f32 %v1037, %v1120
      %v1262 = vmul.f32 %v1038, %v1125
      %v1263 = vmul.f32 %v1039, %v1130
      %v1264 = vmul.f32 %v1040, %v1135
      %v1265 = vmul.f32 %v1041, %v1140
      %v1266 = vmul.f32 %v1042, %v1145
      %v1267 = vmul.f32 %v1043, %v1150
      %v1268 = vmul.f32 %v1044, %v1155
      %v1269 = vmul.f32 %v1045, %v1160
      %v1270 = vmul.f32 %v1046, %v1165
      %v1271 = vmul.f32 %v1047, %v1170
      %v1272 = vmul.f32 %v1048, %v1175
      %v1273 = vmul.f32 %v1049, %v1180
      %v1274 = vmul.f32 %v1050, %v1185
      %v1275 = vmul.f32 %v1051, %v1190
      %v1276 = vmul.f32 %v1052, %v1195
      %v1277 = vmul.f32 %v1053, %v1200
      %v1278 = vmul.f32 %v1054, %v1205
      %v1279 = vmul.f32 %v1055, %v1210
      %v1280 = vmul.f32 %v1056, %v1215
      %v1281 = vmul.f32 %v1057, %v1220
      %v1282 = vmul.f32 %v1058, %v1225
      %v1283 = vmul.f32 %v1059, %v1230
      %v1284 = vmul.f32 %v1060, %v1235
      %v1285 = vmul.f32 %v1061, %v1240
      %v1286 = vmul.f32 %v1062, %v1245
      %v1287 = vmul.f32 %v1063, %v1250
      %v1288 = vmul.f32 %v1064, %v1255
      %1289 = vst [vmem:[#allocation2 + $0x100] sm:$0xff] %v1257
      %1290 = vst [vmem:[#allocation2 + $0x108] sm:$0xff] %v1258
      %1291 = vst [vmem:[#allocation2 + $0x110] sm:$0xff] %v1259
      %1292 = vst [vmem:[#allocation2 + $0x118] sm:$0xff] %v1260
      %1293 = vst [vmem:[#allocation2 + $0x120] sm:$0xff] %v1261
      %1294 = vst [vmem:[#allocation2 + $0x128] sm:$0xff] %v1262
      %1295 = vst [vmem:[#allocation2 + $0x130] sm:$0xff] %v1263
      %1296 = vst [vmem:[#allocation2 + $0x138] sm:$0xff] %v1264
      %1297 = vst [vmem:[#allocation2 + $0x140] sm:$0xff] %v1265
      %1298 = vst [vmem:[#allocation2 + $0x148] sm:$0xff] %v1266
      %1299 = vst [vmem:[#allocation2 + $0x150] sm:$0xff] %v1267
      %1300 = vst [vmem:[#allocation2 + $0x158] sm:$0xff] %v1268
      %1301 = vst [vmem:[#allocation2 + $0x160] sm:$0xff] %v1269
      %1302 = vst [vmem:[#allocation2 + $0x168] sm:$0xff] %v1270
      %1303 = vst [vmem:[#allocation2 + $0x170] sm:$0xff] %v1271
      %1304 = vst [vmem:[#allocation2 + $0x178] sm:$0xff] %v1272
      %1305 = vst [vmem:[#allocation2 + $0x180] sm:$0xff] %v1273
      %1306 = vst [vmem:[#allocation2 + $0x188] sm:$0xff] %v1274
      %1307 = vst [vmem:[#allocation2 + $0x190] sm:$0xff] %v1275
      %1308 = vst [vmem:[#allocation2 + $0x198] sm:$0xff] %v1276
      %1309 = vst [vmem:[#allocation2 + $0x1a0] sm:$0xff] %v1277
      %1310 = vst [vmem:[#allocation2 + $0x1a8] sm:$0xff] %v1278
      %1311 = vst [vmem:[#allocation2 + $0x1b0] sm:$0xff] %v1279
      %1312 = vst [vmem:[#allocation2 + $0x1b8] sm:$0xff] %v1280
      %1313 = vst [vmem:[#allocation2 + $0x1c0] sm:$0xff] %v1281
      %1314 = vst [vmem:[#allocation2 + $0x1c8] sm:$0xff] %v1282
      %1315 = vst [vmem:[#allocation2 + $0x1d0] sm:$0xff] %v1283
      %1316 = vst [vmem:[#allocation2 + $0x1d8] sm:$0xff] %v1284
      %1317 = vst [vmem:[#allocation2 + $0x1e0] sm:$0xff] %v1285
      %1318 = vst [vmem:[#allocation2 + $0x1e8] sm:$0xff] %v1286
      %1319 = vst [vmem:[#allocation2 + $0x1f0] sm:$0xff] %v1287
      %1320 = vst [vmem:[#allocation2 + $0x1f8] sm:$0xff] %v1288
      %v1321 = vld [vmem:[%s443] sm:$0xf]
      %v1322 = vld [vmem:[%s443 + $0x4] sm:$0xf]
      %v1323 = vld [vmem:[%s443 + $0x8] sm:$0xf]
      %v1324 = vld [vmem:[%s443 + $0xc] sm:$0xf]
      %v1325 = vld [vmem:[%s443 + $0x10] sm:$0xf]
      %v1326 = vld [vmem:[%s443 + $0x14] sm:$0xf]
      %v1327 = vld [vmem:[%s443 + $0x18] sm:$0xf]
      %v1328 = vld [vmem:[%s443 + $0x1c] sm:$0xf]
      %v1329 = vld [vmem:[%s443 + $0x20] sm:$0xf]
      %v1330 = vld [vmem:[%s443 + $0x24] sm:$0xf]
      %v1331 = vld [vmem:[%s443 + $0x28] sm:$0xf]
      %v1332 = vld [vmem:[%s443 + $0x2c] sm:$0xf]
      %v1333 = vld [vmem:[%s443 + $0x30] sm:$0xf]
      %v1334 = vld [vmem:[%s443 + $0x34] sm:$0xf]
      %v1335 = vld [vmem:[%s443 + $0x38] sm:$0xf]
      %v1336 = vld [vmem:[%s443 + $0x3c] sm:$0xf]
      %v1337 = vld [vmem:[%s443 + $0x40] sm:$0xf]
      %v1338 = vld [vmem:[%s443 + $0x44] sm:$0xf]
      %v1339 = vld [vmem:[%s443 + $0x48] sm:$0xf]
      %v1340 = vld [vmem:[%s443 + $0x4c] sm:$0xf]
      %v1341 = vld [vmem:[%s443 + $0x50] sm:$0xf]
      %v1342 = vld [vmem:[%s443 + $0x54] sm:$0xf]
      %v1343 = vld [vmem:[%s443 + $0x58] sm:$0xf]
      %v1344 = vld [vmem:[%s443 + $0x5c] sm:$0xf]
      %v1345 = vld [vmem:[%s443 + $0x60] sm:$0xf]
      %v1346 = vld [vmem:[%s443 + $0x64] sm:$0xf]
      %v1347 = vld [vmem:[%s443 + $0x68] sm:$0xf]
      %v1348 = vld [vmem:[%s443 + $0x6c] sm:$0xf]
      %v1349 = vld [vmem:[%s443 + $0x70] sm:$0xf]
      %v1350 = vld [vmem:[%s443 + $0x74] sm:$0xf]
      %v1351 = vld [vmem:[%s443 + $0x78] sm:$0xf]
      %v1352 = vld [vmem:[%s443 + $0x7c] sm:$0xf]
      %v1353 = vunpack.c.l.bf16 %v1321
      %v1354 = vunpack.c.l.bf16 %v1322
      %v1355 = vunpack.c.l.bf16 %v1323
      %v1356 = vunpack.c.l.bf16 %v1324
      %v1357 = vunpack.c.l.bf16 %v1325
      %v1358 = vunpack.c.l.bf16 %v1326
      %v1359 = vunpack.c.l.bf16 %v1327
      %v1360 = vunpack.c.l.bf16 %v1328
      %v1361 = vunpack.c.l.bf16 %v1329
      %v1362 = vunpack.c.l.bf16 %v1330
      %v1363 = vunpack.c.l.bf16 %v1331
      %v1364 = vunpack.c.l.bf16 %v1332
      %v1365 = vunpack.c.l.bf16 %v1333
      %v1366 = vunpack.c.l.bf16 %v1334
      %v1367 = vunpack.c.l.bf16 %v1335
      %v1368 = vunpack.c.l.bf16 %v1336
      %v1369 = vunpack.c.l.bf16 %v1337
      %v1370 = vunpack.c.l.bf16 %v1338
      %v1371 = vunpack.c.l.bf16 %v1339
      %v1372 = vunpack.c.l.bf16 %v1340
      %v1373 = vunpack.c.l.bf16 %v1341
      %v1374 = vunpack.c.l.bf16 %v1342
      %v1375 = vunpack.c.l.bf16 %v1343
      %v1376 = vunpack.c.l.bf16 %v1344
      %v1377 = vunpack.c.l.bf16 %v1345
      %v1378 = vunpack.c.l.bf16 %v1346
      %v1379 = vunpack.c.l.bf16 %v1347
      %v1380 = vunpack.c.l.bf16 %v1348
      %v1381 = vunpack.c.l.bf16 %v1349
      %v1382 = vunpack.c.l.bf16 %v1350
      %v1383 = vunpack.c.l.bf16 %v1351
      %v1384 = vunpack.c.l.bf16 %v1352
      %v1385 = vmul.f32 %v1353, %v545
      %v1386 = vmul.f32 %v1354, %v545
      %v1387 = vmul.f32 %v1355, %v545
      %v1388 = vmul.f32 %v1356, %v545
      %v1389 = vmul.f32 %v1357, %v545
      %v1390 = vmul.f32 %v1358, %v545
      %v1391 = vmul.f32 %v1359, %v545
      %v1392 = vmul.f32 %v1360, %v545
      %v1393 = vmul.f32 %v1361, %v545
      %v1394 = vmul.f32 %v1362, %v545
      %v1395 = vmul.f32 %v1363, %v545
      %v1396 = vmul.f32 %v1364, %v545
      %v1397 = vmul.f32 %v1365, %v545
      %v1398 = vmul.f32 %v1366, %v545
      %v1399 = vmul.f32 %v1367, %v545
      %v1400 = vmul.f32 %v1368, %v545
      %v1401 = vmul.f32 %v1369, %v545
      %v1402 = vmul.f32 %v1370, %v545
      %v1403 = vmul.f32 %v1371, %v545
      %v1404 = vmul.f32 %v1372, %v545
      %v1405 = vmul.f32 %v1373, %v545
      %v1406 = vmul.f32 %v1374, %v545
      %v1407 = vmul.f32 %v1375, %v545
      %v1408 = vmul.f32 %v1376, %v545
      %v1409 = vmul.f32 %v1377, %v545
      %v1410 = vmul.f32 %v1378, %v545
      %v1411 = vmul.f32 %v1379, %v545
      %v1412 = vmul.f32 %v1380, %v545
      %v1413 = vmul.f32 %v1381, %v545
      %v1414 = vmul.f32 %v1382, %v545
      %v1415 = vmul.f32 %v1383, %v545
      %v1416 = vmul.f32 %v1384, %v545
      %v1417 = vadd.f32 %v1385, %v583
      %v1418 = vadd.f32 %v1386, %v583
      %v1419 = vadd.f32 %v1387, %v583
      %v1420 = vadd.f32 %v1388, %v583
      %v1421 = vadd.f32 %v1389, %v583
      %v1422 = vadd.f32 %v1390, %v583
      %v1423 = vadd.f32 %v1391, %v583
      %v1424 = vadd.f32 %v1392, %v583
      %v1425 = vadd.f32 %v1393, %v583
      %v1426 = vadd.f32 %v1394, %v583
      %v1427 = vadd.f32 %v1395, %v583
      %v1428 = vadd.f32 %v1396, %v583
      %v1429 = vadd.f32 %v1397, %v583
      %v1430 = vadd.f32 %v1398, %v583
      %v1431 = vadd.f32 %v1399, %v583
      %v1432 = vadd.f32 %v1400, %v583
      %v1433 = vadd.f32 %v1401, %v583
      %v1434 = vadd.f32 %v1402, %v583
      %v1435 = vadd.f32 %v1403, %v583
      %v1436 = vadd.f32 %v1404, %v583
      %v1437 = vadd.f32 %v1405, %v583
      %v1438 = vadd.f32 %v1406, %v583
      %v1439 = vadd.f32 %v1407, %v583
      %v1440 = vadd.f32 %v1408, %v583
      %v1441 = vadd.f32 %v1409, %v583
      %v1442 = vadd.f32 %v1410, %v583
      %v1443 = vadd.f32 %v1411, %v583
      %v1444 = vadd.f32 %v1412, %v583
      %v1445 = vadd.f32 %v1413, %v583
      %v1446 = vadd.f32 %v1414, %v583
      %v1447 = vadd.f32 %v1415, %v583
      %v1448 = vadd.f32 %v1416, %v583
      %v1449 = vmax.f32 %v1417, 0.0
      %v1450 = vmax.f32 %v1418, 0.0
      %v1451 = vmax.f32 %v1419, 0.0
      %v1452 = vmax.f32 %v1420, 0.0
      %v1453 = vmax.f32 %v1421, 0.0
      %v1454 = vmax.f32 %v1422, 0.0
      %v1455 = vmax.f32 %v1423, 0.0
      %v1456 = vmax.f32 %v1424, 0.0
      %v1457 = vmax.f32 %v1425, 0.0
      %v1458 = vmax.f32 %v1426, 0.0
      %v1459 = vmax.f32 %v1427, 0.0
      %v1460 = vmax.f32 %v1428, 0.0
      %v1461 = vmax.f32 %v1429, 0.0
      %v1462 = vmax.f32 %v1430, 0.0
      %v1463 = vmax.f32 %v1431, 0.0
      %v1464 = vmax.f32 %v1432, 0.0
      %v1465 = vmax.f32 %v1433, 0.0
      %v1466 = vmax.f32 %v1434, 0.0
      %v1467 = vmax.f32 %v1435, 0.0
      %v1468 = vmax.f32 %v1436, 0.0
      %v1469 = vmax.f32 %v1437, 0.0
      %v1470 = vmax.f32 %v1438, 0.0
      %v1471 = vmax.f32 %v1439, 0.0
      %v1472 = vmax.f32 %v1440, 0.0
      %v1473 = vmax.f32 %v1441, 0.0
      %v1474 = vmax.f32 %v1442, 0.0
      %v1475 = vmax.f32 %v1443, 0.0
      %v1476 = vmax.f32 %v1444, 0.0
      %v1477 = vmax.f32 %v1445, 0.0
      %v1478 = vmax.f32 %v1446, 0.0
      %v1479 = vmax.f32 %v1447, 0.0
      %v1480 = vmax.f32 %v1448, 0.0
      %v1481 = vld [vmem:[%s465] sm:$0xff]
      %v1482 = vld [vmem:[%s465 + $0x8] sm:$0xff]
      %v1483 = vld [vmem:[%s465 + $0x10] sm:$0xff]
      %v1484 = vld [vmem:[%s465 + $0x18] sm:$0xff]
      %v1485 = vld [vmem:[%s465 + $0x20] sm:$0xff]
      %v1486 = vld [vmem:[%s465 + $0x28] sm:$0xff]
      %v1487 = vld [vmem:[%s465 + $0x30] sm:$0xff]
      %v1488 = vld [vmem:[%s465 + $0x38] sm:$0xff]
      %v1489 = vld [vmem:[%s465 + $0x40] sm:$0xff]
      %v1490 = vld [vmem:[%s465 + $0x48] sm:$0xff]
      %v1491 = vld [vmem:[%s465 + $0x50] sm:$0xff]
      %v1492 = vld [vmem:[%s465 + $0x58] sm:$0xff]
      %v1493 = vld [vmem:[%s465 + $0x60] sm:$0xff]
      %v1494 = vld [vmem:[%s465 + $0x68] sm:$0xff]
      %v1495 = vld [vmem:[%s465 + $0x70] sm:$0xff]
      %v1496 = vld [vmem:[%s465 + $0x78] sm:$0xff]
      %v1497 = vld [vmem:[%s465 + $0x80] sm:$0xff]
      %v1498 = vld [vmem:[%s465 + $0x88] sm:$0xff]
      %v1499 = vld [vmem:[%s465 + $0x90] sm:$0xff]
      %v1500 = vld [vmem:[%s465 + $0x98] sm:$0xff]
      %v1501 = vld [vmem:[%s465 + $0xa0] sm:$0xff]
      %v1502 = vld [vmem:[%s465 + $0xa8] sm:$0xff]
      %v1503 = vld [vmem:[%s465 + $0xb0] sm:$0xff]
      %v1504 = vld [vmem:[%s465 + $0xb8] sm:$0xff]
      %v1505 = vld [vmem:[%s465 + $0xc0] sm:$0xff]
      %v1506 = vld [vmem:[%s465 + $0xc8] sm:$0xff]
      %v1507 = vld [vmem:[%s465 + $0xd0] sm:$0xff]
      %v1508 = vld [vmem:[%s465 + $0xd8] sm:$0xff]
      %v1509 = vld [vmem:[%s465 + $0xe0] sm:$0xff]
      %v1510 = vld [vmem:[%s465 + $0xe8] sm:$0xff]
      %v1511 = vld [vmem:[%s465 + $0xf0] sm:$0xff]
      %v1512 = vld [vmem:[%s465 + $0xf8] sm:$0xff]
      %1514 = vset.pattern.permute.xlu0 0
      %1515 = vperm.xlu0 %1514, %v1481
      %v1516 = vpop.permute.xlu0 %1515
      %1519 = vset.pattern.permute.xlu0 0
      %1520 = vperm.xlu0 %1519, %v1482
      %v1521 = vpop.permute.xlu0 %1520
      %1524 = vset.pattern.permute.xlu0 0
      %1525 = vperm.xlu0 %1524, %v1483
      %v1526 = vpop.permute.xlu0 %1525
      %1529 = vset.pattern.permute.xlu0 0
      %1530 = vperm.xlu0 %1529, %v1484
      %v1531 = vpop.permute.xlu0 %1530
      %1534 = vset.pattern.permute.xlu0 0
      %1535 = vperm.xlu0 %1534, %v1485
      %v1536 = vpop.permute.xlu0 %1535
      %1539 = vset.pattern.permute.xlu0 0
      %1540 = vperm.xlu0 %1539, %v1486
      %v1541 = vpop.permute.xlu0 %1540
      %1544 = vset.pattern.permute.xlu0 0
      %1545 = vperm.xlu0 %1544, %v1487
      %v1546 = vpop.permute.xlu0 %1545
      %1549 = vset.pattern.permute.xlu0 0
      %1550 = vperm.xlu0 %1549, %v1488
      %v1551 = vpop.permute.xlu0 %1550
      %1554 = vset.pattern.permute.xlu0 0
      %1555 = vperm.xlu0 %1554, %v1489
      %v1556 = vpop.permute.xlu0 %1555
      %1559 = vset.pattern.permute.xlu0 0
      %1560 = vperm.xlu0 %1559, %v1490
      %v1561 = vpop.permute.xlu0 %1560
      %1564 = vset.pattern.permute.xlu0 0
      %1565 = vperm.xlu0 %1564, %v1491
      %v1566 = vpop.permute.xlu0 %1565
      %1569 = vset.pattern.permute.xlu0 0
      %1570 = vperm.xlu0 %1569, %v1492
      %v1571 = vpop.permute.xlu0 %1570
      %1574 = vset.pattern.permute.xlu0 0
      %1575 = vperm.xlu0 %1574, %v1493
      %v1576 = vpop.permute.xlu0 %1575
      %1579 = vset.pattern.permute.xlu0 0
      %1580 = vperm.xlu0 %1579, %v1494
      %v1581 = vpop.permute.xlu0 %1580
      %1584 = vset.pattern.permute.xlu0 0
      %1585 = vperm.xlu0 %1584, %v1495
      %v1586 = vpop.permute.xlu0 %1585
      %1589 = vset.pattern.permute.xlu0 0
      %1590 = vperm.xlu0 %1589, %v1496
      %v1591 = vpop.permute.xlu0 %1590
      %1594 = vset.pattern.permute.xlu0 0
      %1595 = vperm.xlu0 %1594, %v1497
      %v1596 = vpop.permute.xlu0 %1595
      %1599 = vset.pattern.permute.xlu0 0
      %1600 = vperm.xlu0 %1599, %v1498
      %v1601 = vpop.permute.xlu0 %1600
      %1604 = vset.pattern.permute.xlu0 0
      %1605 = vperm.xlu0 %1604, %v1499
      %v1606 = vpop.permute.xlu0 %1605
      %1609 = vset.pattern.permute.xlu0 0
      %1610 = vperm.xlu0 %1609, %v1500
      %v1611 = vpop.permute.xlu0 %1610
      %1614 = vset.pattern.permute.xlu0 0
      %1615 = vperm.xlu0 %1614, %v1501
      %v1616 = vpop.permute.xlu0 %1615
      %1619 = vset.pattern.permute.xlu0 0
      %1620 = vperm.xlu0 %1619, %v1502
      %v1621 = vpop.permute.xlu0 %1620
      %1624 = vset.pattern.permute.xlu0 0
      %1625 = vperm.xlu0 %1624, %v1503
      %v1626 = vpop.permute.xlu0 %1625
      %1629 = vset.pattern.permute.xlu0 0
      %1630 = vperm.xlu0 %1629, %v1504
      %v1631 = vpop.permute.xlu0 %1630
      %1634 = vset.pattern.permute.xlu0 0
      %1635 = vperm.xlu0 %1634, %v1505
      %v1636 = vpop.permute.xlu0 %1635
      %1639 = vset.pattern.permute.xlu0 0
      %1640 = vperm.xlu0 %1639, %v1506
      %v1641 = vpop.permute.xlu0 %1640
      %1644 = vset.pattern.permute.xlu0 0
      %1645 = vperm.xlu0 %1644, %v1507
      %v1646 = vpop.permute.xlu0 %1645
      %1649 = vset.pattern.permute.xlu0 0
      %1650 = vperm.xlu0 %1649, %v1508
      %v1651 = vpop.permute.xlu0 %1650
      %1654 = vset.pattern.permute.xlu0 0
      %1655 = vperm.xlu0 %1654, %v1509
      %v1656 = vpop.permute.xlu0 %1655
      %1659 = vset.pattern.permute.xlu0 0
      %1660 = vperm.xlu0 %1659, %v1510
      %v1661 = vpop.permute.xlu0 %1660
      %1664 = vset.pattern.permute.xlu0 0
      %1665 = vperm.xlu0 %1664, %v1511
      %v1666 = vpop.permute.xlu0 %1665
      %1669 = vset.pattern.permute.xlu0 0
      %1670 = vperm.xlu0 %1669, %v1512
      %v1671 = vpop.permute.xlu0 %1670
      %v1673 = vmul.f32 %v1449, %v1516
      %v1674 = vmul.f32 %v1450, %v1521
      %v1675 = vmul.f32 %v1451, %v1526
      %v1676 = vmul.f32 %v1452, %v1531
      %v1677 = vmul.f32 %v1453, %v1536
      %v1678 = vmul.f32 %v1454, %v1541
      %v1679 = vmul.f32 %v1455, %v1546
      %v1680 = vmul.f32 %v1456, %v1551
      %v1681 = vmul.f32 %v1457, %v1556
      %v1682 = vmul.f32 %v1458, %v1561
      %v1683 = vmul.f32 %v1459, %v1566
      %v1684 = vmul.f32 %v1460, %v1571
      %v1685 = vmul.f32 %v1461, %v1576
      %v1686 = vmul.f32 %v1462, %v1581
      %v1687 = vmul.f32 %v1463, %v1586
      %v1688 = vmul.f32 %v1464, %v1591
      %v1689 = vmul.f32 %v1465, %v1596
      %v1690 = vmul.f32 %v1466, %v1601
      %v1691 = vmul.f32 %v1467, %v1606
      %v1692 = vmul.f32 %v1468, %v1611
      %v1693 = vmul.f32 %v1469, %v1616
      %v1694 = vmul.f32 %v1470, %v1621
      %v1695 = vmul.f32 %v1471, %v1626
      %v1696 = vmul.f32 %v1472, %v1631
      %v1697 = vmul.f32 %v1473, %v1636
      %v1698 = vmul.f32 %v1474, %v1641
      %v1699 = vmul.f32 %v1475, %v1646
      %v1700 = vmul.f32 %v1476, %v1651
      %v1701 = vmul.f32 %v1477, %v1656
      %v1702 = vmul.f32 %v1478, %v1661
      %v1703 = vmul.f32 %v1479, %v1666
      %v1704 = vmul.f32 %v1480, %v1671
      %1705 = vst [vmem:[#allocation2 + $0x200] sm:$0xff] %v1673
      %1706 = vst [vmem:[#allocation2 + $0x208] sm:$0xff] %v1674
      %1707 = vst [vmem:[#allocation2 + $0x210] sm:$0xff] %v1675
      %1708 = vst [vmem:[#allocation2 + $0x218] sm:$0xff] %v1676
      %1709 = vst [vmem:[#allocation2 + $0x220] sm:$0xff] %v1677
      %1710 = vst [vmem:[#allocation2 + $0x228] sm:$0xff] %v1678
      %1711 = vst [vmem:[#allocation2 + $0x230] sm:$0xff] %v1679
      %1712 = vst [vmem:[#allocation2 + $0x238] sm:$0xff] %v1680
      %1713 = vst [vmem:[#allocation2 + $0x240] sm:$0xff] %v1681
      %1714 = vst [vmem:[#allocation2 + $0x248] sm:$0xff] %v1682
      %1715 = vst [vmem:[#allocation2 + $0x250] sm:$0xff] %v1683
      %1716 = vst [vmem:[#allocation2 + $0x258] sm:$0xff] %v1684
      %1717 = vst [vmem:[#allocation2 + $0x260] sm:$0xff] %v1685
      %1718 = vst [vmem:[#allocation2 + $0x268] sm:$0xff] %v1686
      %1719 = vst [vmem:[#allocation2 + $0x270] sm:$0xff] %v1687
      %1720 = vst [vmem:[#allocation2 + $0x278] sm:$0xff] %v1688
      %1721 = vst [vmem:[#allocation2 + $0x280] sm:$0xff] %v1689
      %1722 = vst [vmem:[#allocation2 + $0x288] sm:$0xff] %v1690
      %1723 = vst [vmem:[#allocation2 + $0x290] sm:$0xff] %v1691
      %1724 = vst [vmem:[#allocation2 + $0x298] sm:$0xff] %v1692
      %1725 = vst [vmem:[#allocation2 + $0x2a0] sm:$0xff] %v1693
      %1726 = vst [vmem:[#allocation2 + $0x2a8] sm:$0xff] %v1694
      %1727 = vst [vmem:[#allocation2 + $0x2b0] sm:$0xff] %v1695
      %1728 = vst [vmem:[#allocation2 + $0x2b8] sm:$0xff] %v1696
      %1729 = vst [vmem:[#allocation2 + $0x2c0] sm:$0xff] %v1697
      %1730 = vst [vmem:[#allocation2 + $0x2c8] sm:$0xff] %v1698
      %1731 = vst [vmem:[#allocation2 + $0x2d0] sm:$0xff] %v1699
      %1732 = vst [vmem:[#allocation2 + $0x2d8] sm:$0xff] %v1700
      %1733 = vst [vmem:[#allocation2 + $0x2e0] sm:$0xff] %v1701
      %1734 = vst [vmem:[#allocation2 + $0x2e8] sm:$0xff] %v1702
      %1735 = vst [vmem:[#allocation2 + $0x2f0] sm:$0xff] %v1703
      %1736 = vst [vmem:[#allocation2 + $0x2f8] sm:$0xff] %v1704
      %v1737 = vld [vmem:[#allocation2 + $0xed] sm:$0xff]
      %v1738 = vld [vmem:[#allocation2 + $0xf5] sm:$0xff]
      %v1739 = vld [vmem:[#allocation2 + $0xfd] sm:$0xff]
      %v1740 = vld [vmem:[#allocation2 + $0x105] sm:$0xff]
      %v1741 = vld [vmem:[#allocation2 + $0x10d] sm:$0xff]
      %v1742 = vld [vmem:[#allocation2 + $0x115] sm:$0xff]
      %v1743 = vld [vmem:[#allocation2 + $0x11d] sm:$0xff]
      %v1744 = vld [vmem:[#allocation2 + $0x125] sm:$0xff]
      %v1745 = vld [vmem:[#allocation2 + $0x12d] sm:$0xff]
      %v1746 = vld [vmem:[#allocation2 + $0x135] sm:$0xff]
      %v1747 = vld [vmem:[#allocation2 + $0x13d] sm:$0xff]
      %v1748 = vld [vmem:[#allocation2 + $0x145] sm:$0xff]
      %v1749 = vld [vmem:[#allocation2 + $0x14d] sm:$0xff]
      %v1750 = vld [vmem:[#allocation2 + $0x155] sm:$0xff]
      %v1751 = vld [vmem:[#allocation2 + $0x15d] sm:$0xff]
      %v1752 = vld [vmem:[#allocation2 + $0x165] sm:$0xff]
      %v1753 = vld [vmem:[#allocation2 + $0x16d] sm:$0xff]
      %v1754 = vld [vmem:[#allocation2 + $0x175] sm:$0xff]
      %v1755 = vld [vmem:[#allocation2 + $0x17d] sm:$0xff]
      %v1756 = vld [vmem:[#allocation2 + $0x185] sm:$0xff]
      %v1757 = vld [vmem:[#allocation2 + $0x18d] sm:$0xff]
      %v1758 = vld [vmem:[#allocation2 + $0x195] sm:$0xff]
      %v1759 = vld [vmem:[#allocation2 + $0x19d] sm:$0xff]
      %v1760 = vld [vmem:[#allocation2 + $0x1a5] sm:$0xff]
      %v1761 = vld [vmem:[#allocation2 + $0x1ad] sm:$0xff]
      %v1762 = vld [vmem:[#allocation2 + $0x1b5] sm:$0xff]
      %v1763 = vld [vmem:[#allocation2 + $0x1bd] sm:$0xff]
      %v1764 = vld [vmem:[#allocation2 + $0x1c5] sm:$0xff]
      %v1765 = vld [vmem:[#allocation2 + $0x1cd] sm:$0xff]
      %v1766 = vld [vmem:[#allocation2 + $0x1d5] sm:$0xff]
      %v1767 = vld [vmem:[#allocation2 + $0x1dd] sm:$0xff]
      %v1768 = vld [vmem:[#allocation2 + $0x1e5] sm:$0xff]
      %v1769 = vpack.c.bf16 %v1738, %v1737
      %v1770 = vpack.c.bf16 %v1740, %v1739
      %v1771 = vpack.c.bf16 %v1742, %v1741
      %v1772 = vpack.c.bf16 %v1744, %v1743
      %v1773 = vpack.c.bf16 %v1746, %v1745
      %v1774 = vpack.c.bf16 %v1748, %v1747
      %v1775 = vpack.c.bf16 %v1750, %v1749
      %v1776 = vpack.c.bf16 %v1752, %v1751
      %v1777 = vpack.c.bf16 %v1754, %v1753
      %v1778 = vpack.c.bf16 %v1756, %v1755
      %v1779 = vpack.c.bf16 %v1758, %v1757
      %v1780 = vpack.c.bf16 %v1760, %v1759
      %v1781 = vpack.c.bf16 %v1762, %v1761
      %v1782 = vpack.c.bf16 %v1764, %v1763
      %v1783 = vpack.c.bf16 %v1766, %v1765
      %v1784 = vpack.c.bf16 %v1768, %v1767
      %v1785 = vld [vmem:[%s8] sm:$0xf]
      %v1786 = vld [vmem:[%s8 + $0x4] sm:$0xf]
      %v1787 = vld [vmem:[%s8 + $0x8] sm:$0xf]
      %v1788 = vld [vmem:[%s8 + $0xc] sm:$0xf]
      %v1789 = vld [vmem:[%s8 + $0x10] sm:$0xf]
      %v1790 = vld [vmem:[%s8 + $0x14] sm:$0xf]
      %v1791 = vld [vmem:[%s8 + $0x18] sm:$0xf]
      %v1792 = vld [vmem:[%s8 + $0x1c] sm:$0xf]
      %v1793 = vld [vmem:[%s8 + $0x20] sm:$0xf]
      %v1794 = vld [vmem:[%s8 + $0x24] sm:$0xf]
      %v1795 = vld [vmem:[%s8 + $0x28] sm:$0xf]
      %v1796 = vld [vmem:[%s8 + $0x2c] sm:$0xf]
      %v1797 = vld [vmem:[%s8 + $0x30] sm:$0xf]
      %v1798 = vld [vmem:[%s8 + $0x34] sm:$0xf]
      %v1799 = vld [vmem:[%s8 + $0x38] sm:$0xf]
      %v1800 = vld [vmem:[%s8 + $0x3c] sm:$0xf]
      %v1801 = vld [vmem:[#allocation2 + $0xee] sm:$0xff]
      %v1802 = vld [vmem:[#allocation2 + $0xf6] sm:$0xff]
      %v1803 = vld [vmem:[#allocation2 + $0xfe] sm:$0xff]
      %v1804 = vld [vmem:[#allocation2 + $0x106] sm:$0xff]
      %v1805 = vld [vmem:[#allocation2 + $0x10e] sm:$0xff]
      %v1806 = vld [vmem:[#allocation2 + $0x116] sm:$0xff]
      %v1807 = vld [vmem:[#allocation2 + $0x11e] sm:$0xff]
      %v1808 = vld [vmem:[#allocation2 + $0x126] sm:$0xff]
      %v1809 = vld [vmem:[#allocation2 + $0x12e] sm:$0xff]
      %v1810 = vld [vmem:[#allocation2 + $0x136] sm:$0xff]
      %v1811 = vld [vmem:[#allocation2 + $0x13e] sm:$0xff]
      %v1812 = vld [vmem:[#allocation2 + $0x146] sm:$0xff]
      %v1813 = vld [vmem:[#allocation2 + $0x14e] sm:$0xff]
      %v1814 = vld [vmem:[#allocation2 + $0x156] sm:$0xff]
      %v1815 = vld [vmem:[#allocation2 + $0x15e] sm:$0xff]
      %v1816 = vld [vmem:[#allocation2 + $0x166] sm:$0xff]
      %v1817 = vld [vmem:[#allocation2 + $0x16e] sm:$0xff]
      %v1818 = vld [vmem:[#allocation2 + $0x176] sm:$0xff]
      %v1819 = vld [vmem:[#allocation2 + $0x17e] sm:$0xff]
      %v1820 = vld [vmem:[#allocation2 + $0x186] sm:$0xff]
      %v1821 = vld [vmem:[#allocation2 + $0x18e] sm:$0xff]
      %v1822 = vld [vmem:[#allocation2 + $0x196] sm:$0xff]
      %v1823 = vld [vmem:[#allocation2 + $0x19e] sm:$0xff]
      %v1824 = vld [vmem:[#allocation2 + $0x1a6] sm:$0xff]
      %v1825 = vld [vmem:[#allocation2 + $0x1ae] sm:$0xff]
      %v1826 = vld [vmem:[#allocation2 + $0x1b6] sm:$0xff]
      %v1827 = vld [vmem:[#allocation2 + $0x1be] sm:$0xff]
      %v1828 = vld [vmem:[#allocation2 + $0x1c6] sm:$0xff]
      %v1829 = vld [vmem:[#allocation2 + $0x1ce] sm:$0xff]
      %v1830 = vld [vmem:[#allocation2 + $0x1d6] sm:$0xff]
      %v1831 = vld [vmem:[#allocation2 + $0x1de] sm:$0xff]
      %v1832 = vld [vmem:[#allocation2 + $0x1e6] sm:$0xff]
      %v1833 = vpack.c.bf16 %v1802, %v1801
      %v1834 = vpack.c.bf16 %v1804, %v1803
      %v1835 = vpack.c.bf16 %v1806, %v1805
      %v1836 = vpack.c.bf16 %v1808, %v1807
      %v1837 = vpack.c.bf16 %v1810, %v1809
      %v1838 = vpack.c.bf16 %v1812, %v1811
      %v1839 = vpack.c.bf16 %v1814, %v1813
      %v1840 = vpack.c.bf16 %v1816, %v1815
      %v1841 = vpack.c.bf16 %v1818, %v1817
      %v1842 = vpack.c.bf16 %v1820, %v1819
      %v1843 = vpack.c.bf16 %v1822, %v1821
      %v1844 = vpack.c.bf16 %v1824, %v1823
      %v1845 = vpack.c.bf16 %v1826, %v1825
      %v1846 = vpack.c.bf16 %v1828, %v1827
      %v1847 = vpack.c.bf16 %v1830, %v1829
      %v1848 = vpack.c.bf16 %v1832, %v1831
      %v1849 = vld [vmem:[%s8 + $0x40] sm:$0xf]
      %v1850 = vld [vmem:[%s8 + $0x44] sm:$0xf]
      %v1851 = vld [vmem:[%s8 + $0x48] sm:$0xf]
      %v1852 = vld [vmem:[%s8 + $0x4c] sm:$0xf]
      %v1853 = vld [vmem:[%s8 + $0x50] sm:$0xf]
      %v1854 = vld [vmem:[%s8 + $0x54] sm:$0xf]
      %v1855 = vld [vmem:[%s8 + $0x58] sm:$0xf]
      %v1856 = vld [vmem:[%s8 + $0x5c] sm:$0xf]
      %v1857 = vld [vmem:[%s8 + $0x60] sm:$0xf]
      %v1858 = vld [vmem:[%s8 + $0x64] sm:$0xf]
      %v1859 = vld [vmem:[%s8 + $0x68] sm:$0xf]
      %v1860 = vld [vmem:[%s8 + $0x6c] sm:$0xf]
      %v1861 = vld [vmem:[%s8 + $0x70] sm:$0xf]
      %v1862 = vld [vmem:[%s8 + $0x74] sm:$0xf]
      %v1863 = vld [vmem:[%s8 + $0x78] sm:$0xf]
      %v1864 = vld [vmem:[%s8 + $0x7c] sm:$0xf]
      %v1881 = vunpack.c.l.b16 %v1849
      %v1882 = vunpack.c.l.b16 %v1850
      %v1883 = vunpack.c.l.b16 %v1851
      %v1884 = vunpack.c.l.b16 %v1852
      %v1885 = vunpack.c.l.b16 %v1853
      %v1886 = vunpack.c.l.b16 %v1854
      %v1887 = vunpack.c.l.b16 %v1855
      %v1888 = vunpack.c.l.b16 %v1856
      %v1889 = vunpack.c.l.b16 %v1857
      %v1890 = vunpack.c.l.b16 %v1858
      %v1891 = vunpack.c.l.b16 %v1859
      %v1892 = vunpack.c.l.b16 %v1860
      %v1893 = vunpack.c.l.b16 %v1861
      %v1894 = vunpack.c.l.b16 %v1862
      %v1895 = vunpack.c.l.b16 %v1863
      %v1896 = vunpack.c.l.b16 %v1864
      %v1897 = vpack.c.b16 %v1882, %v1881
      %v1898 = vpack.c.b16 %v1884, %v1883
      %v1899 = vpack.c.b16 %v1886, %v1885
      %v1900 = vpack.c.b16 %v1888, %v1887
      %v1901 = vpack.c.b16 %v1890, %v1889
      %v1902 = vpack.c.b16 %v1892, %v1891
      %v1903 = vpack.c.b16 %v1894, %v1893
      %v1904 = vpack.c.b16 %v1896, %v1895
      %1913 = vmatprep.subr.bf16.mxu0 0
      %1914 = vmatpush1.bf16.msra.mxu0 %v1904
      %1915 = vmatprep.subr.bf16.mxu0 0
      %1916 = vmatpush1.bf16.msra.mxu0 %v1903
      %1917 = vmatprep.subr.bf16.mxu0 0
      %1918 = vmatpush1.bf16.msra.mxu0 %v1902
      %1919 = vmatprep.subr.bf16.mxu0 0
      %1920 = vmatpush1.bf16.msra.mxu0 %v1901
      %1921 = vmatprep.subr.bf16.mxu0 0
      %1922 = vmatpush1.bf16.msra.mxu0 %v1900
      %1923 = vmatprep.subr.bf16.mxu0 0
      %1924 = vmatpush1.bf16.msra.mxu0 %v1899
      %1925 = vmatprep.subr.bf16.mxu0 0
      %1926 = vmatpush1.bf16.msra.mxu0 %v1898
      %1927 = vmatprep.subr.bf16.mxu0 0
      %1928 = vmatpush1.bf16.msra.mxu0 %v1897
      %1929 = vmatprep.subr.bf16.mxu0 0
      %1930 = vmatpush2.bf16.msra.mxu0 0
      %1931 = vmatprep.subr.bf16.mxu0 0
      %1932 = vmatpush2.bf16.msra.mxu0 0
      %1933 = vmatprep.subr.bf16.mxu0 0
      %1934 = vmatpush2.bf16.msra.mxu0 0
      %1935 = vmatprep.subr.bf16.mxu0 0
      %1936 = vmatpush2.bf16.msra.mxu0 0
      %1937 = vmatprep.subr.bf16.mxu0 0
      %1938 = vmatpush2.bf16.msra.mxu0 0
      %1939 = vmatprep.subr.bf16.mxu0 0
      %1940 = vmatpush2.bf16.msra.mxu0 0
      %1941 = vmatprep.subr.bf16.mxu0 0
      %1942 = vmatpush2.bf16.msra.mxu0 0
      %1943 = vmatprep.subr.bf16.mxu0 0
      %1944 = vmatpush2.bf16.msra.mxu0 0
      %1945 = vmatprep.mubr.bf16.mxu0 0
      %1946 = vmatmul.mubr.bf16.gmra.mxu0 %v1833
      %v1947 = vpop.f32.mrf.mxu0
      %v1948 = vadd.f32 0.0, %v1947
      %v1949 = vpop.f32.mrf.mxu0
      %v1950 = vpop.f32.mrf.mxu0
      %v1951 = vadd.f32 0.0, %v1950
      %v1952 = vpop.f32.mrf.mxu0
      %1953 = vmatprep.mubr.bf16.mxu0 0
      %1954 = vmatmul.mubr.bf16.gmra.mxu0 %v1834
      %v1955 = vpop.f32.mrf.mxu0
      %v1956 = vadd.f32 0.0, %v1955
      %v1957 = vpop.f32.mrf.mxu0
      %v1958 = vpop.f32.mrf.mxu0
      %v1959 = vadd.f32 0.0, %v1958
      %v1960 = vpop.f32.mrf.mxu0
      %1961 = vmatprep.mubr.bf16.mxu0 0
      %1962 = vmatmul.mubr.bf16.gmra.mxu0 %v1835
      %v1963 = vpop.f32.mrf.mxu0
      %v1964 = vadd.f32 0.0, %v1963
      %v1965 = vpop.f32.mrf.mxu0
      %v1966 = vpop.f32.mrf.mxu0
      %v1967 = vadd.f32 0.0, %v1966
      %v1968 = vpop.f32.mrf.mxu0
      %1969 = vmatprep.mubr.bf16.mxu0 0
      %1970 = vmatmul.mubr.bf16.gmra.mxu0 %v1836
      %v1971 = vpop.f32.mrf.mxu0
      %v1972 = vadd.f32 0.0, %v1971
      %v1973 = vpop.f32.mrf.mxu0
      %v1974 = vpop.f32.mrf.mxu0
      %v1975 = vadd.f32 0.0, %v1974
      %v1976 = vpop.f32.mrf.mxu0
      %1977 = vmatprep.mubr.bf16.mxu0 0
      %1978 = vmatmul.mubr.bf16.gmra.mxu0 %v1837
      %v1979 = vpop.f32.mrf.mxu0
      %v1980 = vadd.f32 0.0, %v1979
      %v1981 = vpop.f32.mrf.mxu0
      %v1982 = vpop.f32.mrf.mxu0
      %v1983 = vadd.f32 0.0, %v1982
      %v1984 = vpop.f32.mrf.mxu0
      %1985 = vmatprep.mubr.bf16.mxu0 0
      %1986 = vmatmul.mubr.bf16.gmra.mxu0 %v1838
      %v1987 = vpop.f32.mrf.mxu0
      %v1988 = vadd.f32 0.0, %v1987
      %v1989 = vpop.f32.mrf.mxu0
      %v1990 = vpop.f32.mrf.mxu0
      %v1991 = vadd.f32 0.0, %v1990
      %v1992 = vpop.f32.mrf.mxu0
      %1993 = vmatprep.mubr.bf16.mxu0 0
      %1994 = vmatmul.mubr.bf16.gmra.mxu0 %v1839
      %v1995 = vpop.f32.mrf.mxu0
      %v1996 = vadd.f32 0.0, %v1995
      %v1997 = vpop.f32.mrf.mxu0
      %v1998 = vpop.f32.mrf.mxu0
      %v1999 = vadd.f32 0.0, %v1998
      %v2000 = vpop.f32.mrf.mxu0
      %2001 = vmatprep.mubr.bf16.mxu0 0
      %2002 = vmatmul.mubr.bf16.gmra.mxu0 %v1840
      %v2003 = vpop.f32.mrf.mxu0
      %v2004 = vadd.f32 0.0, %v2003
      %v2005 = vpop.f32.mrf.mxu0
      %v2006 = vpop.f32.mrf.mxu0
      %v2007 = vadd.f32 0.0, %v2006
      %v2008 = vpop.f32.mrf.mxu0
      %2009 = vmatprep.mubr.bf16.mxu0 0
      %2010 = vmatmul.mubr.bf16.gmra.mxu0 %v1841
      %v2011 = vpop.f32.mrf.mxu0
      %v2012 = vadd.f32 0.0, %v2011
      %v2013 = vpop.f32.mrf.mxu0
      %v2014 = vpop.f32.mrf.mxu0
      %v2015 = vadd.f32 0.0, %v2014
      %v2016 = vpop.f32.mrf.mxu0
      %2017 = vmatprep.mubr.bf16.mxu0 0
      %2018 = vmatmul.mubr.bf16.gmra.mxu0 %v1842
      %v2019 = vpop.f32.mrf.mxu0
      %v2020 = vadd.f32 0.0, %v2019
      %v2021 = vpop.f32.mrf.mxu0
      %v2022 = vpop.f32.mrf.mxu0
      %v2023 = vadd.f32 0.0, %v2022
      %v2024 = vpop.f32.mrf.mxu0
      %2025 = vmatprep.mubr.bf16.mxu0 0
      %2026 = vmatmul.mubr.bf16.gmra.mxu0 %v1843
      %v2027 = vpop.f32.mrf.mxu0
      %v2028 = vadd.f32 0.0, %v2027
      %v2029 = vpop.f32.mrf.mxu0
      %v2030 = vpop.f32.mrf.mxu0
      %v2031 = vadd.f32 0.0, %v2030
      %v2032 = vpop.f32.mrf.mxu0
      %2033 = vmatprep.mubr.bf16.mxu0 0
      %2034 = vmatmul.mubr.bf16.gmra.mxu0 %v1844
      %v2035 = vpop.f32.mrf.mxu0
      %v2036 = vadd.f32 0.0, %v2035
      %v2037 = vpop.f32.mrf.mxu0
      %v2038 = vpop.f32.mrf.mxu0
      %v2039 = vadd.f32 0.0, %v2038
      %v2040 = vpop.f32.mrf.mxu0
      %2041 = vmatprep.mubr.bf16.mxu0 0
      %2042 = vmatmul.mubr.bf16.gmra.mxu0 %v1845
      %v2043 = vpop.f32.mrf.mxu0
      %v2044 = vadd.f32 0.0, %v2043
      %v2045 = vpop.f32.mrf.mxu0
      %v2046 = vpop.f32.mrf.mxu0
      %v2047 = vadd.f32 0.0, %v2046
      %v2048 = vpop.f32.mrf.mxu0
      %2049 = vmatprep.mubr.bf16.mxu0 0
      %2050 = vmatmul.mubr.bf16.gmra.mxu0 %v1846
      %v2051 = vpop.f32.mrf.mxu0
      %v2052 = vadd.f32 0.0, %v2051
      %v2053 = vpop.f32.mrf.mxu0
      %v2054 = vpop.f32.mrf.mxu0
      %v2055 = vadd.f32 0.0, %v2054
      %v2056 = vpop.f32.mrf.mxu0
      %2057 = vmatprep.mubr.bf16.mxu0 0
      %2058 = vmatmul.mubr.bf16.gmra.mxu0 %v1847
      %v2059 = vpop.f32.mrf.mxu0
      %v2060 = vadd.f32 0.0, %v2059
      %v2061 = vpop.f32.mrf.mxu0
      %v2062 = vpop.f32.mrf.mxu0
      %v2063 = vadd.f32 0.0, %v2062
      %v2064 = vpop.f32.mrf.mxu0
      %2065 = vmatprep.mubr.bf16.mxu0 0
      %2066 = vmatmul.mubr.bf16.gmra.mxu0 %v1848
      %v2067 = vpop.f32.mrf.mxu0
      %v2068 = vadd.f32 0.0, %v2067
      %v2069 = vpop.f32.mrf.mxu0
      %v2070 = vpop.f32.mrf.mxu0
      %v2071 = vadd.f32 0.0, %v2070
      %v2072 = vpop.f32.mrf.mxu0
      %2073 = vdwg.mxu0
      %v2090 = vunpack.c.l.b16 %v1785
      %v2091 = vunpack.c.l.b16 %v1786
      %v2092 = vunpack.c.l.b16 %v1787
      %v2093 = vunpack.c.l.b16 %v1788
      %v2094 = vunpack.c.l.b16 %v1789
      %v2095 = vunpack.c.l.b16 %v1790
      %v2096 = vunpack.c.l.b16 %v1791
      %v2097 = vunpack.c.l.b16 %v1792
      %v2098 = vunpack.c.l.b16 %v1793
      %v2099 = vunpack.c.l.b16 %v1794
      %v2100 = vunpack.c.l.b16 %v1795
      %v2101 = vunpack.c.l.b16 %v1796
      %v2102 = vunpack.c.l.b16 %v1797
      %v2103 = vunpack.c.l.b16 %v1798
      %v2104 = vunpack.c.l.b16 %v1799
      %v2105 = vunpack.c.l.b16 %v1800
      %v2106 = vpack.c.b16 %v2091, %v2090
      %v2107 = vpack.c.b16 %v2093, %v2092
      %v2108 = vpack.c.b16 %v2095, %v2094
      %v2109 = vpack.c.b16 %v2097, %v2096
      %v2110 = vpack.c.b16 %v2099, %v2098
      %v2111 = vpack.c.b16 %v2101, %v2100
      %v2112 = vpack.c.b16 %v2103, %v2102
      %v2113 = vpack.c.b16 %v2105, %v2104
      %2122 = vmatprep.subr.bf16.mxu0 0
      %2123 = vmatpush1.bf16.msra.mxu0 %v2113
      %2124 = vmatprep.subr.bf16.mxu0 0
      %2125 = vmatpush1.bf16.msra.mxu0 %v2112
      %2126 = vmatprep.subr.bf16.mxu0 0
      %2127 = vmatpush1.bf16.msra.mxu0 %v2111
      %2128 = vmatprep.subr.bf16.mxu0 0
      %2129 = vmatpush1.bf16.msra.mxu0 %v2110
      %2130 = vmatprep.subr.bf16.mxu0 0
      %2131 = vmatpush1.bf16.msra.mxu0 %v2109
      %2132 = vmatprep.subr.bf16.mxu0 0
      %2133 = vmatpush1.bf16.msra.mxu0 %v2108
      %2134 = vmatprep.subr.bf16.mxu0 0
      %2135 = vmatpush1.bf16.msra.mxu0 %v2107
      %2136 = vmatprep.subr.bf16.mxu0 0
      %2137 = vmatpush1.bf16.msra.mxu0 %v2106
      %2138 = vmatprep.subr.bf16.mxu0 0
      %2139 = vmatpush2.bf16.msra.mxu0 0
      %2140 = vmatprep.subr.bf16.mxu0 0
      %2141 = vmatpush2.bf16.msra.mxu0 0
      %2142 = vmatprep.subr.bf16.mxu0 0
      %2143 = vmatpush2.bf16.msra.mxu0 0
      %2144 = vmatprep.subr.bf16.mxu0 0
      %2145 = vmatpush2.bf16.msra.mxu0 0
      %2146 = vmatprep.subr.bf16.mxu0 0
      %2147 = vmatpush2.bf16.msra.mxu0 0
      %2148 = vmatprep.subr.bf16.mxu0 0
      %2149 = vmatpush2.bf16.msra.mxu0 0
      %2150 = vmatprep.subr.bf16.mxu0 0
      %2151 = vmatpush2.bf16.msra.mxu0 0
      %2152 = vmatprep.subr.bf16.mxu0 0
      %2153 = vmatpush2.bf16.msra.mxu0 0
      %2154 = vmatprep.mubr.bf16.mxu0 0
      %2155 = vmatmul.mubr.bf16.gmra.mxu0 %v1769
      %v2156 = vpop.f32.mrf.mxu0
      %v2157 = vadd.f32 %v1948, %v2156
      %v2158 = vpop.f32.mrf.mxu0
      %v2159 = vpop.f32.mrf.mxu0
      %v2160 = vadd.f32 %v1951, %v2159
      %v2161 = vpop.f32.mrf.mxu0
      %2162 = vmatprep.mubr.bf16.mxu0 0
      %2163 = vmatmul.mubr.bf16.gmra.mxu0 %v1770
      %v2164 = vpop.f32.mrf.mxu0
      %v2165 = vadd.f32 %v1956, %v2164
      %v2166 = vpop.f32.mrf.mxu0
      %v2167 = vpop.f32.mrf.mxu0
      %v2168 = vadd.f32 %v1959, %v2167
      %v2169 = vpop.f32.mrf.mxu0
      %2170 = vmatprep.mubr.bf16.mxu0 0
      %2171 = vmatmul.mubr.bf16.gmra.mxu0 %v1771
      %v2172 = vpop.f32.mrf.mxu0
      %v2173 = vadd.f32 %v1964, %v2172
      %v2174 = vpop.f32.mrf.mxu0
      %v2175 = vpop.f32.mrf.mxu0
      %v2176 = vadd.f32 %v1967, %v2175
      %v2177 = vpop.f32.mrf.mxu0
      %2178 = vmatprep.mubr.bf16.mxu0 0
      %2179 = vmatmul.mubr.bf16.gmra.mxu0 %v1772
      %v2180 = vpop.f32.mrf.mxu0
      %v2181 = vadd.f32 %v1972, %v2180
      %v2182 = vpop.f32.mrf.mxu0
      %v2183 = vpop.f32.mrf.mxu0
      %v2184 = vadd.f32 %v1975, %v2183
      %v2185 = vpop.f32.mrf.mxu0
      %2186 = vmatprep.mubr.bf16.mxu0 0
      %2187 = vmatmul.mubr.bf16.gmra.mxu0 %v1773
      %v2188 = vpop.f32.mrf.mxu0
      %v2189 = vadd.f32 %v1980, %v2188
      %v2190 = vpop.f32.mrf.mxu0
      %v2191 = vpop.f32.mrf.mxu0
      %v2192 = vadd.f32 %v1983, %v2191
      %v2193 = vpop.f32.mrf.mxu0
      %2194 = vmatprep.mubr.bf16.mxu0 0
      %2195 = vmatmul.mubr.bf16.gmra.mxu0 %v1774
      %v2196 = vpop.f32.mrf.mxu0
      %v2197 = vadd.f32 %v1988, %v2196
      %v2198 = vpop.f32.mrf.mxu0
      %v2199 = vpop.f32.mrf.mxu0
      %v2200 = vadd.f32 %v1991, %v2199
      %v2201 = vpop.f32.mrf.mxu0
      %2202 = vmatprep.mubr.bf16.mxu0 0
      %2203 = vmatmul.mubr.bf16.gmra.mxu0 %v1775
      %v2204 = vpop.f32.mrf.mxu0
      %v2205 = vadd.f32 %v1996, %v2204
      %v2206 = vpop.f32.mrf.mxu0
      %v2207 = vpop.f32.mrf.mxu0
      %v2208 = vadd.f32 %v1999, %v2207
      %v2209 = vpop.f32.mrf.mxu0
      %2210 = vmatprep.mubr.bf16.mxu0 0
      %2211 = vmatmul.mubr.bf16.gmra.mxu0 %v1776
      %v2212 = vpop.f32.mrf.mxu0
      %v2213 = vadd.f32 %v2004, %v2212
      %v2214 = vpop.f32.mrf.mxu0
      %v2215 = vpop.f32.mrf.mxu0
      %v2216 = vadd.f32 %v2007, %v2215
      %v2217 = vpop.f32.mrf.mxu0
      %2218 = vmatprep.mubr.bf16.mxu0 0
      %2219 = vmatmul.mubr.bf16.gmra.mxu0 %v1777
      %v2220 = vpop.f32.mrf.mxu0
      %v2221 = vadd.f32 %v2012, %v2220
      %v2222 = vpop.f32.mrf.mxu0
      %v2223 = vpop.f32.mrf.mxu0
      %v2224 = vadd.f32 %v2015, %v2223
      %v2225 = vpop.f32.mrf.mxu0
      %2226 = vmatprep.mubr.bf16.mxu0 0
      %2227 = vmatmul.mubr.bf16.gmra.mxu0 %v1778
      %v2228 = vpop.f32.mrf.mxu0
      %v2229 = vadd.f32 %v2020, %v2228
      %v2230 = vpop.f32.mrf.mxu0
      %v2231 = vpop.f32.mrf.mxu0
      %v2232 = vadd.f32 %v2023, %v2231
      %v2233 = vpop.f32.mrf.mxu0
      %2234 = vmatprep.mubr.bf16.mxu0 0
      %2235 = vmatmul.mubr.bf16.gmra.mxu0 %v1779
      %v2236 = vpop.f32.mrf.mxu0
      %v2237 = vadd.f32 %v2028, %v2236
      %v2238 = vpop.f32.mrf.mxu0
      %v2239 = vpop.f32.mrf.mxu0
      %v2240 = vadd.f32 %v2031, %v2239
      %v2241 = vpop.f32.mrf.mxu0
      %2242 = vmatprep.mubr.bf16.mxu0 0
      %2243 = vmatmul.mubr.bf16.gmra.mxu0 %v1780
      %v2244 = vpop.f32.mrf.mxu0
      %v2245 = vadd.f32 %v2036, %v2244
      %v2246 = vpop.f32.mrf.mxu0
      %v2247 = vpop.f32.mrf.mxu0
      %v2248 = vadd.f32 %v2039, %v2247
      %v2249 = vpop.f32.mrf.mxu0
      %2250 = vmatprep.mubr.bf16.mxu0 0
      %2251 = vmatmul.mubr.bf16.gmra.mxu0 %v1781
      %v2252 = vpop.f32.mrf.mxu0
      %v2253 = vadd.f32 %v2044, %v2252
      %v2254 = vpop.f32.mrf.mxu0
      %v2255 = vpop.f32.mrf.mxu0
      %v2256 = vadd.f32 %v2047, %v2255
      %v2257 = vpop.f32.mrf.mxu0
      %2258 = vmatprep.mubr.bf16.mxu0 0
      %2259 = vmatmul.mubr.bf16.gmra.mxu0 %v1782
      %v2260 = vpop.f32.mrf.mxu0
      %v2261 = vadd.f32 %v2052, %v2260
      %v2262 = vpop.f32.mrf.mxu0
      %v2263 = vpop.f32.mrf.mxu0
      %v2264 = vadd.f32 %v2055, %v2263
      %v2265 = vpop.f32.mrf.mxu0
      %2266 = vmatprep.mubr.bf16.mxu0 0
      %2267 = vmatmul.mubr.bf16.gmra.mxu0 %v1783
      %v2268 = vpop.f32.mrf.mxu0
      %v2269 = vadd.f32 %v2060, %v2268
      %v2270 = vpop.f32.mrf.mxu0
      %v2271 = vpop.f32.mrf.mxu0
      %v2272 = vadd.f32 %v2063, %v2271
      %v2273 = vpop.f32.mrf.mxu0
      %2274 = vmatprep.mubr.bf16.mxu0 0
      %2275 = vmatmul.mubr.bf16.gmra.mxu0 %v1784
      %v2276 = vpop.f32.mrf.mxu0
      %v2277 = vadd.f32 %v2068, %v2276
      %v2278 = vpop.f32.mrf.mxu0
      %v2279 = vpop.f32.mrf.mxu0
      %v2280 = vadd.f32 %v2071, %v2279
      %v2281 = vpop.f32.mrf.mxu0
      %2282 = vdwg.mxu0
      %v2283 = vld [vmem:[#allocation2 + $0xef] sm:$0xff]
      %v2284 = vld [vmem:[#allocation2 + $0xf7] sm:$0xff]
      %v2285 = vld [vmem:[#allocation2 + $0xff] sm:$0xff]
      %v2286 = vld [vmem:[#allocation2 + $0x107] sm:$0xff]
      %v2287 = vld [vmem:[#allocation2 + $0x10f] sm:$0xff]
      %v2288 = vld [vmem:[#allocation2 + $0x117] sm:$0xff]
      %v2289 = vld [vmem:[#allocation2 + $0x11f] sm:$0xff]
      %v2290 = vld [vmem:[#allocation2 + $0x127] sm:$0xff]
      %v2291 = vld [vmem:[#allocation2 + $0x12f] sm:$0xff]
      %v2292 = vld [vmem:[#allocation2 + $0x137] sm:$0xff]
      %v2293 = vld [vmem:[#allocation2 + $0x13f] sm:$0xff]
      %v2294 = vld [vmem:[#allocation2 + $0x147] sm:$0xff]
      %v2295 = vld [vmem:[#allocation2 + $0x14f] sm:$0xff]
      %v2296 = vld [vmem:[#allocation2 + $0x157] sm:$0xff]
      %v2297 = vld [vmem:[#allocation2 + $0x15f] sm:$0xff]
      %v2298 = vld [vmem:[#allocation2 + $0x167] sm:$0xff]
      %v2299 = vld [vmem:[#allocation2 + $0x16f] sm:$0xff]
      %v2300 = vld [vmem:[#allocation2 + $0x177] sm:$0xff]
      %v2301 = vld [vmem:[#allocation2 + $0x17f] sm:$0xff]
      %v2302 = vld [vmem:[#allocation2 + $0x187] sm:$0xff]
      %v2303 = vld [vmem:[#allocation2 + $0x18f] sm:$0xff]
      %v2304 = vld [vmem:[#allocation2 + $0x197] sm:$0xff]
      %v2305 = vld [vmem:[#allocation2 + $0x19f] sm:$0xff]
      %v2306 = vld [vmem:[#allocation2 + $0x1a7] sm:$0xff]
      %v2307 = vld [vmem:[#allocation2 + $0x1af] sm:$0xff]
      %v2308 = vld [vmem:[#allocation2 + $0x1b7] sm:$0xff]
      %v2309 = vld [vmem:[#allocation2 + $0x1bf] sm:$0xff]
      %v2310 = vld [vmem:[#allocation2 + $0x1c7] sm:$0xff]
      %v2311 = vld [vmem:[#allocation2 + $0x1cf] sm:$0xff]
      %v2312 = vld [vmem:[#allocation2 + $0x1d7] sm:$0xff]
      %v2313 = vld [vmem:[#allocation2 + $0x1df] sm:$0xff]
      %v2314 = vld [vmem:[#allocation2 + $0x1e7] sm:$0xff]
      %v2315 = vpack.c.bf16 %v2284, %v2283
      %v2316 = vpack.c.bf16 %v2286, %v2285
      %v2317 = vpack.c.bf16 %v2288, %v2287
      %v2318 = vpack.c.bf16 %v2290, %v2289
      %v2319 = vpack.c.bf16 %v2292, %v2291
      %v2320 = vpack.c.bf16 %v2294, %v2293
      %v2321 = vpack.c.bf16 %v2296, %v2295
      %v2322 = vpack.c.bf16 %v2298, %v2297
      %v2323 = vpack.c.bf16 %v2300, %v2299
      %v2324 = vpack.c.bf16 %v2302, %v2301
      %v2325 = vpack.c.bf16 %v2304, %v2303
      %v2326 = vpack.c.bf16 %v2306, %v2305
      %v2327 = vpack.c.bf16 %v2308, %v2307
      %v2328 = vpack.c.bf16 %v2310, %v2309
      %v2329 = vpack.c.bf16 %v2312, %v2311
      %v2330 = vpack.c.bf16 %v2314, %v2313
      %v2331 = vld [vmem:[%s8 + $0x80] sm:$0xf]
      %v2332 = vld [vmem:[%s8 + $0x84] sm:$0xf]
      %v2333 = vld [vmem:[%s8 + $0x88] sm:$0xf]
      %v2334 = vld [vmem:[%s8 + $0x8c] sm:$0xf]
      %v2335 = vld [vmem:[%s8 + $0x90] sm:$0xf]
      %v2336 = vld [vmem:[%s8 + $0x94] sm:$0xf]
      %v2337 = vld [vmem:[%s8 + $0x98] sm:$0xf]
      %v2338 = vld [vmem:[%s8 + $0x9c] sm:$0xf]
      %v2339 = vld [vmem:[%s8 + $0xa0] sm:$0xf]
      %v2340 = vld [vmem:[%s8 + $0xa4] sm:$0xf]
      %v2341 = vld [vmem:[%s8 + $0xa8] sm:$0xf]
      %v2342 = vld [vmem:[%s8 + $0xac] sm:$0xf]
      %v2343 = vld [vmem:[%s8 + $0xb0] sm:$0xf]
      %v2344 = vld [vmem:[%s8 + $0xb4] sm:$0xf]
      %v2345 = vld [vmem:[%s8 + $0xb8] sm:$0xf]
      %v2346 = vld [vmem:[%s8 + $0xbc] sm:$0xf]
      %v2363 = vunpack.c.l.b16 %v2331
      %v2364 = vunpack.c.l.b16 %v2332
      %v2365 = vunpack.c.l.b16 %v2333
      %v2366 = vunpack.c.l.b16 %v2334
      %v2367 = vunpack.c.l.b16 %v2335
      %v2368 = vunpack.c.l.b16 %v2336
      %v2369 = vunpack.c.l.b16 %v2337
      %v2370 = vunpack.c.l.b16 %v2338
      %v2371 = vunpack.c.l.b16 %v2339
      %v2372 = vunpack.c.l.b16 %v2340
      %v2373 = vunpack.c.l.b16 %v2341
      %v2374 = vunpack.c.l.b16 %v2342
      %v2375 = vunpack.c.l.b16 %v2343
      %v2376 = vunpack.c.l.b16 %v2344
      %v2377 = vunpack.c.l.b16 %v2345
      %v2378 = vunpack.c.l.b16 %v2346
      %v2379 = vpack.c.b16 %v2364, %v2363
      %v2380 = vpack.c.b16 %v2366, %v2365
      %v2381 = vpack.c.b16 %v2368, %v2367
      %v2382 = vpack.c.b16 %v2370, %v2369
      %v2383 = vpack.c.b16 %v2372, %v2371
      %v2384 = vpack.c.b16 %v2374, %v2373
      %v2385 = vpack.c.b16 %v2376, %v2375
      %v2386 = vpack.c.b16 %v2378, %v2377
      %2395 = vmatprep.subr.bf16.mxu0 0
      %2396 = vmatpush1.bf16.msra.mxu0 %v2386
      %2397 = vmatprep.subr.bf16.mxu0 0
      %2398 = vmatpush1.bf16.msra.mxu0 %v2385
      %2399 = vmatprep.subr.bf16.mxu0 0
      %2400 = vmatpush1.bf16.msra.mxu0 %v2384
      %2401 = vmatprep.subr.bf16.mxu0 0
      %2402 = vmatpush1.bf16.msra.mxu0 %v2383
      %2403 = vmatprep.subr.bf16.mxu0 0
      %2404 = vmatpush1.bf16.msra.mxu0 %v2382
      %2405 = vmatprep.subr.bf16.mxu0 0
      %2406 = vmatpush1.bf16.msra.mxu0 %v2381
      %2407 = vmatprep.subr.bf16.mxu0 0
      %2408 = vmatpush1.bf16.msra.mxu0 %v2380
      %2409 = vmatprep.subr.bf16.mxu0 0
      %2410 = vmatpush1.bf16.msra.mxu0 %v2379
      %2411 = vmatprep.subr.bf16.mxu0 0
      %2412 = vmatpush2.bf16.msra.mxu0 0
      %2413 = vmatprep.subr.bf16.mxu0 0
      %2414 = vmatpush2.bf16.msra.mxu0 0
      %2415 = vmatprep.subr.bf16.mxu0 0
      %2416 = vmatpush2.bf16.msra.mxu0 0
      %2417 = vmatprep.subr.bf16.mxu0 0
      %2418 = vmatpush2.bf16.msra.mxu0 0
      %2419 = vmatprep.subr.bf16.mxu0 0
      %2420 = vmatpush2.bf16.msra.mxu0 0
      %2421 = vmatprep.subr.bf16.mxu0 0
      %2422 = vmatpush2.bf16.msra.mxu0 0
      %2423 = vmatprep.subr.bf16.mxu0 0
      %2424 = vmatpush2.bf16.msra.mxu0 0
      %2425 = vmatprep.subr.bf16.mxu0 0
      %2426 = vmatpush2.bf16.msra.mxu0 0
      %2427 = vmatprep.mubr.bf16.mxu0 0
      %2428 = vmatmul.mubr.bf16.gmra.mxu0 %v2315
      %v2429 = vpop.f32.mrf.mxu0
      %v2430 = vadd.f32 0.0, %v2429
      %v2431 = vpop.f32.mrf.mxu0
      %v2432 = vpop.f32.mrf.mxu0
      %v2433 = vadd.f32 0.0, %v2432
      %v2434 = vpop.f32.mrf.mxu0
      %2435 = vmatprep.mubr.bf16.mxu0 0
      %2436 = vmatmul.mubr.bf16.gmra.mxu0 %v2316
      %v2437 = vpop.f32.mrf.mxu0
      %v2438 = vadd.f32 0.0, %v2437
      %v2439 = vpop.f32.mrf.mxu0
      %v2440 = vpop.f32.mrf.mxu0
      %v2441 = vadd.f32 0.0, %v2440
      %v2442 = vpop.f32.mrf.mxu0
      %2443 = vmatprep.mubr.bf16.mxu0 0
      %2444 = vmatmul.mubr.bf16.gmra.mxu0 %v2317
      %v2445 = vpop.f32.mrf.mxu0
      %v2446 = vadd.f32 0.0, %v2445
      %v2447 = vpop.f32.mrf.mxu0
      %v2448 = vpop.f32.mrf.mxu0
      %v2449 = vadd.f32 0.0, %v2448
      %v2450 = vpop.f32.mrf.mxu0
      %2451 = vmatprep.mubr.bf16.mxu0 0
      %2452 = vmatmul.mubr.bf16.gmra.mxu0 %v2318
      %v2453 = vpop.f32.mrf.mxu0
      %v2454 = vadd.f32 0.0, %v2453
      %v2455 = vpop.f32.mrf.mxu0
      %v2456 = vpop.f32.mrf.mxu0
      %v2457 = vadd.f32 0.0, %v2456
      %v2458 = vpop.f32.mrf.mxu0
      %2459 = vmatprep.mubr.bf16.mxu0 0
      %2460 = vmatmul.mubr.bf16.gmra.mxu0 %v2319
      %v2461 = vpop.f32.mrf.mxu0
      %v2462 = vadd.f32 0.0, %v2461
      %v2463 = vpop.f32.mrf.mxu0
      %v2464 = vpop.f32.mrf.mxu0
      %v2465 = vadd.f32 0.0, %v2464
      %v2466 = vpop.f32.mrf.mxu0
      %2467 = vmatprep.mubr.bf16.mxu0 0
      %2468 = vmatmul.mubr.bf16.gmra.mxu0 %v2320
      %v2469 = vpop.f32.mrf.mxu0
      %v2470 = vadd.f32 0.0, %v2469
      %v2471 = vpop.f32.mrf.mxu0
      %v2472 = vpop.f32.mrf.mxu0
      %v2473 = vadd.f32 0.0, %v2472
      %v2474 = vpop.f32.mrf.mxu0
      %2475 = vmatprep.mubr.bf16.mxu0 0
      %2476 = vmatmul.mubr.bf16.gmra.mxu0 %v2321
      %v2477 = vpop.f32.mrf.mxu0
      %v2478 = vadd.f32 0.0, %v2477
      %v2479 = vpop.f32.mrf.mxu0
      %v2480 = vpop.f32.mrf.mxu0
      %v2481 = vadd.f32 0.0, %v2480
      %v2482 = vpop.f32.mrf.mxu0
      %2483 = vmatprep.mubr.bf16.mxu0 0
      %2484 = vmatmul.mubr.bf16.gmra.mxu0 %v2322
      %v2485 = vpop.f32.mrf.mxu0
      %v2486 = vadd.f32 0.0, %v2485
      %v2487 = vpop.f32.mrf.mxu0
      %v2488 = vpop.f32.mrf.mxu0
      %v2489 = vadd.f32 0.0, %v2488
      %v2490 = vpop.f32.mrf.mxu0
      %2491 = vmatprep.mubr.bf16.mxu0 0
      %2492 = vmatmul.mubr.bf16.gmra.mxu0 %v2323
      %v2493 = vpop.f32.mrf.mxu0
      %v2494 = vadd.f32 0.0, %v2493
      %v2495 = vpop.f32.mrf.mxu0
      %v2496 = vpop.f32.mrf.mxu0
      %v2497 = vadd.f32 0.0, %v2496
      %v2498 = vpop.f32.mrf.mxu0
      %2499 = vmatprep.mubr.bf16.mxu0 0
      %2500 = vmatmul.mubr.bf16.gmra.mxu0 %v2324
      %v2501 = vpop.f32.mrf.mxu0
      %v2502 = vadd.f32 0.0, %v2501
      %v2503 = vpop.f32.mrf.mxu0
      %v2504 = vpop.f32.mrf.mxu0
      %v2505 = vadd.f32 0.0, %v2504
      %v2506 = vpop.f32.mrf.mxu0
      %2507 = vmatprep.mubr.bf16.mxu0 0
      %2508 = vmatmul.mubr.bf16.gmra.mxu0 %v2325
      %v2509 = vpop.f32.mrf.mxu0
      %v2510 = vadd.f32 0.0, %v2509
      %v2511 = vpop.f32.mrf.mxu0
      %v2512 = vpop.f32.mrf.mxu0
      %v2513 = vadd.f32 0.0, %v2512
      %v2514 = vpop.f32.mrf.mxu0
      %2515 = vmatprep.mubr.bf16.mxu0 0
      %2516 = vmatmul.mubr.bf16.gmra.mxu0 %v2326
      %v2517 = vpop.f32.mrf.mxu0
      %v2518 = vadd.f32 0.0, %v2517
      %v2519 = vpop.f32.mrf.mxu0
      %v2520 = vpop.f32.mrf.mxu0
      %v2521 = vadd.f32 0.0, %v2520
      %v2522 = vpop.f32.mrf.mxu0
      %2523 = vmatprep.mubr.bf16.mxu0 0
      %2524 = vmatmul.mubr.bf16.gmra.mxu0 %v2327
      %v2525 = vpop.f32.mrf.mxu0
      %v2526 = vadd.f32 0.0, %v2525
      %v2527 = vpop.f32.mrf.mxu0
      %v2528 = vpop.f32.mrf.mxu0
      %v2529 = vadd.f32 0.0, %v2528
      %v2530 = vpop.f32.mrf.mxu0
      %2531 = vmatprep.mubr.bf16.mxu0 0
      %2532 = vmatmul.mubr.bf16.gmra.mxu0 %v2328
      %v2533 = vpop.f32.mrf.mxu0
      %v2534 = vadd.f32 0.0, %v2533
      %v2535 = vpop.f32.mrf.mxu0
      %v2536 = vpop.f32.mrf.mxu0
      %v2537 = vadd.f32 0.0, %v2536
      %v2538 = vpop.f32.mrf.mxu0
      %2539 = vmatprep.mubr.bf16.mxu0 0
      %2540 = vmatmul.mubr.bf16.gmra.mxu0 %v2329
      %v2541 = vpop.f32.mrf.mxu0
      %v2542 = vadd.f32 0.0, %v2541
      %v2543 = vpop.f32.mrf.mxu0
      %v2544 = vpop.f32.mrf.mxu0
      %v2545 = vadd.f32 0.0, %v2544
      %v2546 = vpop.f32.mrf.mxu0
      %2547 = vmatprep.mubr.bf16.mxu0 0
      %2548 = vmatmul.mubr.bf16.gmra.mxu0 %v2330
      %v2549 = vpop.f32.mrf.mxu0
      %v2550 = vadd.f32 0.0, %v2549
      %v2551 = vpop.f32.mrf.mxu0
      %v2552 = vpop.f32.mrf.mxu0
      %v2553 = vadd.f32 0.0, %v2552
      %v2554 = vpop.f32.mrf.mxu0
      %2555 = vdwg.mxu0
      %v2556 = vadd.f32 %v2157, %v2430
      %v2557 = vadd.f32 %v2160, %v2433
      %v2558 = vadd.f32 %v2165, %v2438
      %v2559 = vadd.f32 %v2168, %v2441
      %v2560 = vadd.f32 %v2173, %v2446
      %v2561 = vadd.f32 %v2176, %v2449
      %v2562 = vadd.f32 %v2181, %v2454
      %v2563 = vadd.f32 %v2184, %v2457
      %v2564 = vadd.f32 %v2189, %v2462
      %v2565 = vadd.f32 %v2192, %v2465
      %v2566 = vadd.f32 %v2197, %v2470
      %v2567 = vadd.f32 %v2200, %v2473
      %v2568 = vadd.f32 %v2205, %v2478
      %v2569 = vadd.f32 %v2208, %v2481
      %v2570 = vadd.f32 %v2213, %v2486
      %v2571 = vadd.f32 %v2216, %v2489
      %v2572 = vadd.f32 %v2221, %v2494
      %v2573 = vadd.f32 %v2224, %v2497
      %v2574 = vadd.f32 %v2229, %v2502
      %v2575 = vadd.f32 %v2232, %v2505
      %v2576 = vadd.f32 %v2237, %v2510
      %v2577 = vadd.f32 %v2240, %v2513
      %v2578 = vadd.f32 %v2245, %v2518
      %v2579 = vadd.f32 %v2248, %v2521
      %v2580 = vadd.f32 %v2253, %v2526
      %v2581 = vadd.f32 %v2256, %v2529
      %v2582 = vadd.f32 %v2261, %v2534
      %v2583 = vadd.f32 %v2264, %v2537
      %v2584 = vadd.f32 %v2269, %v2542
      %v2585 = vadd.f32 %v2272, %v2545
      %v2586 = vadd.f32 %v2277, %v2550
      %v2587 = vadd.f32 %v2280, %v2553
      %v2588 = vld [vmem:[#allocation2 + $0xff] sm:$0xff]
      %v2589 = vld [vmem:[#allocation2 + $0x107] sm:$0xff]
      %v2590 = vld [vmem:[#allocation2 + $0x10f] sm:$0xff]
      %v2591 = vld [vmem:[#allocation2 + $0x117] sm:$0xff]
      %v2592 = vld [vmem:[#allocation2 + $0x11f] sm:$0xff]
      %v2593 = vld [vmem:[#allocation2 + $0x127] sm:$0xff]
      %v2594 = vld [vmem:[#allocation2 + $0x12f] sm:$0xff]
      %v2595 = vld [vmem:[#allocation2 + $0x137] sm:$0xff]
      %v2596 = vld [vmem:[#allocation2 + $0x13f] sm:$0xff]
      %v2597 = vld [vmem:[#allocation2 + $0x147] sm:$0xff]
      %v2598 = vld [vmem:[#allocation2 + $0x14f] sm:$0xff]
      %v2599 = vld [vmem:[#allocation2 + $0x157] sm:$0xff]
      %v2600 = vld [vmem:[#allocation2 + $0x15f] sm:$0xff]
      %v2601 = vld [vmem:[#allocation2 + $0x167] sm:$0xff]
      %v2602 = vld [vmem:[#allocation2 + $0x16f] sm:$0xff]
      %v2603 = vld [vmem:[#allocation2 + $0x177] sm:$0xff]
      %v2604 = vld [vmem:[#allocation2 + $0x17f] sm:$0xff]
      %v2605 = vld [vmem:[#allocation2 + $0x187] sm:$0xff]
      %v2606 = vld [vmem:[#allocation2 + $0x18f] sm:$0xff]
      %v2607 = vld [vmem:[#allocation2 + $0x197] sm:$0xff]
      %v2608 = vld [vmem:[#allocation2 + $0x19f] sm:$0xff]
      %v2609 = vld [vmem:[#allocation2 + $0x1a7] sm:$0xff]
      %v2610 = vld [vmem:[#allocation2 + $0x1af] sm:$0xff]
      %v2611 = vld [vmem:[#allocation2 + $0x1b7] sm:$0xff]
      %v2612 = vld [vmem:[#allocation2 + $0x1bf] sm:$0xff]
      %v2613 = vld [vmem:[#allocation2 + $0x1c7] sm:$0xff]
      %v2614 = vld [vmem:[#allocation2 + $0x1cf] sm:$0xff]
      %v2615 = vld [vmem:[#allocation2 + $0x1d7] sm:$0xff]
      %v2616 = vld [vmem:[#allocation2 + $0x1df] sm:$0xff]
      %v2617 = vld [vmem:[#allocation2 + $0x1e7] sm:$0xff]
      %v2618 = vld [vmem:[#allocation2 + $0x1ef] sm:$0xff]
      %v2619 = vld [vmem:[#allocation2 + $0x1f7] sm:$0xff]
      %v2620 = vpack.c.bf16 %v2589, %v2588
      %v2621 = vpack.c.bf16 %v2591, %v2590
      %v2622 = vpack.c.bf16 %v2593, %v2592
      %v2623 = vpack.c.bf16 %v2595, %v2594
      %v2624 = vpack.c.bf16 %v2597, %v2596
      %v2625 = vpack.c.bf16 %v2599, %v2598
      %v2626 = vpack.c.bf16 %v2601, %v2600
      %v2627 = vpack.c.bf16 %v2603, %v2602
      %v2628 = vpack.c.bf16 %v2605, %v2604
      %v2629 = vpack.c.bf16 %v2607, %v2606
      %v2630 = vpack.c.bf16 %v2609, %v2608
      %v2631 = vpack.c.bf16 %v2611, %v2610
      %v2632 = vpack.c.bf16 %v2613, %v2612
      %v2633 = vpack.c.bf16 %v2615, %v2614
      %v2634 = vpack.c.bf16 %v2617, %v2616
      %v2635 = vpack.c.bf16 %v2619, %v2618
      %v2636 = vld [vmem:[%s8 + $0xc0] sm:$0xf]
      %v2637 = vld [vmem:[%s8 + $0xc4] sm:$0xf]
      %v2638 = vld [vmem:[%s8 + $0xc8] sm:$0xf]
      %v2639 = vld [vmem:[%s8 + $0xcc] sm:$0xf]
      %v2640 = vld [vmem:[%s8 + $0xd0] sm:$0xf]
      %v2641 = vld [vmem:[%s8 + $0xd4] sm:$0xf]
      %v2642 = vld [vmem:[%s8 + $0xd8] sm:$0xf]
      %v2643 = vld [vmem:[%s8 + $0xdc] sm:$0xf]
      %v2644 = vld [vmem:[%s8 + $0xe0] sm:$0xf]
      %v2645 = vld [vmem:[%s8 + $0xe4] sm:$0xf]
      %v2646 = vld [vmem:[%s8 + $0xe8] sm:$0xf]
      %v2647 = vld [vmem:[%s8 + $0xec] sm:$0xf]
      %v2648 = vld [vmem:[%s8 + $0xf0] sm:$0xf]
      %v2649 = vld [vmem:[%s8 + $0xf4] sm:$0xf]
      %v2650 = vld [vmem:[%s8 + $0xf8] sm:$0xf]
      %v2651 = vld [vmem:[%s8 + $0xfc] sm:$0xf]
      %v2668 = vunpack.c.l.b16 %v2636
      %v2669 = vunpack.c.l.b16 %v2637
      %v2670 = vunpack.c.l.b16 %v2638
      %v2671 = vunpack.c.l.b16 %v2639
      %v2672 = vunpack.c.l.b16 %v2640
      %v2673 = vunpack.c.l.b16 %v2641
      %v2674 = vunpack.c.l.b16 %v2642
      %v2675 = vunpack.c.l.b16 %v2643
      %v2676 = vunpack.c.l.b16 %v2644
      %v2677 = vunpack.c.l.b16 %v2645
      %v2678 = vunpack.c.l.b16 %v2646
      %v2679 = vunpack.c.l.b16 %v2647
      %v2680 = vunpack.c.l.b16 %v2648
      %v2681 = vunpack.c.l.b16 %v2649
      %v2682 = vunpack.c.l.b16 %v2650
      %v2683 = vunpack.c.l.b16 %v2651
      %v2684 = vpack.c.b16 %v2669, %v2668
      %v2685 = vpack.c.b16 %v2671, %v2670
      %v2686 = vpack.c.b16 %v2673, %v2672
      %v2687 = vpack.c.b16 %v2675, %v2674
      %v2688 = vpack.c.b16 %v2677, %v2676
      %v2689 = vpack.c.b16 %v2679, %v2678
      %v2690 = vpack.c.b16 %v2681, %v2680
      %v2691 = vpack.c.b16 %v2683, %v2682
      %2700 = vmatprep.subr.bf16.mxu0 0
      %2701 = vmatpush1.bf16.msra.mxu0 %v2691
      %2702 = vmatprep.subr.bf16.mxu0 0
      %2703 = vmatpush1.bf16.msra.mxu0 %v2690
      %2704 = vmatprep.subr.bf16.mxu0 0
      %2705 = vmatpush1.bf16.msra.mxu0 %v2689
      %2706 = vmatprep.subr.bf16.mxu0 0
      %2707 = vmatpush1.bf16.msra.mxu0 %v2688
      %2708 = vmatprep.subr.bf16.mxu0 0
      %2709 = vmatpush1.bf16.msra.mxu0 %v2687
      %2710 = vmatprep.subr.bf16.mxu0 0
      %2711 = vmatpush1.bf16.msra.mxu0 %v2686
      %2712 = vmatprep.subr.bf16.mxu0 0
      %2713 = vmatpush1.bf16.msra.mxu0 %v2685
      %2714 = vmatprep.subr.bf16.mxu0 0
      %2715 = vmatpush1.bf16.msra.mxu0 %v2684
      %2716 = vmatprep.subr.bf16.mxu0 0
      %2717 = vmatpush2.bf16.msra.mxu0 0
      %2718 = vmatprep.subr.bf16.mxu0 0
      %2719 = vmatpush2.bf16.msra.mxu0 0
      %2720 = vmatprep.subr.bf16.mxu0 0
      %2721 = vmatpush2.bf16.msra.mxu0 0
      %2722 = vmatprep.subr.bf16.mxu0 0
      %2723 = vmatpush2.bf16.msra.mxu0 0
      %2724 = vmatprep.subr.bf16.mxu0 0
      %2725 = vmatpush2.bf16.msra.mxu0 0
      %2726 = vmatprep.subr.bf16.mxu0 0
      %2727 = vmatpush2.bf16.msra.mxu0 0
      %2728 = vmatprep.subr.bf16.mxu0 0
      %2729 = vmatpush2.bf16.msra.mxu0 0
      %2730 = vmatprep.subr.bf16.mxu0 0
      %2731 = vmatpush2.bf16.msra.mxu0 0
      %2732 = vmatprep.mubr.bf16.mxu0 0
      %2733 = vmatmul.mubr.bf16.gmra.mxu0 %v2620
      %v2734 = vpop.f32.mrf.mxu0
      %v2735 = vadd.f32 0.0, %v2734
      %v2736 = vpop.f32.mrf.mxu0
      %v2737 = vpop.f32.mrf.mxu0
      %v2738 = vadd.f32 0.0, %v2737
      %v2739 = vpop.f32.mrf.mxu0
      %2740 = vmatprep.mubr.bf16.mxu0 0
      %2741 = vmatmul.mubr.bf16.gmra.mxu0 %v2621
      %v2742 = vpop.f32.mrf.mxu0
      %v2743 = vadd.f32 0.0, %v2742
      %v2744 = vpop.f32.mrf.mxu0
      %v2745 = vpop.f32.mrf.mxu0
      %v2746 = vadd.f32 0.0, %v2745
      %v2747 = vpop.f32.mrf.mxu0
      %2748 = vmatprep.mubr.bf16.mxu0 0
      %2749 = vmatmul.mubr.bf16.gmra.mxu0 %v2622
      %v2750 = vpop.f32.mrf.mxu0
      %v2751 = vadd.f32 0.0, %v2750
      %v2752 = vpop.f32.mrf.mxu0
      %v2753 = vpop.f32.mrf.mxu0
      %v2754 = vadd.f32 0.0, %v2753
      %v2755 = vpop.f32.mrf.mxu0
      %2756 = vmatprep.mubr.bf16.mxu0 0
      %2757 = vmatmul.mubr.bf16.gmra.mxu0 %v2623
      %v2758 = vpop.f32.mrf.mxu0
      %v2759 = vadd.f32 0.0, %v2758
      %v2760 = vpop.f32.mrf.mxu0
      %v2761 = vpop.f32.mrf.mxu0
      %v2762 = vadd.f32 0.0, %v2761
      %v2763 = vpop.f32.mrf.mxu0
      %2764 = vmatprep.mubr.bf16.mxu0 0
      %2765 = vmatmul.mubr.bf16.gmra.mxu0 %v2624
      %v2766 = vpop.f32.mrf.mxu0
      %v2767 = vadd.f32 0.0, %v2766
      %v2768 = vpop.f32.mrf.mxu0
      %v2769 = vpop.f32.mrf.mxu0
      %v2770 = vadd.f32 0.0, %v2769
      %v2771 = vpop.f32.mrf.mxu0
      %2772 = vmatprep.mubr.bf16.mxu0 0
      %2773 = vmatmul.mubr.bf16.gmra.mxu0 %v2625
      %v2774 = vpop.f32.mrf.mxu0
      %v2775 = vadd.f32 0.0, %v2774
      %v2776 = vpop.f32.mrf.mxu0
      %v2777 = vpop.f32.mrf.mxu0
      %v2778 = vadd.f32 0.0, %v2777
      %v2779 = vpop.f32.mrf.mxu0
      %2780 = vmatprep.mubr.bf16.mxu0 0
      %2781 = vmatmul.mubr.bf16.gmra.mxu0 %v2626
      %v2782 = vpop.f32.mrf.mxu0
      %v2783 = vadd.f32 0.0, %v2782
      %v2784 = vpop.f32.mrf.mxu0
      %v2785 = vpop.f32.mrf.mxu0
      %v2786 = vadd.f32 0.0, %v2785
      %v2787 = vpop.f32.mrf.mxu0
      %2788 = vmatprep.mubr.bf16.mxu0 0
      %2789 = vmatmul.mubr.bf16.gmra.mxu0 %v2627
      %v2790 = vpop.f32.mrf.mxu0
      %v2791 = vadd.f32 0.0, %v2790
      %v2792 = vpop.f32.mrf.mxu0
      %v2793 = vpop.f32.mrf.mxu0
      %v2794 = vadd.f32 0.0, %v2793
      %v2795 = vpop.f32.mrf.mxu0
      %2796 = vmatprep.mubr.bf16.mxu0 0
      %2797 = vmatmul.mubr.bf16.gmra.mxu0 %v2628
      %v2798 = vpop.f32.mrf.mxu0
      %v2799 = vadd.f32 0.0, %v2798
      %v2800 = vpop.f32.mrf.mxu0
      %v2801 = vpop.f32.mrf.mxu0
      %v2802 = vadd.f32 0.0, %v2801
      %v2803 = vpop.f32.mrf.mxu0
      %2804 = vmatprep.mubr.bf16.mxu0 0
      %2805 = vmatmul.mubr.bf16.gmra.mxu0 %v2629
      %v2806 = vpop.f32.mrf.mxu0
      %v2807 = vadd.f32 0.0, %v2806
      %v2808 = vpop.f32.mrf.mxu0
      %v2809 = vpop.f32.mrf.mxu0
      %v2810 = vadd.f32 0.0, %v2809
      %v2811 = vpop.f32.mrf.mxu0
      %2812 = vmatprep.mubr.bf16.mxu0 0
      %2813 = vmatmul.mubr.bf16.gmra.mxu0 %v2630
      %v2814 = vpop.f32.mrf.mxu0
      %v2815 = vadd.f32 0.0, %v2814
      %v2816 = vpop.f32.mrf.mxu0
      %v2817 = vpop.f32.mrf.mxu0
      %v2818 = vadd.f32 0.0, %v2817
      %v2819 = vpop.f32.mrf.mxu0
      %2820 = vmatprep.mubr.bf16.mxu0 0
      %2821 = vmatmul.mubr.bf16.gmra.mxu0 %v2631
      %v2822 = vpop.f32.mrf.mxu0
      %v2823 = vadd.f32 0.0, %v2822
      %v2824 = vpop.f32.mrf.mxu0
      %v2825 = vpop.f32.mrf.mxu0
      %v2826 = vadd.f32 0.0, %v2825
      %v2827 = vpop.f32.mrf.mxu0
      %2828 = vmatprep.mubr.bf16.mxu0 0
      %2829 = vmatmul.mubr.bf16.gmra.mxu0 %v2632
      %v2830 = vpop.f32.mrf.mxu0
      %v2831 = vadd.f32 0.0, %v2830
      %v2832 = vpop.f32.mrf.mxu0
      %v2833 = vpop.f32.mrf.mxu0
      %v2834 = vadd.f32 0.0, %v2833
      %v2835 = vpop.f32.mrf.mxu0
      %2836 = vmatprep.mubr.bf16.mxu0 0
      %2837 = vmatmul.mubr.bf16.gmra.mxu0 %v2633
      %v2838 = vpop.f32.mrf.mxu0
      %v2839 = vadd.f32 0.0, %v2838
      %v2840 = vpop.f32.mrf.mxu0
      %v2841 = vpop.f32.mrf.mxu0
      %v2842 = vadd.f32 0.0, %v2841
      %v2843 = vpop.f32.mrf.mxu0
      %2844 = vmatprep.mubr.bf16.mxu0 0
      %2845 = vmatmul.mubr.bf16.gmra.mxu0 %v2634
      %v2846 = vpop.f32.mrf.mxu0
      %v2847 = vadd.f32 0.0, %v2846
      %v2848 = vpop.f32.mrf.mxu0
      %v2849 = vpop.f32.mrf.mxu0
      %v2850 = vadd.f32 0.0, %v2849
      %v2851 = vpop.f32.mrf.mxu0
      %2852 = vmatprep.mubr.bf16.mxu0 0
      %2853 = vmatmul.mubr.bf16.gmra.mxu0 %v2635
      %v2854 = vpop.f32.mrf.mxu0
      %v2855 = vadd.f32 0.0, %v2854
      %v2856 = vpop.f32.mrf.mxu0
      %v2857 = vpop.f32.mrf.mxu0
      %v2858 = vadd.f32 0.0, %v2857
      %v2859 = vpop.f32.mrf.mxu0
      %2860 = vdwg.mxu0
      %v2861 = vadd.f32 %v2556, %v2735
      %v2862 = vadd.f32 %v2557, %v2738
      %v2863 = vadd.f32 %v2558, %v2743
      %v2864 = vadd.f32 %v2559, %v2746
      %v2865 = vadd.f32 %v2560, %v2751
      %v2866 = vadd.f32 %v2561, %v2754
      %v2867 = vadd.f32 %v2562, %v2759
      %v2868 = vadd.f32 %v2563, %v2762
      %v2869 = vadd.f32 %v2564, %v2767
      %v2870 = vadd.f32 %v2565, %v2770
      %v2871 = vadd.f32 %v2566, %v2775
      %v2872 = vadd.f32 %v2567, %v2778
      %v2873 = vadd.f32 %v2568, %v2783
      %v2874 = vadd.f32 %v2569, %v2786
      %v2875 = vadd.f32 %v2570, %v2791
      %v2876 = vadd.f32 %v2571, %v2794
      %v2877 = vadd.f32 %v2572, %v2799
      %v2878 = vadd.f32 %v2573, %v2802
      %v2879 = vadd.f32 %v2574, %v2807
      %v2880 = vadd.f32 %v2575, %v2810
      %v2881 = vadd.f32 %v2576, %v2815
      %v2882 = vadd.f32 %v2577, %v2818
      %v2883 = vadd.f32 %v2578, %v2823
      %v2884 = vadd.f32 %v2579, %v2826
      %v2885 = vadd.f32 %v2580, %v2831
      %v2886 = vadd.f32 %v2581, %v2834
      %v2887 = vadd.f32 %v2582, %v2839
      %v2888 = vadd.f32 %v2583, %v2842
      %v2889 = vadd.f32 %v2584, %v2847
      %v2890 = vadd.f32 %v2585, %v2850
      %v2891 = vadd.f32 %v2586, %v2855
      %v2892 = vadd.f32 %v2587, %v2858
      %v2893 = vld [vmem:[#allocation2 + $0x100] sm:$0xff]
      %v2894 = vld [vmem:[#allocation2 + $0x108] sm:$0xff]
      %v2895 = vld [vmem:[#allocation2 + $0x110] sm:$0xff]
      %v2896 = vld [vmem:[#allocation2 + $0x118] sm:$0xff]
      %v2897 = vld [vmem:[#allocation2 + $0x120] sm:$0xff]
      %v2898 = vld [vmem:[#allocation2 + $0x128] sm:$0xff]
      %v2899 = vld [vmem:[#allocation2 + $0x130] sm:$0xff]
      %v2900 = vld [vmem:[#allocation2 + $0x138] sm:$0xff]
      %v2901 = vld [vmem:[#allocation2 + $0x140] sm:$0xff]
      %v2902 = vld [vmem:[#allocation2 + $0x148] sm:$0xff]
      %v2903 = vld [vmem:[#allocation2 + $0x150] sm:$0xff]
      %v2904 = vld [vmem:[#allocation2 + $0x158] sm:$0xff]
      %v2905 = vld [vmem:[#allocation2 + $0x160] sm:$0xff]
      %v2906 = vld [vmem:[#allocation2 + $0x168] sm:$0xff]
      %v2907 = vld [vmem:[#allocation2 + $0x170] sm:$0xff]
      %v2908 = vld [vmem:[#allocation2 + $0x178] sm:$0xff]
      %v2909 = vld [vmem:[#allocation2 + $0x180] sm:$0xff]
      %v2910 = vld [vmem:[#allocation2 + $0x188] sm:$0xff]
      %v2911 = vld [vmem:[#allocation2 + $0x190] sm:$0xff]
      %v2912 = vld [vmem:[#allocation2 + $0x198] sm:$0xff]
      %v2913 = vld [vmem:[#allocation2 + $0x1a0] sm:$0xff]
      %v2914 = vld [vmem:[#allocation2 + $0x1a8] sm:$0xff]
      %v2915 = vld [vmem:[#allocation2 + $0x1b0] sm:$0xff]
      %v2916 = vld [vmem:[#allocation2 + $0x1b8] sm:$0xff]
      %v2917 = vld [vmem:[#allocation2 + $0x1c0] sm:$0xff]
      %v2918 = vld [vmem:[#allocation2 + $0x1c8] sm:$0xff]
      %v2919 = vld [vmem:[#allocation2 + $0x1d0] sm:$0xff]
      %v2920 = vld [vmem:[#allocation2 + $0x1d8] sm:$0xff]
      %v2921 = vld [vmem:[#allocation2 + $0x1e0] sm:$0xff]
      %v2922 = vld [vmem:[#allocation2 + $0x1e8] sm:$0xff]
      %v2923 = vld [vmem:[#allocation2 + $0x1f0] sm:$0xff]
      %v2924 = vld [vmem:[#allocation2 + $0x1f8] sm:$0xff]
      %v2925 = vpack.c.bf16 %v2894, %v2893
      %v2926 = vpack.c.bf16 %v2896, %v2895
      %v2927 = vpack.c.bf16 %v2898, %v2897
      %v2928 = vpack.c.bf16 %v2900, %v2899
      %v2929 = vpack.c.bf16 %v2902, %v2901
      %v2930 = vpack.c.bf16 %v2904, %v2903
      %v2931 = vpack.c.bf16 %v2906, %v2905
      %v2932 = vpack.c.bf16 %v2908, %v2907
      %v2933 = vpack.c.bf16 %v2910, %v2909
      %v2934 = vpack.c.bf16 %v2912, %v2911
      %v2935 = vpack.c.bf16 %v2914, %v2913
      %v2936 = vpack.c.bf16 %v2916, %v2915
      %v2937 = vpack.c.bf16 %v2918, %v2917
      %v2938 = vpack.c.bf16 %v2920, %v2919
      %v2939 = vpack.c.bf16 %v2922, %v2921
      %v2940 = vpack.c.bf16 %v2924, %v2923
      %v2941 = vld [vmem:[%s8 + $0x100] sm:$0xf]
      %v2942 = vld [vmem:[%s8 + $0x104] sm:$0xf]
      %v2943 = vld [vmem:[%s8 + $0x108] sm:$0xf]
      %v2944 = vld [vmem:[%s8 + $0x10c] sm:$0xf]
      %v2945 = vld [vmem:[%s8 + $0x110] sm:$0xf]
      %v2946 = vld [vmem:[%s8 + $0x114] sm:$0xf]
      %v2947 = vld [vmem:[%s8 + $0x118] sm:$0xf]
      %v2948 = vld [vmem:[%s8 + $0x11c] sm:$0xf]
      %v2949 = vld [vmem:[%s8 + $0x120] sm:$0xf]
      %v2950 = vld [vmem:[%s8 + $0x124] sm:$0xf]
      %v2951 = vld [vmem:[%s8 + $0x128] sm:$0xf]
      %v2952 = vld [vmem:[%s8 + $0x12c] sm:$0xf]
      %v2953 = vld [vmem:[%s8 + $0x130] sm:$0xf]
      %v2954 = vld [vmem:[%s8 + $0x134] sm:$0xf]
      %v2955 = vld [vmem:[%s8 + $0x138] sm:$0xf]
      %v2956 = vld [vmem:[%s8 + $0x13c] sm:$0xf]
      %v2973 = vunpack.c.l.b16 %v2941
      %v2974 = vunpack.c.l.b16 %v2942
      %v2975 = vunpack.c.l.b16 %v2943
      %v2976 = vunpack.c.l.b16 %v2944
      %v2977 = vunpack.c.l.b16 %v2945
      %v2978 = vunpack.c.l.b16 %v2946
      %v2979 = vunpack.c.l.b16 %v2947
      %v2980 = vunpack.c.l.b16 %v2948
      %v2981 = vunpack.c.l.b16 %v2949
      %v2982 = vunpack.c.l.b16 %v2950
      %v2983 = vunpack.c.l.b16 %v2951
      %v2984 = vunpack.c.l.b16 %v2952
      %v2985 = vunpack.c.l.b16 %v2953
      %v2986 = vunpack.c.l.b16 %v2954
      %v2987 = vunpack.c.l.b16 %v2955
      %v2988 = vunpack.c.l.b16 %v2956
      %v2989 = vpack.c.b16 %v2974, %v2973
      %v2990 = vpack.c.b16 %v2976, %v2975
      %v2991 = vpack.c.b16 %v2978, %v2977
      %v2992 = vpack.c.b16 %v2980, %v2979
      %v2993 = vpack.c.b16 %v2982, %v2981
      %v2994 = vpack.c.b16 %v2984, %v2983
      %v2995 = vpack.c.b16 %v2986, %v2985
      %v2996 = vpack.c.b16 %v2988, %v2987
      %3005 = vmatprep.subr.bf16.mxu0 0
      %3006 = vmatpush1.bf16.msra.mxu0 %v2996
      %3007 = vmatprep.subr.bf16.mxu0 0
      %3008 = vmatpush1.bf16.msra.mxu0 %v2995
      %3009 = vmatprep.subr.bf16.mxu0 0
      %3010 = vmatpush1.bf16.msra.mxu0 %v2994
      %3011 = vmatprep.subr.bf16.mxu0 0
      %3012 = vmatpush1.bf16.msra.mxu0 %v2993
      %3013 = vmatprep.subr.bf16.mxu0 0
      %3014 = vmatpush1.bf16.msra.mxu0 %v2992
      %3015 = vmatprep.subr.bf16.mxu0 0
      %3016 = vmatpush1.bf16.msra.mxu0 %v2991
      %3017 = vmatprep.subr.bf16.mxu0 0
      %3018 = vmatpush1.bf16.msra.mxu0 %v2990
      %3019 = vmatprep.subr.bf16.mxu0 0
      %3020 = vmatpush1.bf16.msra.mxu0 %v2989
      %3021 = vmatprep.subr.bf16.mxu0 0
      %3022 = vmatpush2.bf16.msra.mxu0 0
      %3023 = vmatprep.subr.bf16.mxu0 0
      %3024 = vmatpush2.bf16.msra.mxu0 0
      %3025 = vmatprep.subr.bf16.mxu0 0
      %3026 = vmatpush2.bf16.msra.mxu0 0
      %3027 = vmatprep.subr.bf16.mxu0 0
      %3028 = vmatpush2.bf16.msra.mxu0 0
      %3029 = vmatprep.subr.bf16.mxu0 0
      %3030 = vmatpush2.bf16.msra.mxu0 0
      %3031 = vmatprep.subr.bf16.mxu0 0
      %3032 = vmatpush2.bf16.msra.mxu0 0
      %3033 = vmatprep.subr.bf16.mxu0 0
      %3034 = vmatpush2.bf16.msra.mxu0 0
      %3035 = vmatprep.subr.bf16.mxu0 0
      %3036 = vmatpush2.bf16.msra.mxu0 0
      %3037 = vmatprep.mubr.bf16.mxu0 0
      %3038 = vmatmul.mubr.bf16.gmra.mxu0 %v2925
      %v3039 = vpop.f32.mrf.mxu0
      %v3040 = vadd.f32 0.0, %v3039
      %v3041 = vpop.f32.mrf.mxu0
      %v3042 = vpop.f32.mrf.mxu0
      %v3043 = vadd.f32 0.0, %v3042
      %v3044 = vpop.f32.mrf.mxu0
      %3045 = vmatprep.mubr.bf16.mxu0 0
      %3046 = vmatmul.mubr.bf16.gmra.mxu0 %v2926
      %v3047 = vpop.f32.mrf.mxu0
      %v3048 = vadd.f32 0.0, %v3047
      %v3049 = vpop.f32.mrf.mxu0
      %v3050 = vpop.f32.mrf.mxu0
      %v3051 = vadd.f32 0.0, %v3050
      %v3052 = vpop.f32.mrf.mxu0
      %3053 = vmatprep.mubr.bf16.mxu0 0
      %3054 = vmatmul.mubr.bf16.gmra.mxu0 %v2927
      %v3055 = vpop.f32.mrf.mxu0
      %v3056 = vadd.f32 0.0, %v3055
      %v3057 = vpop.f32.mrf.mxu0
      %v3058 = vpop.f32.mrf.mxu0
      %v3059 = vadd.f32 0.0, %v3058
      %v3060 = vpop.f32.mrf.mxu0
      %3061 = vmatprep.mubr.bf16.mxu0 0
      %3062 = vmatmul.mubr.bf16.gmra.mxu0 %v2928
      %v3063 = vpop.f32.mrf.mxu0
      %v3064 = vadd.f32 0.0, %v3063
      %v3065 = vpop.f32.mrf.mxu0
      %v3066 = vpop.f32.mrf.mxu0
      %v3067 = vadd.f32 0.0, %v3066
      %v3068 = vpop.f32.mrf.mxu0
      %3069 = vmatprep.mubr.bf16.mxu0 0
      %3070 = vmatmul.mubr.bf16.gmra.mxu0 %v2929
      %v3071 = vpop.f32.mrf.mxu0
      %v3072 = vadd.f32 0.0, %v3071
      %v3073 = vpop.f32.mrf.mxu0
      %v3074 = vpop.f32.mrf.mxu0
      %v3075 = vadd.f32 0.0, %v3074
      %v3076 = vpop.f32.mrf.mxu0
      %3077 = vmatprep.mubr.bf16.mxu0 0
      %3078 = vmatmul.mubr.bf16.gmra.mxu0 %v2930
      %v3079 = vpop.f32.mrf.mxu0
      %v3080 = vadd.f32 0.0, %v3079
      %v3081 = vpop.f32.mrf.mxu0
      %v3082 = vpop.f32.mrf.mxu0
      %v3083 = vadd.f32 0.0, %v3082
      %v3084 = vpop.f32.mrf.mxu0
      %3085 = vmatprep.mubr.bf16.mxu0 0
      %3086 = vmatmul.mubr.bf16.gmra.mxu0 %v2931
      %v3087 = vpop.f32.mrf.mxu0
      %v3088 = vadd.f32 0.0, %v3087
      %v3089 = vpop.f32.mrf.mxu0
      %v3090 = vpop.f32.mrf.mxu0
      %v3091 = vadd.f32 0.0, %v3090
      %v3092 = vpop.f32.mrf.mxu0
      %3093 = vmatprep.mubr.bf16.mxu0 0
      %3094 = vmatmul.mubr.bf16.gmra.mxu0 %v2932
      %v3095 = vpop.f32.mrf.mxu0
      %v3096 = vadd.f32 0.0, %v3095
      %v3097 = vpop.f32.mrf.mxu0
      %v3098 = vpop.f32.mrf.mxu0
      %v3099 = vadd.f32 0.0, %v3098
      %v3100 = vpop.f32.mrf.mxu0
      %3101 = vmatprep.mubr.bf16.mxu0 0
      %3102 = vmatmul.mubr.bf16.gmra.mxu0 %v2933
      %v3103 = vpop.f32.mrf.mxu0
      %v3104 = vadd.f32 0.0, %v3103
      %v3105 = vpop.f32.mrf.mxu0
      %v3106 = vpop.f32.mrf.mxu0
      %v3107 = vadd.f32 0.0, %v3106
      %v3108 = vpop.f32.mrf.mxu0
      %3109 = vmatprep.mubr.bf16.mxu0 0
      %3110 = vmatmul.mubr.bf16.gmra.mxu0 %v2934
      %v3111 = vpop.f32.mrf.mxu0
      %v3112 = vadd.f32 0.0, %v3111
      %v3113 = vpop.f32.mrf.mxu0
      %v3114 = vpop.f32.mrf.mxu0
      %v3115 = vadd.f32 0.0, %v3114
      %v3116 = vpop.f32.mrf.mxu0
      %3117 = vmatprep.mubr.bf16.mxu0 0
      %3118 = vmatmul.mubr.bf16.gmra.mxu0 %v2935
      %v3119 = vpop.f32.mrf.mxu0
      %v3120 = vadd.f32 0.0, %v3119
      %v3121 = vpop.f32.mrf.mxu0
      %v3122 = vpop.f32.mrf.mxu0
      %v3123 = vadd.f32 0.0, %v3122
      %v3124 = vpop.f32.mrf.mxu0
      %3125 = vmatprep.mubr.bf16.mxu0 0
      %3126 = vmatmul.mubr.bf16.gmra.mxu0 %v2936
      %v3127 = vpop.f32.mrf.mxu0
      %v3128 = vadd.f32 0.0, %v3127
      %v3129 = vpop.f32.mrf.mxu0
      %v3130 = vpop.f32.mrf.mxu0
      %v3131 = vadd.f32 0.0, %v3130
      %v3132 = vpop.f32.mrf.mxu0
      %3133 = vmatprep.mubr.bf16.mxu0 0
      %3134 = vmatmul.mubr.bf16.gmra.mxu0 %v2937
      %v3135 = vpop.f32.mrf.mxu0
      %v3136 = vadd.f32 0.0, %v3135
      %v3137 = vpop.f32.mrf.mxu0
      %v3138 = vpop.f32.mrf.mxu0
      %v3139 = vadd.f32 0.0, %v3138
      %v3140 = vpop.f32.mrf.mxu0
      %3141 = vmatprep.mubr.bf16.mxu0 0
      %3142 = vmatmul.mubr.bf16.gmra.mxu0 %v2938
      %v3143 = vpop.f32.mrf.mxu0
      %v3144 = vadd.f32 0.0, %v3143
      %v3145 = vpop.f32.mrf.mxu0
      %v3146 = vpop.f32.mrf.mxu0
      %v3147 = vadd.f32 0.0, %v3146
      %v3148 = vpop.f32.mrf.mxu0
      %3149 = vmatprep.mubr.bf16.mxu0 0
      %3150 = vmatmul.mubr.bf16.gmra.mxu0 %v2939
      %v3151 = vpop.f32.mrf.mxu0
      %v3152 = vadd.f32 0.0, %v3151
      %v3153 = vpop.f32.mrf.mxu0
      %v3154 = vpop.f32.mrf.mxu0
      %v3155 = vadd.f32 0.0, %v3154
      %v3156 = vpop.f32.mrf.mxu0
      %3157 = vmatprep.mubr.bf16.mxu0 0
      %3158 = vmatmul.mubr.bf16.gmra.mxu0 %v2940
      %v3159 = vpop.f32.mrf.mxu0
      %v3160 = vadd.f32 0.0, %v3159
      %v3161 = vpop.f32.mrf.mxu0
      %v3162 = vpop.f32.mrf.mxu0
      %v3163 = vadd.f32 0.0, %v3162
      %v3164 = vpop.f32.mrf.mxu0
      %3165 = vdwg.mxu0
      %v3166 = vadd.f32 %v2861, %v3040
      %v3167 = vadd.f32 %v2862, %v3043
      %v3168 = vadd.f32 %v2863, %v3048
      %v3169 = vadd.f32 %v2864, %v3051
      %v3170 = vadd.f32 %v2865, %v3056
      %v3171 = vadd.f32 %v2866, %v3059
      %v3172 = vadd.f32 %v2867, %v3064
      %v3173 = vadd.f32 %v2868, %v3067
      %v3174 = vadd.f32 %v2869, %v3072
      %v3175 = vadd.f32 %v2870, %v3075
      %v3176 = vadd.f32 %v2871, %v3080
      %v3177 = vadd.f32 %v2872, %v3083
      %v3178 = vadd.f32 %v2873, %v3088
      %v3179 = vadd.f32 %v2874, %v3091
      %v3180 = vadd.f32 %v2875, %v3096
      %v3181 = vadd.f32 %v2876, %v3099
      %v3182 = vadd.f32 %v2877, %v3104
      %v3183 = vadd.f32 %v2878, %v3107
      %v3184 = vadd.f32 %v2879, %v3112
      %v3185 = vadd.f32 %v2880, %v3115
      %v3186 = vadd.f32 %v2881, %v3120
      %v3187 = vadd.f32 %v2882, %v3123
      %v3188 = vadd.f32 %v2883, %v3128
      %v3189 = vadd.f32 %v2884, %v3131
      %v3190 = vadd.f32 %v2885, %v3136
      %v3191 = vadd.f32 %v2886, %v3139
      %v3192 = vadd.f32 %v2887, %v3144
      %v3193 = vadd.f32 %v2888, %v3147
      %v3194 = vadd.f32 %v2889, %v3152
      %v3195 = vadd.f32 %v2890, %v3155
      %v3196 = vadd.f32 %v2891, %v3160
      %v3197 = vadd.f32 %v2892, %v3163
      %v3198 = vld [vmem:[#allocation2 + $0x101] sm:$0xff]
      %v3199 = vld [vmem:[#allocation2 + $0x109] sm:$0xff]
      %v3200 = vld [vmem:[#allocation2 + $0x111] sm:$0xff]
      %v3201 = vld [vmem:[#allocation2 + $0x119] sm:$0xff]
      %v3202 = vld [vmem:[#allocation2 + $0x121] sm:$0xff]
      %v3203 = vld [vmem:[#allocation2 + $0x129] sm:$0xff]
      %v3204 = vld [vmem:[#allocation2 + $0x131] sm:$0xff]
      %v3205 = vld [vmem:[#allocation2 + $0x139] sm:$0xff]
      %v3206 = vld [vmem:[#allocation2 + $0x141] sm:$0xff]
      %v3207 = vld [vmem:[#allocation2 + $0x149] sm:$0xff]
      %v3208 = vld [vmem:[#allocation2 + $0x151] sm:$0xff]
      %v3209 = vld [vmem:[#allocation2 + $0x159] sm:$0xff]
      %v3210 = vld [vmem:[#allocation2 + $0x161] sm:$0xff]
      %v3211 = vld [vmem:[#allocation2 + $0x169] sm:$0xff]
      %v3212 = vld [vmem:[#allocation2 + $0x171] sm:$0xff]
      %v3213 = vld [vmem:[#allocation2 + $0x179] sm:$0xff]
      %v3214 = vld [vmem:[#allocation2 + $0x181] sm:$0xff]
      %v3215 = vld [vmem:[#allocation2 + $0x189] sm:$0xff]
      %v3216 = vld [vmem:[#allocation2 + $0x191] sm:$0xff]
      %v3217 = vld [vmem:[#allocation2 + $0x199] sm:$0xff]
      %v3218 = vld [vmem:[#allocation2 + $0x1a1] sm:$0xff]
      %v3219 = vld [vmem:[#allocation2 + $0x1a9] sm:$0xff]
      %v3220 = vld [vmem:[#allocation2 + $0x1b1] sm:$0xff]
      %v3221 = vld [vmem:[#allocation2 + $0x1b9] sm:$0xff]
      %v3222 = vld [vmem:[#allocation2 + $0x1c1] sm:$0xff]
      %v3223 = vld [vmem:[#allocation2 + $0x1c9] sm:$0xff]
      %v3224 = vld [vmem:[#allocation2 + $0x1d1] sm:$0xff]
      %v3225 = vld [vmem:[#allocation2 + $0x1d9] sm:$0xff]
      %v3226 = vld [vmem:[#allocation2 + $0x1e1] sm:$0xff]
      %v3227 = vld [vmem:[#allocation2 + $0x1e9] sm:$0xff]
      %v3228 = vld [vmem:[#allocation2 + $0x1f1] sm:$0xff]
      %v3229 = vld [vmem:[#allocation2 + $0x1f9] sm:$0xff]
      %v3230 = vpack.c.bf16 %v3199, %v3198
      %v3231 = vpack.c.bf16 %v3201, %v3200
      %v3232 = vpack.c.bf16 %v3203, %v3202
      %v3233 = vpack.c.bf16 %v3205, %v3204
      %v3234 = vpack.c.bf16 %v3207, %v3206
      %v3235 = vpack.c.bf16 %v3209, %v3208
      %v3236 = vpack.c.bf16 %v3211, %v3210
      %v3237 = vpack.c.bf16 %v3213, %v3212
      %v3238 = vpack.c.bf16 %v3215, %v3214
      %v3239 = vpack.c.bf16 %v3217, %v3216
      %v3240 = vpack.c.bf16 %v3219, %v3218
      %v3241 = vpack.c.bf16 %v3221, %v3220
      %v3242 = vpack.c.bf16 %v3223, %v3222
      %v3243 = vpack.c.bf16 %v3225, %v3224
      %v3244 = vpack.c.bf16 %v3227, %v3226
      %v3245 = vpack.c.bf16 %v3229, %v3228
      %v3246 = vld [vmem:[%s8 + $0x140] sm:$0xf]
      %v3247 = vld [vmem:[%s8 + $0x144] sm:$0xf]
      %v3248 = vld [vmem:[%s8 + $0x148] sm:$0xf]
      %v3249 = vld [vmem:[%s8 + $0x14c] sm:$0xf]
      %v3250 = vld [vmem:[%s8 + $0x150] sm:$0xf]
      %v3251 = vld [vmem:[%s8 + $0x154] sm:$0xf]
      %v3252 = vld [vmem:[%s8 + $0x158] sm:$0xf]
      %v3253 = vld [vmem:[%s8 + $0x15c] sm:$0xf]
      %v3254 = vld [vmem:[%s8 + $0x160] sm:$0xf]
      %v3255 = vld [vmem:[%s8 + $0x164] sm:$0xf]
      %v3256 = vld [vmem:[%s8 + $0x168] sm:$0xf]
      %v3257 = vld [vmem:[%s8 + $0x16c] sm:$0xf]
      %v3258 = vld [vmem:[%s8 + $0x170] sm:$0xf]
      %v3259 = vld [vmem:[%s8 + $0x174] sm:$0xf]
      %v3260 = vld [vmem:[%s8 + $0x178] sm:$0xf]
      %v3261 = vld [vmem:[%s8 + $0x17c] sm:$0xf]
      %v3278 = vunpack.c.l.b16 %v3246
      %v3279 = vunpack.c.l.b16 %v3247
      %v3280 = vunpack.c.l.b16 %v3248
      %v3281 = vunpack.c.l.b16 %v3249
      %v3282 = vunpack.c.l.b16 %v3250
      %v3283 = vunpack.c.l.b16 %v3251
      %v3284 = vunpack.c.l.b16 %v3252
      %v3285 = vunpack.c.l.b16 %v3253
      %v3286 = vunpack.c.l.b16 %v3254
      %v3287 = vunpack.c.l.b16 %v3255
      %v3288 = vunpack.c.l.b16 %v3256
      %v3289 = vunpack.c.l.b16 %v3257
      %v3290 = vunpack.c.l.b16 %v3258
      %v3291 = vunpack.c.l.b16 %v3259
      %v3292 = vunpack.c.l.b16 %v3260
      %v3293 = vunpack.c.l.b16 %v3261
      %v3294 = vpack.c.b16 %v3279, %v3278
      %v3295 = vpack.c.b16 %v3281, %v3280
      %v3296 = vpack.c.b16 %v3283, %v3282
      %v3297 = vpack.c.b16 %v3285, %v3284
      %v3298 = vpack.c.b16 %v3287, %v3286
      %v3299 = vpack.c.b16 %v3289, %v3288
      %v3300 = vpack.c.b16 %v3291, %v3290
      %v3301 = vpack.c.b16 %v3293, %v3292
      %3310 = vmatprep.subr.bf16.mxu0 0
      %3311 = vmatpush1.bf16.msra.mxu0 %v3301
      %3312 = vmatprep.subr.bf16.mxu0 0
      %3313 = vmatpush1.bf16.msra.mxu0 %v3300
      %3314 = vmatprep.subr.bf16.mxu0 0
      %3315 = vmatpush1.bf16.msra.mxu0 %v3299
      %3316 = vmatprep.subr.bf16.mxu0 0
      %3317 = vmatpush1.bf16.msra.mxu0 %v3298
      %3318 = vmatprep.subr.bf16.mxu0 0
      %3319 = vmatpush1.bf16.msra.mxu0 %v3297
      %3320 = vmatprep.subr.bf16.mxu0 0
      %3321 = vmatpush1.bf16.msra.mxu0 %v3296
      %3322 = vmatprep.subr.bf16.mxu0 0
      %3323 = vmatpush1.bf16.msra.mxu0 %v3295
      %3324 = vmatprep.subr.bf16.mxu0 0
      %3325 = vmatpush1.bf16.msra.mxu0 %v3294
      %3326 = vmatprep.subr.bf16.mxu0 0
      %3327 = vmatpush2.bf16.msra.mxu0 0
      %3328 = vmatprep.subr.bf16.mxu0 0
      %3329 = vmatpush2.bf16.msra.mxu0 0
      %3330 = vmatprep.subr.bf16.mxu0 0
      %3331 = vmatpush2.bf16.msra.mxu0 0
      %3332 = vmatprep.subr.bf16.mxu0 0
      %3333 = vmatpush2.bf16.msra.mxu0 0
      %3334 = vmatprep.subr.bf16.mxu0 0
      %3335 = vmatpush2.bf16.msra.mxu0 0
      %3336 = vmatprep.subr.bf16.mxu0 0
      %3337 = vmatpush2.bf16.msra.mxu0 0
      %3338 = vmatprep.subr.bf16.mxu0 0
      %3339 = vmatpush2.bf16.msra.mxu0 0
      %3340 = vmatprep.subr.bf16.mxu0 0
      %3341 = vmatpush2.bf16.msra.mxu0 0
      %3342 = vmatprep.mubr.bf16.mxu0 0
      %3343 = vmatmul.mubr.bf16.gmra.mxu0 %v3230
      %v3344 = vpop.f32.mrf.mxu0
      %v3345 = vadd.f32 0.0, %v3344
      %v3346 = vpop.f32.mrf.mxu0
      %v3347 = vpop.f32.mrf.mxu0
      %v3348 = vadd.f32 0.0, %v3347
      %v3349 = vpop.f32.mrf.mxu0
      %3350 = vmatprep.mubr.bf16.mxu0 0
      %3351 = vmatmul.mubr.bf16.gmra.mxu0 %v3231
      %v3352 = vpop.f32.mrf.mxu0
      %v3353 = vadd.f32 0.0, %v3352
      %v3354 = vpop.f32.mrf.mxu0
      %v3355 = vpop.f32.mrf.mxu0
      %v3356 = vadd.f32 0.0, %v3355
      %v3357 = vpop.f32.mrf.mxu0
      %3358 = vmatprep.mubr.bf16.mxu0 0
      %3359 = vmatmul.mubr.bf16.gmra.mxu0 %v3232
      %v3360 = vpop.f32.mrf.mxu0
      %v3361 = vadd.f32 0.0, %v3360
      %v3362 = vpop.f32.mrf.mxu0
      %v3363 = vpop.f32.mrf.mxu0
      %v3364 = vadd.f32 0.0, %v3363
      %v3365 = vpop.f32.mrf.mxu0
      %3366 = vmatprep.mubr.bf16.mxu0 0
      %3367 = vmatmul.mubr.bf16.gmra.mxu0 %v3233
      %v3368 = vpop.f32.mrf.mxu0
      %v3369 = vadd.f32 0.0, %v3368
      %v3370 = vpop.f32.mrf.mxu0
      %v3371 = vpop.f32.mrf.mxu0
      %v3372 = vadd.f32 0.0, %v3371
      %v3373 = vpop.f32.mrf.mxu0
      %3374 = vmatprep.mubr.bf16.mxu0 0
      %3375 = vmatmul.mubr.bf16.gmra.mxu0 %v3234
      %v3376 = vpop.f32.mrf.mxu0
      %v3377 = vadd.f32 0.0, %v3376
      %v3378 = vpop.f32.mrf.mxu0
      %v3379 = vpop.f32.mrf.mxu0
      %v3380 = vadd.f32 0.0, %v3379
      %v3381 = vpop.f32.mrf.mxu0
      %3382 = vmatprep.mubr.bf16.mxu0 0
      %3383 = vmatmul.mubr.bf16.gmra.mxu0 %v3235
      %v3384 = vpop.f32.mrf.mxu0
      %v3385 = vadd.f32 0.0, %v3384
      %v3386 = vpop.f32.mrf.mxu0
      %v3387 = vpop.f32.mrf.mxu0
      %v3388 = vadd.f32 0.0, %v3387
      %v3389 = vpop.f32.mrf.mxu0
      %3390 = vmatprep.mubr.bf16.mxu0 0
      %3391 = vmatmul.mubr.bf16.gmra.mxu0 %v3236
      %v3392 = vpop.f32.mrf.mxu0
      %v3393 = vadd.f32 0.0, %v3392
      %v3394 = vpop.f32.mrf.mxu0
      %v3395 = vpop.f32.mrf.mxu0
      %v3396 = vadd.f32 0.0, %v3395
      %v3397 = vpop.f32.mrf.mxu0
      %3398 = vmatprep.mubr.bf16.mxu0 0
      %3399 = vmatmul.mubr.bf16.gmra.mxu0 %v3237
      %v3400 = vpop.f32.mrf.mxu0
      %v3401 = vadd.f32 0.0, %v3400
      %v3402 = vpop.f32.mrf.mxu0
      %v3403 = vpop.f32.mrf.mxu0
      %v3404 = vadd.f32 0.0, %v3403
      %v3405 = vpop.f32.mrf.mxu0
      %3406 = vmatprep.mubr.bf16.mxu0 0
      %3407 = vmatmul.mubr.bf16.gmra.mxu0 %v3238
      %v3408 = vpop.f32.mrf.mxu0
      %v3409 = vadd.f32 0.0, %v3408
      %v3410 = vpop.f32.mrf.mxu0
      %v3411 = vpop.f32.mrf.mxu0
      %v3412 = vadd.f32 0.0, %v3411
      %v3413 = vpop.f32.mrf.mxu0
      %3414 = vmatprep.mubr.bf16.mxu0 0
      %3415 = vmatmul.mubr.bf16.gmra.mxu0 %v3239
      %v3416 = vpop.f32.mrf.mxu0
      %v3417 = vadd.f32 0.0, %v3416
      %v3418 = vpop.f32.mrf.mxu0
      %v3419 = vpop.f32.mrf.mxu0
      %v3420 = vadd.f32 0.0, %v3419
      %v3421 = vpop.f32.mrf.mxu0
      %3422 = vmatprep.mubr.bf16.mxu0 0
      %3423 = vmatmul.mubr.bf16.gmra.mxu0 %v3240
      %v3424 = vpop.f32.mrf.mxu0
      %v3425 = vadd.f32 0.0, %v3424
      %v3426 = vpop.f32.mrf.mxu0
      %v3427 = vpop.f32.mrf.mxu0
      %v3428 = vadd.f32 0.0, %v3427
      %v3429 = vpop.f32.mrf.mxu0
      %3430 = vmatprep.mubr.bf16.mxu0 0
      %3431 = vmatmul.mubr.bf16.gmra.mxu0 %v3241
      %v3432 = vpop.f32.mrf.mxu0
      %v3433 = vadd.f32 0.0, %v3432
      %v3434 = vpop.f32.mrf.mxu0
      %v3435 = vpop.f32.mrf.mxu0
      %v3436 = vadd.f32 0.0, %v3435
      %v3437 = vpop.f32.mrf.mxu0
      %3438 = vmatprep.mubr.bf16.mxu0 0
      %3439 = vmatmul.mubr.bf16.gmra.mxu0 %v3242
      %v3440 = vpop.f32.mrf.mxu0
      %v3441 = vadd.f32 0.0, %v3440
      %v3442 = vpop.f32.mrf.mxu0
      %v3443 = vpop.f32.mrf.mxu0
      %v3444 = vadd.f32 0.0, %v3443
      %v3445 = vpop.f32.mrf.mxu0
      %3446 = vmatprep.mubr.bf16.mxu0 0
      %3447 = vmatmul.mubr.bf16.gmra.mxu0 %v3243
      %v3448 = vpop.f32.mrf.mxu0
      %v3449 = vadd.f32 0.0, %v3448
      %v3450 = vpop.f32.mrf.mxu0
      %v3451 = vpop.f32.mrf.mxu0
      %v3452 = vadd.f32 0.0, %v3451
      %v3453 = vpop.f32.mrf.mxu0
      %3454 = vmatprep.mubr.bf16.mxu0 0
      %3455 = vmatmul.mubr.bf16.gmra.mxu0 %v3244
      %v3456 = vpop.f32.mrf.mxu0
      %v3457 = vadd.f32 0.0, %v3456
      %v3458 = vpop.f32.mrf.mxu0
      %v3459 = vpop.f32.mrf.mxu0
      %v3460 = vadd.f32 0.0, %v3459
      %v3461 = vpop.f32.mrf.mxu0
      %3462 = vmatprep.mubr.bf16.mxu0 0
      %3463 = vmatmul.mubr.bf16.gmra.mxu0 %v3245
      %v3464 = vpop.f32.mrf.mxu0
      %v3465 = vadd.f32 0.0, %v3464
      %v3466 = vpop.f32.mrf.mxu0
      %v3467 = vpop.f32.mrf.mxu0
      %v3468 = vadd.f32 0.0, %v3467
      %v3469 = vpop.f32.mrf.mxu0
      %3470 = vdwg.mxu0
      %v3471 = vadd.f32 %v3166, %v3345
      %v3472 = vadd.f32 %v3167, %v3348
      %v3473 = vadd.f32 %v3168, %v3353
      %v3474 = vadd.f32 %v3169, %v3356
      %v3475 = vadd.f32 %v3170, %v3361
      %v3476 = vadd.f32 %v3171, %v3364
      %v3477 = vadd.f32 %v3172, %v3369
      %v3478 = vadd.f32 %v3173, %v3372
      %v3479 = vadd.f32 %v3174, %v3377
      %v3480 = vadd.f32 %v3175, %v3380
      %v3481 = vadd.f32 %v3176, %v3385
      %v3482 = vadd.f32 %v3177, %v3388
      %v3483 = vadd.f32 %v3178, %v3393
      %v3484 = vadd.f32 %v3179, %v3396
      %v3485 = vadd.f32 %v3180, %v3401
      %v3486 = vadd.f32 %v3181, %v3404
      %v3487 = vadd.f32 %v3182, %v3409
      %v3488 = vadd.f32 %v3183, %v3412
      %v3489 = vadd.f32 %v3184, %v3417
      %v3490 = vadd.f32 %v3185, %v3420
      %v3491 = vadd.f32 %v3186, %v3425
      %v3492 = vadd.f32 %v3187, %v3428
      %v3493 = vadd.f32 %v3188, %v3433
      %v3494 = vadd.f32 %v3189, %v3436
      %v3495 = vadd.f32 %v3190, %v3441
      %v3496 = vadd.f32 %v3191, %v3444
      %v3497 = vadd.f32 %v3192, %v3449
      %v3498 = vadd.f32 %v3193, %v3452
      %v3499 = vadd.f32 %v3194, %v3457
      %v3500 = vadd.f32 %v3195, %v3460
      %v3501 = vadd.f32 %v3196, %v3465
      %v3502 = vadd.f32 %v3197, %v3468
      %v3503 = vld [vmem:[#allocation2 + $0x111] sm:$0xff]
      %v3504 = vld [vmem:[#allocation2 + $0x119] sm:$0xff]
      %v3505 = vld [vmem:[#allocation2 + $0x121] sm:$0xff]
      %v3506 = vld [vmem:[#allocation2 + $0x129] sm:$0xff]
      %v3507 = vld [vmem:[#allocation2 + $0x131] sm:$0xff]
      %v3508 = vld [vmem:[#allocation2 + $0x139] sm:$0xff]
      %v3509 = vld [vmem:[#allocation2 + $0x141] sm:$0xff]
      %v3510 = vld [vmem:[#allocation2 + $0x149] sm:$0xff]
      %v3511 = vld [vmem:[#allocation2 + $0x151] sm:$0xff]
      %v3512 = vld [vmem:[#allocation2 + $0x159] sm:$0xff]
      %v3513 = vld [vmem:[#allocation2 + $0x161] sm:$0xff]
      %v3514 = vld [vmem:[#allocation2 + $0x169] sm:$0xff]
      %v3515 = vld [vmem:[#allocation2 + $0x171] sm:$0xff]
      %v3516 = vld [vmem:[#allocation2 + $0x179] sm:$0xff]
      %v3517 = vld [vmem:[#allocation2 + $0x181] sm:$0xff]
      %v3518 = vld [vmem:[#allocation2 + $0x189] sm:$0xff]
      %v3519 = vld [vmem:[#allocation2 + $0x191] sm:$0xff]
      %v3520 = vld [vmem:[#allocation2 + $0x199] sm:$0xff]
      %v3521 = vld [vmem:[#allocation2 + $0x1a1] sm:$0xff]
      %v3522 = vld [vmem:[#allocation2 + $0x1a9] sm:$0xff]
      %v3523 = vld [vmem:[#allocation2 + $0x1b1] sm:$0xff]
      %v3524 = vld [vmem:[#allocation2 + $0x1b9] sm:$0xff]
      %v3525 = vld [vmem:[#allocation2 + $0x1c1] sm:$0xff]
      %v3526 = vld [vmem:[#allocation2 + $0x1c9] sm:$0xff]
      %v3527 = vld [vmem:[#allocation2 + $0x1d1] sm:$0xff]
      %v3528 = vld [vmem:[#allocation2 + $0x1d9] sm:$0xff]
      %v3529 = vld [vmem:[#allocation2 + $0x1e1] sm:$0xff]
      %v3530 = vld [vmem:[#allocation2 + $0x1e9] sm:$0xff]
      %v3531 = vld [vmem:[#allocation2 + $0x1f1] sm:$0xff]
      %v3532 = vld [vmem:[#allocation2 + $0x1f9] sm:$0xff]
      %v3533 = vld [vmem:[#allocation2 + $0x201] sm:$0xff]
      %v3534 = vld [vmem:[#allocation2 + $0x209] sm:$0xff]
      %v3535 = vpack.c.bf16 %v3504, %v3503
      %v3536 = vpack.c.bf16 %v3506, %v3505
      %v3537 = vpack.c.bf16 %v3508, %v3507
      %v3538 = vpack.c.bf16 %v3510, %v3509
      %v3539 = vpack.c.bf16 %v3512, %v3511
      %v3540 = vpack.c.bf16 %v3514, %v3513
      %v3541 = vpack.c.bf16 %v3516, %v3515
      %v3542 = vpack.c.bf16 %v3518, %v3517
      %v3543 = vpack.c.bf16 %v3520, %v3519
      %v3544 = vpack.c.bf16 %v3522, %v3521
      %v3545 = vpack.c.bf16 %v3524, %v3523
      %v3546 = vpack.c.bf16 %v3526, %v3525
      %v3547 = vpack.c.bf16 %v3528, %v3527
      %v3548 = vpack.c.bf16 %v3530, %v3529
      %v3549 = vpack.c.bf16 %v3532, %v3531
      %v3550 = vpack.c.bf16 %v3534, %v3533
      %v3551 = vld [vmem:[%s8 + $0x180] sm:$0xf]
      %v3552 = vld [vmem:[%s8 + $0x184] sm:$0xf]
      %v3553 = vld [vmem:[%s8 + $0x188] sm:$0xf]
      %v3554 = vld [vmem:[%s8 + $0x18c] sm:$0xf]
      %v3555 = vld [vmem:[%s8 + $0x190] sm:$0xf]
      %v3556 = vld [vmem:[%s8 + $0x194] sm:$0xf]
      %v3557 = vld [vmem:[%s8 + $0x198] sm:$0xf]
      %v3558 = vld [vmem:[%s8 + $0x19c] sm:$0xf]
      %v3559 = vld [vmem:[%s8 + $0x1a0] sm:$0xf]
      %v3560 = vld [vmem:[%s8 + $0x1a4] sm:$0xf]
      %v3561 = vld [vmem:[%s8 + $0x1a8] sm:$0xf]
      %v3562 = vld [vmem:[%s8 + $0x1ac] sm:$0xf]
      %v3563 = vld [vmem:[%s8 + $0x1b0] sm:$0xf]
      %v3564 = vld [vmem:[%s8 + $0x1b4] sm:$0xf]
      %v3565 = vld [vmem:[%s8 + $0x1b8] sm:$0xf]
      %v3566 = vld [vmem:[%s8 + $0x1bc] sm:$0xf]
      %v3583 = vunpack.c.l.b16 %v3551
      %v3584 = vunpack.c.l.b16 %v3552
      %v3585 = vunpack.c.l.b16 %v3553
      %v3586 = vunpack.c.l.b16 %v3554
      %v3587 = vunpack.c.l.b16 %v3555
      %v3588 = vunpack.c.l.b16 %v3556
      %v3589 = vunpack.c.l.b16 %v3557
      %v3590 = vunpack.c.l.b16 %v3558
      %v3591 = vunpack.c.l.b16 %v3559
      %v3592 = vunpack.c.l.b16 %v3560
      %v3593 = vunpack.c.l.b16 %v3561
      %v3594 = vunpack.c.l.b16 %v3562
      %v3595 = vunpack.c.l.b16 %v3563
      %v3596 = vunpack.c.l.b16 %v3564
      %v3597 = vunpack.c.l.b16 %v3565
      %v3598 = vunpack.c.l.b16 %v3566
      %v3599 = vpack.c.b16 %v3584, %v3583
      %v3600 = vpack.c.b16 %v3586, %v3585
      %v3601 = vpack.c.b16 %v3588, %v3587
      %v3602 = vpack.c.b16 %v3590, %v3589
      %v3603 = vpack.c.b16 %v3592, %v3591
      %v3604 = vpack.c.b16 %v3594, %v3593
      %v3605 = vpack.c.b16 %v3596, %v3595
      %v3606 = vpack.c.b16 %v3598, %v3597
      %3615 = vmatprep.subr.bf16.mxu0 0
      %3616 = vmatpush1.bf16.msra.mxu0 %v3606
      %3617 = vmatprep.subr.bf16.mxu0 0
      %3618 = vmatpush1.bf16.msra.mxu0 %v3605
      %3619 = vmatprep.subr.bf16.mxu0 0
      %3620 = vmatpush1.bf16.msra.mxu0 %v3604
      %3621 = vmatprep.subr.bf16.mxu0 0
      %3622 = vmatpush1.bf16.msra.mxu0 %v3603
      %3623 = vmatprep.subr.bf16.mxu0 0
      %3624 = vmatpush1.bf16.msra.mxu0 %v3602
      %3625 = vmatprep.subr.bf16.mxu0 0
      %3626 = vmatpush1.bf16.msra.mxu0 %v3601
      %3627 = vmatprep.subr.bf16.mxu0 0
      %3628 = vmatpush1.bf16.msra.mxu0 %v3600
      %3629 = vmatprep.subr.bf16.mxu0 0
      %3630 = vmatpush1.bf16.msra.mxu0 %v3599
      %3631 = vmatprep.subr.bf16.mxu0 0
      %3632 = vmatpush2.bf16.msra.mxu0 0
      %3633 = vmatprep.subr.bf16.mxu0 0
      %3634 = vmatpush2.bf16.msra.mxu0 0
      %3635 = vmatprep.subr.bf16.mxu0 0
      %3636 = vmatpush2.bf16.msra.mxu0 0
      %3637 = vmatprep.subr.bf16.mxu0 0
      %3638 = vmatpush2.bf16.msra.mxu0 0
      %3639 = vmatprep.subr.bf16.mxu0 0
      %3640 = vmatpush2.bf16.msra.mxu0 0
      %3641 = vmatprep.subr.bf16.mxu0 0
      %3642 = vmatpush2.bf16.msra.mxu0 0
      %3643 = vmatprep.subr.bf16.mxu0 0
      %3644 = vmatpush2.bf16.msra.mxu0 0
      %3645 = vmatprep.subr.bf16.mxu0 0
      %3646 = vmatpush2.bf16.msra.mxu0 0
      %3647 = vmatprep.mubr.bf16.mxu0 0
      %3648 = vmatmul.mubr.bf16.gmra.mxu0 %v3535
      %v3649 = vpop.f32.mrf.mxu0
      %v3650 = vadd.f32 0.0, %v3649
      %v3651 = vpop.f32.mrf.mxu0
      %v3652 = vpop.f32.mrf.mxu0
      %v3653 = vadd.f32 0.0, %v3652
      %v3654 = vpop.f32.mrf.mxu0
      %3655 = vmatprep.mubr.bf16.mxu0 0
      %3656 = vmatmul.mubr.bf16.gmra.mxu0 %v3536
      %v3657 = vpop.f32.mrf.mxu0
      %v3658 = vadd.f32 0.0, %v3657
      %v3659 = vpop.f32.mrf.mxu0
      %v3660 = vpop.f32.mrf.mxu0
      %v3661 = vadd.f32 0.0, %v3660
      %v3662 = vpop.f32.mrf.mxu0
      %3663 = vmatprep.mubr.bf16.mxu0 0
      %3664 = vmatmul.mubr.bf16.gmra.mxu0 %v3537
      %v3665 = vpop.f32.mrf.mxu0
      %v3666 = vadd.f32 0.0, %v3665
      %v3667 = vpop.f32.mrf.mxu0
      %v3668 = vpop.f32.mrf.mxu0
      %v3669 = vadd.f32 0.0, %v3668
      %v3670 = vpop.f32.mrf.mxu0
      %3671 = vmatprep.mubr.bf16.mxu0 0
      %3672 = vmatmul.mubr.bf16.gmra.mxu0 %v3538
      %v3673 = vpop.f32.mrf.mxu0
      %v3674 = vadd.f32 0.0, %v3673
      %v3675 = vpop.f32.mrf.mxu0
      %v3676 = vpop.f32.mrf.mxu0
      %v3677 = vadd.f32 0.0, %v3676
      %v3678 = vpop.f32.mrf.mxu0
      %3679 = vmatprep.mubr.bf16.mxu0 0
      %3680 = vmatmul.mubr.bf16.gmra.mxu0 %v3539
      %v3681 = vpop.f32.mrf.mxu0
      %v3682 = vadd.f32 0.0, %v3681
      %v3683 = vpop.f32.mrf.mxu0
      %v3684 = vpop.f32.mrf.mxu0
      %v3685 = vadd.f32 0.0, %v3684
      %v3686 = vpop.f32.mrf.mxu0
      %3687 = vmatprep.mubr.bf16.mxu0 0
      %3688 = vmatmul.mubr.bf16.gmra.mxu0 %v3540
      %v3689 = vpop.f32.mrf.mxu0
      %v3690 = vadd.f32 0.0, %v3689
      %v3691 = vpop.f32.mrf.mxu0
      %v3692 = vpop.f32.mrf.mxu0
      %v3693 = vadd.f32 0.0, %v3692
      %v3694 = vpop.f32.mrf.mxu0
      %3695 = vmatprep.mubr.bf16.mxu0 0
      %3696 = vmatmul.mubr.bf16.gmra.mxu0 %v3541
      %v3697 = vpop.f32.mrf.mxu0
      %v3698 = vadd.f32 0.0, %v3697
      %v3699 = vpop.f32.mrf.mxu0
      %v3700 = vpop.f32.mrf.mxu0
      %v3701 = vadd.f32 0.0, %v3700
      %v3702 = vpop.f32.mrf.mxu0
      %3703 = vmatprep.mubr.bf16.mxu0 0
      %3704 = vmatmul.mubr.bf16.gmra.mxu0 %v3542
      %v3705 = vpop.f32.mrf.mxu0
      %v3706 = vadd.f32 0.0, %v3705
      %v3707 = vpop.f32.mrf.mxu0
      %v3708 = vpop.f32.mrf.mxu0
      %v3709 = vadd.f32 0.0, %v3708
      %v3710 = vpop.f32.mrf.mxu0
      %3711 = vmatprep.mubr.bf16.mxu0 0
      %3712 = vmatmul.mubr.bf16.gmra.mxu0 %v3543
      %v3713 = vpop.f32.mrf.mxu0
      %v3714 = vadd.f32 0.0, %v3713
      %v3715 = vpop.f32.mrf.mxu0
      %v3716 = vpop.f32.mrf.mxu0
      %v3717 = vadd.f32 0.0, %v3716
      %v3718 = vpop.f32.mrf.mxu0
      %3719 = vmatprep.mubr.bf16.mxu0 0
      %3720 = vmatmul.mubr.bf16.gmra.mxu0 %v3544
      %v3721 = vpop.f32.mrf.mxu0
      %v3722 = vadd.f32 0.0, %v3721
      %v3723 = vpop.f32.mrf.mxu0
      %v3724 = vpop.f32.mrf.mxu0
      %v3725 = vadd.f32 0.0, %v3724
      %v3726 = vpop.f32.mrf.mxu0
      %3727 = vmatprep.mubr.bf16.mxu0 0
      %3728 = vmatmul.mubr.bf16.gmra.mxu0 %v3545
      %v3729 = vpop.f32.mrf.mxu0
      %v3730 = vadd.f32 0.0, %v3729
      %v3731 = vpop.f32.mrf.mxu0
      %v3732 = vpop.f32.mrf.mxu0
      %v3733 = vadd.f32 0.0, %v3732
      %v3734 = vpop.f32.mrf.mxu0
      %3735 = vmatprep.mubr.bf16.mxu0 0
      %3736 = vmatmul.mubr.bf16.gmra.mxu0 %v3546
      %v3737 = vpop.f32.mrf.mxu0
      %v3738 = vadd.f32 0.0, %v3737
      %v3739 = vpop.f32.mrf.mxu0
      %v3740 = vpop.f32.mrf.mxu0
      %v3741 = vadd.f32 0.0, %v3740
      %v3742 = vpop.f32.mrf.mxu0
      %3743 = vmatprep.mubr.bf16.mxu0 0
      %3744 = vmatmul.mubr.bf16.gmra.mxu0 %v3547
      %v3745 = vpop.f32.mrf.mxu0
      %v3746 = vadd.f32 0.0, %v3745
      %v3747 = vpop.f32.mrf.mxu0
      %v3748 = vpop.f32.mrf.mxu0
      %v3749 = vadd.f32 0.0, %v3748
      %v3750 = vpop.f32.mrf.mxu0
      %3751 = vmatprep.mubr.bf16.mxu0 0
      %3752 = vmatmul.mubr.bf16.gmra.mxu0 %v3548
      %v3753 = vpop.f32.mrf.mxu0
      %v3754 = vadd.f32 0.0, %v3753
      %v3755 = vpop.f32.mrf.mxu0
      %v3756 = vpop.f32.mrf.mxu0
      %v3757 = vadd.f32 0.0, %v3756
      %v3758 = vpop.f32.mrf.mxu0
      %3759 = vmatprep.mubr.bf16.mxu0 0
      %3760 = vmatmul.mubr.bf16.gmra.mxu0 %v3549
      %v3761 = vpop.f32.mrf.mxu0
      %v3762 = vadd.f32 0.0, %v3761
      %v3763 = vpop.f32.mrf.mxu0
      %v3764 = vpop.f32.mrf.mxu0
      %v3765 = vadd.f32 0.0, %v3764
      %v3766 = vpop.f32.mrf.mxu0
      %3767 = vmatprep.mubr.bf16.mxu0 0
      %3768 = vmatmul.mubr.bf16.gmra.mxu0 %v3550
      %v3769 = vpop.f32.mrf.mxu0
      %v3770 = vadd.f32 0.0, %v3769
      %v3771 = vpop.f32.mrf.mxu0
      %v3772 = vpop.f32.mrf.mxu0
      %v3773 = vadd.f32 0.0, %v3772
      %v3774 = vpop.f32.mrf.mxu0
      %3775 = vdwg.mxu0
      %v3776 = vadd.f32 %v3471, %v3650
      %v3777 = vadd.f32 %v3472, %v3653
      %v3778 = vadd.f32 %v3473, %v3658
      %v3779 = vadd.f32 %v3474, %v3661
      %v3780 = vadd.f32 %v3475, %v3666
      %v3781 = vadd.f32 %v3476, %v3669
      %v3782 = vadd.f32 %v3477, %v3674
      %v3783 = vadd.f32 %v3478, %v3677
      %v3784 = vadd.f32 %v3479, %v3682
      %v3785 = vadd.f32 %v3480, %v3685
      %v3786 = vadd.f32 %v3481, %v3690
      %v3787 = vadd.f32 %v3482, %v3693
      %v3788 = vadd.f32 %v3483, %v3698
      %v3789 = vadd.f32 %v3484, %v3701
      %v3790 = vadd.f32 %v3485, %v3706
      %v3791 = vadd.f32 %v3486, %v3709
      %v3792 = vadd.f32 %v3487, %v3714
      %v3793 = vadd.f32 %v3488, %v3717
      %v3794 = vadd.f32 %v3489, %v3722
      %v3795 = vadd.f32 %v3490, %v3725
      %v3796 = vadd.f32 %v3491, %v3730
      %v3797 = vadd.f32 %v3492, %v3733
      %v3798 = vadd.f32 %v3493, %v3738
      %v3799 = vadd.f32 %v3494, %v3741
      %v3800 = vadd.f32 %v3495, %v3746
      %v3801 = vadd.f32 %v3496, %v3749
      %v3802 = vadd.f32 %v3497, %v3754
      %v3803 = vadd.f32 %v3498, %v3757
      %v3804 = vadd.f32 %v3499, %v3762
      %v3805 = vadd.f32 %v3500, %v3765
      %v3806 = vadd.f32 %v3501, %v3770
      %v3807 = vadd.f32 %v3502, %v3773
      %v3808 = vld [vmem:[#allocation2 + $0x112] sm:$0xff]
      %v3809 = vld [vmem:[#allocation2 + $0x11a] sm:$0xff]
      %v3810 = vld [vmem:[#allocation2 + $0x122] sm:$0xff]
      %v3811 = vld [vmem:[#allocation2 + $0x12a] sm:$0xff]
      %v3812 = vld [vmem:[#allocation2 + $0x132] sm:$0xff]
      %v3813 = vld [vmem:[#allocation2 + $0x13a] sm:$0xff]
      %v3814 = vld [vmem:[#allocation2 + $0x142] sm:$0xff]
      %v3815 = vld [vmem:[#allocation2 + $0x14a] sm:$0xff]
      %v3816 = vld [vmem:[#allocation2 + $0x152] sm:$0xff]
      %v3817 = vld [vmem:[#allocation2 + $0x15a] sm:$0xff]
      %v3818 = vld [vmem:[#allocation2 + $0x162] sm:$0xff]
      %v3819 = vld [vmem:[#allocation2 + $0x16a] sm:$0xff]
      %v3820 = vld [vmem:[#allocation2 + $0x172] sm:$0xff]
      %v3821 = vld [vmem:[#allocation2 + $0x17a] sm:$0xff]
      %v3822 = vld [vmem:[#allocation2 + $0x182] sm:$0xff]
      %v3823 = vld [vmem:[#allocation2 + $0x18a] sm:$0xff]
      %v3824 = vld [vmem:[#allocation2 + $0x192] sm:$0xff]
      %v3825 = vld [vmem:[#allocation2 + $0x19a] sm:$0xff]
      %v3826 = vld [vmem:[#allocation2 + $0x1a2] sm:$0xff]
      %v3827 = vld [vmem:[#allocation2 + $0x1aa] sm:$0xff]
      %v3828 = vld [vmem:[#allocation2 + $0x1b2] sm:$0xff]
      %v3829 = vld [vmem:[#allocation2 + $0x1ba] sm:$0xff]
      %v3830 = vld [vmem:[#allocation2 + $0x1c2] sm:$0xff]
      %v3831 = vld [vmem:[#allocation2 + $0x1ca] sm:$0xff]
      %v3832 = vld [vmem:[#allocation2 + $0x1d2] sm:$0xff]
      %v3833 = vld [vmem:[#allocation2 + $0x1da] sm:$0xff]
      %v3834 = vld [vmem:[#allocation2 + $0x1e2] sm:$0xff]
      %v3835 = vld [vmem:[#allocation2 + $0x1ea] sm:$0xff]
      %v3836 = vld [vmem:[#allocation2 + $0x1f2] sm:$0xff]
      %v3837 = vld [vmem:[#allocation2 + $0x1fa] sm:$0xff]
      %v3838 = vld [vmem:[#allocation2 + $0x202] sm:$0xff]
      %v3839 = vld [vmem:[#allocation2 + $0x20a] sm:$0xff]
      %v3840 = vpack.c.bf16 %v3809, %v3808
      %v3841 = vpack.c.bf16 %v3811, %v3810
      %v3842 = vpack.c.bf16 %v3813, %v3812
      %v3843 = vpack.c.bf16 %v3815, %v3814
      %v3844 = vpack.c.bf16 %v3817, %v3816
      %v3845 = vpack.c.bf16 %v3819, %v3818
      %v3846 = vpack.c.bf16 %v3821, %v3820
      %v3847 = vpack.c.bf16 %v3823, %v3822
      %v3848 = vpack.c.bf16 %v3825, %v3824
      %v3849 = vpack.c.bf16 %v3827, %v3826
      %v3850 = vpack.c.bf16 %v3829, %v3828
      %v3851 = vpack.c.bf16 %v3831, %v3830
      %v3852 = vpack.c.bf16 %v3833, %v3832
      %v3853 = vpack.c.bf16 %v3835, %v3834
      %v3854 = vpack.c.bf16 %v3837, %v3836
      %v3855 = vpack.c.bf16 %v3839, %v3838
      %v3856 = vld [vmem:[%s8 + $0x1c0] sm:$0xf]
      %v3857 = vld [vmem:[%s8 + $0x1c4] sm:$0xf]
      %v3858 = vld [vmem:[%s8 + $0x1c8] sm:$0xf]
      %v3859 = vld [vmem:[%s8 + $0x1cc] sm:$0xf]
      %v3860 = vld [vmem:[%s8 + $0x1d0] sm:$0xf]
      %v3861 = vld [vmem:[%s8 + $0x1d4] sm:$0xf]
      %v3862 = vld [vmem:[%s8 + $0x1d8] sm:$0xf]
      %v3863 = vld [vmem:[%s8 + $0x1dc] sm:$0xf]
      %v3864 = vld [vmem:[%s8 + $0x1e0] sm:$0xf]
      %v3865 = vld [vmem:[%s8 + $0x1e4] sm:$0xf]
      %v3866 = vld [vmem:[%s8 + $0x1e8] sm:$0xf]
      %v3867 = vld [vmem:[%s8 + $0x1ec] sm:$0xf]
      %v3868 = vld [vmem:[%s8 + $0x1f0] sm:$0xf]
      %v3869 = vld [vmem:[%s8 + $0x1f4] sm:$0xf]
      %v3870 = vld [vmem:[%s8 + $0x1f8] sm:$0xf]
      %v3871 = vld [vmem:[%s8 + $0x1fc] sm:$0xf]
      %v3888 = vunpack.c.l.b16 %v3856
      %v3889 = vunpack.c.l.b16 %v3857
      %v3890 = vunpack.c.l.b16 %v3858
      %v3891 = vunpack.c.l.b16 %v3859
      %v3892 = vunpack.c.l.b16 %v3860
      %v3893 = vunpack.c.l.b16 %v3861
      %v3894 = vunpack.c.l.b16 %v3862
      %v3895 = vunpack.c.l.b16 %v3863
      %v3896 = vunpack.c.l.b16 %v3864
      %v3897 = vunpack.c.l.b16 %v3865
      %v3898 = vunpack.c.l.b16 %v3866
      %v3899 = vunpack.c.l.b16 %v3867
      %v3900 = vunpack.c.l.b16 %v3868
      %v3901 = vunpack.c.l.b16 %v3869
      %v3902 = vunpack.c.l.b16 %v3870
      %v3903 = vunpack.c.l.b16 %v3871
      %v3904 = vpack.c.b16 %v3889, %v3888
      %v3905 = vpack.c.b16 %v3891, %v3890
      %v3906 = vpack.c.b16 %v3893, %v3892
      %v3907 = vpack.c.b16 %v3895, %v3894
      %v3908 = vpack.c.b16 %v3897, %v3896
      %v3909 = vpack.c.b16 %v3899, %v3898
      %v3910 = vpack.c.b16 %v3901, %v3900
      %v3911 = vpack.c.b16 %v3903, %v3902
      %3920 = vmatprep.subr.bf16.mxu0 0
      %3921 = vmatpush1.bf16.msra.mxu0 %v3911
      %3922 = vmatprep.subr.bf16.mxu0 0
      %3923 = vmatpush1.bf16.msra.mxu0 %v3910
      %3924 = vmatprep.subr.bf16.mxu0 0
      %3925 = vmatpush1.bf16.msra.mxu0 %v3909
      %3926 = vmatprep.subr.bf16.mxu0 0
      %3927 = vmatpush1.bf16.msra.mxu0 %v3908
      %3928 = vmatprep.subr.bf16.mxu0 0
      %3929 = vmatpush1.bf16.msra.mxu0 %v3907
      %3930 = vmatprep.subr.bf16.mxu0 0
      %3931 = vmatpush1.bf16.msra.mxu0 %v3906
      %3932 = vmatprep.subr.bf16.mxu0 0
      %3933 = vmatpush1.bf16.msra.mxu0 %v3905
      %3934 = vmatprep.subr.bf16.mxu0 0
      %3935 = vmatpush1.bf16.msra.mxu0 %v3904
      %3936 = vmatprep.subr.bf16.mxu0 0
      %3937 = vmatpush2.bf16.msra.mxu0 0
      %3938 = vmatprep.subr.bf16.mxu0 0
      %3939 = vmatpush2.bf16.msra.mxu0 0
      %3940 = vmatprep.subr.bf16.mxu0 0
      %3941 = vmatpush2.bf16.msra.mxu0 0
      %3942 = vmatprep.subr.bf16.mxu0 0
      %3943 = vmatpush2.bf16.msra.mxu0 0
      %3944 = vmatprep.subr.bf16.mxu0 0
      %3945 = vmatpush2.bf16.msra.mxu0 0
      %3946 = vmatprep.subr.bf16.mxu0 0
      %3947 = vmatpush2.bf16.msra.mxu0 0
      %3948 = vmatprep.subr.bf16.mxu0 0
      %3949 = vmatpush2.bf16.msra.mxu0 0
      %3950 = vmatprep.subr.bf16.mxu0 0
      %3951 = vmatpush2.bf16.msra.mxu0 0
      %3952 = vmatprep.mubr.bf16.mxu0 0
      %3953 = vmatmul.mubr.bf16.gmra.mxu0 %v3840
      %v3954 = vpop.f32.mrf.mxu0
      %v3955 = vadd.f32 0.0, %v3954
      %v3956 = vpop.f32.mrf.mxu0
      %v3957 = vpop.f32.mrf.mxu0
      %v3958 = vadd.f32 0.0, %v3957
      %v3959 = vpop.f32.mrf.mxu0
      %3960 = vmatprep.mubr.bf16.mxu0 0
      %3961 = vmatmul.mubr.bf16.gmra.mxu0 %v3841
      %v3962 = vpop.f32.mrf.mxu0
      %v3963 = vadd.f32 0.0, %v3962
      %v3964 = vpop.f32.mrf.mxu0
      %v3965 = vpop.f32.mrf.mxu0
      %v3966 = vadd.f32 0.0, %v3965
      %v3967 = vpop.f32.mrf.mxu0
      %3968 = vmatprep.mubr.bf16.mxu0 0
      %3969 = vmatmul.mubr.bf16.gmra.mxu0 %v3842
      %v3970 = vpop.f32.mrf.mxu0
      %v3971 = vadd.f32 0.0, %v3970
      %v3972 = vpop.f32.mrf.mxu0
      %v3973 = vpop.f32.mrf.mxu0
      %v3974 = vadd.f32 0.0, %v3973
      %v3975 = vpop.f32.mrf.mxu0
      %3976 = vmatprep.mubr.bf16.mxu0 0
      %3977 = vmatmul.mubr.bf16.gmra.mxu0 %v3843
      %v3978 = vpop.f32.mrf.mxu0
      %v3979 = vadd.f32 0.0, %v3978
      %v3980 = vpop.f32.mrf.mxu0
      %v3981 = vpop.f32.mrf.mxu0
      %v3982 = vadd.f32 0.0, %v3981
      %v3983 = vpop.f32.mrf.mxu0
      %3984 = vmatprep.mubr.bf16.mxu0 0
      %3985 = vmatmul.mubr.bf16.gmra.mxu0 %v3844
      %v3986 = vpop.f32.mrf.mxu0
      %v3987 = vadd.f32 0.0, %v3986
      %v3988 = vpop.f32.mrf.mxu0
      %v3989 = vpop.f32.mrf.mxu0
      %v3990 = vadd.f32 0.0, %v3989
      %v3991 = vpop.f32.mrf.mxu0
      %3992 = vmatprep.mubr.bf16.mxu0 0
      %3993 = vmatmul.mubr.bf16.gmra.mxu0 %v3845
      %v3994 = vpop.f32.mrf.mxu0
      %v3995 = vadd.f32 0.0, %v3994
      %v3996 = vpop.f32.mrf.mxu0
      %v3997 = vpop.f32.mrf.mxu0
      %v3998 = vadd.f32 0.0, %v3997
      %v3999 = vpop.f32.mrf.mxu0
      %4000 = vmatprep.mubr.bf16.mxu0 0
      %4001 = vmatmul.mubr.bf16.gmra.mxu0 %v3846
      %v4002 = vpop.f32.mrf.mxu0
      %v4003 = vadd.f32 0.0, %v4002
      %v4004 = vpop.f32.mrf.mxu0
      %v4005 = vpop.f32.mrf.mxu0
      %v4006 = vadd.f32 0.0, %v4005
      %v4007 = vpop.f32.mrf.mxu0
      %4008 = vmatprep.mubr.bf16.mxu0 0
      %4009 = vmatmul.mubr.bf16.gmra.mxu0 %v3847
      %v4010 = vpop.f32.mrf.mxu0
      %v4011 = vadd.f32 0.0, %v4010
      %v4012 = vpop.f32.mrf.mxu0
      %v4013 = vpop.f32.mrf.mxu0
      %v4014 = vadd.f32 0.0, %v4013
      %v4015 = vpop.f32.mrf.mxu0
      %4016 = vmatprep.mubr.bf16.mxu0 0
      %4017 = vmatmul.mubr.bf16.gmra.mxu0 %v3848
      %v4018 = vpop.f32.mrf.mxu0
      %v4019 = vadd.f32 0.0, %v4018
      %v4020 = vpop.f32.mrf.mxu0
      %v4021 = vpop.f32.mrf.mxu0
      %v4022 = vadd.f32 0.0, %v4021
      %v4023 = vpop.f32.mrf.mxu0
      %4024 = vmatprep.mubr.bf16.mxu0 0
      %4025 = vmatmul.mubr.bf16.gmra.mxu0 %v3849
      %v4026 = vpop.f32.mrf.mxu0
      %v4027 = vadd.f32 0.0, %v4026
      %v4028 = vpop.f32.mrf.mxu0
      %v4029 = vpop.f32.mrf.mxu0
      %v4030 = vadd.f32 0.0, %v4029
      %v4031 = vpop.f32.mrf.mxu0
      %4032 = vmatprep.mubr.bf16.mxu0 0
      %4033 = vmatmul.mubr.bf16.gmra.mxu0 %v3850
      %v4034 = vpop.f32.mrf.mxu0
      %v4035 = vadd.f32 0.0, %v4034
      %v4036 = vpop.f32.mrf.mxu0
      %v4037 = vpop.f32.mrf.mxu0
      %v4038 = vadd.f32 0.0, %v4037
      %v4039 = vpop.f32.mrf.mxu0
      %4040 = vmatprep.mubr.bf16.mxu0 0
      %4041 = vmatmul.mubr.bf16.gmra.mxu0 %v3851
      %v4042 = vpop.f32.mrf.mxu0
      %v4043 = vadd.f32 0.0, %v4042
      %v4044 = vpop.f32.mrf.mxu0
      %v4045 = vpop.f32.mrf.mxu0
      %v4046 = vadd.f32 0.0, %v4045
      %v4047 = vpop.f32.mrf.mxu0
      %4048 = vmatprep.mubr.bf16.mxu0 0
      %4049 = vmatmul.mubr.bf16.gmra.mxu0 %v3852
      %v4050 = vpop.f32.mrf.mxu0
      %v4051 = vadd.f32 0.0, %v4050
      %v4052 = vpop.f32.mrf.mxu0
      %v4053 = vpop.f32.mrf.mxu0
      %v4054 = vadd.f32 0.0, %v4053
      %v4055 = vpop.f32.mrf.mxu0
      %4056 = vmatprep.mubr.bf16.mxu0 0
      %4057 = vmatmul.mubr.bf16.gmra.mxu0 %v3853
      %v4058 = vpop.f32.mrf.mxu0
      %v4059 = vadd.f32 0.0, %v4058
      %v4060 = vpop.f32.mrf.mxu0
      %v4061 = vpop.f32.mrf.mxu0
      %v4062 = vadd.f32 0.0, %v4061
      %v4063 = vpop.f32.mrf.mxu0
      %4064 = vmatprep.mubr.bf16.mxu0 0
      %4065 = vmatmul.mubr.bf16.gmra.mxu0 %v3854
      %v4066 = vpop.f32.mrf.mxu0
      %v4067 = vadd.f32 0.0, %v4066
      %v4068 = vpop.f32.mrf.mxu0
      %v4069 = vpop.f32.mrf.mxu0
      %v4070 = vadd.f32 0.0, %v4069
      %v4071 = vpop.f32.mrf.mxu0
      %4072 = vmatprep.mubr.bf16.mxu0 0
      %4073 = vmatmul.mubr.bf16.gmra.mxu0 %v3855
      %v4074 = vpop.f32.mrf.mxu0
      %v4075 = vadd.f32 0.0, %v4074
      %v4076 = vpop.f32.mrf.mxu0
      %v4077 = vpop.f32.mrf.mxu0
      %v4078 = vadd.f32 0.0, %v4077
      %v4079 = vpop.f32.mrf.mxu0
      %4080 = vdwg.mxu0
      %v4081 = vadd.f32 %v3776, %v3955
      %v4082 = vadd.f32 %v3777, %v3958
      %v4083 = vadd.f32 %v3778, %v3963
      %v4084 = vadd.f32 %v3779, %v3966
      %v4085 = vadd.f32 %v3780, %v3971
      %v4086 = vadd.f32 %v3781, %v3974
      %v4087 = vadd.f32 %v3782, %v3979
      %v4088 = vadd.f32 %v3783, %v3982
      %v4089 = vadd.f32 %v3784, %v3987
      %v4090 = vadd.f32 %v3785, %v3990
      %v4091 = vadd.f32 %v3786, %v3995
      %v4092 = vadd.f32 %v3787, %v3998
      %v4093 = vadd.f32 %v3788, %v4003
      %v4094 = vadd.f32 %v3789, %v4006
      %v4095 = vadd.f32 %v3790, %v4011
      %v4096 = vadd.f32 %v3791, %v4014
      %v4097 = vadd.f32 %v3792, %v4019
      %v4098 = vadd.f32 %v3793, %v4022
      %v4099 = vadd.f32 %v3794, %v4027
      %v4100 = vadd.f32 %v3795, %v4030
      %v4101 = vadd.f32 %v3796, %v4035
      %v4102 = vadd.f32 %v3797, %v4038
      %v4103 = vadd.f32 %v3798, %v4043
      %v4104 = vadd.f32 %v3799, %v4046
      %v4105 = vadd.f32 %v3800, %v4051
      %v4106 = vadd.f32 %v3801, %v4054
      %v4107 = vadd.f32 %v3802, %v4059
      %v4108 = vadd.f32 %v3803, %v4062
      %v4109 = vadd.f32 %v3804, %v4067
      %v4110 = vadd.f32 %v3805, %v4070
      %v4111 = vadd.f32 %v3806, %v4075
      %v4112 = vadd.f32 %v3807, %v4078
      %v4113 = vld [vmem:[#allocation2 + $0x113] sm:$0xff]
      %v4114 = vld [vmem:[#allocation2 + $0x11b] sm:$0xff]
      %v4115 = vld [vmem:[#allocation2 + $0x123] sm:$0xff]
      %v4116 = vld [vmem:[#allocation2 + $0x12b] sm:$0xff]
      %v4117 = vld [vmem:[#allocation2 + $0x133] sm:$0xff]
      %v4118 = vld [vmem:[#allocation2 + $0x13b] sm:$0xff]
      %v4119 = vld [vmem:[#allocation2 + $0x143] sm:$0xff]
      %v4120 = vld [vmem:[#allocation2 + $0x14b] sm:$0xff]
      %v4121 = vld [vmem:[#allocation2 + $0x153] sm:$0xff]
      %v4122 = vld [vmem:[#allocation2 + $0x15b] sm:$0xff]
      %v4123 = vld [vmem:[#allocation2 + $0x163] sm:$0xff]
      %v4124 = vld [vmem:[#allocation2 + $0x16b] sm:$0xff]
      %v4125 = vld [vmem:[#allocation2 + $0x173] sm:$0xff]
      %v4126 = vld [vmem:[#allocation2 + $0x17b] sm:$0xff]
      %v4127 = vld [vmem:[#allocation2 + $0x183] sm:$0xff]
      %v4128 = vld [vmem:[#allocation2 + $0x18b] sm:$0xff]
      %v4129 = vld [vmem:[#allocation2 + $0x193] sm:$0xff]
      %v4130 = vld [vmem:[#allocation2 + $0x19b] sm:$0xff]
      %v4131 = vld [vmem:[#allocation2 + $0x1a3] sm:$0xff]
      %v4132 = vld [vmem:[#allocation2 + $0x1ab] sm:$0xff]
      %v4133 = vld [vmem:[#allocation2 + $0x1b3] sm:$0xff]
      %v4134 = vld [vmem:[#allocation2 + $0x1bb] sm:$0xff]
      %v4135 = vld [vmem:[#allocation2 + $0x1c3] sm:$0xff]
      %v4136 = vld [vmem:[#allocation2 + $0x1cb] sm:$0xff]
      %v4137 = vld [vmem:[#allocation2 + $0x1d3] sm:$0xff]
      %v4138 = vld [vmem:[#allocation2 + $0x1db] sm:$0xff]
      %v4139 = vld [vmem:[#allocation2 + $0x1e3] sm:$0xff]
      %v4140 = vld [vmem:[#allocation2 + $0x1eb] sm:$0xff]
      %v4141 = vld [vmem:[#allocation2 + $0x1f3] sm:$0xff]
      %v4142 = vld [vmem:[#allocation2 + $0x1fb] sm:$0xff]
      %v4143 = vld [vmem:[#allocation2 + $0x203] sm:$0xff]
      %v4144 = vld [vmem:[#allocation2 + $0x20b] sm:$0xff]
      %v4145 = vpack.c.bf16 %v4114, %v4113
      %v4146 = vpack.c.bf16 %v4116, %v4115
      %v4147 = vpack.c.bf16 %v4118, %v4117
      %v4148 = vpack.c.bf16 %v4120, %v4119
      %v4149 = vpack.c.bf16 %v4122, %v4121
      %v4150 = vpack.c.bf16 %v4124, %v4123
      %v4151 = vpack.c.bf16 %v4126, %v4125
      %v4152 = vpack.c.bf16 %v4128, %v4127
      %v4153 = vpack.c.bf16 %v4130, %v4129
      %v4154 = vpack.c.bf16 %v4132, %v4131
      %v4155 = vpack.c.bf16 %v4134, %v4133
      %v4156 = vpack.c.bf16 %v4136, %v4135
      %v4157 = vpack.c.bf16 %v4138, %v4137
      %v4158 = vpack.c.bf16 %v4140, %v4139
      %v4159 = vpack.c.bf16 %v4142, %v4141
      %v4160 = vpack.c.bf16 %v4144, %v4143
      %v4161 = vld [vmem:[%s8 + $0x200] sm:$0xf]
      %v4162 = vld [vmem:[%s8 + $0x204] sm:$0xf]
      %v4163 = vld [vmem:[%s8 + $0x208] sm:$0xf]
      %v4164 = vld [vmem:[%s8 + $0x20c] sm:$0xf]
      %v4165 = vld [vmem:[%s8 + $0x210] sm:$0xf]
      %v4166 = vld [vmem:[%s8 + $0x214] sm:$0xf]
      %v4167 = vld [vmem:[%s8 + $0x218] sm:$0xf]
      %v4168 = vld [vmem:[%s8 + $0x21c] sm:$0xf]
      %v4169 = vld [vmem:[%s8 + $0x220] sm:$0xf]
      %v4170 = vld [vmem:[%s8 + $0x224] sm:$0xf]
      %v4171 = vld [vmem:[%s8 + $0x228] sm:$0xf]
      %v4172 = vld [vmem:[%s8 + $0x22c] sm:$0xf]
      %v4173 = vld [vmem:[%s8 + $0x230] sm:$0xf]
      %v4174 = vld [vmem:[%s8 + $0x234] sm:$0xf]
      %v4175 = vld [vmem:[%s8 + $0x238] sm:$0xf]
      %v4176 = vld [vmem:[%s8 + $0x23c] sm:$0xf]
      %v4193 = vunpack.c.l.b16 %v4161
      %v4194 = vunpack.c.l.b16 %v4162
      %v4195 = vunpack.c.l.b16 %v4163
      %v4196 = vunpack.c.l.b16 %v4164
      %v4197 = vunpack.c.l.b16 %v4165
      %v4198 = vunpack.c.l.b16 %v4166
      %v4199 = vunpack.c.l.b16 %v4167
      %v4200 = vunpack.c.l.b16 %v4168
      %v4201 = vunpack.c.l.b16 %v4169
      %v4202 = vunpack.c.l.b16 %v4170
      %v4203 = vunpack.c.l.b16 %v4171
      %v4204 = vunpack.c.l.b16 %v4172
      %v4205 = vunpack.c.l.b16 %v4173
      %v4206 = vunpack.c.l.b16 %v4174
      %v4207 = vunpack.c.l.b16 %v4175
      %v4208 = vunpack.c.l.b16 %v4176
      %v4209 = vpack.c.b16 %v4194, %v4193
      %v4210 = vpack.c.b16 %v4196, %v4195
      %v4211 = vpack.c.b16 %v4198, %v4197
      %v4212 = vpack.c.b16 %v4200, %v4199
      %v4213 = vpack.c.b16 %v4202, %v4201
      %v4214 = vpack.c.b16 %v4204, %v4203
      %v4215 = vpack.c.b16 %v4206, %v4205
      %v4216 = vpack.c.b16 %v4208, %v4207
      %4225 = vmatprep.subr.bf16.mxu0 0
      %4226 = vmatpush1.bf16.msra.mxu0 %v4216
      %4227 = vmatprep.subr.bf16.mxu0 0
      %4228 = vmatpush1.bf16.msra.mxu0 %v4215
      %4229 = vmatprep.subr.bf16.mxu0 0
      %4230 = vmatpush1.bf16.msra.mxu0 %v4214
      %4231 = vmatprep.subr.bf16.mxu0 0
      %4232 = vmatpush1.bf16.msra.mxu0 %v4213
      %4233 = vmatprep.subr.bf16.mxu0 0
      %4234 = vmatpush1.bf16.msra.mxu0 %v4212
      %4235 = vmatprep.subr.bf16.mxu0 0
      %4236 = vmatpush1.bf16.msra.mxu0 %v4211
      %4237 = vmatprep.subr.bf16.mxu0 0
      %4238 = vmatpush1.bf16.msra.mxu0 %v4210
      %4239 = vmatprep.subr.bf16.mxu0 0
      %4240 = vmatpush1.bf16.msra.mxu0 %v4209
      %4241 = vmatprep.subr.bf16.mxu0 0
      %4242 = vmatpush2.bf16.msra.mxu0 0
      %4243 = vmatprep.subr.bf16.mxu0 0
      %4244 = vmatpush2.bf16.msra.mxu0 0
      %4245 = vmatprep.subr.bf16.mxu0 0
      %4246 = vmatpush2.bf16.msra.mxu0 0
      %4247 = vmatprep.subr.bf16.mxu0 0
      %4248 = vmatpush2.bf16.msra.mxu0 0
      %4249 = vmatprep.subr.bf16.mxu0 0
      %4250 = vmatpush2.bf16.msra.mxu0 0
      %4251 = vmatprep.subr.bf16.mxu0 0
      %4252 = vmatpush2.bf16.msra.mxu0 0
      %4253 = vmatprep.subr.bf16.mxu0 0
      %4254 = vmatpush2.bf16.msra.mxu0 0
      %4255 = vmatprep.subr.bf16.mxu0 0
      %4256 = vmatpush2.bf16.msra.mxu0 0
      %4257 = vmatprep.mubr.bf16.mxu0 0
      %4258 = vmatmul.mubr.bf16.gmra.mxu0 %v4145
      %v4259 = vpop.f32.mrf.mxu0
      %v4260 = vadd.f32 0.0, %v4259
      %v4261 = vpop.f32.mrf.mxu0
      %v4262 = vpop.f32.mrf.mxu0
      %v4263 = vadd.f32 0.0, %v4262
      %v4264 = vpop.f32.mrf.mxu0
      %4265 = vmatprep.mubr.bf16.mxu0 0
      %4266 = vmatmul.mubr.bf16.gmra.mxu0 %v4146
      %v4267 = vpop.f32.mrf.mxu0
      %v4268 = vadd.f32 0.0, %v4267
      %v4269 = vpop.f32.mrf.mxu0
      %v4270 = vpop.f32.mrf.mxu0
      %v4271 = vadd.f32 0.0, %v4270
      %v4272 = vpop.f32.mrf.mxu0
      %4273 = vmatprep.mubr.bf16.mxu0 0
      %4274 = vmatmul.mubr.bf16.gmra.mxu0 %v4147
      %v4275 = vpop.f32.mrf.mxu0
      %v4276 = vadd.f32 0.0, %v4275
      %v4277 = vpop.f32.mrf.mxu0
      %v4278 = vpop.f32.mrf.mxu0
      %v4279 = vadd.f32 0.0, %v4278
      %v4280 = vpop.f32.mrf.mxu0
      %4281 = vmatprep.mubr.bf16.mxu0 0
      %4282 = vmatmul.mubr.bf16.gmra.mxu0 %v4148
      %v4283 = vpop.f32.mrf.mxu0
      %v4284 = vadd.f32 0.0, %v4283
      %v4285 = vpop.f32.mrf.mxu0
      %v4286 = vpop.f32.mrf.mxu0
      %v4287 = vadd.f32 0.0, %v4286
      %v4288 = vpop.f32.mrf.mxu0
      %4289 = vmatprep.mubr.bf16.mxu0 0
      %4290 = vmatmul.mubr.bf16.gmra.mxu0 %v4149
      %v4291 = vpop.f32.mrf.mxu0
      %v4292 = vadd.f32 0.0, %v4291
      %v4293 = vpop.f32.mrf.mxu0
      %v4294 = vpop.f32.mrf.mxu0
      %v4295 = vadd.f32 0.0, %v4294
      %v4296 = vpop.f32.mrf.mxu0
      %4297 = vmatprep.mubr.bf16.mxu0 0
      %4298 = vmatmul.mubr.bf16.gmra.mxu0 %v4150
      %v4299 = vpop.f32.mrf.mxu0
      %v4300 = vadd.f32 0.0, %v4299
      %v4301 = vpop.f32.mrf.mxu0
      %v4302 = vpop.f32.mrf.mxu0
      %v4303 = vadd.f32 0.0, %v4302
      %v4304 = vpop.f32.mrf.mxu0
      %4305 = vmatprep.mubr.bf16.mxu0 0
      %4306 = vmatmul.mubr.bf16.gmra.mxu0 %v4151
      %v4307 = vpop.f32.mrf.mxu0
      %v4308 = vadd.f32 0.0, %v4307
      %v4309 = vpop.f32.mrf.mxu0
      %v4310 = vpop.f32.mrf.mxu0
      %v4311 = vadd.f32 0.0, %v4310
      %v4312 = vpop.f32.mrf.mxu0
      %4313 = vmatprep.mubr.bf16.mxu0 0
      %4314 = vmatmul.mubr.bf16.gmra.mxu0 %v4152
      %v4315 = vpop.f32.mrf.mxu0
      %v4316 = vadd.f32 0.0, %v4315
      %v4317 = vpop.f32.mrf.mxu0
      %v4318 = vpop.f32.mrf.mxu0
      %v4319 = vadd.f32 0.0, %v4318
      %v4320 = vpop.f32.mrf.mxu0
      %4321 = vmatprep.mubr.bf16.mxu0 0
      %4322 = vmatmul.mubr.bf16.gmra.mxu0 %v4153
      %v4323 = vpop.f32.mrf.mxu0
      %v4324 = vadd.f32 0.0, %v4323
      %v4325 = vpop.f32.mrf.mxu0
      %v4326 = vpop.f32.mrf.mxu0
      %v4327 = vadd.f32 0.0, %v4326
      %v4328 = vpop.f32.mrf.mxu0
      %4329 = vmatprep.mubr.bf16.mxu0 0
      %4330 = vmatmul.mubr.bf16.gmra.mxu0 %v4154
      %v4331 = vpop.f32.mrf.mxu0
      %v4332 = vadd.f32 0.0, %v4331
      %v4333 = vpop.f32.mrf.mxu0
      %v4334 = vpop.f32.mrf.mxu0
      %v4335 = vadd.f32 0.0, %v4334
      %v4336 = vpop.f32.mrf.mxu0
      %4337 = vmatprep.mubr.bf16.mxu0 0
      %4338 = vmatmul.mubr.bf16.gmra.mxu0 %v4155
      %v4339 = vpop.f32.mrf.mxu0
      %v4340 = vadd.f32 0.0, %v4339
      %v4341 = vpop.f32.mrf.mxu0
      %v4342 = vpop.f32.mrf.mxu0
      %v4343 = vadd.f32 0.0, %v4342
      %v4344 = vpop.f32.mrf.mxu0
      %4345 = vmatprep.mubr.bf16.mxu0 0
      %4346 = vmatmul.mubr.bf16.gmra.mxu0 %v4156
      %v4347 = vpop.f32.mrf.mxu0
      %v4348 = vadd.f32 0.0, %v4347
      %v4349 = vpop.f32.mrf.mxu0
      %v4350 = vpop.f32.mrf.mxu0
      %v4351 = vadd.f32 0.0, %v4350
      %v4352 = vpop.f32.mrf.mxu0
      %4353 = vmatprep.mubr.bf16.mxu0 0
      %4354 = vmatmul.mubr.bf16.gmra.mxu0 %v4157
      %v4355 = vpop.f32.mrf.mxu0
      %v4356 = vadd.f32 0.0, %v4355
      %v4357 = vpop.f32.mrf.mxu0
      %v4358 = vpop.f32.mrf.mxu0
      %v4359 = vadd.f32 0.0, %v4358
      %v4360 = vpop.f32.mrf.mxu0
      %4361 = vmatprep.mubr.bf16.mxu0 0
      %4362 = vmatmul.mubr.bf16.gmra.mxu0 %v4158
      %v4363 = vpop.f32.mrf.mxu0
      %v4364 = vadd.f32 0.0, %v4363
      %v4365 = vpop.f32.mrf.mxu0
      %v4366 = vpop.f32.mrf.mxu0
      %v4367 = vadd.f32 0.0, %v4366
      %v4368 = vpop.f32.mrf.mxu0
      %4369 = vmatprep.mubr.bf16.mxu0 0
      %4370 = vmatmul.mubr.bf16.gmra.mxu0 %v4159
      %v4371 = vpop.f32.mrf.mxu0
      %v4372 = vadd.f32 0.0, %v4371
      %v4373 = vpop.f32.mrf.mxu0
      %v4374 = vpop.f32.mrf.mxu0
      %v4375 = vadd.f32 0.0, %v4374
      %v4376 = vpop.f32.mrf.mxu0
      %4377 = vmatprep.mubr.bf16.mxu0 0
      %4378 = vmatmul.mubr.bf16.gmra.mxu0 %v4160
      %v4379 = vpop.f32.mrf.mxu0
      %v4380 = vadd.f32 0.0, %v4379
      %v4381 = vpop.f32.mrf.mxu0
      %v4382 = vpop.f32.mrf.mxu0
      %v4383 = vadd.f32 0.0, %v4382
      %v4384 = vpop.f32.mrf.mxu0
      %4385 = vdwg.mxu0
      %v4386 = vadd.f32 %v4081, %v4260
      %v4387 = vadd.f32 %v4082, %v4263
      %v4388 = vadd.f32 %v4083, %v4268
      %v4389 = vadd.f32 %v4084, %v4271
      %v4390 = vadd.f32 %v4085, %v4276
      %v4391 = vadd.f32 %v4086, %v4279
      %v4392 = vadd.f32 %v4087, %v4284
      %v4393 = vadd.f32 %v4088, %v4287
      %v4394 = vadd.f32 %v4089, %v4292
      %v4395 = vadd.f32 %v4090, %v4295
      %v4396 = vadd.f32 %v4091, %v4300
      %v4397 = vadd.f32 %v4092, %v4303
      %v4398 = vadd.f32 %v4093, %v4308
      %v4399 = vadd.f32 %v4094, %v4311
      %v4400 = vadd.f32 %v4095, %v4316
      %v4401 = vadd.f32 %v4096, %v4319
      %v4402 = vadd.f32 %v4097, %v4324
      %v4403 = vadd.f32 %v4098, %v4327
      %v4404 = vadd.f32 %v4099, %v4332
      %v4405 = vadd.f32 %v4100, %v4335
      %v4406 = vadd.f32 %v4101, %v4340
      %v4407 = vadd.f32 %v4102, %v4343
      %v4408 = vadd.f32 %v4103, %v4348
      %v4409 = vadd.f32 %v4104, %v4351
      %v4410 = vadd.f32 %v4105, %v4356
      %v4411 = vadd.f32 %v4106, %v4359
      %v4412 = vadd.f32 %v4107, %v4364
      %v4413 = vadd.f32 %v4108, %v4367
      %v4414 = vadd.f32 %v4109, %v4372
      %v4415 = vadd.f32 %v4110, %v4375
      %v4416 = vadd.f32 %v4111, %v4380
      %v4417 = vadd.f32 %v4112, %v4383
      %4418 = vst [vmem:[%s472] sm:$0xff] %v4386
      %4419 = vst [vmem:[%s472 + $0x8] sm:$0xff] %v4387
      %4420 = vst [vmem:[%s472 + $0x10] sm:$0xff] %v4388
      %4421 = vst [vmem:[%s472 + $0x18] sm:$0xff] %v4389
      %4422 = vst [vmem:[%s472 + $0x20] sm:$0xff] %v4390
      %4423 = vst [vmem:[%s472 + $0x28] sm:$0xff] %v4391
      %4424 = vst [vmem:[%s472 + $0x30] sm:$0xff] %v4392
      %4425 = vst [vmem:[%s472 + $0x38] sm:$0xff] %v4393
      %4426 = vst [vmem:[%s472 + $0x40] sm:$0xff] %v4394
      %4427 = vst [vmem:[%s472 + $0x48] sm:$0xff] %v4395
      %4428 = vst [vmem:[%s472 + $0x50] sm:$0xff] %v4396
      %4429 = vst [vmem:[%s472 + $0x58] sm:$0xff] %v4397
      %4430 = vst [vmem:[%s472 + $0x60] sm:$0xff] %v4398
      %4431 = vst [vmem:[%s472 + $0x68] sm:$0xff] %v4399
      %4432 = vst [vmem:[%s472 + $0x70] sm:$0xff] %v4400
      %4433 = vst [vmem:[%s472 + $0x78] sm:$0xff] %v4401
      %4434 = vst [vmem:[%s472 + $0x80] sm:$0xff] %v4402
      %4435 = vst [vmem:[%s472 + $0x88] sm:$0xff] %v4403
      %4436 = vst [vmem:[%s472 + $0x90] sm:$0xff] %v4404
      %4437 = vst [vmem:[%s472 + $0x98] sm:$0xff] %v4405
      %4438 = vst [vmem:[%s472 + $0xa0] sm:$0xff] %v4406
      %4439 = vst [vmem:[%s472 + $0xa8] sm:$0xff] %v4407
      %4440 = vst [vmem:[%s472 + $0xb0] sm:$0xff] %v4408
      %4441 = vst [vmem:[%s472 + $0xb8] sm:$0xff] %v4409
      %4442 = vst [vmem:[%s472 + $0xc0] sm:$0xff] %v4410
      %4443 = vst [vmem:[%s472 + $0xc8] sm:$0xff] %v4411
      %4444 = vst [vmem:[%s472 + $0xd0] sm:$0xff] %v4412
      %4445 = vst [vmem:[%s472 + $0xd8] sm:$0xff] %v4413
      %4446 = vst [vmem:[%s472 + $0xe0] sm:$0xff] %v4414
      %4447 = vst [vmem:[%s472 + $0xe8] sm:$0xff] %v4415
      %4448 = vst [vmem:[%s472 + $0xf0] sm:$0xff] %v4416
      %4449 = vst [vmem:[%s472 + $0xf8] sm:$0xff] %v4417
      %s4450 = smul.u32 32, %s20
      %p4451 = scmp.lt.s32.totalorder %s4450, 95
      %s4452 = scalar_select %p4451, %s4450, 95
      %s4453 = smul.addr %s4452, 8
      %s4454 = scalar_lea.vmem %s9, %s4453
      // Predicated region
      $region57: #{forward.3} parent=55 // pred_check
        %p4455 = pneg %p265
      $region58: #{forward.3} parent=55 // pred_check_branch
        %4457 = sbr.rel (%p4455) target = $region60
      $region59: #{forward.3} parent=55 // pred_region
        %s4458 = smul.u32 32, %s20
      $region60: #{forward.3} parent=55 // pred_fallthru
        _
    $region56: #{forward.3} parent=5 // pred_fallthru
      _
    %p4459 = scmp.le.s32.totalorder 2, %s15
    // Predicated region
    $region61: #{forward.3} parent=5 // pred_check
      %p4460 = pneg %p4459
    $region62: #{forward.3} parent=5 // pred_check_branch
      %4462 = sbr.rel (%p4460) target = $region64
    $region63: #{forward.3} parent=5 // pred_region
      %s4463 = ssub.s32 %s15, 2
      // Predicated region
      $region65: #{forward.3} parent=63 // pred_check
        %p4464 = pneg %p271
      $region66: #{forward.3} parent=63 // pred_check_branch
        %4466 = sbr.rel (%p4464) target = $region68
      $region67: #{forward.3} parent=63 // pred_region
        %s4467 = smul.u32 32, %s21
        %p4468 = scmp.lt.s32.totalorder %s4467, 95
        %s4469 = scalar_select %p4468, %s4467, 95
        %s4470 = smul.addr %s4469, 8
        %s4471 = scalar_lea.vmem %s9, %s4470
      $region68: #{forward.3} parent=63 // pred_fallthru
        _
    $region64: #{forward.3} parent=5 // pred_fallthru
      _
  $region6: #{forward.3} parent=0 // loop_footer
    %s19 = sadd.s32 1, %s15
  $region7: #{forward.3} parent=0 // loop_footer_branch
    %14 = sbr.rel target = $region3
  $region8: #{forward.3} parent=0 // loop_exit
    _

</llo_original>
